<compile_context>
chip_gen: v7x
topology: tpu7x:2x2x1
jax: 0.10.0
libtpu: 0.0.40
codegen_flags: <defaults>
</compile_context>

<pallas_src>
import jax
import jax.numpy as jnp
import numpy as np
from jax import lax
from jax.experimental import pallas as pl
from jax.experimental.pallas import tpu as pltpu


# ----------------------------- in-kernel helpers ----------------------------

def _sel_matrices(w_in, w_out):
    """Four constant (w_out, w_in) 0/1 matrices.  S[dj][o, w] == 1 iff w == 2*o + dj.

    Multiplying S[dj] @ row gathers columns {dj, dj+2, ...} of a stride-2,
    kernel-4 conv window (exact: one nonzero per output row, f32 accumulate).
    """
    o = lax.broadcasted_iota(jnp.int32, (w_out, w_in), 0)
    w = lax.broadcasted_iota(jnp.int32, (w_out, w_in), 1)
    return [jnp.where(w == 2 * o + dj, 1.0, 0.0).astype(jnp.bfloat16)
            for dj in range(4)]


# ------------------------------- Pallas kernel ------------------------------

def _encoder_kernel(p1_ref, w1_ref, b1_ref, w2_ref, b2_ref, w3_ref, b3_ref,
                    w4_ref, b4_ref, out_ref, a1_ref, a2_ref, a3_ref):
    """Whole encoder forward for one image (grid step = one batch element).

    p1_ref : (31, 31, 48)  layer-1 im2col patches (f32)
    wN_ref : layer weights (bf16); w1 as (48, C1), layers 2-4 as (16, Cin, Cout)
             with tap index t = kh*4 + kw.
    bN_ref : (1, Cn) biases (f32)
    out_ref: (2, 2, C4) f32 NHWC output block
    aN_ref : bf16 VMEM scratches holding the NHWC activations of layers 1-3.
    """
    f32 = jnp.float32
    bf16 = jnp.bfloat16

    # ---------------- layer 1: (31, 48) @ (48, C1) per output row ----------------
    w1 = w1_ref[...]
    b1 = b1_ref[...]

    def l1_body(oh, carry):
        row = p1_ref[oh].astype(bf16)                          # (31, 48)
        y = jnp.dot(row, w1, preferred_element_type=f32)       # (31, C1)
        a1_ref[oh] = jnp.maximum(y + b1, 0.0).astype(bf16)
        return carry

    lax.fori_loop(0, 31, l1_body, 0)

    # ------ layers 2..4: stride-2 4x4 conv on an (H, W, C) bf16 scratch ------
    def make_row_fn(x_ref, w_ref, b_ref, sel):
        b = b_ref[...]

        def row_fn(oh):
            acc = None
            for di in range(4):                                # kernel row
                row = x_ref[2 * oh + di]                       # (W_in, C_in)
                for dj in range(4):                            # kernel col
                    g = jnp.dot(sel[dj], row,
                                preferred_element_type=f32)    # (OW, C_in)
                    c = jnp.dot(g.astype(bf16), w_ref[4 * di + dj],
                                preferred_element_type=f32)    # (OW, C_out)
                    acc = c if acc is None else acc + c
            return jnp.maximum(acc + b, 0.0)

        return row_fn

    # layer 2: (31, 31, C1) -> (14, 14, C2)
    row2 = make_row_fn(a1_ref, w2_ref, b2_ref, _sel_matrices(31, 14))

    def l2_body(oh, carry):
        a2_ref[oh] = row2(oh).astype(bf16)
        return carry

    lax.fori_loop(0, 14, l2_body, 0)

    # layer 3: (14, 14, C2) -> (6, 6, C3)
    row3 = make_row_fn(a2_ref, w3_ref, b3_ref, _sel_matrices(14, 6))

    def l3_body(oh, carry):
        a3_ref[oh] = row3(oh).astype(bf16)
        return carry

    lax.fori_loop(0, 6, l3_body, 0)

    # layer 4: (6, 6, C3) -> (2, 2, C4), written straight to the output block
    row4 = make_row_fn(a3_ref, w4_ref, b4_ref, _sel_matrices(6, 2))
    for oh in range(2):
        out_ref[oh] = row4(oh)


# ------------------------------ wrapper / glue -------------------------------

def _im2col_layer1(x, k, s):
    """x: (B, C, H, W) -> (B, OH, OW, C*k*k); last dim flattened in (C, KH, KW)
    order, matching PyTorch weight.reshape(OC, IC*KH*KW)."""
    b, c, h, w = x.shape
    oh = (h - k) // s + 1
    ow = (w - k) // s + 1
    cols = []
    for i in range(k):
        for j in range(k):
            cols.append(x[:, :, i:i + s * oh:s, j:j + s * ow:s])
    p = jnp.stack(cols, axis=0).reshape(k, k, b, c, oh, ow)
    p = p.transpose(2, 4, 5, 3, 0, 1)                 # (B, OH, OW, C, KH, KW)
    return p.reshape(b, oh, ow, c * k * k)


def _tap_weights(w):
    """(OC, IC, 4, 4) -> (16, IC, OC) bf16, tap index = kh*4 + kw."""
    oc, ic = w.shape[0], w.shape[1]
    return w.transpose(2, 3, 1, 0).reshape(16, ic, oc).astype(jnp.bfloat16)


def conv_encoder_forward(params, image):
    """Matches ConvEncoder.forward: image (..., 3, 64, 64) -> (..., depth*32)."""
    lead = image.shape[:-3]
    x = image.reshape((-1,) + image.shape[-3:])       # (B, 3, 64, 64)
    assert x.shape[1:] == (3, 64, 64), x.shape
    bsz = x.shape[0]

    (w1, b1), (w2, b2), (w3, b3), (w4, b4) = params
    c1, c2, c3, c4 = w1.shape[0], w2.shape[0], w3.shape[0], w4.shape[0]
    kp = w1.shape[1] * 16                             # 3*4*4 = 48

    # Layer-1 im2col (tiny, done once in plain JAX); weights prepped for the MXU.
    patches = _im2col_layer1(x, k=4, s=2)             # (B, 31, 31, 48) f32
    w1m = w1.reshape(c1, kp).T.astype(jnp.bfloat16)   # (48, C1)
    w2t, w3t, w4t = _tap_weights(w2), _tap_weights(w3), _tap_weights(w4)
    b1r = b1.reshape(1, c1)
    b2r = b2.reshape(1, c2)
    b3r = b3.reshape(1, c3)
    b4r = b4.reshape(1, c4)

    out = pl.pallas_call(
        _encoder_kernel,
        out_shape=jax.ShapeDtypeStruct((bsz, 2, 2, c4), jnp.float32),
        grid_spec=pltpu.PrefetchScalarGridSpec(
            num_scalar_prefetch=0,
            grid=(bsz,),
            in_specs=[
                pl.BlockSpec((None, 31, 31, kp), lambda b: (b, 0, 0, 0)),
                pl.BlockSpec((kp, c1), lambda b: (0, 0)),
                pl.BlockSpec((1, c1), lambda b: (0, 0)),
                pl.BlockSpec((16, c1, c2), lambda b: (0, 0, 0)),
                pl.BlockSpec((1, c2), lambda b: (0, 0)),
                pl.BlockSpec((16, c2, c3), lambda b: (0, 0, 0)),
                pl.BlockSpec((1, c3), lambda b: (0, 0)),
                pl.BlockSpec((16, c3, c4), lambda b: (0, 0, 0)),
                pl.BlockSpec((1, c4), lambda b: (0, 0)),
            ],
            out_specs=pl.BlockSpec((None, 2, 2, c4), lambda b: (b, 0, 0, 0)),
            scratch_shapes=[
                pltpu.VMEM((31, 31, c1), jnp.bfloat16),   # layer-1 activations
                pltpu.VMEM((14, 14, c2), jnp.bfloat16),   # layer-2 activations
                pltpu.VMEM((6, 6, c3), jnp.bfloat16),     # layer-3 activations
            ],
        ),
        compiler_params=pltpu.CompilerParams(
            dimension_semantics=("parallel",),            # v7x: 2nd TC works too
            vmem_limit_bytes=32 * 1024 * 1024,
        ),
    )(patches, w1m, b1r, w2t, b2r, w3t, b3r, w4t, b4r)

    # Single NHWC -> NCHW flatten at the very end (matches x.view(B, -1)).
    emb = out.transpose(0, 3, 1, 2).reshape(bsz, -1)
    return emb.reshape(lead + (emb.shape[-1],))


# --------------------------------- params ------------------------------------

def init_conv_encoder_params(key, depth=32, kernels=(4, 4, 4, 4)):
    """Deterministic init mimicking PyTorch Conv2d defaults (uniform +-1/sqrt(fan_in))."""
    channels = [3, 1 * depth, 2 * depth, 4 * depth, 8 * depth]
    params = []
    for layer in range(4):
        ic, oc, k = channels[layer], channels[layer + 1], kernels[layer]
        key, kw_key, kb_key = jax.random.split(key, 3)
        fan_in = ic * k * k
        bound = 1.0 / np.sqrt(fan_in)
        w = jax.random.uniform(kw_key, (oc, ic, k, k), jnp.float32, -bound, bound)
        b = jax.random.uniform(kb_key, (oc,), jnp.float32, -bound, bound)
        params.append((w, b))
    return params


# ------------------------------- reference -----------------------------------

def conv_encoder_reference(params, image):
    x = image.reshape((-1,) + image.shape[-3:])
    for (w, b) in params:
        x = jax.lax.conv_general_dilated(
            x, w, window_strides=(2, 2), padding="VALID",
            dimension_numbers=("NCHW", "OIHW", "NCHW"),
            precision=jax.lax.Precision.HIGHEST)
        x = jax.nn.relu(x + b[None, :, None, None])
    x = x.reshape(x.shape[0], -1)
    return x.reshape(image.shape[:-3] + (x.shape[-1],))


# --------------------------------- main ---------------------------------------

if __name__ == "__main__":
    key = jax.random.PRNGKey(0)
    key, pkey, xkey = jax.random.split(key, 3)

    depth = 32
    params = init_conv_encoder_params(pkey, depth=depth)

    # obs['image'] : (batch=2, C=3, H=64, W=64)  (64x64 => embed = depth*32)
    image = jax.random.uniform(xkey, (2, 3, 64, 64), jnp.float32)

    fwd = jax.jit(conv_encoder_forward)
    out = jax.block_until_ready(fwd(params, image))
    assert out.shape == (2, depth * 32), out.shape

    ref = jax.block_until_ready(conv_encoder_reference(params, image))
    # Kernel uses bf16 MXU compute with f32 accumulation (no Precision.HIGHEST),
    # so compare against the f32 reference with a bf16-appropriate tolerance.
    np.testing.assert_allclose(np.asarray(out), np.asarray(ref),
                               rtol=2e-2, atol=2e-2)

    print("KERNEL_OK")
</pallas_src>

<mosaic_0001>
module attributes {stable_mosaic.version = 11 : i64} {
  func.func @_encoder_kernel(%arg0: i32, %arg1: memref<1x31x31x48xf32, #tpu.memory_space<vmem>>, %arg2: memref<48x32xbf16, #tpu.memory_space<vmem>>, %arg3: memref<1x32xf32, #tpu.memory_space<vmem>>, %arg4: memref<16x32x64xbf16, #tpu.memory_space<vmem>>, %arg5: memref<1x64xf32, #tpu.memory_space<vmem>>, %arg6: memref<16x64x128xbf16, #tpu.memory_space<vmem>>, %arg7: memref<1x128xf32, #tpu.memory_space<vmem>>, %arg8: memref<16x128x256xbf16, #tpu.memory_space<vmem>>, %arg9: memref<1x256xf32, #tpu.memory_space<vmem>>, %arg10: memref<1x2x2x256xf32, #tpu.memory_space<vmem>>, %arg11: memref<31x31x32xbf16, #tpu.memory_space<vmem>>, %arg12: memref<14x14x64xbf16, #tpu.memory_space<vmem>>, %arg13: memref<6x6x128xbf16, #tpu.memory_space<vmem>>) attributes {dimension_semantics = [#tpu.dimension_semantics<parallel>], iteration_bounds = array<i64: 2>, scalar_prefetch = 0 : i64, scratch_operands = 3 : i64, tpu.core_type = #tpu.core_type<tc>, window_params = [{transform_indices = @transform_0, window_bounds = array<i64: 1, 31, 31, 48>}, {pipeline_mode = #tpu.pipeline_mode<synchronous>, transform_indices = @transform_1, window_bounds = array<i64: 48, 32>}, {pipeline_mode = #tpu.pipeline_mode<synchronous>, transform_indices = @transform_2, window_bounds = array<i64: 1, 32>}, {pipeline_mode = #tpu.pipeline_mode<synchronous>, transform_indices = @transform_3, window_bounds = array<i64: 16, 32, 64>}, {pipeline_mode = #tpu.pipeline_mode<synchronous>, transform_indices = @transform_4, window_bounds = array<i64: 1, 64>}, {pipeline_mode = #tpu.pipeline_mode<synchronous>, transform_indices = @transform_5, window_bounds = array<i64: 16, 64, 128>}, {pipeline_mode = #tpu.pipeline_mode<synchronous>, transform_indices = @transform_6, window_bounds = array<i64: 1, 128>}, {pipeline_mode = #tpu.pipeline_mode<synchronous>, transform_indices = @transform_7, window_bounds = array<i64: 16, 128, 256>}, {pipeline_mode = #tpu.pipeline_mode<synchronous>, transform_indices = @transform_8, window_bounds = array<i64: 1, 256>}, {transform_indices = @transform_9, window_bounds = array<i64: 1, 2, 2, 256>}]} {
    %c0 = arith.constant 0 : index
    %c0_0 = arith.constant 0 : index
    %0 = vector.load %arg2[%c0, %c0_0] : memref<48x32xbf16, #tpu.memory_space<vmem>>, vector<48x32xbf16>
    %c0_1 = arith.constant 0 : index
    %c0_2 = arith.constant 0 : index
    %1 = vector.load %arg3[%c0_1, %c0_2] : memref<1x32xf32, #tpu.memory_space<vmem>>, vector<1x32xf32>
    %c0_i32 = arith.constant 0 : i32
    %c31_i32 = arith.constant 31 : i32
    %2 = arith.addi %c0_i32, %c31_i32 : i32
    %c1_i32 = arith.constant 1 : i32
    scf.for %arg14 = %c0_i32 to %2 step %c1_i32  : i32 {
      %c0_240 = arith.constant 0 : index
      %342 = arith.index_cast %arg14 : i32 to index
      %c0_241 = arith.constant 0 : index
      %c0_242 = arith.constant 0 : index
      %343 = vector.load %arg1[%c0_240, %342, %c0_241, %c0_242] : memref<1x31x31x48xf32, #tpu.memory_space<vmem>>, vector<1x1x31x48xf32>
      %344 = vector.shape_cast %343 : vector<1x1x31x48xf32> to vector<31x48xf32>
      %345 = arith.truncf %344 : vector<31x48xf32> to vector<31x48xbf16>
      %cst_243 = arith.constant dense<0.000000e+00> : vector<31x32xf32>
      %346 = tpu.matmul %345, %0, %cst_243 {dimension_numbers = #tpu.dot_dimension_numbers<[1], [0], [0], [1], [0, 0, 1, 1], [], []>} : vector<31x48xbf16>, vector<48x32xbf16>, vector<31x32xf32> -> vector<31x32xf32>
      %347 = vector.broadcast %1 : vector<1x32xf32> to vector<31x32xf32>
      %348 = arith.addf %346, %347 : vector<31x32xf32>
      %cst_244 = arith.constant 0.000000e+00 : f32
      %349 = vector.broadcast %cst_244 : f32 to vector<31x32xf32>
      %350 = arith.maximumf %348, %349 : vector<31x32xf32>
      %351 = arith.truncf %350 : vector<31x32xf32> to vector<31x32xbf16>
      %352 = arith.index_cast %arg14 : i32 to index
      %c0_245 = arith.constant 0 : index
      %c0_246 = arith.constant 0 : index
      %353 = vector.load %arg11[%352, %c0_245, %c0_246] : memref<31x31x32xbf16, #tpu.memory_space<vmem>>, vector<1x31x32xbf16>
      %354 = vector.shape_cast %353 : vector<1x31x32xbf16> to vector<31x32xbf16>
      %355 = vector.shape_cast %351 : vector<31x32xbf16> to vector<1x31x32xbf16>
      tpu.vector_store %arg11[%352, %c0_245, %c0_246], %355 {strides = array<i32>} : memref<31x31x32xbf16, #tpu.memory_space<vmem>>, vector<1x31x32xbf16>,
    }
    %c31_i32_3 = arith.constant 31 : i32
    %3 = tpu.iota {dimensions = array<i32: 0>} : vector<14x31xi32>
    %4 = tpu.iota {dimensions = array<i32: 1>} : vector<14x31xi32>
    %c2_i32 = arith.constant 2 : i32
    %5 = vector.broadcast %c2_i32 : i32 to vector<14x31xi32>
    %6 = arith.muli %5, %3 : vector<14x31xi32>
    %c0_i32_4 = arith.constant 0 : i32
    %7 = vector.broadcast %c0_i32_4 : i32 to vector<14x31xi32>
    %8 = arith.addi %6, %7 : vector<14x31xi32>
    %9 = arith.cmpi eq, %4, %8 : vector<14x31xi32>
    %cst = arith.constant 1.000000e+00 : f32
    %cst_5 = arith.constant 0.000000e+00 : f32
    %10 = vector.broadcast %cst : f32 to vector<14x31xf32>
    %11 = vector.broadcast %cst_5 : f32 to vector<14x31xf32>
    %12 = arith.select %9, %10, %11 : vector<14x31xi1>, vector<14x31xf32>
    %13 = arith.truncf %12 : vector<14x31xf32> to vector<14x31xbf16>
    %c2_i32_6 = arith.constant 2 : i32
    %14 = vector.broadcast %c2_i32_6 : i32 to vector<14x31xi32>
    %15 = arith.muli %14, %3 : vector<14x31xi32>
    %c1_i32_7 = arith.constant 1 : i32
    %16 = vector.broadcast %c1_i32_7 : i32 to vector<14x31xi32>
    %17 = arith.addi %15, %16 : vector<14x31xi32>
    %18 = arith.cmpi eq, %4, %17 : vector<14x31xi32>
    %cst_8 = arith.constant 1.000000e+00 : f32
    %cst_9 = arith.constant 0.000000e+00 : f32
    %19 = vector.broadcast %cst_8 : f32 to vector<14x31xf32>
    %20 = vector.broadcast %cst_9 : f32 to vector<14x31xf32>
    %21 = arith.select %18, %19, %20 : vector<14x31xi1>, vector<14x31xf32>
    %22 = arith.truncf %21 : vector<14x31xf32> to vector<14x31xbf16>
    %c2_i32_10 = arith.constant 2 : i32
    %23 = vector.broadcast %c2_i32_10 : i32 to vector<14x31xi32>
    %24 = arith.muli %23, %3 : vector<14x31xi32>
    %c2_i32_11 = arith.constant 2 : i32
    %25 = vector.broadcast %c2_i32_11 : i32 to vector<14x31xi32>
    %26 = arith.addi %24, %25 : vector<14x31xi32>
    %27 = arith.cmpi eq, %4, %26 : vector<14x31xi32>
    %cst_12 = arith.constant 1.000000e+00 : f32
    %cst_13 = arith.constant 0.000000e+00 : f32
    %28 = vector.broadcast %cst_12 : f32 to vector<14x31xf32>
    %29 = vector.broadcast %cst_13 : f32 to vector<14x31xf32>
    %30 = arith.select %27, %28, %29 : vector<14x31xi1>, vector<14x31xf32>
    %31 = arith.truncf %30 : vector<14x31xf32> to vector<14x31xbf16>
    %c2_i32_14 = arith.constant 2 : i32
    %32 = vector.broadcast %c2_i32_14 : i32 to vector<14x31xi32>
    %33 = arith.muli %32, %3 : vector<14x31xi32>
    %c3_i32 = arith.constant 3 : i32
    %34 = vector.broadcast %c3_i32 : i32 to vector<14x31xi32>
    %35 = arith.addi %33, %34 : vector<14x31xi32>
    %36 = arith.cmpi eq, %4, %35 : vector<14x31xi32>
    %cst_15 = arith.constant 1.000000e+00 : f32
    %cst_16 = arith.constant 0.000000e+00 : f32
    %37 = vector.broadcast %cst_15 : f32 to vector<14x31xf32>
    %38 = vector.broadcast %cst_16 : f32 to vector<14x31xf32>
    %39 = arith.select %36, %37, %38 : vector<14x31xi1>, vector<14x31xf32>
    %40 = arith.truncf %39 : vector<14x31xf32> to vector<14x31xbf16>
    %c0_17 = arith.constant 0 : index
    %c0_18 = arith.constant 0 : index
    %41 = vector.load %arg5[%c0_17, %c0_18] : memref<1x64xf32, #tpu.memory_space<vmem>>, vector<1x64xf32>
    %c0_i32_19 = arith.constant 0 : i32
    %c14_i32 = arith.constant 14 : i32
    %42 = arith.addi %c0_i32_19, %c14_i32 : i32
    %c1_i32_20 = arith.constant 1 : i32
    scf.for %arg14 = %c0_i32_19 to %42 step %c1_i32_20  : i32 {
      %c2_i32_240 = arith.constant 2 : i32
      %342 = arith.muli %c2_i32_240, %arg14 : i32
      %c0_i32_241 = arith.constant 0 : i32
      %343 = arith.addi %342, %c0_i32_241 : i32
      %344 = arith.index_cast %343 : i32 to index
      %c0_242 = arith.constant 0 : index
      %c0_243 = arith.constant 0 : index
      %345 = vector.load %arg11[%344, %c0_242, %c0_243] : memref<31x31x32xbf16, #tpu.memory_space<vmem>>, vector<1x31x32xbf16>
      %346 = vector.shape_cast %345 : vector<1x31x32xbf16> to vector<31x32xbf16>
      %cst_244 = arith.constant dense<0.000000e+00> : vector<14x32xf32>
      %347 = tpu.matmul %13, %346, %cst_244 {dimension_numbers = #tpu.dot_dimension_numbers<[1], [0], [0], [1], [0, 0, 1, 1], [], []>} : vector<14x31xbf16>, vector<31x32xbf16>, vector<14x32xf32> -> vector<14x32xf32>
      %348 = arith.truncf %347 : vector<14x32xf32> to vector<14x32xbf16>
      %c0_245 = arith.constant 0 : index
      %c0_246 = arith.constant 0 : index
      %c0_247 = arith.constant 0 : index
      %349 = vector.load %arg4[%c0_245, %c0_246, %c0_247] : memref<16x32x64xbf16, #tpu.memory_space<vmem>>, vector<1x32x64xbf16>
      %350 = vector.shape_cast %349 : vector<1x32x64xbf16> to vector<32x64xbf16>
      %cst_248 = arith.constant dense<0.000000e+00> : vector<14x64xf32>
      %351 = tpu.matmul %348, %350, %cst_248 {dimension_numbers = #tpu.dot_dimension_numbers<[1], [0], [0], [1], [0, 0, 1, 1], [], []>} : vector<14x32xbf16>, vector<32x64xbf16>, vector<14x64xf32> -> vector<14x64xf32>
      %cst_249 = arith.constant dense<0.000000e+00> : vector<14x32xf32>
      %352 = tpu.matmul %22, %346, %cst_249 {dimension_numbers = #tpu.dot_dimension_numbers<[1], [0], [0], [1], [0, 0, 1, 1], [], []>} : vector<14x31xbf16>, vector<31x32xbf16>, vector<14x32xf32> -> vector<14x32xf32>
      %353 = arith.truncf %352 : vector<14x32xf32> to vector<14x32xbf16>
      %c1_250 = arith.constant 1 : index
      %c0_251 = arith.constant 0 : index
      %c0_252 = arith.constant 0 : index
      %354 = vector.load %arg4[%c1_250, %c0_251, %c0_252] : memref<16x32x64xbf16, #tpu.memory_space<vmem>>, vector<1x32x64xbf16>
      %355 = vector.shape_cast %354 : vector<1x32x64xbf16> to vector<32x64xbf16>
      %cst_253 = arith.constant dense<0.000000e+00> : vector<14x64xf32>
      %356 = tpu.matmul %353, %355, %cst_253 {dimension_numbers = #tpu.dot_dimension_numbers<[1], [0], [0], [1], [0, 0, 1, 1], [], []>} : vector<14x32xbf16>, vector<32x64xbf16>, vector<14x64xf32> -> vector<14x64xf32>
      %357 = arith.addf %351, %356 : vector<14x64xf32>
      %cst_254 = arith.constant dense<0.000000e+00> : vector<14x32xf32>
      %358 = tpu.matmul %31, %346, %cst_254 {dimension_numbers = #tpu.dot_dimension_numbers<[1], [0], [0], [1], [0, 0, 1, 1], [], []>} : vector<14x31xbf16>, vector<31x32xbf16>, vector<14x32xf32> -> vector<14x32xf32>
      %359 = arith.truncf %358 : vector<14x32xf32> to vector<14x32xbf16>
      %c2_255 = arith.constant 2 : index
      %c0_256 = arith.constant 0 : index
      %c0_257 = arith.constant 0 : index
      %360 = vector.load %arg4[%c2_255, %c0_256, %c0_257] : memref<16x32x64xbf16, #tpu.memory_space<vmem>>, vector<1x32x64xbf16>
      %361 = vector.shape_cast %360 : vector<1x32x64xbf16> to vector<32x64xbf16>
      %cst_258 = arith.constant dense<0.000000e+00> : vector<14x64xf32>
      %362 = tpu.matmul %359, %361, %cst_258 {dimension_numbers = #tpu.dot_dimension_numbers<[1], [0], [0], [1], [0, 0, 1, 1], [], []>} : vector<14x32xbf16>, vector<32x64xbf16>, vector<14x64xf32> -> vector<14x64xf32>
      %363 = arith.addf %357, %362 : vector<14x64xf32>
      %cst_259 = arith.constant dense<0.000000e+00> : vector<14x32xf32>
      %364 = tpu.matmul %40, %346, %cst_259 {dimension_numbers = #tpu.dot_dimension_numbers<[1], [0], [0], [1], [0, 0, 1, 1], [], []>} : vector<14x31xbf16>, vector<31x32xbf16>, vector<14x32xf32> -> vector<14x32xf32>
      %365 = arith.truncf %364 : vector<14x32xf32> to vector<14x32xbf16>
      %c3_260 = arith.constant 3 : index
      %c0_261 = arith.constant 0 : index
      %c0_262 = arith.constant 0 : index
      %366 = vector.load %arg4[%c3_260, %c0_261, %c0_262] : memref<16x32x64xbf16, #tpu.memory_space<vmem>>, vector<1x32x64xbf16>
      %367 = vector.shape_cast %366 : vector<1x32x64xbf16> to vector<32x64xbf16>
      %cst_263 = arith.constant dense<0.000000e+00> : vector<14x64xf32>
      %368 = tpu.matmul %365, %367, %cst_263 {dimension_numbers = #tpu.dot_dimension_numbers<[1], [0], [0], [1], [0, 0, 1, 1], [], []>} : vector<14x32xbf16>, vector<32x64xbf16>, vector<14x64xf32> -> vector<14x64xf32>
      %369 = arith.addf %363, %368 : vector<14x64xf32>
      %c2_i32_264 = arith.constant 2 : i32
      %370 = arith.muli %c2_i32_264, %arg14 : i32
      %c1_i32_265 = arith.constant 1 : i32
      %371 = arith.addi %370, %c1_i32_265 : i32
      %372 = arith.index_cast %371 : i32 to index
      %c0_266 = arith.constant 0 : index
      %c0_267 = arith.constant 0 : index
      %373 = vector.load %arg11[%372, %c0_266, %c0_267] : memref<31x31x32xbf16, #tpu.memory_space<vmem>>, vector<1x31x32xbf16>
      %374 = vector.shape_cast %373 : vector<1x31x32xbf16> to vector<31x32xbf16>
      %cst_268 = arith.constant dense<0.000000e+00> : vector<14x32xf32>
      %375 = tpu.matmul %13, %374, %cst_268 {dimension_numbers = #tpu.dot_dimension_numbers<[1], [0], [0], [1], [0, 0, 1, 1], [], []>} : vector<14x31xbf16>, vector<31x32xbf16>, vector<14x32xf32> -> vector<14x32xf32>
      %376 = arith.truncf %375 : vector<14x32xf32> to vector<14x32xbf16>
      %c4_269 = arith.constant 4 : index
      %c0_270 = arith.constant 0 : index
      %c0_271 = arith.constant 0 : index
      %377 = vector.load %arg4[%c4_269, %c0_270, %c0_271] : memref<16x32x64xbf16, #tpu.memory_space<vmem>>, vector<1x32x64xbf16>
      %378 = vector.shape_cast %377 : vector<1x32x64xbf16> to vector<32x64xbf16>
      %cst_272 = arith.constant dense<0.000000e+00> : vector<14x64xf32>
      %379 = tpu.matmul %376, %378, %cst_272 {dimension_numbers = #tpu.dot_dimension_numbers<[1], [0], [0], [1], [0, 0, 1, 1], [], []>} : vector<14x32xbf16>, vector<32x64xbf16>, vector<14x64xf32> -> vector<14x64xf32>
      %380 = arith.addf %369, %379 : vector<14x64xf32>
      %cst_273 = arith.constant dense<0.000000e+00> : vector<14x32xf32>
      %381 = tpu.matmul %22, %374, %cst_273 {dimension_numbers = #tpu.dot_dimension_numbers<[1], [0], [0], [1], [0, 0, 1, 1], [], []>} : vector<14x31xbf16>, vector<31x32xbf16>, vector<14x32xf32> -> vector<14x32xf32>
      %382 = arith.truncf %381 : vector<14x32xf32> to vector<14x32xbf16>
      %c5_274 = arith.constant 5 : index
      %c0_275 = arith.constant 0 : index
      %c0_276 = arith.constant 0 : index
      %383 = vector.load %arg4[%c5_274, %c0_275, %c0_276] : memref<16x32x64xbf16, #tpu.memory_space<vmem>>, vector<1x32x64xbf16>
      %384 = vector.shape_cast %383 : vector<1x32x64xbf16> to vector<32x64xbf16>
      %cst_277 = arith.constant dense<0.000000e+00> : vector<14x64xf32>
      %385 = tpu.matmul %382, %384, %cst_277 {dimension_numbers = #tpu.dot_dimension_numbers<[1], [0], [0], [1], [0, 0, 1, 1], [], []>} : vector<14x32xbf16>, vector<32x64xbf16>, vector<14x64xf32> -> vector<14x64xf32>
      %386 = arith.addf %380, %385 : vector<14x64xf32>
      %cst_278 = arith.constant dense<0.000000e+00> : vector<14x32xf32>
      %387 = tpu.matmul %31, %374, %cst_278 {dimension_numbers = #tpu.dot_dimension_numbers<[1], [0], [0], [1], [0, 0, 1, 1], [], []>} : vector<14x31xbf16>, vector<31x32xbf16>, vector<14x32xf32> -> vector<14x32xf32>
      %388 = arith.truncf %387 : vector<14x32xf32> to vector<14x32xbf16>
      %c6_279 = arith.constant 6 : index
      %c0_280 = arith.constant 0 : index
      %c0_281 = arith.constant 0 : index
      %389 = vector.load %arg4[%c6_279, %c0_280, %c0_281] : memref<16x32x64xbf16, #tpu.memory_space<vmem>>, vector<1x32x64xbf16>
      %390 = vector.shape_cast %389 : vector<1x32x64xbf16> to vector<32x64xbf16>
      %cst_282 = arith.constant dense<0.000000e+00> : vector<14x64xf32>
      %391 = tpu.matmul %388, %390, %cst_282 {dimension_numbers = #tpu.dot_dimension_numbers<[1], [0], [0], [1], [0, 0, 1, 1], [], []>} : vector<14x32xbf16>, vector<32x64xbf16>, vector<14x64xf32> -> vector<14x64xf32>
      %392 = arith.addf %386, %391 : vector<14x64xf32>
      %cst_283 = arith.constant dense<0.000000e+00> : vector<14x32xf32>
      %393 = tpu.matmul %40, %374, %cst_283 {dimension_numbers = #tpu.dot_dimension_numbers<[1], [0], [0], [1], [0, 0, 1, 1], [], []>} : vector<14x31xbf16>, vector<31x32xbf16>, vector<14x32xf32> -> vector<14x32xf32>
      %394 = arith.truncf %393 : vector<14x32xf32> to vector<14x32xbf16>
      %c7_284 = arith.constant 7 : index
      %c0_285 = arith.constant 0 : index
      %c0_286 = arith.constant 0 : index
      %395 = vector.load %arg4[%c7_284, %c0_285, %c0_286] : memref<16x32x64xbf16, #tpu.memory_space<vmem>>, vector<1x32x64xbf16>
      %396 = vector.shape_cast %395 : vector<1x32x64xbf16> to vector<32x64xbf16>
      %cst_287 = arith.constant dense<0.000000e+00> : vector<14x64xf32>
      %397 = tpu.matmul %394, %396, %cst_287 {dimension_numbers = #tpu.dot_dimension_numbers<[1], [0], [0], [1], [0, 0, 1, 1], [], []>} : vector<14x32xbf16>, vector<32x64xbf16>, vector<14x64xf32> -> vector<14x64xf32>
      %398 = arith.addf %392, %397 : vector<14x64xf32>
      %c2_i32_288 = arith.constant 2 : i32
      %399 = arith.muli %c2_i32_288, %arg14 : i32
      %c2_i32_289 = arith.constant 2 : i32
      %400 = arith.addi %399, %c2_i32_289 : i32
      %401 = arith.index_cast %400 : i32 to index
      %c0_290 = arith.constant 0 : index
      %c0_291 = arith.constant 0 : index
      %402 = vector.load %arg11[%401, %c0_290, %c0_291] : memref<31x31x32xbf16, #tpu.memory_space<vmem>>, vector<1x31x32xbf16>
      %403 = vector.shape_cast %402 : vector<1x31x32xbf16> to vector<31x32xbf16>
      %cst_292 = arith.constant dense<0.000000e+00> : vector<14x32xf32>
      %404 = tpu.matmul %13, %403, %cst_292 {dimension_numbers = #tpu.dot_dimension_numbers<[1], [0], [0], [1], [0, 0, 1, 1], [], []>} : vector<14x31xbf16>, vector<31x32xbf16>, vector<14x32xf32> -> vector<14x32xf32>
      %405 = arith.truncf %404 : vector<14x32xf32> to vector<14x32xbf16>
      %c8_293 = arith.constant 8 : index
      %c0_294 = arith.constant 0 : index
      %c0_295 = arith.constant 0 : index
      %406 = vector.load %arg4[%c8_293, %c0_294, %c0_295] : memref<16x32x64xbf16, #tpu.memory_space<vmem>>, vector<1x32x64xbf16>
      %407 = vector.shape_cast %406 : vector<1x32x64xbf16> to vector<32x64xbf16>
      %cst_296 = arith.constant dense<0.000000e+00> : vector<14x64xf32>
      %408 = tpu.matmul %405, %407, %cst_296 {dimension_numbers = #tpu.dot_dimension_numbers<[1], [0], [0], [1], [0, 0, 1, 1], [], []>} : vector<14x32xbf16>, vector<32x64xbf16>, vector<14x64xf32> -> vector<14x64xf32>
      %409 = arith.addf %398, %408 : vector<14x64xf32>
      %cst_297 = arith.constant dense<0.000000e+00> : vector<14x32xf32>
      %410 = tpu.matmul %22, %403, %cst_297 {dimension_numbers = #tpu.dot_dimension_numbers<[1], [0], [0], [1], [0, 0, 1, 1], [], []>} : vector<14x31xbf16>, vector<31x32xbf16>, vector<14x32xf32> -> vector<14x32xf32>
      %411 = arith.truncf %410 : vector<14x32xf32> to vector<14x32xbf16>
      %c9_298 = arith.constant 9 : index
      %c0_299 = arith.constant 0 : index
      %c0_300 = arith.constant 0 : index
      %412 = vector.load %arg4[%c9_298, %c0_299, %c0_300] : memref<16x32x64xbf16, #tpu.memory_space<vmem>>, vector<1x32x64xbf16>
      %413 = vector.shape_cast %412 : vector<1x32x64xbf16> to vector<32x64xbf16>
      %cst_301 = arith.constant dense<0.000000e+00> : vector<14x64xf32>
      %414 = tpu.matmul %411, %413, %cst_301 {dimension_numbers = #tpu.dot_dimension_numbers<[1], [0], [0], [1], [0, 0, 1, 1], [], []>} : vector<14x32xbf16>, vector<32x64xbf16>, vector<14x64xf32> -> vector<14x64xf32>
      %415 = arith.addf %409, %414 : vector<14x64xf32>
      %cst_302 = arith.constant dense<0.000000e+00> : vector<14x32xf32>
      %416 = tpu.matmul %31, %403, %cst_302 {dimension_numbers = #tpu.dot_dimension_numbers<[1], [0], [0], [1], [0, 0, 1, 1], [], []>} : vector<14x31xbf16>, vector<31x32xbf16>, vector<14x32xf32> -> vector<14x32xf32>
      %417 = arith.truncf %416 : vector<14x32xf32> to vector<14x32xbf16>
      %c10_303 = arith.constant 10 : index
      %c0_304 = arith.constant 0 : index
      %c0_305 = arith.constant 0 : index
      %418 = vector.load %arg4[%c10_303, %c0_304, %c0_305] : memref<16x32x64xbf16, #tpu.memory_space<vmem>>, vector<1x32x64xbf16>
      %419 = vector.shape_cast %418 : vector<1x32x64xbf16> to vector<32x64xbf16>
      %cst_306 = arith.constant dense<0.000000e+00> : vector<14x64xf32>
      %420 = tpu.matmul %417, %419, %cst_306 {dimension_numbers = #tpu.dot_dimension_numbers<[1], [0], [0], [1], [0, 0, 1, 1], [], []>} : vector<14x32xbf16>, vector<32x64xbf16>, vector<14x64xf32> -> vector<14x64xf32>
      %421 = arith.addf %415, %420 : vector<14x64xf32>
      %cst_307 = arith.constant dense<0.000000e+00> : vector<14x32xf32>
      %422 = tpu.matmul %40, %403, %cst_307 {dimension_numbers = #tpu.dot_dimension_numbers<[1], [0], [0], [1], [0, 0, 1, 1], [], []>} : vector<14x31xbf16>, vector<31x32xbf16>, vector<14x32xf32> -> vector<14x32xf32>
      %423 = arith.truncf %422 : vector<14x32xf32> to vector<14x32xbf16>
      %c11_308 = arith.constant 11 : index
      %c0_309 = arith.constant 0 : index
      %c0_310 = arith.constant 0 : index
      %424 = vector.load %arg4[%c11_308, %c0_309, %c0_310] : memref<16x32x64xbf16, #tpu.memory_space<vmem>>, vector<1x32x64xbf16>
      %425 = vector.shape_cast %424 : vector<1x32x64xbf16> to vector<32x64xbf16>
      %cst_311 = arith.constant dense<0.000000e+00> : vector<14x64xf32>
      %426 = tpu.matmul %423, %425, %cst_311 {dimension_numbers = #tpu.dot_dimension_numbers<[1], [0], [0], [1], [0, 0, 1, 1], [], []>} : vector<14x32xbf16>, vector<32x64xbf16>, vector<14x64xf32> -> vector<14x64xf32>
      %427 = arith.addf %421, %426 : vector<14x64xf32>
      %c2_i32_312 = arith.constant 2 : i32
      %428 = arith.muli %c2_i32_312, %arg14 : i32
      %c3_i32_313 = arith.constant 3 : i32
      %429 = arith.addi %428, %c3_i32_313 : i32
      %430 = arith.index_cast %429 : i32 to index
      %c0_314 = arith.constant 0 : index
      %c0_315 = arith.constant 0 : index
      %431 = vector.load %arg11[%430, %c0_314, %c0_315] : memref<31x31x32xbf16, #tpu.memory_space<vmem>>, vector<1x31x32xbf16>
      %432 = vector.shape_cast %431 : vector<1x31x32xbf16> to vector<31x32xbf16>
      %cst_316 = arith.constant dense<0.000000e+00> : vector<14x32xf32>
      %433 = tpu.matmul %13, %432, %cst_316 {dimension_numbers = #tpu.dot_dimension_numbers<[1], [0], [0], [1], [0, 0, 1, 1], [], []>} : vector<14x31xbf16>, vector<31x32xbf16>, vector<14x32xf32> -> vector<14x32xf32>
      %434 = arith.truncf %433 : vector<14x32xf32> to vector<14x32xbf16>
      %c12_317 = arith.constant 12 : index
      %c0_318 = arith.constant 0 : index
      %c0_319 = arith.constant 0 : index
      %435 = vector.load %arg4[%c12_317, %c0_318, %c0_319] : memref<16x32x64xbf16, #tpu.memory_space<vmem>>, vector<1x32x64xbf16>
      %436 = vector.shape_cast %435 : vector<1x32x64xbf16> to vector<32x64xbf16>
      %cst_320 = arith.constant dense<0.000000e+00> : vector<14x64xf32>
      %437 = tpu.matmul %434, %436, %cst_320 {dimension_numbers = #tpu.dot_dimension_numbers<[1], [0], [0], [1], [0, 0, 1, 1], [], []>} : vector<14x32xbf16>, vector<32x64xbf16>, vector<14x64xf32> -> vector<14x64xf32>
      %438 = arith.addf %427, %437 : vector<14x64xf32>
      %cst_321 = arith.constant dense<0.000000e+00> : vector<14x32xf32>
      %439 = tpu.matmul %22, %432, %cst_321 {dimension_numbers = #tpu.dot_dimension_numbers<[1], [0], [0], [1], [0, 0, 1, 1], [], []>} : vector<14x31xbf16>, vector<31x32xbf16>, vector<14x32xf32> -> vector<14x32xf32>
      %440 = arith.truncf %439 : vector<14x32xf32> to vector<14x32xbf16>
      %c13_322 = arith.constant 13 : index
      %c0_323 = arith.constant 0 : index
      %c0_324 = arith.constant 0 : index
      %441 = vector.load %arg4[%c13_322, %c0_323, %c0_324] : memref<16x32x64xbf16, #tpu.memory_space<vmem>>, vector<1x32x64xbf16>
      %442 = vector.shape_cast %441 : vector<1x32x64xbf16> to vector<32x64xbf16>
      %cst_325 = arith.constant dense<0.000000e+00> : vector<14x64xf32>
      %443 = tpu.matmul %440, %442, %cst_325 {dimension_numbers = #tpu.dot_dimension_numbers<[1], [0], [0], [1], [0, 0, 1, 1], [], []>} : vector<14x32xbf16>, vector<32x64xbf16>, vector<14x64xf32> -> vector<14x64xf32>
      %444 = arith.addf %438, %443 : vector<14x64xf32>
      %cst_326 = arith.constant dense<0.000000e+00> : vector<14x32xf32>
      %445 = tpu.matmul %31, %432, %cst_326 {dimension_numbers = #tpu.dot_dimension_numbers<[1], [0], [0], [1], [0, 0, 1, 1], [], []>} : vector<14x31xbf16>, vector<31x32xbf16>, vector<14x32xf32> -> vector<14x32xf32>
      %446 = arith.truncf %445 : vector<14x32xf32> to vector<14x32xbf16>
      %c14_327 = arith.constant 14 : index
      %c0_328 = arith.constant 0 : index
      %c0_329 = arith.constant 0 : index
      %447 = vector.load %arg4[%c14_327, %c0_328, %c0_329] : memref<16x32x64xbf16, #tpu.memory_space<vmem>>, vector<1x32x64xbf16>
      %448 = vector.shape_cast %447 : vector<1x32x64xbf16> to vector<32x64xbf16>
      %cst_330 = arith.constant dense<0.000000e+00> : vector<14x64xf32>
      %449 = tpu.matmul %446, %448, %cst_330 {dimension_numbers = #tpu.dot_dimension_numbers<[1], [0], [0], [1], [0, 0, 1, 1], [], []>} : vector<14x32xbf16>, vector<32x64xbf16>, vector<14x64xf32> -> vector<14x64xf32>
      %450 = arith.addf %444, %449 : vector<14x64xf32>
      %cst_331 = arith.constant dense<0.000000e+00> : vector<14x32xf32>
      %451 = tpu.matmul %40, %432, %cst_331 {dimension_numbers = #tpu.dot_dimension_numbers<[1], [0], [0], [1], [0, 0, 1, 1], [], []>} : vector<14x31xbf16>, vector<31x32xbf16>, vector<14x32xf32> -> vector<14x32xf32>
      %452 = arith.truncf %451 : vector<14x32xf32> to vector<14x32xbf16>
      %c15_332 = arith.constant 15 : index
      %c0_333 = arith.constant 0 : index
      %c0_334 = arith.constant 0 : index
      %453 = vector.load %arg4[%c15_332, %c0_333, %c0_334] : memref<16x32x64xbf16, #tpu.memory_space<vmem>>, vector<1x32x64xbf16>
      %454 = vector.shape_cast %453 : vector<1x32x64xbf16> to vector<32x64xbf16>
      %cst_335 = arith.constant dense<0.000000e+00> : vector<14x64xf32>
      %455 = tpu.matmul %452, %454, %cst_335 {dimension_numbers = #tpu.dot_dimension_numbers<[1], [0], [0], [1], [0, 0, 1, 1], [], []>} : vector<14x32xbf16>, vector<32x64xbf16>, vector<14x64xf32> -> vector<14x64xf32>
      %456 = arith.addf %450, %455 : vector<14x64xf32>
      %457 = vector.broadcast %41 : vector<1x64xf32> to vector<14x64xf32>
      %458 = arith.addf %456, %457 : vector<14x64xf32>
      %cst_336 = arith.constant 0.000000e+00 : f32
      %459 = vector.broadcast %cst_336 : f32 to vector<14x64xf32>
      %460 = arith.maximumf %458, %459 : vector<14x64xf32>
      %461 = arith.truncf %460 : vector<14x64xf32> to vector<14x64xbf16>
      %462 = arith.index_cast %arg14 : i32 to index
      %c0_337 = arith.constant 0 : index
      %c0_338 = arith.constant 0 : index
      %463 = vector.load %arg12[%462, %c0_337, %c0_338] : memref<14x14x64xbf16, #tpu.memory_space<vmem>>, vector<1x14x64xbf16>
      %464 = vector.shape_cast %463 : vector<1x14x64xbf16> to vector<14x64xbf16>
      %465 = vector.shape_cast %461 : vector<14x64xbf16> to vector<1x14x64xbf16>
      tpu.vector_store %arg12[%462, %c0_337, %c0_338], %465 {strides = array<i32>} : memref<14x14x64xbf16, #tpu.memory_space<vmem>>, vector<1x14x64xbf16>,
    }
    %c14_i32_21 = arith.constant 14 : i32
    %43 = tpu.iota {dimensions = array<i32: 0>} : vector<6x14xi32>
    %44 = tpu.iota {dimensions = array<i32: 1>} : vector<6x14xi32>
    %c2_i32_22 = arith.constant 2 : i32
    %45 = vector.broadcast %c2_i32_22 : i32 to vector<6x14xi32>
    %46 = arith.muli %45, %43 : vector<6x14xi32>
    %c0_i32_23 = arith.constant 0 : i32
    %47 = vector.broadcast %c0_i32_23 : i32 to vector<6x14xi32>
    %48 = arith.addi %46, %47 : vector<6x14xi32>
    %49 = arith.cmpi eq, %44, %48 : vector<6x14xi32>
    %cst_24 = arith.constant 1.000000e+00 : f32
    %cst_25 = arith.constant 0.000000e+00 : f32
    %50 = vector.broadcast %cst_24 : f32 to vector<6x14xf32>
    %51 = vector.broadcast %cst_25 : f32 to vector<6x14xf32>
    %52 = arith.select %49, %50, %51 : vector<6x14xi1>, vector<6x14xf32>
    %53 = arith.truncf %52 : vector<6x14xf32> to vector<6x14xbf16>
    %c2_i32_26 = arith.constant 2 : i32
    %54 = vector.broadcast %c2_i32_26 : i32 to vector<6x14xi32>
    %55 = arith.muli %54, %43 : vector<6x14xi32>
    %c1_i32_27 = arith.constant 1 : i32
    %56 = vector.broadcast %c1_i32_27 : i32 to vector<6x14xi32>
    %57 = arith.addi %55, %56 : vector<6x14xi32>
    %58 = arith.cmpi eq, %44, %57 : vector<6x14xi32>
    %cst_28 = arith.constant 1.000000e+00 : f32
    %cst_29 = arith.constant 0.000000e+00 : f32
    %59 = vector.broadcast %cst_28 : f32 to vector<6x14xf32>
    %60 = vector.broadcast %cst_29 : f32 to vector<6x14xf32>
    %61 = arith.select %58, %59, %60 : vector<6x14xi1>, vector<6x14xf32>
    %62 = arith.truncf %61 : vector<6x14xf32> to vector<6x14xbf16>
    %c2_i32_30 = arith.constant 2 : i32
    %63 = vector.broadcast %c2_i32_30 : i32 to vector<6x14xi32>
    %64 = arith.muli %63, %43 : vector<6x14xi32>
    %c2_i32_31 = arith.constant 2 : i32
    %65 = vector.broadcast %c2_i32_31 : i32 to vector<6x14xi32>
    %66 = arith.addi %64, %65 : vector<6x14xi32>
    %67 = arith.cmpi eq, %44, %66 : vector<6x14xi32>
    %cst_32 = arith.constant 1.000000e+00 : f32
    %cst_33 = arith.constant 0.000000e+00 : f32
    %68 = vector.broadcast %cst_32 : f32 to vector<6x14xf32>
    %69 = vector.broadcast %cst_33 : f32 to vector<6x14xf32>
    %70 = arith.select %67, %68, %69 : vector<6x14xi1>, vector<6x14xf32>
    %71 = arith.truncf %70 : vector<6x14xf32> to vector<6x14xbf16>
    %c2_i32_34 = arith.constant 2 : i32
    %72 = vector.broadcast %c2_i32_34 : i32 to vector<6x14xi32>
    %73 = arith.muli %72, %43 : vector<6x14xi32>
    %c3_i32_35 = arith.constant 3 : i32
    %74 = vector.broadcast %c3_i32_35 : i32 to vector<6x14xi32>
    %75 = arith.addi %73, %74 : vector<6x14xi32>
    %76 = arith.cmpi eq, %44, %75 : vector<6x14xi32>
    %cst_36 = arith.constant 1.000000e+00 : f32
    %cst_37 = arith.constant 0.000000e+00 : f32
    %77 = vector.broadcast %cst_36 : f32 to vector<6x14xf32>
    %78 = vector.broadcast %cst_37 : f32 to vector<6x14xf32>
    %79 = arith.select %76, %77, %78 : vector<6x14xi1>, vector<6x14xf32>
    %80 = arith.truncf %79 : vector<6x14xf32> to vector<6x14xbf16>
    %c0_38 = arith.constant 0 : index
    %c0_39 = arith.constant 0 : index
    %81 = vector.load %arg7[%c0_38, %c0_39] : memref<1x128xf32, #tpu.memory_space<vmem>>, vector<1x128xf32>
    %c0_i32_40 = arith.constant 0 : i32
    %c6_i32 = arith.constant 6 : i32
    %82 = arith.addi %c0_i32_40, %c6_i32 : i32
    %c1_i32_41 = arith.constant 1 : i32
    scf.for %arg14 = %c0_i32_40 to %82 step %c1_i32_41  : i32 {
      %c2_i32_240 = arith.constant 2 : i32
      %342 = arith.muli %c2_i32_240, %arg14 : i32
      %c0_i32_241 = arith.constant 0 : i32
      %343 = arith.addi %342, %c0_i32_241 : i32
      %344 = arith.index_cast %343 : i32 to index
      %c0_242 = arith.constant 0 : index
      %c0_243 = arith.constant 0 : index
      %345 = vector.load %arg12[%344, %c0_242, %c0_243] : memref<14x14x64xbf16, #tpu.memory_space<vmem>>, vector<1x14x64xbf16>
      %346 = vector.shape_cast %345 : vector<1x14x64xbf16> to vector<14x64xbf16>
      %cst_244 = arith.constant dense<0.000000e+00> : vector<6x64xf32>
      %347 = tpu.matmul %53, %346, %cst_244 {dimension_numbers = #tpu.dot_dimension_numbers<[1], [0], [0], [1], [0, 0, 1, 1], [], []>} : vector<6x14xbf16>, vector<14x64xbf16>, vector<6x64xf32> -> vector<6x64xf32>
      %348 = arith.truncf %347 : vector<6x64xf32> to vector<6x64xbf16>
      %c0_245 = arith.constant 0 : index
      %c0_246 = arith.constant 0 : index
      %c0_247 = arith.constant 0 : index
      %349 = vector.load %arg6[%c0_245, %c0_246, %c0_247] : memref<16x64x128xbf16, #tpu.memory_space<vmem>>, vector<1x64x128xbf16>
      %350 = vector.shape_cast %349 : vector<1x64x128xbf16> to vector<64x128xbf16>
      %cst_248 = arith.constant dense<0.000000e+00> : vector<6x128xf32>
      %351 = tpu.matmul %348, %350, %cst_248 {dimension_numbers = #tpu.dot_dimension_numbers<[1], [0], [0], [1], [0, 0, 1, 1], [], []>} : vector<6x64xbf16>, vector<64x128xbf16>, vector<6x128xf32> -> vector<6x128xf32>
      %cst_249 = arith.constant dense<0.000000e+00> : vector<6x64xf32>
      %352 = tpu.matmul %62, %346, %cst_249 {dimension_numbers = #tpu.dot_dimension_numbers<[1], [0], [0], [1], [0, 0, 1, 1], [], []>} : vector<6x14xbf16>, vector<14x64xbf16>, vector<6x64xf32> -> vector<6x64xf32>
      %353 = arith.truncf %352 : vector<6x64xf32> to vector<6x64xbf16>
      %c1_250 = arith.constant 1 : index
      %c0_251 = arith.constant 0 : index
      %c0_252 = arith.constant 0 : index
      %354 = vector.load %arg6[%c1_250, %c0_251, %c0_252] : memref<16x64x128xbf16, #tpu.memory_space<vmem>>, vector<1x64x128xbf16>
      %355 = vector.shape_cast %354 : vector<1x64x128xbf16> to vector<64x128xbf16>
      %cst_253 = arith.constant dense<0.000000e+00> : vector<6x128xf32>
      %356 = tpu.matmul %353, %355, %cst_253 {dimension_numbers = #tpu.dot_dimension_numbers<[1], [0], [0], [1], [0, 0, 1, 1], [], []>} : vector<6x64xbf16>, vector<64x128xbf16>, vector<6x128xf32> -> vector<6x128xf32>
      %357 = arith.addf %351, %356 : vector<6x128xf32>
      %cst_254 = arith.constant dense<0.000000e+00> : vector<6x64xf32>
      %358 = tpu.matmul %71, %346, %cst_254 {dimension_numbers = #tpu.dot_dimension_numbers<[1], [0], [0], [1], [0, 0, 1, 1], [], []>} : vector<6x14xbf16>, vector<14x64xbf16>, vector<6x64xf32> -> vector<6x64xf32>
      %359 = arith.truncf %358 : vector<6x64xf32> to vector<6x64xbf16>
      %c2_255 = arith.constant 2 : index
      %c0_256 = arith.constant 0 : index
      %c0_257 = arith.constant 0 : index
      %360 = vector.load %arg6[%c2_255, %c0_256, %c0_257] : memref<16x64x128xbf16, #tpu.memory_space<vmem>>, vector<1x64x128xbf16>
      %361 = vector.shape_cast %360 : vector<1x64x128xbf16> to vector<64x128xbf16>
      %cst_258 = arith.constant dense<0.000000e+00> : vector<6x128xf32>
      %362 = tpu.matmul %359, %361, %cst_258 {dimension_numbers = #tpu.dot_dimension_numbers<[1], [0], [0], [1], [0, 0, 1, 1], [], []>} : vector<6x64xbf16>, vector<64x128xbf16>, vector<6x128xf32> -> vector<6x128xf32>
      %363 = arith.addf %357, %362 : vector<6x128xf32>
      %cst_259 = arith.constant dense<0.000000e+00> : vector<6x64xf32>
      %364 = tpu.matmul %80, %346, %cst_259 {dimension_numbers = #tpu.dot_dimension_numbers<[1], [0], [0], [1], [0, 0, 1, 1], [], []>} : vector<6x14xbf16>, vector<14x64xbf16>, vector<6x64xf32> -> vector<6x64xf32>
      %365 = arith.truncf %364 : vector<6x64xf32> to vector<6x64xbf16>
      %c3_260 = arith.constant 3 : index
      %c0_261 = arith.constant 0 : index
      %c0_262 = arith.constant 0 : index
      %366 = vector.load %arg6[%c3_260, %c0_261, %c0_262] : memref<16x64x128xbf16, #tpu.memory_space<vmem>>, vector<1x64x128xbf16>
      %367 = vector.shape_cast %366 : vector<1x64x128xbf16> to vector<64x128xbf16>
      %cst_263 = arith.constant dense<0.000000e+00> : vector<6x128xf32>
      %368 = tpu.matmul %365, %367, %cst_263 {dimension_numbers = #tpu.dot_dimension_numbers<[1], [0], [0], [1], [0, 0, 1, 1], [], []>} : vector<6x64xbf16>, vector<64x128xbf16>, vector<6x128xf32> -> vector<6x128xf32>
      %369 = arith.addf %363, %368 : vector<6x128xf32>
      %c2_i32_264 = arith.constant 2 : i32
      %370 = arith.muli %c2_i32_264, %arg14 : i32
      %c1_i32_265 = arith.constant 1 : i32
      %371 = arith.addi %370, %c1_i32_265 : i32
      %372 = arith.index_cast %371 : i32 to index
      %c0_266 = arith.constant 0 : index
      %c0_267 = arith.constant 0 : index
      %373 = vector.load %arg12[%372, %c0_266, %c0_267] : memref<14x14x64xbf16, #tpu.memory_space<vmem>>, vector<1x14x64xbf16>
      %374 = vector.shape_cast %373 : vector<1x14x64xbf16> to vector<14x64xbf16>
      %cst_268 = arith.constant dense<0.000000e+00> : vector<6x64xf32>
      %375 = tpu.matmul %53, %374, %cst_268 {dimension_numbers = #tpu.dot_dimension_numbers<[1], [0], [0], [1], [0, 0, 1, 1], [], []>} : vector<6x14xbf16>, vector<14x64xbf16>, vector<6x64xf32> -> vector<6x64xf32>
      %376 = arith.truncf %375 : vector<6x64xf32> to vector<6x64xbf16>
      %c4_269 = arith.constant 4 : index
      %c0_270 = arith.constant 0 : index
      %c0_271 = arith.constant 0 : index
      %377 = vector.load %arg6[%c4_269, %c0_270, %c0_271] : memref<16x64x128xbf16, #tpu.memory_space<vmem>>, vector<1x64x128xbf16>
      %378 = vector.shape_cast %377 : vector<1x64x128xbf16> to vector<64x128xbf16>
      %cst_272 = arith.constant dense<0.000000e+00> : vector<6x128xf32>
      %379 = tpu.matmul %376, %378, %cst_272 {dimension_numbers = #tpu.dot_dimension_numbers<[1], [0], [0], [1], [0, 0, 1, 1], [], []>} : vector<6x64xbf16>, vector<64x128xbf16>, vector<6x128xf32> -> vector<6x128xf32>
      %380 = arith.addf %369, %379 : vector<6x128xf32>
      %cst_273 = arith.constant dense<0.000000e+00> : vector<6x64xf32>
      %381 = tpu.matmul %62, %374, %cst_273 {dimension_numbers = #tpu.dot_dimension_numbers<[1], [0], [0], [1], [0, 0, 1, 1], [], []>} : vector<6x14xbf16>, vector<14x64xbf16>, vector<6x64xf32> -> vector<6x64xf32>
      %382 = arith.truncf %381 : vector<6x64xf32> to vector<6x64xbf16>
      %c5_274 = arith.constant 5 : index
      %c0_275 = arith.constant 0 : index
      %c0_276 = arith.constant 0 : index
      %383 = vector.load %arg6[%c5_274, %c0_275, %c0_276] : memref<16x64x128xbf16, #tpu.memory_space<vmem>>, vector<1x64x128xbf16>
      %384 = vector.shape_cast %383 : vector<1x64x128xbf16> to vector<64x128xbf16>
      %cst_277 = arith.constant dense<0.000000e+00> : vector<6x128xf32>
      %385 = tpu.matmul %382, %384, %cst_277 {dimension_numbers = #tpu.dot_dimension_numbers<[1], [0], [0], [1], [0, 0, 1, 1], [], []>} : vector<6x64xbf16>, vector<64x128xbf16>, vector<6x128xf32> -> vector<6x128xf32>
      %386 = arith.addf %380, %385 : vector<6x128xf32>
      %cst_278 = arith.constant dense<0.000000e+00> : vector<6x64xf32>
      %387 = tpu.matmul %71, %374, %cst_278 {dimension_numbers = #tpu.dot_dimension_numbers<[1], [0], [0], [1], [0, 0, 1, 1], [], []>} : vector<6x14xbf16>, vector<14x64xbf16>, vector<6x64xf32> -> vector<6x64xf32>
      %388 = arith.truncf %387 : vector<6x64xf32> to vector<6x64xbf16>
      %c6_279 = arith.constant 6 : index
      %c0_280 = arith.constant 0 : index
      %c0_281 = arith.constant 0 : index
      %389 = vector.load %arg6[%c6_279, %c0_280, %c0_281] : memref<16x64x128xbf16, #tpu.memory_space<vmem>>, vector<1x64x128xbf16>
      %390 = vector.shape_cast %389 : vector<1x64x128xbf16> to vector<64x128xbf16>
      %cst_282 = arith.constant dense<0.000000e+00> : vector<6x128xf32>
      %391 = tpu.matmul %388, %390, %cst_282 {dimension_numbers = #tpu.dot_dimension_numbers<[1], [0], [0], [1], [0, 0, 1, 1], [], []>} : vector<6x64xbf16>, vector<64x128xbf16>, vector<6x128xf32> -> vector<6x128xf32>
      %392 = arith.addf %386, %391 : vector<6x128xf32>
      %cst_283 = arith.constant dense<0.000000e+00> : vector<6x64xf32>
      %393 = tpu.matmul %80, %374, %cst_283 {dimension_numbers = #tpu.dot_dimension_numbers<[1], [0], [0], [1], [0, 0, 1, 1], [], []>} : vector<6x14xbf16>, vector<14x64xbf16>, vector<6x64xf32> -> vector<6x64xf32>
      %394 = arith.truncf %393 : vector<6x64xf32> to vector<6x64xbf16>
      %c7_284 = arith.constant 7 : index
      %c0_285 = arith.constant 0 : index
      %c0_286 = arith.constant 0 : index
      %395 = vector.load %arg6[%c7_284, %c0_285, %c0_286] : memref<16x64x128xbf16, #tpu.memory_space<vmem>>, vector<1x64x128xbf16>
      %396 = vector.shape_cast %395 : vector<1x64x128xbf16> to vector<64x128xbf16>
      %cst_287 = arith.constant dense<0.000000e+00> : vector<6x128xf32>
      %397 = tpu.matmul %394, %396, %cst_287 {dimension_numbers = #tpu.dot_dimension_numbers<[1], [0], [0], [1], [0, 0, 1, 1], [], []>} : vector<6x64xbf16>, vector<64x128xbf16>, vector<6x128xf32> -> vector<6x128xf32>
      %398 = arith.addf %392, %397 : vector<6x128xf32>
      %c2_i32_288 = arith.constant 2 : i32
      %399 = arith.muli %c2_i32_288, %arg14 : i32
      %c2_i32_289 = arith.constant 2 : i32
      %400 = arith.addi %399, %c2_i32_289 : i32
      %401 = arith.index_cast %400 : i32 to index
      %c0_290 = arith.constant 0 : index
      %c0_291 = arith.constant 0 : index
      %402 = vector.load %arg12[%401, %c0_290, %c0_291] : memref<14x14x64xbf16, #tpu.memory_space<vmem>>, vector<1x14x64xbf16>
      %403 = vector.shape_cast %402 : vector<1x14x64xbf16> to vector<14x64xbf16>
      %cst_292 = arith.constant dense<0.000000e+00> : vector<6x64xf32>
      %404 = tpu.matmul %53, %403, %cst_292 {dimension_numbers = #tpu.dot_dimension_numbers<[1], [0], [0], [1], [0, 0, 1, 1], [], []>} : vector<6x14xbf16>, vector<14x64xbf16>, vector<6x64xf32> -> vector<6x64xf32>
      %405 = arith.truncf %404 : vector<6x64xf32> to vector<6x64xbf16>
      %c8_293 = arith.constant 8 : index
      %c0_294 = arith.constant 0 : index
      %c0_295 = arith.constant 0 : index
      %406 = vector.load %arg6[%c8_293, %c0_294, %c0_295] : memref<16x64x128xbf16, #tpu.memory_space<vmem>>, vector<1x64x128xbf16>
      %407 = vector.shape_cast %406 : vector<1x64x128xbf16> to vector<64x128xbf16>
      %cst_296 = arith.constant dense<0.000000e+00> : vector<6x128xf32>
      %408 = tpu.matmul %405, %407, %cst_296 {dimension_numbers = #tpu.dot_dimension_numbers<[1], [0], [0], [1], [0, 0, 1, 1], [], []>} : vector<6x64xbf16>, vector<64x128xbf16>, vector<6x128xf32> -> vector<6x128xf32>
      %409 = arith.addf %398, %408 : vector<6x128xf32>
      %cst_297 = arith.constant dense<0.000000e+00> : vector<6x64xf32>
      %410 = tpu.matmul %62, %403, %cst_297 {dimension_numbers = #tpu.dot_dimension_numbers<[1], [0], [0], [1], [0, 0, 1, 1], [], []>} : vector<6x14xbf16>, vector<14x64xbf16>, vector<6x64xf32> -> vector<6x64xf32>
      %411 = arith.truncf %410 : vector<6x64xf32> to vector<6x64xbf16>
      %c9_298 = arith.constant 9 : index
      %c0_299 = arith.constant 0 : index
      %c0_300 = arith.constant 0 : index
      %412 = vector.load %arg6[%c9_298, %c0_299, %c0_300] : memref<16x64x128xbf16, #tpu.memory_space<vmem>>, vector<1x64x128xbf16>
      %413 = vector.shape_cast %412 : vector<1x64x128xbf16> to vector<64x128xbf16>
      %cst_301 = arith.constant dense<0.000000e+00> : vector<6x128xf32>
      %414 = tpu.matmul %411, %413, %cst_301 {dimension_numbers = #tpu.dot_dimension_numbers<[1], [0], [0], [1], [0, 0, 1, 1], [], []>} : vector<6x64xbf16>, vector<64x128xbf16>, vector<6x128xf32> -> vector<6x128xf32>
      %415 = arith.addf %409, %414 : vector<6x128xf32>
      %cst_302 = arith.constant dense<0.000000e+00> : vector<6x64xf32>
      %416 = tpu.matmul %71, %403, %cst_302 {dimension_numbers = #tpu.dot_dimension_numbers<[1], [0], [0], [1], [0, 0, 1, 1], [], []>} : vector<6x14xbf16>, vector<14x64xbf16>, vector<6x64xf32> -> vector<6x64xf32>
      %417 = arith.truncf %416 : vector<6x64xf32> to vector<6x64xbf16>
      %c10_303 = arith.constant 10 : index
      %c0_304 = arith.constant 0 : index
      %c0_305 = arith.constant 0 : index
      %418 = vector.load %arg6[%c10_303, %c0_304, %c0_305] : memref<16x64x128xbf16, #tpu.memory_space<vmem>>, vector<1x64x128xbf16>
      %419 = vector.shape_cast %418 : vector<1x64x128xbf16> to vector<64x128xbf16>
      %cst_306 = arith.constant dense<0.000000e+00> : vector<6x128xf32>
      %420 = tpu.matmul %417, %419, %cst_306 {dimension_numbers = #tpu.dot_dimension_numbers<[1], [0], [0], [1], [0, 0, 1, 1], [], []>} : vector<6x64xbf16>, vector<64x128xbf16>, vector<6x128xf32> -> vector<6x128xf32>
      %421 = arith.addf %415, %420 : vector<6x128xf32>
      %cst_307 = arith.constant dense<0.000000e+00> : vector<6x64xf32>
      %422 = tpu.matmul %80, %403, %cst_307 {dimension_numbers = #tpu.dot_dimension_numbers<[1], [0], [0], [1], [0, 0, 1, 1], [], []>} : vector<6x14xbf16>, vector<14x64xbf16>, vector<6x64xf32> -> vector<6x64xf32>
      %423 = arith.truncf %422 : vector<6x64xf32> to vector<6x64xbf16>
      %c11_308 = arith.constant 11 : index
      %c0_309 = arith.constant 0 : index
      %c0_310 = arith.constant 0 : index
      %424 = vector.load %arg6[%c11_308, %c0_309, %c0_310] : memref<16x64x128xbf16, #tpu.memory_space<vmem>>, vector<1x64x128xbf16>
      %425 = vector.shape_cast %424 : vector<1x64x128xbf16> to vector<64x128xbf16>
      %cst_311 = arith.constant dense<0.000000e+00> : vector<6x128xf32>
      %426 = tpu.matmul %423, %425, %cst_311 {dimension_numbers = #tpu.dot_dimension_numbers<[1], [0], [0], [1], [0, 0, 1, 1], [], []>} : vector<6x64xbf16>, vector<64x128xbf16>, vector<6x128xf32> -> vector<6x128xf32>
      %427 = arith.addf %421, %426 : vector<6x128xf32>
      %c2_i32_312 = arith.constant 2 : i32
      %428 = arith.muli %c2_i32_312, %arg14 : i32
      %c3_i32_313 = arith.constant 3 : i32
      %429 = arith.addi %428, %c3_i32_313 : i32
      %430 = arith.index_cast %429 : i32 to index
      %c0_314 = arith.constant 0 : index
      %c0_315 = arith.constant 0 : index
      %431 = vector.load %arg12[%430, %c0_314, %c0_315] : memref<14x14x64xbf16, #tpu.memory_space<vmem>>, vector<1x14x64xbf16>
      %432 = vector.shape_cast %431 : vector<1x14x64xbf16> to vector<14x64xbf16>
      %cst_316 = arith.constant dense<0.000000e+00> : vector<6x64xf32>
      %433 = tpu.matmul %53, %432, %cst_316 {dimension_numbers = #tpu.dot_dimension_numbers<[1], [0], [0], [1], [0, 0, 1, 1], [], []>} : vector<6x14xbf16>, vector<14x64xbf16>, vector<6x64xf32> -> vector<6x64xf32>
      %434 = arith.truncf %433 : vector<6x64xf32> to vector<6x64xbf16>
      %c12_317 = arith.constant 12 : index
      %c0_318 = arith.constant 0 : index
      %c0_319 = arith.constant 0 : index
      %435 = vector.load %arg6[%c12_317, %c0_318, %c0_319] : memref<16x64x128xbf16, #tpu.memory_space<vmem>>, vector<1x64x128xbf16>
      %436 = vector.shape_cast %435 : vector<1x64x128xbf16> to vector<64x128xbf16>
      %cst_320 = arith.constant dense<0.000000e+00> : vector<6x128xf32>
      %437 = tpu.matmul %434, %436, %cst_320 {dimension_numbers = #tpu.dot_dimension_numbers<[1], [0], [0], [1], [0, 0, 1, 1], [], []>} : vector<6x64xbf16>, vector<64x128xbf16>, vector<6x128xf32> -> vector<6x128xf32>
      %438 = arith.addf %427, %437 : vector<6x128xf32>
      %cst_321 = arith.constant dense<0.000000e+00> : vector<6x64xf32>
      %439 = tpu.matmul %62, %432, %cst_321 {dimension_numbers = #tpu.dot_dimension_numbers<[1], [0], [0], [1], [0, 0, 1, 1], [], []>} : vector<6x14xbf16>, vector<14x64xbf16>, vector<6x64xf32> -> vector<6x64xf32>
      %440 = arith.truncf %439 : vector<6x64xf32> to vector<6x64xbf16>
      %c13_322 = arith.constant 13 : index
      %c0_323 = arith.constant 0 : index
      %c0_324 = arith.constant 0 : index
      %441 = vector.load %arg6[%c13_322, %c0_323, %c0_324] : memref<16x64x128xbf16, #tpu.memory_space<vmem>>, vector<1x64x128xbf16>
      %442 = vector.shape_cast %441 : vector<1x64x128xbf16> to vector<64x128xbf16>
      %cst_325 = arith.constant dense<0.000000e+00> : vector<6x128xf32>
      %443 = tpu.matmul %440, %442, %cst_325 {dimension_numbers = #tpu.dot_dimension_numbers<[1], [0], [0], [1], [0, 0, 1, 1], [], []>} : vector<6x64xbf16>, vector<64x128xbf16>, vector<6x128xf32> -> vector<6x128xf32>
      %444 = arith.addf %438, %443 : vector<6x128xf32>
      %cst_326 = arith.constant dense<0.000000e+00> : vector<6x64xf32>
      %445 = tpu.matmul %71, %432, %cst_326 {dimension_numbers = #tpu.dot_dimension_numbers<[1], [0], [0], [1], [0, 0, 1, 1], [], []>} : vector<6x14xbf16>, vector<14x64xbf16>, vector<6x64xf32> -> vector<6x64xf32>
      %446 = arith.truncf %445 : vector<6x64xf32> to vector<6x64xbf16>
      %c14_327 = arith.constant 14 : index
      %c0_328 = arith.constant 0 : index
      %c0_329 = arith.constant 0 : index
      %447 = vector.load %arg6[%c14_327, %c0_328, %c0_329] : memref<16x64x128xbf16, #tpu.memory_space<vmem>>, vector<1x64x128xbf16>
      %448 = vector.shape_cast %447 : vector<1x64x128xbf16> to vector<64x128xbf16>
      %cst_330 = arith.constant dense<0.000000e+00> : vector<6x128xf32>
      %449 = tpu.matmul %446, %448, %cst_330 {dimension_numbers = #tpu.dot_dimension_numbers<[1], [0], [0], [1], [0, 0, 1, 1], [], []>} : vector<6x64xbf16>, vector<64x128xbf16>, vector<6x128xf32> -> vector<6x128xf32>
      %450 = arith.addf %444, %449 : vector<6x128xf32>
      %cst_331 = arith.constant dense<0.000000e+00> : vector<6x64xf32>
      %451 = tpu.matmul %80, %432, %cst_331 {dimension_numbers = #tpu.dot_dimension_numbers<[1], [0], [0], [1], [0, 0, 1, 1], [], []>} : vector<6x14xbf16>, vector<14x64xbf16>, vector<6x64xf32> -> vector<6x64xf32>
      %452 = arith.truncf %451 : vector<6x64xf32> to vector<6x64xbf16>
      %c15_332 = arith.constant 15 : index
      %c0_333 = arith.constant 0 : index
      %c0_334 = arith.constant 0 : index
      %453 = vector.load %arg6[%c15_332, %c0_333, %c0_334] : memref<16x64x128xbf16, #tpu.memory_space<vmem>>, vector<1x64x128xbf16>
      %454 = vector.shape_cast %453 : vector<1x64x128xbf16> to vector<64x128xbf16>
      %cst_335 = arith.constant dense<0.000000e+00> : vector<6x128xf32>
      %455 = tpu.matmul %452, %454, %cst_335 {dimension_numbers = #tpu.dot_dimension_numbers<[1], [0], [0], [1], [0, 0, 1, 1], [], []>} : vector<6x64xbf16>, vector<64x128xbf16>, vector<6x128xf32> -> vector<6x128xf32>
      %456 = arith.addf %450, %455 : vector<6x128xf32>
      %457 = vector.broadcast %81 : vector<1x128xf32> to vector<6x128xf32>
      %458 = arith.addf %456, %457 : vector<6x128xf32>
      %cst_336 = arith.constant 0.000000e+00 : f32
      %459 = vector.broadcast %cst_336 : f32 to vector<6x128xf32>
      %460 = arith.maximumf %458, %459 : vector<6x128xf32>
      %461 = arith.truncf %460 : vector<6x128xf32> to vector<6x128xbf16>
      %462 = arith.index_cast %arg14 : i32 to index
      %c0_337 = arith.constant 0 : index
      %c0_338 = arith.constant 0 : index
      %463 = vector.load %arg13[%462, %c0_337, %c0_338] : memref<6x6x128xbf16, #tpu.memory_space<vmem>>, vector<1x6x128xbf16>
      %464 = vector.shape_cast %463 : vector<1x6x128xbf16> to vector<6x128xbf16>
      %465 = vector.shape_cast %461 : vector<6x128xbf16> to vector<1x6x128xbf16>
      tpu.vector_store %arg13[%462, %c0_337, %c0_338], %465 {strides = array<i32>} : memref<6x6x128xbf16, #tpu.memory_space<vmem>>, vector<1x6x128xbf16>,
    }
    %c6_i32_42 = arith.constant 6 : i32
    %83 = tpu.iota {dimensions = array<i32: 0>} : vector<2x6xi32>
    %84 = tpu.iota {dimensions = array<i32: 1>} : vector<2x6xi32>
    %c2_i32_43 = arith.constant 2 : i32
    %85 = vector.broadcast %c2_i32_43 : i32 to vector<2x6xi32>
    %86 = arith.muli %85, %83 : vector<2x6xi32>
    %c0_i32_44 = arith.constant 0 : i32
    %87 = vector.broadcast %c0_i32_44 : i32 to vector<2x6xi32>
    %88 = arith.addi %86, %87 : vector<2x6xi32>
    %89 = arith.cmpi eq, %84, %88 : vector<2x6xi32>
    %cst_45 = arith.constant 1.000000e+00 : f32
    %cst_46 = arith.constant 0.000000e+00 : f32
    %90 = vector.broadcast %cst_45 : f32 to vector<2x6xf32>
    %91 = vector.broadcast %cst_46 : f32 to vector<2x6xf32>
    %92 = arith.select %89, %90, %91 : vector<2x6xi1>, vector<2x6xf32>
    %93 = arith.truncf %92 : vector<2x6xf32> to vector<2x6xbf16>
    %c2_i32_47 = arith.constant 2 : i32
    %94 = vector.broadcast %c2_i32_47 : i32 to vector<2x6xi32>
    %95 = arith.muli %94, %83 : vector<2x6xi32>
    %c1_i32_48 = arith.constant 1 : i32
    %96 = vector.broadcast %c1_i32_48 : i32 to vector<2x6xi32>
    %97 = arith.addi %95, %96 : vector<2x6xi32>
    %98 = arith.cmpi eq, %84, %97 : vector<2x6xi32>
    %cst_49 = arith.constant 1.000000e+00 : f32
    %cst_50 = arith.constant 0.000000e+00 : f32
    %99 = vector.broadcast %cst_49 : f32 to vector<2x6xf32>
    %100 = vector.broadcast %cst_50 : f32 to vector<2x6xf32>
    %101 = arith.select %98, %99, %100 : vector<2x6xi1>, vector<2x6xf32>
    %102 = arith.truncf %101 : vector<2x6xf32> to vector<2x6xbf16>
    %c2_i32_51 = arith.constant 2 : i32
    %103 = vector.broadcast %c2_i32_51 : i32 to vector<2x6xi32>
    %104 = arith.muli %103, %83 : vector<2x6xi32>
    %c2_i32_52 = arith.constant 2 : i32
    %105 = vector.broadcast %c2_i32_52 : i32 to vector<2x6xi32>
    %106 = arith.addi %104, %105 : vector<2x6xi32>
    %107 = arith.cmpi eq, %84, %106 : vector<2x6xi32>
    %cst_53 = arith.constant 1.000000e+00 : f32
    %cst_54 = arith.constant 0.000000e+00 : f32
    %108 = vector.broadcast %cst_53 : f32 to vector<2x6xf32>
    %109 = vector.broadcast %cst_54 : f32 to vector<2x6xf32>
    %110 = arith.select %107, %108, %109 : vector<2x6xi1>, vector<2x6xf32>
    %111 = arith.truncf %110 : vector<2x6xf32> to vector<2x6xbf16>
    %c2_i32_55 = arith.constant 2 : i32
    %112 = vector.broadcast %c2_i32_55 : i32 to vector<2x6xi32>
    %113 = arith.muli %112, %83 : vector<2x6xi32>
    %c3_i32_56 = arith.constant 3 : i32
    %114 = vector.broadcast %c3_i32_56 : i32 to vector<2x6xi32>
    %115 = arith.addi %113, %114 : vector<2x6xi32>
    %116 = arith.cmpi eq, %84, %115 : vector<2x6xi32>
    %cst_57 = arith.constant 1.000000e+00 : f32
    %cst_58 = arith.constant 0.000000e+00 : f32
    %117 = vector.broadcast %cst_57 : f32 to vector<2x6xf32>
    %118 = vector.broadcast %cst_58 : f32 to vector<2x6xf32>
    %119 = arith.select %116, %117, %118 : vector<2x6xi1>, vector<2x6xf32>
    %120 = arith.truncf %119 : vector<2x6xf32> to vector<2x6xbf16>
    %c0_59 = arith.constant 0 : index
    %c0_60 = arith.constant 0 : index
    %121 = vector.load %arg9[%c0_59, %c0_60] : memref<1x256xf32, #tpu.memory_space<vmem>>, vector<1x256xf32>
    %c0_61 = arith.constant 0 : index
    %c0_62 = arith.constant 0 : index
    %c0_63 = arith.constant 0 : index
    %122 = vector.load %arg13[%c0_61, %c0_62, %c0_63] : memref<6x6x128xbf16, #tpu.memory_space<vmem>>, vector<1x6x128xbf16>
    %123 = vector.shape_cast %122 : vector<1x6x128xbf16> to vector<6x128xbf16>
    %cst_64 = arith.constant dense<0.000000e+00> : vector<2x128xf32>
    %124 = tpu.matmul %93, %123, %cst_64 {dimension_numbers = #tpu.dot_dimension_numbers<[1], [0], [0], [1], [0, 0, 1, 1], [], []>} : vector<2x6xbf16>, vector<6x128xbf16>, vector<2x128xf32> -> vector<2x128xf32>
    %125 = arith.truncf %124 : vector<2x128xf32> to vector<2x128xbf16>
    %c0_65 = arith.constant 0 : index
    %c0_66 = arith.constant 0 : index
    %c0_67 = arith.constant 0 : index
    %126 = vector.load %arg8[%c0_65, %c0_66, %c0_67] : memref<16x128x256xbf16, #tpu.memory_space<vmem>>, vector<1x128x256xbf16>
    %127 = vector.shape_cast %126 : vector<1x128x256xbf16> to vector<128x256xbf16>
    %cst_68 = arith.constant dense<0.000000e+00> : vector<2x256xf32>
    %128 = tpu.matmul %125, %127, %cst_68 {dimension_numbers = #tpu.dot_dimension_numbers<[1], [0], [0], [1], [0, 0, 1, 1], [], []>} : vector<2x128xbf16>, vector<128x256xbf16>, vector<2x256xf32> -> vector<2x256xf32>
    %cst_69 = arith.constant dense<0.000000e+00> : vector<2x128xf32>
    %129 = tpu.matmul %102, %123, %cst_69 {dimension_numbers = #tpu.dot_dimension_numbers<[1], [0], [0], [1], [0, 0, 1, 1], [], []>} : vector<2x6xbf16>, vector<6x128xbf16>, vector<2x128xf32> -> vector<2x128xf32>
    %130 = arith.truncf %129 : vector<2x128xf32> to vector<2x128xbf16>
    %c1 = arith.constant 1 : index
    %c0_70 = arith.constant 0 : index
    %c0_71 = arith.constant 0 : index
    %131 = vector.load %arg8[%c1, %c0_70, %c0_71] : memref<16x128x256xbf16, #tpu.memory_space<vmem>>, vector<1x128x256xbf16>
    %132 = vector.shape_cast %131 : vector<1x128x256xbf16> to vector<128x256xbf16>
    %cst_72 = arith.constant dense<0.000000e+00> : vector<2x256xf32>
    %133 = tpu.matmul %130, %132, %cst_72 {dimension_numbers = #tpu.dot_dimension_numbers<[1], [0], [0], [1], [0, 0, 1, 1], [], []>} : vector<2x128xbf16>, vector<128x256xbf16>, vector<2x256xf32> -> vector<2x256xf32>
    %134 = arith.addf %128, %133 : vector<2x256xf32>
    %cst_73 = arith.constant dense<0.000000e+00> : vector<2x128xf32>
    %135 = tpu.matmul %111, %123, %cst_73 {dimension_numbers = #tpu.dot_dimension_numbers<[1], [0], [0], [1], [0, 0, 1, 1], [], []>} : vector<2x6xbf16>, vector<6x128xbf16>, vector<2x128xf32> -> vector<2x128xf32>
    %136 = arith.truncf %135 : vector<2x128xf32> to vector<2x128xbf16>
    %c2 = arith.constant 2 : index
    %c0_74 = arith.constant 0 : index
    %c0_75 = arith.constant 0 : index
    %137 = vector.load %arg8[%c2, %c0_74, %c0_75] : memref<16x128x256xbf16, #tpu.memory_space<vmem>>, vector<1x128x256xbf16>
    %138 = vector.shape_cast %137 : vector<1x128x256xbf16> to vector<128x256xbf16>
    %cst_76 = arith.constant dense<0.000000e+00> : vector<2x256xf32>
    %139 = tpu.matmul %136, %138, %cst_76 {dimension_numbers = #tpu.dot_dimension_numbers<[1], [0], [0], [1], [0, 0, 1, 1], [], []>} : vector<2x128xbf16>, vector<128x256xbf16>, vector<2x256xf32> -> vector<2x256xf32>
    %140 = arith.addf %134, %139 : vector<2x256xf32>
    %cst_77 = arith.constant dense<0.000000e+00> : vector<2x128xf32>
    %141 = tpu.matmul %120, %123, %cst_77 {dimension_numbers = #tpu.dot_dimension_numbers<[1], [0], [0], [1], [0, 0, 1, 1], [], []>} : vector<2x6xbf16>, vector<6x128xbf16>, vector<2x128xf32> -> vector<2x128xf32>
    %142 = arith.truncf %141 : vector<2x128xf32> to vector<2x128xbf16>
    %c3 = arith.constant 3 : index
    %c0_78 = arith.constant 0 : index
    %c0_79 = arith.constant 0 : index
    %143 = vector.load %arg8[%c3, %c0_78, %c0_79] : memref<16x128x256xbf16, #tpu.memory_space<vmem>>, vector<1x128x256xbf16>
    %144 = vector.shape_cast %143 : vector<1x128x256xbf16> to vector<128x256xbf16>
    %cst_80 = arith.constant dense<0.000000e+00> : vector<2x256xf32>
    %145 = tpu.matmul %142, %144, %cst_80 {dimension_numbers = #tpu.dot_dimension_numbers<[1], [0], [0], [1], [0, 0, 1, 1], [], []>} : vector<2x128xbf16>, vector<128x256xbf16>, vector<2x256xf32> -> vector<2x256xf32>
    %146 = arith.addf %140, %145 : vector<2x256xf32>
    %c1_81 = arith.constant 1 : index
    %c0_82 = arith.constant 0 : index
    %c0_83 = arith.constant 0 : index
    %147 = vector.load %arg13[%c1_81, %c0_82, %c0_83] : memref<6x6x128xbf16, #tpu.memory_space<vmem>>, vector<1x6x128xbf16>
    %148 = vector.shape_cast %147 : vector<1x6x128xbf16> to vector<6x128xbf16>
    %cst_84 = arith.constant dense<0.000000e+00> : vector<2x128xf32>
    %149 = tpu.matmul %93, %148, %cst_84 {dimension_numbers = #tpu.dot_dimension_numbers<[1], [0], [0], [1], [0, 0, 1, 1], [], []>} : vector<2x6xbf16>, vector<6x128xbf16>, vector<2x128xf32> -> vector<2x128xf32>
    %150 = arith.truncf %149 : vector<2x128xf32> to vector<2x128xbf16>
    %c4 = arith.constant 4 : index
    %c0_85 = arith.constant 0 : index
    %c0_86 = arith.constant 0 : index
    %151 = vector.load %arg8[%c4, %c0_85, %c0_86] : memref<16x128x256xbf16, #tpu.memory_space<vmem>>, vector<1x128x256xbf16>
    %152 = vector.shape_cast %151 : vector<1x128x256xbf16> to vector<128x256xbf16>
    %cst_87 = arith.constant dense<0.000000e+00> : vector<2x256xf32>
    %153 = tpu.matmul %150, %152, %cst_87 {dimension_numbers = #tpu.dot_dimension_numbers<[1], [0], [0], [1], [0, 0, 1, 1], [], []>} : vector<2x128xbf16>, vector<128x256xbf16>, vector<2x256xf32> -> vector<2x256xf32>
    %154 = arith.addf %146, %153 : vector<2x256xf32>
    %cst_88 = arith.constant dense<0.000000e+00> : vector<2x128xf32>
    %155 = tpu.matmul %102, %148, %cst_88 {dimension_numbers = #tpu.dot_dimension_numbers<[1], [0], [0], [1], [0, 0, 1, 1], [], []>} : vector<2x6xbf16>, vector<6x128xbf16>, vector<2x128xf32> -> vector<2x128xf32>
    %156 = arith.truncf %155 : vector<2x128xf32> to vector<2x128xbf16>
    %c5 = arith.constant 5 : index
    %c0_89 = arith.constant 0 : index
    %c0_90 = arith.constant 0 : index
    %157 = vector.load %arg8[%c5, %c0_89, %c0_90] : memref<16x128x256xbf16, #tpu.memory_space<vmem>>, vector<1x128x256xbf16>
    %158 = vector.shape_cast %157 : vector<1x128x256xbf16> to vector<128x256xbf16>
    %cst_91 = arith.constant dense<0.000000e+00> : vector<2x256xf32>
    %159 = tpu.matmul %156, %158, %cst_91 {dimension_numbers = #tpu.dot_dimension_numbers<[1], [0], [0], [1], [0, 0, 1, 1], [], []>} : vector<2x128xbf16>, vector<128x256xbf16>, vector<2x256xf32> -> vector<2x256xf32>
    %160 = arith.addf %154, %159 : vector<2x256xf32>
    %cst_92 = arith.constant dense<0.000000e+00> : vector<2x128xf32>
    %161 = tpu.matmul %111, %148, %cst_92 {dimension_numbers = #tpu.dot_dimension_numbers<[1], [0], [0], [1], [0, 0, 1, 1], [], []>} : vector<2x6xbf16>, vector<6x128xbf16>, vector<2x128xf32> -> vector<2x128xf32>
    %162 = arith.truncf %161 : vector<2x128xf32> to vector<2x128xbf16>
    %c6 = arith.constant 6 : index
    %c0_93 = arith.constant 0 : index
    %c0_94 = arith.constant 0 : index
    %163 = vector.load %arg8[%c6, %c0_93, %c0_94] : memref<16x128x256xbf16, #tpu.memory_space<vmem>>, vector<1x128x256xbf16>
    %164 = vector.shape_cast %163 : vector<1x128x256xbf16> to vector<128x256xbf16>
    %cst_95 = arith.constant dense<0.000000e+00> : vector<2x256xf32>
    %165 = tpu.matmul %162, %164, %cst_95 {dimension_numbers = #tpu.dot_dimension_numbers<[1], [0], [0], [1], [0, 0, 1, 1], [], []>} : vector<2x128xbf16>, vector<128x256xbf16>, vector<2x256xf32> -> vector<2x256xf32>
    %166 = arith.addf %160, %165 : vector<2x256xf32>
    %cst_96 = arith.constant dense<0.000000e+00> : vector<2x128xf32>
    %167 = tpu.matmul %120, %148, %cst_96 {dimension_numbers = #tpu.dot_dimension_numbers<[1], [0], [0], [1], [0, 0, 1, 1], [], []>} : vector<2x6xbf16>, vector<6x128xbf16>, vector<2x128xf32> -> vector<2x128xf32>
    %168 = arith.truncf %167 : vector<2x128xf32> to vector<2x128xbf16>
    %c7 = arith.constant 7 : index
    %c0_97 = arith.constant 0 : index
    %c0_98 = arith.constant 0 : index
    %169 = vector.load %arg8[%c7, %c0_97, %c0_98] : memref<16x128x256xbf16, #tpu.memory_space<vmem>>, vector<1x128x256xbf16>
    %170 = vector.shape_cast %169 : vector<1x128x256xbf16> to vector<128x256xbf16>
    %cst_99 = arith.constant dense<0.000000e+00> : vector<2x256xf32>
    %171 = tpu.matmul %168, %170, %cst_99 {dimension_numbers = #tpu.dot_dimension_numbers<[1], [0], [0], [1], [0, 0, 1, 1], [], []>} : vector<2x128xbf16>, vector<128x256xbf16>, vector<2x256xf32> -> vector<2x256xf32>
    %172 = arith.addf %166, %171 : vector<2x256xf32>
    %c2_100 = arith.constant 2 : index
    %c0_101 = arith.constant 0 : index
    %c0_102 = arith.constant 0 : index
    %173 = vector.load %arg13[%c2_100, %c0_101, %c0_102] : memref<6x6x128xbf16, #tpu.memory_space<vmem>>, vector<1x6x128xbf16>
    %174 = vector.shape_cast %173 : vector<1x6x128xbf16> to vector<6x128xbf16>
    %cst_103 = arith.constant dense<0.000000e+00> : vector<2x128xf32>
    %175 = tpu.matmul %93, %174, %cst_103 {dimension_numbers = #tpu.dot_dimension_numbers<[1], [0], [0], [1], [0, 0, 1, 1], [], []>} : vector<2x6xbf16>, vector<6x128xbf16>, vector<2x128xf32> -> vector<2x128xf32>
    %176 = arith.truncf %175 : vector<2x128xf32> to vector<2x128xbf16>
    %c8 = arith.constant 8 : index
    %c0_104 = arith.constant 0 : index
    %c0_105 = arith.constant 0 : index
    %177 = vector.load %arg8[%c8, %c0_104, %c0_105] : memref<16x128x256xbf16, #tpu.memory_space<vmem>>, vector<1x128x256xbf16>
    %178 = vector.shape_cast %177 : vector<1x128x256xbf16> to vector<128x256xbf16>
    %cst_106 = arith.constant dense<0.000000e+00> : vector<2x256xf32>
    %179 = tpu.matmul %176, %178, %cst_106 {dimension_numbers = #tpu.dot_dimension_numbers<[1], [0], [0], [1], [0, 0, 1, 1], [], []>} : vector<2x128xbf16>, vector<128x256xbf16>, vector<2x256xf32> -> vector<2x256xf32>
    %180 = arith.addf %172, %179 : vector<2x256xf32>
    %cst_107 = arith.constant dense<0.000000e+00> : vector<2x128xf32>
    %181 = tpu.matmul %102, %174, %cst_107 {dimension_numbers = #tpu.dot_dimension_numbers<[1], [0], [0], [1], [0, 0, 1, 1], [], []>} : vector<2x6xbf16>, vector<6x128xbf16>, vector<2x128xf32> -> vector<2x128xf32>
    %182 = arith.truncf %181 : vector<2x128xf32> to vector<2x128xbf16>
    %c9 = arith.constant 9 : index
    %c0_108 = arith.constant 0 : index
    %c0_109 = arith.constant 0 : index
    %183 = vector.load %arg8[%c9, %c0_108, %c0_109] : memref<16x128x256xbf16, #tpu.memory_space<vmem>>, vector<1x128x256xbf16>
    %184 = vector.shape_cast %183 : vector<1x128x256xbf16> to vector<128x256xbf16>
    %cst_110 = arith.constant dense<0.000000e+00> : vector<2x256xf32>
    %185 = tpu.matmul %182, %184, %cst_110 {dimension_numbers = #tpu.dot_dimension_numbers<[1], [0], [0], [1], [0, 0, 1, 1], [], []>} : vector<2x128xbf16>, vector<128x256xbf16>, vector<2x256xf32> -> vector<2x256xf32>
    %186 = arith.addf %180, %185 : vector<2x256xf32>
    %cst_111 = arith.constant dense<0.000000e+00> : vector<2x128xf32>
    %187 = tpu.matmul %111, %174, %cst_111 {dimension_numbers = #tpu.dot_dimension_numbers<[1], [0], [0], [1], [0, 0, 1, 1], [], []>} : vector<2x6xbf16>, vector<6x128xbf16>, vector<2x128xf32> -> vector<2x128xf32>
    %188 = arith.truncf %187 : vector<2x128xf32> to vector<2x128xbf16>
    %c10 = arith.constant 10 : index
    %c0_112 = arith.constant 0 : index
    %c0_113 = arith.constant 0 : index
    %189 = vector.load %arg8[%c10, %c0_112, %c0_113] : memref<16x128x256xbf16, #tpu.memory_space<vmem>>, vector<1x128x256xbf16>
    %190 = vector.shape_cast %189 : vector<1x128x256xbf16> to vector<128x256xbf16>
    %cst_114 = arith.constant dense<0.000000e+00> : vector<2x256xf32>
    %191 = tpu.matmul %188, %190, %cst_114 {dimension_numbers = #tpu.dot_dimension_numbers<[1], [0], [0], [1], [0, 0, 1, 1], [], []>} : vector<2x128xbf16>, vector<128x256xbf16>, vector<2x256xf32> -> vector<2x256xf32>
    %192 = arith.addf %186, %191 : vector<2x256xf32>
    %cst_115 = arith.constant dense<0.000000e+00> : vector<2x128xf32>
    %193 = tpu.matmul %120, %174, %cst_115 {dimension_numbers = #tpu.dot_dimension_numbers<[1], [0], [0], [1], [0, 0, 1, 1], [], []>} : vector<2x6xbf16>, vector<6x128xbf16>, vector<2x128xf32> -> vector<2x128xf32>
    %194 = arith.truncf %193 : vector<2x128xf32> to vector<2x128xbf16>
    %c11 = arith.constant 11 : index
    %c0_116 = arith.constant 0 : index
    %c0_117 = arith.constant 0 : index
    %195 = vector.load %arg8[%c11, %c0_116, %c0_117] : memref<16x128x256xbf16, #tpu.memory_space<vmem>>, vector<1x128x256xbf16>
    %196 = vector.shape_cast %195 : vector<1x128x256xbf16> to vector<128x256xbf16>
    %cst_118 = arith.constant dense<0.000000e+00> : vector<2x256xf32>
    %197 = tpu.matmul %194, %196, %cst_118 {dimension_numbers = #tpu.dot_dimension_numbers<[1], [0], [0], [1], [0, 0, 1, 1], [], []>} : vector<2x128xbf16>, vector<128x256xbf16>, vector<2x256xf32> -> vector<2x256xf32>
    %198 = arith.addf %192, %197 : vector<2x256xf32>
    %c3_119 = arith.constant 3 : index
    %c0_120 = arith.constant 0 : index
    %c0_121 = arith.constant 0 : index
    %199 = vector.load %arg13[%c3_119, %c0_120, %c0_121] : memref<6x6x128xbf16, #tpu.memory_space<vmem>>, vector<1x6x128xbf16>
    %200 = vector.shape_cast %199 : vector<1x6x128xbf16> to vector<6x128xbf16>
    %cst_122 = arith.constant dense<0.000000e+00> : vector<2x128xf32>
    %201 = tpu.matmul %93, %200, %cst_122 {dimension_numbers = #tpu.dot_dimension_numbers<[1], [0], [0], [1], [0, 0, 1, 1], [], []>} : vector<2x6xbf16>, vector<6x128xbf16>, vector<2x128xf32> -> vector<2x128xf32>
    %202 = arith.truncf %201 : vector<2x128xf32> to vector<2x128xbf16>
    %c12 = arith.constant 12 : index
    %c0_123 = arith.constant 0 : index
    %c0_124 = arith.constant 0 : index
    %203 = vector.load %arg8[%c12, %c0_123, %c0_124] : memref<16x128x256xbf16, #tpu.memory_space<vmem>>, vector<1x128x256xbf16>
    %204 = vector.shape_cast %203 : vector<1x128x256xbf16> to vector<128x256xbf16>
    %cst_125 = arith.constant dense<0.000000e+00> : vector<2x256xf32>
    %205 = tpu.matmul %202, %204, %cst_125 {dimension_numbers = #tpu.dot_dimension_numbers<[1], [0], [0], [1], [0, 0, 1, 1], [], []>} : vector<2x128xbf16>, vector<128x256xbf16>, vector<2x256xf32> -> vector<2x256xf32>
    %206 = arith.addf %198, %205 : vector<2x256xf32>
    %cst_126 = arith.constant dense<0.000000e+00> : vector<2x128xf32>
    %207 = tpu.matmul %102, %200, %cst_126 {dimension_numbers = #tpu.dot_dimension_numbers<[1], [0], [0], [1], [0, 0, 1, 1], [], []>} : vector<2x6xbf16>, vector<6x128xbf16>, vector<2x128xf32> -> vector<2x128xf32>
    %208 = arith.truncf %207 : vector<2x128xf32> to vector<2x128xbf16>
    %c13 = arith.constant 13 : index
    %c0_127 = arith.constant 0 : index
    %c0_128 = arith.constant 0 : index
    %209 = vector.load %arg8[%c13, %c0_127, %c0_128] : memref<16x128x256xbf16, #tpu.memory_space<vmem>>, vector<1x128x256xbf16>
    %210 = vector.shape_cast %209 : vector<1x128x256xbf16> to vector<128x256xbf16>
    %cst_129 = arith.constant dense<0.000000e+00> : vector<2x256xf32>
    %211 = tpu.matmul %208, %210, %cst_129 {dimension_numbers = #tpu.dot_dimension_numbers<[1], [0], [0], [1], [0, 0, 1, 1], [], []>} : vector<2x128xbf16>, vector<128x256xbf16>, vector<2x256xf32> -> vector<2x256xf32>
    %212 = arith.addf %206, %211 : vector<2x256xf32>
    %cst_130 = arith.constant dense<0.000000e+00> : vector<2x128xf32>
    %213 = tpu.matmul %111, %200, %cst_130 {dimension_numbers = #tpu.dot_dimension_numbers<[1], [0], [0], [1], [0, 0, 1, 1], [], []>} : vector<2x6xbf16>, vector<6x128xbf16>, vector<2x128xf32> -> vector<2x128xf32>
    %214 = arith.truncf %213 : vector<2x128xf32> to vector<2x128xbf16>
    %c14 = arith.constant 14 : index
    %c0_131 = arith.constant 0 : index
    %c0_132 = arith.constant 0 : index
    %215 = vector.load %arg8[%c14, %c0_131, %c0_132] : memref<16x128x256xbf16, #tpu.memory_space<vmem>>, vector<1x128x256xbf16>
    %216 = vector.shape_cast %215 : vector<1x128x256xbf16> to vector<128x256xbf16>
    %cst_133 = arith.constant dense<0.000000e+00> : vector<2x256xf32>
    %217 = tpu.matmul %214, %216, %cst_133 {dimension_numbers = #tpu.dot_dimension_numbers<[1], [0], [0], [1], [0, 0, 1, 1], [], []>} : vector<2x128xbf16>, vector<128x256xbf16>, vector<2x256xf32> -> vector<2x256xf32>
    %218 = arith.addf %212, %217 : vector<2x256xf32>
    %cst_134 = arith.constant dense<0.000000e+00> : vector<2x128xf32>
    %219 = tpu.matmul %120, %200, %cst_134 {dimension_numbers = #tpu.dot_dimension_numbers<[1], [0], [0], [1], [0, 0, 1, 1], [], []>} : vector<2x6xbf16>, vector<6x128xbf16>, vector<2x128xf32> -> vector<2x128xf32>
    %220 = arith.truncf %219 : vector<2x128xf32> to vector<2x128xbf16>
    %c15 = arith.constant 15 : index
    %c0_135 = arith.constant 0 : index
    %c0_136 = arith.constant 0 : index
    %221 = vector.load %arg8[%c15, %c0_135, %c0_136] : memref<16x128x256xbf16, #tpu.memory_space<vmem>>, vector<1x128x256xbf16>
    %222 = vector.shape_cast %221 : vector<1x128x256xbf16> to vector<128x256xbf16>
    %cst_137 = arith.constant dense<0.000000e+00> : vector<2x256xf32>
    %223 = tpu.matmul %220, %222, %cst_137 {dimension_numbers = #tpu.dot_dimension_numbers<[1], [0], [0], [1], [0, 0, 1, 1], [], []>} : vector<2x128xbf16>, vector<128x256xbf16>, vector<2x256xf32> -> vector<2x256xf32>
    %224 = arith.addf %218, %223 : vector<2x256xf32>
    %225 = vector.broadcast %121 : vector<1x256xf32> to vector<2x256xf32>
    %226 = arith.addf %224, %225 : vector<2x256xf32>
    %cst_138 = arith.constant 0.000000e+00 : f32
    %227 = vector.broadcast %cst_138 : f32 to vector<2x256xf32>
    %228 = arith.maximumf %226, %227 : vector<2x256xf32>
    %c0_139 = arith.constant 0 : index
    %c0_140 = arith.constant 0 : index
    %c0_141 = arith.constant 0 : index
    %c0_142 = arith.constant 0 : index
    %229 = vector.load %arg10[%c0_139, %c0_140, %c0_141, %c0_142] : memref<1x2x2x256xf32, #tpu.memory_space<vmem>>, vector<1x1x2x256xf32>
    %230 = vector.shape_cast %229 : vector<1x1x2x256xf32> to vector<2x256xf32>
    %231 = vector.shape_cast %228 : vector<2x256xf32> to vector<1x1x2x256xf32>
    tpu.vector_store %arg10[%c0_139, %c0_140, %c0_141, %c0_142], %231 {strides = array<i32>} : memref<1x2x2x256xf32, #tpu.memory_space<vmem>>, vector<1x1x2x256xf32>,
    %c2_143 = arith.constant 2 : index
    %c0_144 = arith.constant 0 : index
    %c0_145 = arith.constant 0 : index
    %232 = vector.load %arg13[%c2_143, %c0_144, %c0_145] : memref<6x6x128xbf16, #tpu.memory_space<vmem>>, vector<1x6x128xbf16>
    %233 = vector.shape_cast %232 : vector<1x6x128xbf16> to vector<6x128xbf16>
    %cst_146 = arith.constant dense<0.000000e+00> : vector<2x128xf32>
    %234 = tpu.matmul %93, %233, %cst_146 {dimension_numbers = #tpu.dot_dimension_numbers<[1], [0], [0], [1], [0, 0, 1, 1], [], []>} : vector<2x6xbf16>, vector<6x128xbf16>, vector<2x128xf32> -> vector<2x128xf32>
    %235 = arith.truncf %234 : vector<2x128xf32> to vector<2x128xbf16>
    %c0_147 = arith.constant 0 : index
    %c0_148 = arith.constant 0 : index
    %c0_149 = arith.constant 0 : index
    %236 = vector.load %arg8[%c0_147, %c0_148, %c0_149] : memref<16x128x256xbf16, #tpu.memory_space<vmem>>, vector<1x128x256xbf16>
    %237 = vector.shape_cast %236 : vector<1x128x256xbf16> to vector<128x256xbf16>
    %cst_150 = arith.constant dense<0.000000e+00> : vector<2x256xf32>
    %238 = tpu.matmul %235, %237, %cst_150 {dimension_numbers = #tpu.dot_dimension_numbers<[1], [0], [0], [1], [0, 0, 1, 1], [], []>} : vector<2x128xbf16>, vector<128x256xbf16>, vector<2x256xf32> -> vector<2x256xf32>
    %cst_151 = arith.constant dense<0.000000e+00> : vector<2x128xf32>
    %239 = tpu.matmul %102, %233, %cst_151 {dimension_numbers = #tpu.dot_dimension_numbers<[1], [0], [0], [1], [0, 0, 1, 1], [], []>} : vector<2x6xbf16>, vector<6x128xbf16>, vector<2x128xf32> -> vector<2x128xf32>
    %240 = arith.truncf %239 : vector<2x128xf32> to vector<2x128xbf16>
    %c1_152 = arith.constant 1 : index
    %c0_153 = arith.constant 0 : index
    %c0_154 = arith.constant 0 : index
    %241 = vector.load %arg8[%c1_152, %c0_153, %c0_154] : memref<16x128x256xbf16, #tpu.memory_space<vmem>>, vector<1x128x256xbf16>
    %242 = vector.shape_cast %241 : vector<1x128x256xbf16> to vector<128x256xbf16>
    %cst_155 = arith.constant dense<0.000000e+00> : vector<2x256xf32>
    %243 = tpu.matmul %240, %242, %cst_155 {dimension_numbers = #tpu.dot_dimension_numbers<[1], [0], [0], [1], [0, 0, 1, 1], [], []>} : vector<2x128xbf16>, vector<128x256xbf16>, vector<2x256xf32> -> vector<2x256xf32>
    %244 = arith.addf %238, %243 : vector<2x256xf32>
    %cst_156 = arith.constant dense<0.000000e+00> : vector<2x128xf32>
    %245 = tpu.matmul %111, %233, %cst_156 {dimension_numbers = #tpu.dot_dimension_numbers<[1], [0], [0], [1], [0, 0, 1, 1], [], []>} : vector<2x6xbf16>, vector<6x128xbf16>, vector<2x128xf32> -> vector<2x128xf32>
    %246 = arith.truncf %245 : vector<2x128xf32> to vector<2x128xbf16>
    %c2_157 = arith.constant 2 : index
    %c0_158 = arith.constant 0 : index
    %c0_159 = arith.constant 0 : index
    %247 = vector.load %arg8[%c2_157, %c0_158, %c0_159] : memref<16x128x256xbf16, #tpu.memory_space<vmem>>, vector<1x128x256xbf16>
    %248 = vector.shape_cast %247 : vector<1x128x256xbf16> to vector<128x256xbf16>
    %cst_160 = arith.constant dense<0.000000e+00> : vector<2x256xf32>
    %249 = tpu.matmul %246, %248, %cst_160 {dimension_numbers = #tpu.dot_dimension_numbers<[1], [0], [0], [1], [0, 0, 1, 1], [], []>} : vector<2x128xbf16>, vector<128x256xbf16>, vector<2x256xf32> -> vector<2x256xf32>
    %250 = arith.addf %244, %249 : vector<2x256xf32>
    %cst_161 = arith.constant dense<0.000000e+00> : vector<2x128xf32>
    %251 = tpu.matmul %120, %233, %cst_161 {dimension_numbers = #tpu.dot_dimension_numbers<[1], [0], [0], [1], [0, 0, 1, 1], [], []>} : vector<2x6xbf16>, vector<6x128xbf16>, vector<2x128xf32> -> vector<2x128xf32>
    %252 = arith.truncf %251 : vector<2x128xf32> to vector<2x128xbf16>
    %c3_162 = arith.constant 3 : index
    %c0_163 = arith.constant 0 : index
    %c0_164 = arith.constant 0 : index
    %253 = vector.load %arg8[%c3_162, %c0_163, %c0_164] : memref<16x128x256xbf16, #tpu.memory_space<vmem>>, vector<1x128x256xbf16>
    %254 = vector.shape_cast %253 : vector<1x128x256xbf16> to vector<128x256xbf16>
    %cst_165 = arith.constant dense<0.000000e+00> : vector<2x256xf32>
    %255 = tpu.matmul %252, %254, %cst_165 {dimension_numbers = #tpu.dot_dimension_numbers<[1], [0], [0], [1], [0, 0, 1, 1], [], []>} : vector<2x128xbf16>, vector<128x256xbf16>, vector<2x256xf32> -> vector<2x256xf32>
    %256 = arith.addf %250, %255 : vector<2x256xf32>
    %c3_166 = arith.constant 3 : index
    %c0_167 = arith.constant 0 : index
    %c0_168 = arith.constant 0 : index
    %257 = vector.load %arg13[%c3_166, %c0_167, %c0_168] : memref<6x6x128xbf16, #tpu.memory_space<vmem>>, vector<1x6x128xbf16>
    %258 = vector.shape_cast %257 : vector<1x6x128xbf16> to vector<6x128xbf16>
    %cst_169 = arith.constant dense<0.000000e+00> : vector<2x128xf32>
    %259 = tpu.matmul %93, %258, %cst_169 {dimension_numbers = #tpu.dot_dimension_numbers<[1], [0], [0], [1], [0, 0, 1, 1], [], []>} : vector<2x6xbf16>, vector<6x128xbf16>, vector<2x128xf32> -> vector<2x128xf32>
    %260 = arith.truncf %259 : vector<2x128xf32> to vector<2x128xbf16>
    %c4_170 = arith.constant 4 : index
    %c0_171 = arith.constant 0 : index
    %c0_172 = arith.constant 0 : index
    %261 = vector.load %arg8[%c4_170, %c0_171, %c0_172] : memref<16x128x256xbf16, #tpu.memory_space<vmem>>, vector<1x128x256xbf16>
    %262 = vector.shape_cast %261 : vector<1x128x256xbf16> to vector<128x256xbf16>
    %cst_173 = arith.constant dense<0.000000e+00> : vector<2x256xf32>
    %263 = tpu.matmul %260, %262, %cst_173 {dimension_numbers = #tpu.dot_dimension_numbers<[1], [0], [0], [1], [0, 0, 1, 1], [], []>} : vector<2x128xbf16>, vector<128x256xbf16>, vector<2x256xf32> -> vector<2x256xf32>
    %264 = arith.addf %256, %263 : vector<2x256xf32>
    %cst_174 = arith.constant dense<0.000000e+00> : vector<2x128xf32>
    %265 = tpu.matmul %102, %258, %cst_174 {dimension_numbers = #tpu.dot_dimension_numbers<[1], [0], [0], [1], [0, 0, 1, 1], [], []>} : vector<2x6xbf16>, vector<6x128xbf16>, vector<2x128xf32> -> vector<2x128xf32>
    %266 = arith.truncf %265 : vector<2x128xf32> to vector<2x128xbf16>
    %c5_175 = arith.constant 5 : index
    %c0_176 = arith.constant 0 : index
    %c0_177 = arith.constant 0 : index
    %267 = vector.load %arg8[%c5_175, %c0_176, %c0_177] : memref<16x128x256xbf16, #tpu.memory_space<vmem>>, vector<1x128x256xbf16>
    %268 = vector.shape_cast %267 : vector<1x128x256xbf16> to vector<128x256xbf16>
    %cst_178 = arith.constant dense<0.000000e+00> : vector<2x256xf32>
    %269 = tpu.matmul %266, %268, %cst_178 {dimension_numbers = #tpu.dot_dimension_numbers<[1], [0], [0], [1], [0, 0, 1, 1], [], []>} : vector<2x128xbf16>, vector<128x256xbf16>, vector<2x256xf32> -> vector<2x256xf32>
    %270 = arith.addf %264, %269 : vector<2x256xf32>
    %cst_179 = arith.constant dense<0.000000e+00> : vector<2x128xf32>
    %271 = tpu.matmul %111, %258, %cst_179 {dimension_numbers = #tpu.dot_dimension_numbers<[1], [0], [0], [1], [0, 0, 1, 1], [], []>} : vector<2x6xbf16>, vector<6x128xbf16>, vector<2x128xf32> -> vector<2x128xf32>
    %272 = arith.truncf %271 : vector<2x128xf32> to vector<2x128xbf16>
    %c6_180 = arith.constant 6 : index
    %c0_181 = arith.constant 0 : index
    %c0_182 = arith.constant 0 : index
    %273 = vector.load %arg8[%c6_180, %c0_181, %c0_182] : memref<16x128x256xbf16, #tpu.memory_space<vmem>>, vector<1x128x256xbf16>
    %274 = vector.shape_cast %273 : vector<1x128x256xbf16> to vector<128x256xbf16>
    %cst_183 = arith.constant dense<0.000000e+00> : vector<2x256xf32>
    %275 = tpu.matmul %272, %274, %cst_183 {dimension_numbers = #tpu.dot_dimension_numbers<[1], [0], [0], [1], [0, 0, 1, 1], [], []>} : vector<2x128xbf16>, vector<128x256xbf16>, vector<2x256xf32> -> vector<2x256xf32>
    %276 = arith.addf %270, %275 : vector<2x256xf32>
    %cst_184 = arith.constant dense<0.000000e+00> : vector<2x128xf32>
    %277 = tpu.matmul %120, %258, %cst_184 {dimension_numbers = #tpu.dot_dimension_numbers<[1], [0], [0], [1], [0, 0, 1, 1], [], []>} : vector<2x6xbf16>, vector<6x128xbf16>, vector<2x128xf32> -> vector<2x128xf32>
    %278 = arith.truncf %277 : vector<2x128xf32> to vector<2x128xbf16>
    %c7_185 = arith.constant 7 : index
    %c0_186 = arith.constant 0 : index
    %c0_187 = arith.constant 0 : index
    %279 = vector.load %arg8[%c7_185, %c0_186, %c0_187] : memref<16x128x256xbf16, #tpu.memory_space<vmem>>, vector<1x128x256xbf16>
    %280 = vector.shape_cast %279 : vector<1x128x256xbf16> to vector<128x256xbf16>
    %cst_188 = arith.constant dense<0.000000e+00> : vector<2x256xf32>
    %281 = tpu.matmul %278, %280, %cst_188 {dimension_numbers = #tpu.dot_dimension_numbers<[1], [0], [0], [1], [0, 0, 1, 1], [], []>} : vector<2x128xbf16>, vector<128x256xbf16>, vector<2x256xf32> -> vector<2x256xf32>
    %282 = arith.addf %276, %281 : vector<2x256xf32>
    %c4_189 = arith.constant 4 : index
    %c0_190 = arith.constant 0 : index
    %c0_191 = arith.constant 0 : index
    %283 = vector.load %arg13[%c4_189, %c0_190, %c0_191] : memref<6x6x128xbf16, #tpu.memory_space<vmem>>, vector<1x6x128xbf16>
    %284 = vector.shape_cast %283 : vector<1x6x128xbf16> to vector<6x128xbf16>
    %cst_192 = arith.constant dense<0.000000e+00> : vector<2x128xf32>
    %285 = tpu.matmul %93, %284, %cst_192 {dimension_numbers = #tpu.dot_dimension_numbers<[1], [0], [0], [1], [0, 0, 1, 1], [], []>} : vector<2x6xbf16>, vector<6x128xbf16>, vector<2x128xf32> -> vector<2x128xf32>
    %286 = arith.truncf %285 : vector<2x128xf32> to vector<2x128xbf16>
    %c8_193 = arith.constant 8 : index
    %c0_194 = arith.constant 0 : index
    %c0_195 = arith.constant 0 : index
    %287 = vector.load %arg8[%c8_193, %c0_194, %c0_195] : memref<16x128x256xbf16, #tpu.memory_space<vmem>>, vector<1x128x256xbf16>
    %288 = vector.shape_cast %287 : vector<1x128x256xbf16> to vector<128x256xbf16>
    %cst_196 = arith.constant dense<0.000000e+00> : vector<2x256xf32>
    %289 = tpu.matmul %286, %288, %cst_196 {dimension_numbers = #tpu.dot_dimension_numbers<[1], [0], [0], [1], [0, 0, 1, 1], [], []>} : vector<2x128xbf16>, vector<128x256xbf16>, vector<2x256xf32> -> vector<2x256xf32>
    %290 = arith.addf %282, %289 : vector<2x256xf32>
    %cst_197 = arith.constant dense<0.000000e+00> : vector<2x128xf32>
    %291 = tpu.matmul %102, %284, %cst_197 {dimension_numbers = #tpu.dot_dimension_numbers<[1], [0], [0], [1], [0, 0, 1, 1], [], []>} : vector<2x6xbf16>, vector<6x128xbf16>, vector<2x128xf32> -> vector<2x128xf32>
    %292 = arith.truncf %291 : vector<2x128xf32> to vector<2x128xbf16>
    %c9_198 = arith.constant 9 : index
    %c0_199 = arith.constant 0 : index
    %c0_200 = arith.constant 0 : index
    %293 = vector.load %arg8[%c9_198, %c0_199, %c0_200] : memref<16x128x256xbf16, #tpu.memory_space<vmem>>, vector<1x128x256xbf16>
    %294 = vector.shape_cast %293 : vector<1x128x256xbf16> to vector<128x256xbf16>
    %cst_201 = arith.constant dense<0.000000e+00> : vector<2x256xf32>
    %295 = tpu.matmul %292, %294, %cst_201 {dimension_numbers = #tpu.dot_dimension_numbers<[1], [0], [0], [1], [0, 0, 1, 1], [], []>} : vector<2x128xbf16>, vector<128x256xbf16>, vector<2x256xf32> -> vector<2x256xf32>
    %296 = arith.addf %290, %295 : vector<2x256xf32>
    %cst_202 = arith.constant dense<0.000000e+00> : vector<2x128xf32>
    %297 = tpu.matmul %111, %284, %cst_202 {dimension_numbers = #tpu.dot_dimension_numbers<[1], [0], [0], [1], [0, 0, 1, 1], [], []>} : vector<2x6xbf16>, vector<6x128xbf16>, vector<2x128xf32> -> vector<2x128xf32>
    %298 = arith.truncf %297 : vector<2x128xf32> to vector<2x128xbf16>
    %c10_203 = arith.constant 10 : index
    %c0_204 = arith.constant 0 : index
    %c0_205 = arith.constant 0 : index
    %299 = vector.load %arg8[%c10_203, %c0_204, %c0_205] : memref<16x128x256xbf16, #tpu.memory_space<vmem>>, vector<1x128x256xbf16>
    %300 = vector.shape_cast %299 : vector<1x128x256xbf16> to vector<128x256xbf16>
    %cst_206 = arith.constant dense<0.000000e+00> : vector<2x256xf32>
    %301 = tpu.matmul %298, %300, %cst_206 {dimension_numbers = #tpu.dot_dimension_numbers<[1], [0], [0], [1], [0, 0, 1, 1], [], []>} : vector<2x128xbf16>, vector<128x256xbf16>, vector<2x256xf32> -> vector<2x256xf32>
    %302 = arith.addf %296, %301 : vector<2x256xf32>
    %cst_207 = arith.constant dense<0.000000e+00> : vector<2x128xf32>
    %303 = tpu.matmul %120, %284, %cst_207 {dimension_numbers = #tpu.dot_dimension_numbers<[1], [0], [0], [1], [0, 0, 1, 1], [], []>} : vector<2x6xbf16>, vector<6x128xbf16>, vector<2x128xf32> -> vector<2x128xf32>
    %304 = arith.truncf %303 : vector<2x128xf32> to vector<2x128xbf16>
    %c11_208 = arith.constant 11 : index
    %c0_209 = arith.constant 0 : index
    %c0_210 = arith.constant 0 : index
    %305 = vector.load %arg8[%c11_208, %c0_209, %c0_210] : memref<16x128x256xbf16, #tpu.memory_space<vmem>>, vector<1x128x256xbf16>
    %306 = vector.shape_cast %305 : vector<1x128x256xbf16> to vector<128x256xbf16>
    %cst_211 = arith.constant dense<0.000000e+00> : vector<2x256xf32>
    %307 = tpu.matmul %304, %306, %cst_211 {dimension_numbers = #tpu.dot_dimension_numbers<[1], [0], [0], [1], [0, 0, 1, 1], [], []>} : vector<2x128xbf16>, vector<128x256xbf16>, vector<2x256xf32> -> vector<2x256xf32>
    %308 = arith.addf %302, %307 : vector<2x256xf32>
    %c5_212 = arith.constant 5 : index
    %c0_213 = arith.constant 0 : index
    %c0_214 = arith.constant 0 : index
    %309 = vector.load %arg13[%c5_212, %c0_213, %c0_214] : memref<6x6x128xbf16, #tpu.memory_space<vmem>>, vector<1x6x128xbf16>
    %310 = vector.shape_cast %309 : vector<1x6x128xbf16> to vector<6x128xbf16>
    %cst_215 = arith.constant dense<0.000000e+00> : vector<2x128xf32>
    %311 = tpu.matmul %93, %310, %cst_215 {dimension_numbers = #tpu.dot_dimension_numbers<[1], [0], [0], [1], [0, 0, 1, 1], [], []>} : vector<2x6xbf16>, vector<6x128xbf16>, vector<2x128xf32> -> vector<2x128xf32>
    %312 = arith.truncf %311 : vector<2x128xf32> to vector<2x128xbf16>
    %c12_216 = arith.constant 12 : index
    %c0_217 = arith.constant 0 : index
    %c0_218 = arith.constant 0 : index
    %313 = vector.load %arg8[%c12_216, %c0_217, %c0_218] : memref<16x128x256xbf16, #tpu.memory_space<vmem>>, vector<1x128x256xbf16>
    %314 = vector.shape_cast %313 : vector<1x128x256xbf16> to vector<128x256xbf16>
    %cst_219 = arith.constant dense<0.000000e+00> : vector<2x256xf32>
    %315 = tpu.matmul %312, %314, %cst_219 {dimension_numbers = #tpu.dot_dimension_numbers<[1], [0], [0], [1], [0, 0, 1, 1], [], []>} : vector<2x128xbf16>, vector<128x256xbf16>, vector<2x256xf32> -> vector<2x256xf32>
    %316 = arith.addf %308, %315 : vector<2x256xf32>
    %cst_220 = arith.constant dense<0.000000e+00> : vector<2x128xf32>
    %317 = tpu.matmul %102, %310, %cst_220 {dimension_numbers = #tpu.dot_dimension_numbers<[1], [0], [0], [1], [0, 0, 1, 1], [], []>} : vector<2x6xbf16>, vector<6x128xbf16>, vector<2x128xf32> -> vector<2x128xf32>
    %318 = arith.truncf %317 : vector<2x128xf32> to vector<2x128xbf16>
    %c13_221 = arith.constant 13 : index
    %c0_222 = arith.constant 0 : index
    %c0_223 = arith.constant 0 : index
    %319 = vector.load %arg8[%c13_221, %c0_222, %c0_223] : memref<16x128x256xbf16, #tpu.memory_space<vmem>>, vector<1x128x256xbf16>
    %320 = vector.shape_cast %319 : vector<1x128x256xbf16> to vector<128x256xbf16>
    %cst_224 = arith.constant dense<0.000000e+00> : vector<2x256xf32>
    %321 = tpu.matmul %318, %320, %cst_224 {dimension_numbers = #tpu.dot_dimension_numbers<[1], [0], [0], [1], [0, 0, 1, 1], [], []>} : vector<2x128xbf16>, vector<128x256xbf16>, vector<2x256xf32> -> vector<2x256xf32>
    %322 = arith.addf %316, %321 : vector<2x256xf32>
    %cst_225 = arith.constant dense<0.000000e+00> : vector<2x128xf32>
    %323 = tpu.matmul %111, %310, %cst_225 {dimension_numbers = #tpu.dot_dimension_numbers<[1], [0], [0], [1], [0, 0, 1, 1], [], []>} : vector<2x6xbf16>, vector<6x128xbf16>, vector<2x128xf32> -> vector<2x128xf32>
    %324 = arith.truncf %323 : vector<2x128xf32> to vector<2x128xbf16>
    %c14_226 = arith.constant 14 : index
    %c0_227 = arith.constant 0 : index
    %c0_228 = arith.constant 0 : index
    %325 = vector.load %arg8[%c14_226, %c0_227, %c0_228] : memref<16x128x256xbf16, #tpu.memory_space<vmem>>, vector<1x128x256xbf16>
    %326 = vector.shape_cast %325 : vector<1x128x256xbf16> to vector<128x256xbf16>
    %cst_229 = arith.constant dense<0.000000e+00> : vector<2x256xf32>
    %327 = tpu.matmul %324, %326, %cst_229 {dimension_numbers = #tpu.dot_dimension_numbers<[1], [0], [0], [1], [0, 0, 1, 1], [], []>} : vector<2x128xbf16>, vector<128x256xbf16>, vector<2x256xf32> -> vector<2x256xf32>
    %328 = arith.addf %322, %327 : vector<2x256xf32>
    %cst_230 = arith.constant dense<0.000000e+00> : vector<2x128xf32>
    %329 = tpu.matmul %120, %310, %cst_230 {dimension_numbers = #tpu.dot_dimension_numbers<[1], [0], [0], [1], [0, 0, 1, 1], [], []>} : vector<2x6xbf16>, vector<6x128xbf16>, vector<2x128xf32> -> vector<2x128xf32>
    %330 = arith.truncf %329 : vector<2x128xf32> to vector<2x128xbf16>
    %c15_231 = arith.constant 15 : index
    %c0_232 = arith.constant 0 : index
    %c0_233 = arith.constant 0 : index
    %331 = vector.load %arg8[%c15_231, %c0_232, %c0_233] : memref<16x128x256xbf16, #tpu.memory_space<vmem>>, vector<1x128x256xbf16>
    %332 = vector.shape_cast %331 : vector<1x128x256xbf16> to vector<128x256xbf16>
    %cst_234 = arith.constant dense<0.000000e+00> : vector<2x256xf32>
    %333 = tpu.matmul %330, %332, %cst_234 {dimension_numbers = #tpu.dot_dimension_numbers<[1], [0], [0], [1], [0, 0, 1, 1], [], []>} : vector<2x128xbf16>, vector<128x256xbf16>, vector<2x256xf32> -> vector<2x256xf32>
    %334 = arith.addf %328, %333 : vector<2x256xf32>
    %335 = vector.broadcast %121 : vector<1x256xf32> to vector<2x256xf32>
    %336 = arith.addf %334, %335 : vector<2x256xf32>
    %cst_235 = arith.constant 0.000000e+00 : f32
    %337 = vector.broadcast %cst_235 : f32 to vector<2x256xf32>
    %338 = arith.maximumf %336, %337 : vector<2x256xf32>
    %c0_236 = arith.constant 0 : index
    %c1_237 = arith.constant 1 : index
    %c0_238 = arith.constant 0 : index
    %c0_239 = arith.constant 0 : index
    %339 = vector.load %arg10[%c0_236, %c1_237, %c0_238, %c0_239] : memref<1x2x2x256xf32, #tpu.memory_space<vmem>>, vector<1x1x2x256xf32>
    %340 = vector.shape_cast %339 : vector<1x1x2x256xf32> to vector<2x256xf32>
    %341 = vector.shape_cast %338 : vector<2x256xf32> to vector<1x1x2x256xf32>
    tpu.vector_store %arg10[%c0_236, %c1_237, %c0_238, %c0_239], %341 {strides = array<i32>} : memref<1x2x2x256xf32, #tpu.memory_space<vmem>>, vector<1x1x2x256xf32>,
    return
  }
  func.func @transform_0(%arg0: i32) -> (i32, i32, i32, i32) {
    %c0_i32 = arith.constant 0 : i32
    %c0_i32_0 = arith.constant 0 : i32
    %c0_i32_1 = arith.constant 0 : i32
    %c0_i32_2 = arith.constant 0 : i32
    return %arg0, %c0_i32, %c0_i32_0, %c0_i32_1 : i32, i32, i32, i32
  }
  func.func @transform_1(%arg0: i32) -> (i32, i32) {
    %c0_i32 = arith.constant 0 : i32
    %c0_i32_0 = arith.constant 0 : i32
    %c0_i32_1 = arith.constant 0 : i32
    return %c0_i32, %c0_i32_0 : i32, i32
  }
  func.func @transform_2(%arg0: i32) -> (i32, i32) {
    %c0_i32 = arith.constant 0 : i32
    %c0_i32_0 = arith.constant 0 : i32
    %c0_i32_1 = arith.constant 0 : i32
    return %c0_i32, %c0_i32_0 : i32, i32
  }
  func.func @transform_3(%arg0: i32) -> (i32, i32, i32) {
    %c0_i32 = arith.constant 0 : i32
    %c0_i32_0 = arith.constant 0 : i32
    %c0_i32_1 = arith.constant 0 : i32
    %c0_i32_2 = arith.constant 0 : i32
    return %c0_i32, %c0_i32_0, %c0_i32_1 : i32, i32, i32
  }
  func.func @transform_4(%arg0: i32) -> (i32, i32) {
    %c0_i32 = arith.constant 0 : i32
    %c0_i32_0 = arith.constant 0 : i32
    %c0_i32_1 = arith.constant 0 : i32
    return %c0_i32, %c0_i32_0 : i32, i32
  }
  func.func @transform_5(%arg0: i32) -> (i32, i32, i32) {
    %c0_i32 = arith.constant 0 : i32
    %c0_i32_0 = arith.constant 0 : i32
    %c0_i32_1 = arith.constant 0 : i32
    %c0_i32_2 = arith.constant 0 : i32
    return %c0_i32, %c0_i32_0, %c0_i32_1 : i32, i32, i32
  }
  func.func @transform_6(%arg0: i32) -> (i32, i32) {
    %c0_i32 = arith.constant 0 : i32
    %c0_i32_0 = arith.constant 0 : i32
    %c0_i32_1 = arith.constant 0 : i32
    return %c0_i32, %c0_i32_0 : i32, i32
  }
  func.func @transform_7(%arg0: i32) -> (i32, i32, i32) {
    %c0_i32 = arith.constant 0 : i32
    %c0_i32_0 = arith.constant 0 : i32
    %c0_i32_1 = arith.constant 0 : i32
    %c0_i32_2 = arith.constant 0 : i32
    return %c0_i32, %c0_i32_0, %c0_i32_1 : i32, i32, i32
  }
  func.func @transform_8(%arg0: i32) -> (i32, i32) {
    %c0_i32 = arith.constant 0 : i32
    %c0_i32_0 = arith.constant 0 : i32
    %c0_i32_1 = arith.constant 0 : i32
    return %c0_i32, %c0_i32_0 : i32, i32
  }
  func.func @transform_9(%arg0: i32) -> (i32, i32, i32, i32) {
    %c0_i32 = arith.constant 0 : i32
    %c0_i32_0 = arith.constant 0 : i32
    %c0_i32_1 = arith.constant 0 : i32
    %c0_i32_2 = arith.constant 0 : i32
    return %arg0, %c0_i32, %c0_i32_0, %c0_i32_1 : i32, i32, i32, i32
  }
}

</mosaic_0001>

<llo_original>
// kernel: conv_encoder_forward.1
$region0: #{conv_encoder_forward.1}
  #allocation0 [shape = 'u32[]', space=smem, size = 0x4, offset = 0x4, fixed_abs, tag = 'smem constant byte address 0x4 - core index']
  #allocation1 [shape = 'u32[144,128]{1,0:T(1,128)}', space=vmem, size = 0x12000, scoped, tag = 'internal scratch']
  #allocation2 [shape = 'bf16[31,31,32]{2,1,0:T(8,128)(2,1)}', space=vmem, size = 0x3e000, scoped, tag = 'scratch operand']
  #allocation3 [shape = 'bf16[14,14,64]{2,1,0:T(8,128)(2,1)}', space=vmem, size = 0xe000, scoped, tag = 'scratch operand']
  #allocation4 [shape = 'bf16[6,6,128]{2,1,0:T(8,128)(2,1)}', space=vmem, size = 0x3000, scoped, tag = 'scratch operand']
  %s0 = inlined_call_operand.vmem [shape: f32[2,31,31,48], index: 0, kind: input, shape index: {}]
  %s1 = inlined_call_operand.vmem [shape: bf16[48,32], index: 1, kind: input, shape index: {}]
  %s2 = inlined_call_operand.vmem [shape: f32[1,32], index: 2, kind: input, shape index: {}]
  %s3 = inlined_call_operand.vmem [shape: bf16[16,32,64], index: 3, kind: input, shape index: {}]
  %s4 = inlined_call_operand.vmem [shape: f32[1,64], index: 4, kind: input, shape index: {}]
  %s5 = inlined_call_operand.vmem [shape: bf16[16,64,128], index: 5, kind: input, shape index: {}]
  %s6 = inlined_call_operand.vmem [shape: f32[1,128], index: 6, kind: input, shape index: {}]
  %s7 = inlined_call_operand.vmem [shape: bf16[16,128,256], index: 7, kind: input, shape index: {}]
  %s8 = inlined_call_operand.vmem [shape: f32[1,256], index: 8, kind: input, shape index: {}]
  %s9 = inlined_call_operand.vmem [shape: f32[2,2,2,256], index: 9, kind: output, shape index: {}]
  %s10 = sld [smem:[#allocation0]]
  $region90: #{conv_encoder_forward.1} parent=0
    _
  %s12 = ssub.s32 1, %s10
  %s13 = scalar_select 0, %s12, %s10
  loop: start=0, step=1, limit=4
  $region2: #{conv_encoder_forward.1} parent=0 // loop_pre_header
    _
  $region3: #{conv_encoder_forward.1} parent=0 // loop_header
    %s15 = sphi 0, %s19
    %p16 = scmp.ge.s32.totalorder %s15, 4
    %s25 = sphi 0, %s27
    %s28 = sphi 0, %s25
    %s29 = sphi 0, %s28
    %s45 = sphi 0, %s29
    %s49 = sphi 0, %s49
    %s51 = sphi 0, %s49
    %s52 = sphi 0, %s51
    %s66 = sphi 0, %s52
    %s70 = sphi 0, %s70
    %s72 = sphi 0, %s70
    %s73 = sphi 0, %s72
    %s87 = sphi 0, %s73
    %s91 = sphi 0, %s91
    %s93 = sphi 0, %s91
    %s94 = sphi 0, %s93
    %s108 = sphi 0, %s94
    %s112 = sphi 0, %s112
    %s114 = sphi 0, %s112
    %s115 = sphi 0, %s114
    %s129 = sphi 0, %s115
    %s133 = sphi 0, %s133
    %s135 = sphi 0, %s133
    %s136 = sphi 0, %s135
    %s150 = sphi 0, %s136
    %s154 = sphi 0, %s154
    %s156 = sphi 0, %s154
    %s157 = sphi 0, %s156
    %s171 = sphi 0, %s157
    %s175 = sphi 0, %s175
    %s177 = sphi 0, %s175
    %s178 = sphi 0, %s177
    %s192 = sphi 0, %s178
    %s196 = sphi 0, %s196
    %s198 = sphi 0, %s196
    %s199 = sphi 0, %s198
    %s213 = sphi 0, %s199
    %s219 = sphi 0, %s221
    %s222 = sphi 0, %s219
    %s223 = sphi 0, %s222
    %s239 = sphi 0, %s223
  $region4: #{conv_encoder_forward.1} parent=0 // loop_header_branch
    %18 = sbr.rel (%p16) target = $region8
  $region5: #{conv_encoder_forward.1} parent=0 // loop_body
    %s20 = ssub.s32 %s15, 1
    %s21 = ssub.s32 %s15, 2
    %s22 = sadd.s32 %s15, 1
    %s23 = ssub.s32 %s15, %s22
    %p24 = scmp.eq.s32.totalorder %s23, 0
    %s26 = sadd.s32 %s25, 1
    %s27 = scalar_select %p24, %s25, %s26
    %p30 = pneg %p24
    %p31 = scmp.eq.s32.totalorder %s15, 1
    %p32 = por %p30, %p31
    %p33 = scmp.ne.s32.totalorder %s25, %s28
    %p34 = scmp.eq.s32.totalorder %s15, 0
    %p35 = por %p33, %p34
    %p36 = scmp.ne.s32.totalorder %s25, %s28
    %p37 = scmp.eq.s32.totalorder %s20, 1
    %p38 = por %p36, %p37
    %p39 = scmp.ne.s32.totalorder %s28, %s29
    %p40 = scmp.eq.s32.totalorder %s20, 0
    %p41 = por %p39, %p40
    %p42 = scmp.ne.s32.totalorder %s28, %s29
    %p43 = scmp.eq.s32.totalorder %s21, 1
    %p44 = por %p42, %p43
    %p46 = scmp.ne.s32.totalorder %s29, %s45
    %p47 = scmp.eq.s32.totalorder %s21, 0
    %p48 = por %p46, %p47
    %s50 = sadd.s32 %s49, 1
    %p53 = scmp.eq.s32.totalorder %s15, 1
    %p54 = scmp.ne.s32.totalorder %s49, %s51
    %p55 = scmp.eq.s32.totalorder %s15, 0
    %p56 = por %p54, %p55
    %p57 = scmp.ne.s32.totalorder %s49, %s51
    %p58 = scmp.eq.s32.totalorder %s20, 1
    %p59 = por %p57, %p58
    %p60 = scmp.ne.s32.totalorder %s51, %s52
    %p61 = scmp.eq.s32.totalorder %s20, 0
    %p62 = por %p60, %p61
    %p63 = scmp.ne.s32.totalorder %s51, %s52
    %p64 = scmp.eq.s32.totalorder %s21, 1
    %p65 = por %p63, %p64
    %p67 = scmp.ne.s32.totalorder %s52, %s66
    %p68 = scmp.eq.s32.totalorder %s21, 0
    %p69 = por %p67, %p68
    %s71 = sadd.s32 %s70, 1
    %p74 = scmp.eq.s32.totalorder %s15, 1
    %p75 = scmp.ne.s32.totalorder %s70, %s72
    %p76 = scmp.eq.s32.totalorder %s15, 0
    %p77 = por %p75, %p76
    %p78 = scmp.ne.s32.totalorder %s70, %s72
    %p79 = scmp.eq.s32.totalorder %s20, 1
    %p80 = por %p78, %p79
    %p81 = scmp.ne.s32.totalorder %s72, %s73
    %p82 = scmp.eq.s32.totalorder %s20, 0
    %p83 = por %p81, %p82
    %p84 = scmp.ne.s32.totalorder %s72, %s73
    %p85 = scmp.eq.s32.totalorder %s21, 1
    %p86 = por %p84, %p85
    %p88 = scmp.ne.s32.totalorder %s73, %s87
    %p89 = scmp.eq.s32.totalorder %s21, 0
    %p90 = por %p88, %p89
    %s92 = sadd.s32 %s91, 1
    %p95 = scmp.eq.s32.totalorder %s15, 1
    %p96 = scmp.ne.s32.totalorder %s91, %s93
    %p97 = scmp.eq.s32.totalorder %s15, 0
    %p98 = por %p96, %p97
    %p99 = scmp.ne.s32.totalorder %s91, %s93
    %p100 = scmp.eq.s32.totalorder %s20, 1
    %p101 = por %p99, %p100
    %p102 = scmp.ne.s32.totalorder %s93, %s94
    %p103 = scmp.eq.s32.totalorder %s20, 0
    %p104 = por %p102, %p103
    %p105 = scmp.ne.s32.totalorder %s93, %s94
    %p106 = scmp.eq.s32.totalorder %s21, 1
    %p107 = por %p105, %p106
    %p109 = scmp.ne.s32.totalorder %s94, %s108
    %p110 = scmp.eq.s32.totalorder %s21, 0
    %p111 = por %p109, %p110
    %s113 = sadd.s32 %s112, 1
    %p116 = scmp.eq.s32.totalorder %s15, 1
    %p117 = scmp.ne.s32.totalorder %s112, %s114
    %p118 = scmp.eq.s32.totalorder %s15, 0
    %p119 = por %p117, %p118
    %p120 = scmp.ne.s32.totalorder %s112, %s114
    %p121 = scmp.eq.s32.totalorder %s20, 1
    %p122 = por %p120, %p121
    %p123 = scmp.ne.s32.totalorder %s114, %s115
    %p124 = scmp.eq.s32.totalorder %s20, 0
    %p125 = por %p123, %p124
    %p126 = scmp.ne.s32.totalorder %s114, %s115
    %p127 = scmp.eq.s32.totalorder %s21, 1
    %p128 = por %p126, %p127
    %p130 = scmp.ne.s32.totalorder %s115, %s129
    %p131 = scmp.eq.s32.totalorder %s21, 0
    %p132 = por %p130, %p131
    %s134 = sadd.s32 %s133, 1
    %p137 = scmp.eq.s32.totalorder %s15, 1
    %p138 = scmp.ne.s32.totalorder %s133, %s135
    %p139 = scmp.eq.s32.totalorder %s15, 0
    %p140 = por %p138, %p139
    %p141 = scmp.ne.s32.totalorder %s133, %s135
    %p142 = scmp.eq.s32.totalorder %s20, 1
    %p143 = por %p141, %p142
    %p144 = scmp.ne.s32.totalorder %s135, %s136
    %p145 = scmp.eq.s32.totalorder %s20, 0
    %p146 = por %p144, %p145
    %p147 = scmp.ne.s32.totalorder %s135, %s136
    %p148 = scmp.eq.s32.totalorder %s21, 1
    %p149 = por %p147, %p148
    %p151 = scmp.ne.s32.totalorder %s136, %s150
    %p152 = scmp.eq.s32.totalorder %s21, 0
    %p153 = por %p151, %p152
    %s155 = sadd.s32 %s154, 1
    %p158 = scmp.eq.s32.totalorder %s15, 1
    %p159 = scmp.ne.s32.totalorder %s154, %s156
    %p160 = scmp.eq.s32.totalorder %s15, 0
    %p161 = por %p159, %p160
    %p162 = scmp.ne.s32.totalorder %s154, %s156
    %p163 = scmp.eq.s32.totalorder %s20, 1
    %p164 = por %p162, %p163
    %p165 = scmp.ne.s32.totalorder %s156, %s157
    %p166 = scmp.eq.s32.totalorder %s20, 0
    %p167 = por %p165, %p166
    %p168 = scmp.ne.s32.totalorder %s156, %s157
    %p169 = scmp.eq.s32.totalorder %s21, 1
    %p170 = por %p168, %p169
    %p172 = scmp.ne.s32.totalorder %s157, %s171
    %p173 = scmp.eq.s32.totalorder %s21, 0
    %p174 = por %p172, %p173
    %s176 = sadd.s32 %s175, 1
    %p179 = scmp.eq.s32.totalorder %s15, 1
    %p180 = scmp.ne.s32.totalorder %s175, %s177
    %p181 = scmp.eq.s32.totalorder %s15, 0
    %p182 = por %p180, %p181
    %p183 = scmp.ne.s32.totalorder %s175, %s177
    %p184 = scmp.eq.s32.totalorder %s20, 1
    %p185 = por %p183, %p184
    %p186 = scmp.ne.s32.totalorder %s177, %s178
    %p187 = scmp.eq.s32.totalorder %s20, 0
    %p188 = por %p186, %p187
    %p189 = scmp.ne.s32.totalorder %s177, %s178
    %p190 = scmp.eq.s32.totalorder %s21, 1
    %p191 = por %p189, %p190
    %p193 = scmp.ne.s32.totalorder %s178, %s192
    %p194 = scmp.eq.s32.totalorder %s21, 0
    %p195 = por %p193, %p194
    %s197 = sadd.s32 %s196, 1
    %p200 = scmp.eq.s32.totalorder %s15, 1
    %p201 = scmp.ne.s32.totalorder %s196, %s198
    %p202 = scmp.eq.s32.totalorder %s15, 0
    %p203 = por %p201, %p202
    %p204 = scmp.ne.s32.totalorder %s196, %s198
    %p205 = scmp.eq.s32.totalorder %s20, 1
    %p206 = por %p204, %p205
    %p207 = scmp.ne.s32.totalorder %s198, %s199
    %p208 = scmp.eq.s32.totalorder %s20, 0
    %p209 = por %p207, %p208
    %p210 = scmp.ne.s32.totalorder %s198, %s199
    %p211 = scmp.eq.s32.totalorder %s21, 1
    %p212 = por %p210, %p211
    %p214 = scmp.ne.s32.totalorder %s199, %s213
    %p215 = scmp.eq.s32.totalorder %s21, 0
    %p216 = por %p214, %p215
    %s217 = ssub.s32 %s15, %s22
    %p218 = scmp.eq.s32.totalorder %s217, 0
    %s220 = sadd.s32 %s219, 1
    %s221 = scalar_select %p218, %s219, %s220
    %p224 = pneg %p218
    %p225 = scmp.eq.s32.totalorder %s15, 1
    %p226 = por %p224, %p225
    %p227 = scmp.ne.s32.totalorder %s219, %s222
    %p228 = scmp.eq.s32.totalorder %s15, 0
    %p229 = por %p227, %p228
    %p230 = scmp.ne.s32.totalorder %s219, %s222
    %p231 = scmp.eq.s32.totalorder %s20, 1
    %p232 = por %p230, %p231
    %p233 = scmp.ne.s32.totalorder %s222, %s223
    %p234 = scmp.eq.s32.totalorder %s20, 0
    %p235 = por %p233, %p234
    %p236 = scmp.ne.s32.totalorder %s222, %s223
    %p237 = scmp.eq.s32.totalorder %s21, 1
    %p238 = por %p236, %p237
    %p240 = scmp.ne.s32.totalorder %s223, %s239
    %p241 = scmp.eq.s32.totalorder %s21, 0
    %p242 = por %p240, %p241
    %p243 = scmp.le.s32.totalorder 1, %s15
    %p244 = scmp.lt.s32.totalorder %s15, 3
    %p245 = pnand %p243, %p244
    %p246 = pneg %p245
    // Predicated region
    $region9: #{conv_encoder_forward.1} parent=5 // pred_check
      _
    $region10: #{conv_encoder_forward.1} parent=5 // pred_check_branch
      %248 = sbr.rel (%p245) target = $region12
    $region11: #{conv_encoder_forward.1} parent=5 // pred_region
      %s249 = ssub.s32 %s15, 1
      // Predicated region
      $region13: #{conv_encoder_forward.1} parent=11 // pred_check
        %p250 = pneg %p62
      $region14: #{conv_encoder_forward.1} parent=11 // pred_check_branch
        %252 = sbr.rel (%p250) target = $region16
      $region15: #{conv_encoder_forward.1} parent=11 // pred_region
        _
      $region16: #{conv_encoder_forward.1} parent=11 // pred_fallthru
        _
      // Predicated region
      $region17: #{conv_encoder_forward.1} parent=11 // pred_check
        %p253 = pneg %p83
      $region18: #{conv_encoder_forward.1} parent=11 // pred_check_branch
        %255 = sbr.rel (%p253) target = $region20
      $region19: #{conv_encoder_forward.1} parent=11 // pred_region
        _
      $region20: #{conv_encoder_forward.1} parent=11 // pred_fallthru
        _
      // Predicated region
      $region21: #{conv_encoder_forward.1} parent=11 // pred_check
        %p256 = pneg %p104
      $region22: #{conv_encoder_forward.1} parent=11 // pred_check_branch
        %258 = sbr.rel (%p256) target = $region24
      $region23: #{conv_encoder_forward.1} parent=11 // pred_region
        _
      $region24: #{conv_encoder_forward.1} parent=11 // pred_fallthru
        _
      // Predicated region
      $region25: #{conv_encoder_forward.1} parent=11 // pred_check
        %p259 = pneg %p125
      $region26: #{conv_encoder_forward.1} parent=11 // pred_check_branch
        %261 = sbr.rel (%p259) target = $region28
      $region27: #{conv_encoder_forward.1} parent=11 // pred_region
        _
      $region28: #{conv_encoder_forward.1} parent=11 // pred_fallthru
        _
      // Predicated region
      $region29: #{conv_encoder_forward.1} parent=11 // pred_check
        %p262 = pneg %p146
      $region30: #{conv_encoder_forward.1} parent=11 // pred_check_branch
        %264 = sbr.rel (%p262) target = $region32
      $region31: #{conv_encoder_forward.1} parent=11 // pred_region
        _
      $region32: #{conv_encoder_forward.1} parent=11 // pred_fallthru
        _
      // Predicated region
      $region33: #{conv_encoder_forward.1} parent=11 // pred_check
        %p265 = pneg %p167
      $region34: #{conv_encoder_forward.1} parent=11 // pred_check_branch
        %267 = sbr.rel (%p265) target = $region36
      $region35: #{conv_encoder_forward.1} parent=11 // pred_region
        _
      $region36: #{conv_encoder_forward.1} parent=11 // pred_fallthru
        _
      // Predicated region
      $region37: #{conv_encoder_forward.1} parent=11 // pred_check
        %p268 = pneg %p188
      $region38: #{conv_encoder_forward.1} parent=11 // pred_check_branch
        %270 = sbr.rel (%p268) target = $region40
      $region39: #{conv_encoder_forward.1} parent=11 // pred_region
        _
      $region40: #{conv_encoder_forward.1} parent=11 // pred_fallthru
        _
      // Predicated region
      $region41: #{conv_encoder_forward.1} parent=11 // pred_check
        %p271 = pneg %p209
      $region42: #{conv_encoder_forward.1} parent=11 // pred_check_branch
        %273 = sbr.rel (%p271) target = $region44
      $region43: #{conv_encoder_forward.1} parent=11 // pred_region
        _
      $region44: #{conv_encoder_forward.1} parent=11 // pred_fallthru
        _
    $region12: #{conv_encoder_forward.1} parent=5 // pred_fallthru
      _
    %p274 = scmp.lt.s32.totalorder %s15, 2
    // Predicated region
    $region45: #{conv_encoder_forward.1} parent=5 // pred_check
      %p275 = pneg %p274
    $region46: #{conv_encoder_forward.1} parent=5 // pred_check_branch
      %277 = sbr.rel (%p275) target = $region48
    $region47: #{conv_encoder_forward.1} parent=5 // pred_region
      // Predicated region
      $region49: #{conv_encoder_forward.1} parent=47 // pred_check
        %p278 = pneg %p35
      $region50: #{conv_encoder_forward.1} parent=47 // pred_check_branch
        %280 = sbr.rel (%p278) target = $region52
      $region51: #{conv_encoder_forward.1} parent=47 // pred_region
        %p281 = scmp.lt.s32.totalorder %s15, 1
        %s282 = scalar_select %p281, %s15, 1
        %s283 = smul.addr %s282, 124
        %s284 = smul.addr %s283, 8
        %s285 = scalar_lea.vmem %s0, %s284
      $region52: #{conv_encoder_forward.1} parent=47 // pred_fallthru
        _
    $region48: #{conv_encoder_forward.1} parent=5 // pred_fallthru
      _
    %p286 = scmp.le.s32.totalorder 1, %s15
    %p287 = scmp.lt.s32.totalorder %s15, 3
    %p288 = pnand %p286, %p287
    %p289 = pneg %p288
    // Predicated region
    $region53: #{conv_encoder_forward.1} parent=5 // pred_check
      _
    $region54: #{conv_encoder_forward.1} parent=5 // pred_check_branch
      %291 = sbr.rel (%p288) target = $region56
    $region55: #{conv_encoder_forward.1} parent=5 // pred_region
      %s292 = ssub.s32 %s15, 1
      %p293 = scmp.lt.s32.totalorder %s20, 1
      %s294 = scalar_select %p293, %s20, 1
      %s295 = smul.addr %s294, 124
      %s296 = smul.addr %s295, 8
      %s297 = scalar_lea.vmem %s0, %s296
      %p298 = pneg %p41
      %p299 = pneg %p38
      %p300 = pneg %p62
      %p301 = pneg %p59
      %p302 = pneg %p83
      %p303 = pneg %p80
      %p304 = pneg %p104
      %p305 = pneg %p101
      %p306 = pneg %p125
      %p307 = pneg %p122
      %p308 = pneg %p146
      %p309 = pneg %p143
      %p310 = pneg %p167
      %p311 = pneg %p164
      %p312 = pneg %p188
      %p313 = pneg %p185
      %p314 = pneg %p209
      %p315 = pneg %p206
      %p316 = pneg %p235
      %p317 = pneg %p232
      %p318 = scmp.lt.s32.totalorder %s20, 1
      %s319 = scalar_select %p318, %s20, 1
      %s320 = smul.addr %s319, 4
      %s321 = smul.addr %s320, 2
      %s322 = scalar_lea.vmem %s9, %s321
      %p323 = scmp.lt.s32.totalorder %s20, 1
      %s324 = scalar_select %p323, %s20, 1
      %s325 = smul.addr %s324, 124
      %s326 = smul.addr %s325, 8
      %s327 = scalar_lea.vmem %s0, %s326
      %p328 = scmp.lt.s32.totalorder %s20, 1
      %s329 = scalar_select %p328, %s20, 1
      %s330 = smul.addr %s329, 4
      %s331 = smul.addr %s330, 2
      %s332 = scalar_lea.vmem %s9, %s331
      %v334 = vld [vmem:[%s1] sm:$0xf]
      %v335 = vld [vmem:[%s1 + $0x4] sm:$0xf]
      %v336 = vld [vmem:[%s1 + $0x8] sm:$0xf]
      %v337 = vld [vmem:[%s1 + $0xc] sm:$0xf]
      %v338 = vld [vmem:[%s1 + $0x10] sm:$0xf]
      %v339 = vld [vmem:[%s1 + $0x14] sm:$0xf]
      %v340 = vld [vmem:[%s2] sm:$0x1]
      loop: start=0, step=1, limit=31
      $region57: #{conv_encoder_forward.1} parent=55 // loop_pre_header
        _
      $region58: #{conv_encoder_forward.1} parent=55 // loop_header
        %s342 = sphi 0, %s346
        %p343 = scmp.ge.s32.totalorder %s342, 31
      $region59: #{conv_encoder_forward.1} parent=55 // loop_header_branch
        %345 = sbr.rel (%p343) target = $region63
      $region60: #{conv_encoder_forward.1} parent=55 // loop_body
        %s347 = smul.u32 %s342, 32
        %s348 = scalar_lea.vmem %s327, %s347
        %v349 = vld [vmem:[%s348] sm:$0xff]
        %v350 = vld [vmem:[%s348 + $0x8] sm:$0xff]
        %v351 = vld [vmem:[%s348 + $0x10] sm:$0xff]
        %v352 = vld [vmem:[%s348 + $0x18] sm:$0x7f]
        %v353 = vpack.c.bf16 %v350, %v349
        %v354 = vpack.c.bf16 %v352, %v351
        %v356 = vlaneseq
        %v357 = vshrl.u32 %v356, 7
        %v358 = vsub.s32 0, %v357
        %v359 = vrot.slane %v340, %v358
        %v367 = vunpack.c.l.b16 %v334
        %v368 = vunpack.c.l.b16 %v335
        %v369 = vunpack.c.l.b16 %v336
        %v370 = vunpack.c.l.b16 %v337
        %v371 = vunpack.c.l.b16 %v338
        %v372 = vunpack.c.l.b16 %v339
        %v373 = vpack.c.b16 %v368, %v367
        %v374 = vpack.c.b16 %v370, %v369
        %v375 = vpack.c.b16 %v372, %v371
        %vm379 = vcmask 392192
        %v381 = vsel %vm379, %v353, 0
        %v384 = vsel %vm379, %v354, 0
        %386 = vmatprep.subr.bf16.mxu0 0
        %387 = vmatpush1.bf16.msra.mxu0 %v373
        %388 = vmatprep.subr.bf16.mxu0 0
        %389 = vmatpush1.bf16.msra.mxu0 %v374
        %390 = vmatprep.subr.bf16.mxu0 0
        %391 = vmatpush1.bf16.msra.mxu0 %v375
        %392 = vmatprep.subr.bf16.mxu0 0
        %393 = vmatpush1.bf16.msra.mxu0 0
        %394 = vmatprep.subr.bf16.mxu0 0
        %395 = vmatpush1.bf16.msra.mxu0 0
        %396 = vmatprep.subr.bf16.mxu0 0
        %397 = vmatpush1.bf16.msra.mxu0 0
        %398 = vmatprep.subr.bf16.mxu0 0
        %399 = vmatpush1.bf16.msra.mxu0 0
        %400 = vmatprep.subr.bf16.mxu0 0
        %401 = vmatpush1.bf16.msra.mxu0 0
        %402 = vmatprep.subr.bf16.mxu0 0
        %403 = vmatpush1.bf16.msra.mxu0 0
        %404 = vmatprep.subr.bf16.mxu0 0
        %405 = vmatpush1.bf16.msra.mxu0 0
        %406 = vmatprep.subr.bf16.mxu0 0
        %407 = vmatpush1.bf16.msra.mxu0 0
        %408 = vmatprep.subr.bf16.mxu0 0
        %409 = vmatpush1.bf16.msra.mxu0 0
        %410 = vmatprep.subr.bf16.mxu0 0
        %411 = vmatpush1.bf16.msra.mxu0 0
        %412 = vmatprep.subr.bf16.mxu0 0
        %413 = vmatpush1.bf16.msra.mxu0 0
        %414 = vmatprep.subr.bf16.mxu0 0
        %415 = vmatpush1.bf16.msra.mxu0 0
        %416 = vmatprep.subr.bf16.mxu0 0
        %417 = vmatpush1.bf16.msra.mxu0 0
        %418 = vmatprep.mubr.bf16.mxu0 0
        %419 = vmatmul.mubr.bf16.gmra.mrb[0].mxu0 %v381
        %v420 = vpop.f32.mrb[0].mxu0
        %v421 = vadd.f32 %v359, %v420
        %v422 = vpop.f32.mrb[0].mxu0
        %v423 = vpop.f32.mrb[0].mxu0
        %v424 = vadd.f32 %v359, %v423
        %v425 = vpop.f32.mrb[0].mxu0
        %426 = vmatprep.mubr.bf16.mxu0 0
        %427 = vmatmul.mubr.bf16.gmra.mrb[0].mxu0 %v384
        %v428 = vpop.f32.mrb[0].mxu0
        %v429 = vadd.f32 %v359, %v428
        %v430 = vpop.f32.mrb[0].mxu0
        %v431 = vpop.f32.mrb[0].mxu0
        %v432 = vadd.f32 %v359, %v431
        %v433 = vpop.f32.mrb[0].mxu0
        %434 = vdwg.mxu0
        %v435 = vmax.f32 %v421, 0.0
        %v436 = vmax.f32 %v424, 0.0
        %v437 = vmax.f32 %v429, 0.0
        %v438 = vmax.f32 %v432, 0.0
        %v439 = vpack.c.bf16 %v436, %v435
        %v440 = vpack.c.bf16 %v438, %v437
        %v443 = vunpack.c.l.b16 %v439
        %v444 = vunpack.c.h.b16 %v439
        %v445 = vunpack.c.l.b16 %v440
        %v446 = vunpack.c.h.b16 %v440
        %v447 = vpack.c.b16 %v443, %v443
        %v448 = vpack.c.b16 %v444, %v444
        %v449 = vpack.c.b16 %v445, %v445
        %v450 = vpack.c.b16 %v446, %v446
        %s455 = smul.u32 %s342, 4
        %s456 = smul.addr %s455, 4
        %s457 = scalar_lea.vmem [#allocation2], %s456
        %vm458 = vcmask 257024
        %459 = vst.msk [vmem:[%s457] sm:$0xf] %vm458, %v447
        %460 = vst.msk [vmem:[%s457 + $0x4] sm:$0xf] %vm458, %v448
        %461 = vst.msk [vmem:[%s457 + $0x8] sm:$0xf] %vm458, %v449
        %vm462 = vcmask 257024
        %vm463 = vsmask.f32 3328
        %vm464 = vmand %vm462, %vm463
        %v465 = vld [vmem:[%s457 + $0xc] sm:$0xf]
        %v466 = vsel %vm464, %v450, %v465
        %467 = vst [vmem:[%s457 + $0xc] sm:$0xf] %v466
      $region61: #{conv_encoder_forward.1} parent=55 // loop_footer
        %s346 = sadd.s32 1, %s342
      $region62: #{conv_encoder_forward.1} parent=55 // loop_footer_branch
        %341 = sbr.rel target = $region58
      $region63: #{conv_encoder_forward.1} parent=55 // loop_exit
        _
      %v468 = vlaneseq
      %v469 = vshrl.u32 %v468, 7
      %v470 = vadd.s32 %v469, 8
      %v471 = vlaneseq
      %v472 = vand.u32 %v471, 127
      %v473 = vmul.u32 %v469, 2
      %v474 = vmul.u32 %v470, 2
      %vm475 = vcmp.eq.s32.totalorder %v472, %v473
      %vm476 = vcmp.eq.s32.totalorder %v472, %v474
      %v477 = vsel %vm475, 1.0, 0.0
      %v478 = vsel %vm476, 1.0, 0.0
      %v479 = vpack.c.bf16 %v478, %v477
      %v480 = vadd.s32 %v473, 1
      %v481 = vadd.s32 %v474, 1
      %vm482 = vcmp.eq.s32.totalorder %v472, %v480
      %vm483 = vcmp.eq.s32.totalorder %v472, %v481
      %v484 = vsel %vm482, 1.0, 0.0
      %v485 = vsel %vm483, 1.0, 0.0
      %v486 = vpack.c.bf16 %v485, %v484
      %v487 = vadd.s32 %v473, 2
      %v488 = vadd.s32 %v474, 2
      %vm489 = vcmp.eq.s32.totalorder %v472, %v487
      %vm490 = vcmp.eq.s32.totalorder %v472, %v488
      %v491 = vsel %vm489, 1.0, 0.0
      %v492 = vsel %vm490, 1.0, 0.0
      %v493 = vpack.c.bf16 %v492, %v491
      %v494 = vadd.s32 %v473, 3
      %v495 = vadd.s32 %v474, 3
      %vm496 = vcmp.eq.s32.totalorder %v472, %v494
      %vm497 = vcmp.eq.s32.totalorder %v472, %v495
      %v498 = vsel %vm496, 1.0, 0.0
      %v499 = vsel %vm497, 1.0, 0.0
      %v500 = vpack.c.bf16 %v499, %v498
      %v501 = vld [vmem:[%s4] sm:$0x1]
      loop: start=0, step=1, limit=14
      $region64: #{conv_encoder_forward.1} parent=55 // loop_pre_header
        _
      $region65: #{conv_encoder_forward.1} parent=55 // loop_header
        %s503 = sphi 0, %s507
        %p504 = scmp.ge.s32.totalorder %s503, 14
      $region66: #{conv_encoder_forward.1} parent=55 // loop_header_branch
        %506 = sbr.rel (%p504) target = $region70
      $region67: #{conv_encoder_forward.1} parent=55 // loop_body
        %s508 = smul.u32 %s503, 2
        %s509 = smul.u32 %s508, 4
        %s510 = smul.addr %s509, 4
        %s511 = scalar_lea.vmem [#allocation2], %s510
        %v512 = vld [vmem:[%s511] sm:$0xf]
        %v513 = vld [vmem:[%s511 + $0x4] sm:$0xf]
        %v514 = vld [vmem:[%s511 + $0x8] sm:$0xf]
        %v515 = vld [vmem:[%s511 + $0xc] sm:$0xf]
        %v520 = vunpack.c.l.b16 %v512
        %v521 = vunpack.c.l.b16 %v513
        %v522 = vunpack.c.l.b16 %v514
        %v523 = vunpack.c.l.b16 %v515
        %v524 = vpack.c.b16 %v521, %v520
        %v525 = vpack.c.b16 %v523, %v522
        %vm527 = vcmask 252928
        %v529 = vsel %vm527, %v479, 0
        %vm531 = vcmask 1046528
        %vm532 = vcmask 1047552
        %v533 = vsel %vm531, 4294967295, 65535
        %v534 = vsel %vm532, %v533, 0
        %v536 = vand.u32 %v525, %v534
        %538 = vmatprep.subr.bf16.mxu0 0
        %539 = vmatpush1.bf16.msra.mxu0 %v524
        %540 = vmatprep.subr.bf16.mxu0 0
        %541 = vmatpush1.bf16.msra.mxu0 %v536
        %542 = vmatprep.subr.bf16.mxu0 0
        %543 = vmatpush1.bf16.msra.mxu0 0
        %544 = vmatprep.subr.bf16.mxu0 0
        %545 = vmatpush1.bf16.msra.mxu0 0
        %546 = vmatprep.subr.bf16.mxu0 0
        %547 = vmatpush1.bf16.msra.mxu0 0
        %548 = vmatprep.subr.bf16.mxu0 0
        %549 = vmatpush1.bf16.msra.mxu0 0
        %550 = vmatprep.subr.bf16.mxu0 0
        %551 = vmatpush1.bf16.msra.mxu0 0
        %552 = vmatprep.subr.bf16.mxu0 0
        %553 = vmatpush1.bf16.msra.mxu0 0
        %554 = vmatprep.subr.bf16.mxu0 0
        %555 = vmatpush1.bf16.msra.mxu0 0
        %556 = vmatprep.subr.bf16.mxu0 0
        %557 = vmatpush1.bf16.msra.mxu0 0
        %558 = vmatprep.subr.bf16.mxu0 0
        %559 = vmatpush1.bf16.msra.mxu0 0
        %560 = vmatprep.subr.bf16.mxu0 0
        %561 = vmatpush1.bf16.msra.mxu0 0
        %562 = vmatprep.subr.bf16.mxu0 0
        %563 = vmatpush1.bf16.msra.mxu0 0
        %564 = vmatprep.subr.bf16.mxu0 0
        %565 = vmatpush1.bf16.msra.mxu0 0
        %566 = vmatprep.subr.bf16.mxu0 0
        %567 = vmatpush1.bf16.msra.mxu0 0
        %568 = vmatprep.subr.bf16.mxu0 0
        %569 = vmatpush1.bf16.msra.mxu0 0
        %570 = vmatprep.mubr.bf16.mxu0 0
        %571 = vmatmul.mubr.bf16.gmra.mrb[0].mxu0 %v529
        %v572 = vpop.f32.mrb[0].mxu0
        %v573 = vadd.f32 0.0, %v572
        %v574 = vpop.f32.mrb[0].mxu0
        %v575 = vpop.f32.mrb[0].mxu0
        %v576 = vadd.f32 0.0, %v575
        %v577 = vpop.f32.mrb[0].mxu0
        %578 = vdwg.mxu0
        %v579 = vpack.c.bf16 %v576, %v573
        %v580 = vld [vmem:[%s3] sm:$0xf]
        %v581 = vld [vmem:[%s3 + $0x4] sm:$0xf]
        %v582 = vld [vmem:[%s3 + $0x8] sm:$0xf]
        %v583 = vld [vmem:[%s3 + $0xc] sm:$0xf]
        %v585 = vsel %vm527, %v486, 0
        %587 = vmatprep.subr.bf16.mxu0 0
        %588 = vmatpush1.bf16.msra.mxu0 %v524
        %589 = vmatprep.subr.bf16.mxu0 0
        %590 = vmatpush1.bf16.msra.mxu0 %v536
        %591 = vmatprep.subr.bf16.mxu0 0
        %592 = vmatpush1.bf16.msra.mxu0 0
        %593 = vmatprep.subr.bf16.mxu0 0
        %594 = vmatpush1.bf16.msra.mxu0 0
        %595 = vmatprep.subr.bf16.mxu0 0
        %596 = vmatpush1.bf16.msra.mxu0 0
        %597 = vmatprep.subr.bf16.mxu0 0
        %598 = vmatpush1.bf16.msra.mxu0 0
        %599 = vmatprep.subr.bf16.mxu0 0
        %600 = vmatpush1.bf16.msra.mxu0 0
        %601 = vmatprep.subr.bf16.mxu0 0
        %602 = vmatpush1.bf16.msra.mxu0 0
        %603 = vmatprep.subr.bf16.mxu0 0
        %604 = vmatpush1.bf16.msra.mxu0 0
        %605 = vmatprep.subr.bf16.mxu0 0
        %606 = vmatpush1.bf16.msra.mxu0 0
        %607 = vmatprep.subr.bf16.mxu0 0
        %608 = vmatpush1.bf16.msra.mxu0 0
        %609 = vmatprep.subr.bf16.mxu0 0
        %610 = vmatpush1.bf16.msra.mxu0 0
        %611 = vmatprep.subr.bf16.mxu0 0
        %612 = vmatpush1.bf16.msra.mxu0 0
        %613 = vmatprep.subr.bf16.mxu0 0
        %614 = vmatpush1.bf16.msra.mxu0 0
        %615 = vmatprep.subr.bf16.mxu0 0
        %616 = vmatpush1.bf16.msra.mxu0 0
        %617 = vmatprep.subr.bf16.mxu0 0
        %618 = vmatpush1.bf16.msra.mxu0 0
        %619 = vmatprep.mubr.bf16.mxu0 0
        %620 = vmatmul.mubr.bf16.gmra.mrb[0].mxu0 %v585
        %v621 = vpop.f32.mrb[0].mxu0
        %v622 = vadd.f32 0.0, %v621
        %v623 = vpop.f32.mrb[0].mxu0
        %v624 = vpop.f32.mrb[0].mxu0
        %v625 = vadd.f32 0.0, %v624
        %v626 = vpop.f32.mrb[0].mxu0
        %627 = vdwg.mxu0
        %v628 = vpack.c.bf16 %v625, %v622
        %s629 = scalar_lea.vmem %s3, 16
        %v630 = vld [vmem:[%s629] sm:$0xf]
        %v631 = vld [vmem:[%s629 + $0x4] sm:$0xf]
        %v632 = vld [vmem:[%s629 + $0x8] sm:$0xf]
        %v633 = vld [vmem:[%s629 + $0xc] sm:$0xf]
        %v638 = vunpack.c.l.b16 %v630
        %v639 = vunpack.c.l.b16 %v631
        %v640 = vunpack.c.l.b16 %v632
        %v641 = vunpack.c.l.b16 %v633
        %v642 = vpack.c.b16 %v639, %v638
        %v643 = vpack.c.b16 %v641, %v640
        %vm646 = vcmask 261120
        %v648 = vsel %vm646, %v628, 0
        %650 = vmatprep.subr.bf16.mxu0 0
        %651 = vmatpush1.bf16.msra.mxu0 %v642
        %652 = vmatprep.subr.bf16.mxu0 0
        %653 = vmatpush1.bf16.msra.mxu0 %v643
        %654 = vmatprep.subr.bf16.mxu0 0
        %655 = vmatpush1.bf16.msra.mxu0 0
        %656 = vmatprep.subr.bf16.mxu0 0
        %657 = vmatpush1.bf16.msra.mxu0 0
        %658 = vmatprep.subr.bf16.mxu0 0
        %659 = vmatpush1.bf16.msra.mxu0 0
        %660 = vmatprep.subr.bf16.mxu0 0
        %661 = vmatpush1.bf16.msra.mxu0 0
        %662 = vmatprep.subr.bf16.mxu0 0
        %663 = vmatpush1.bf16.msra.mxu0 0
        %664 = vmatprep.subr.bf16.mxu0 0
        %665 = vmatpush1.bf16.msra.mxu0 0
        %666 = vmatprep.subr.bf16.mxu0 0
        %667 = vmatpush1.bf16.msra.mxu0 0
        %668 = vmatprep.subr.bf16.mxu0 0
        %669 = vmatpush1.bf16.msra.mxu0 0
        %670 = vmatprep.subr.bf16.mxu0 0
        %671 = vmatpush1.bf16.msra.mxu0 0
        %672 = vmatprep.subr.bf16.mxu0 0
        %673 = vmatpush1.bf16.msra.mxu0 0
        %674 = vmatprep.subr.bf16.mxu0 0
        %675 = vmatpush1.bf16.msra.mxu0 0
        %676 = vmatprep.subr.bf16.mxu0 0
        %677 = vmatpush1.bf16.msra.mxu0 0
        %678 = vmatprep.subr.bf16.mxu0 0
        %679 = vmatpush1.bf16.msra.mxu0 0
        %680 = vmatprep.subr.bf16.mxu0 0
        %681 = vmatpush1.bf16.msra.mxu0 0
        %682 = vmatprep.mubr.bf16.mxu0 0
        %683 = vmatmul.mubr.bf16.gmra.mrb[0].mxu0 %v648
        %v684 = vpop.f32.mrb[0].mxu0
        %v685 = vadd.f32 0.0, %v684
        %v686 = vpop.f32.mrb[0].mxu0
        %v687 = vpop.f32.mrb[0].mxu0
        %v688 = vadd.f32 0.0, %v687
        %v689 = vpop.f32.mrb[0].mxu0
        %690 = vdwg.mxu0
        %v695 = vunpack.c.l.b16 %v580
        %v696 = vunpack.c.l.b16 %v581
        %v697 = vunpack.c.l.b16 %v582
        %v698 = vunpack.c.l.b16 %v583
        %v699 = vpack.c.b16 %v696, %v695
        %v700 = vpack.c.b16 %v698, %v697
        %v704 = vsel %vm646, %v579, 0
        %706 = vmatprep.subr.bf16.mxu0 0
        %707 = vmatpush1.bf16.msra.mxu0 %v699
        %708 = vmatprep.subr.bf16.mxu0 0
        %709 = vmatpush1.bf16.msra.mxu0 %v700
        %710 = vmatprep.subr.bf16.mxu0 0
        %711 = vmatpush1.bf16.msra.mxu0 0
        %712 = vmatprep.subr.bf16.mxu0 0
        %713 = vmatpush1.bf16.msra.mxu0 0
        %714 = vmatprep.subr.bf16.mxu0 0
        %715 = vmatpush1.bf16.msra.mxu0 0
        %716 = vmatprep.subr.bf16.mxu0 0
        %717 = vmatpush1.bf16.msra.mxu0 0
        %718 = vmatprep.subr.bf16.mxu0 0
        %719 = vmatpush1.bf16.msra.mxu0 0
        %720 = vmatprep.subr.bf16.mxu0 0
        %721 = vmatpush1.bf16.msra.mxu0 0
        %722 = vmatprep.subr.bf16.mxu0 0
        %723 = vmatpush1.bf16.msra.mxu0 0
        %724 = vmatprep.subr.bf16.mxu0 0
        %725 = vmatpush1.bf16.msra.mxu0 0
        %726 = vmatprep.subr.bf16.mxu0 0
        %727 = vmatpush1.bf16.msra.mxu0 0
        %728 = vmatprep.subr.bf16.mxu0 0
        %729 = vmatpush1.bf16.msra.mxu0 0
        %730 = vmatprep.subr.bf16.mxu0 0
        %731 = vmatpush1.bf16.msra.mxu0 0
        %732 = vmatprep.subr.bf16.mxu0 0
        %733 = vmatpush1.bf16.msra.mxu0 0
        %734 = vmatprep.subr.bf16.mxu0 0
        %735 = vmatpush1.bf16.msra.mxu0 0
        %736 = vmatprep.subr.bf16.mxu0 0
        %737 = vmatpush1.bf16.msra.mxu0 0
        %738 = vmatprep.mubr.bf16.mxu0 0
        %739 = vmatmul.mubr.bf16.gmra.mrb[0].mxu0 %v704
        %v740 = vpop.f32.mrb[0].mxu0
        %v741 = vadd.f32 %v685, %v740
        %v742 = vpop.f32.mrb[0].mxu0
        %v743 = vpop.f32.mrb[0].mxu0
        %v744 = vadd.f32 %v688, %v743
        %v745 = vpop.f32.mrb[0].mxu0
        %746 = vdwg.mxu0
        %v748 = vsel %vm527, %v493, 0
        %750 = vmatprep.subr.bf16.mxu0 0
        %751 = vmatpush1.bf16.msra.mxu0 %v524
        %752 = vmatprep.subr.bf16.mxu0 0
        %753 = vmatpush1.bf16.msra.mxu0 %v536
        %754 = vmatprep.subr.bf16.mxu0 0
        %755 = vmatpush1.bf16.msra.mxu0 0
        %756 = vmatprep.subr.bf16.mxu0 0
        %757 = vmatpush1.bf16.msra.mxu0 0
        %758 = vmatprep.subr.bf16.mxu0 0
        %759 = vmatpush1.bf16.msra.mxu0 0
        %760 = vmatprep.subr.bf16.mxu0 0
        %761 = vmatpush1.bf16.msra.mxu0 0
        %762 = vmatprep.subr.bf16.mxu0 0
        %763 = vmatpush1.bf16.msra.mxu0 0
        %764 = vmatprep.subr.bf16.mxu0 0
        %765 = vmatpush1.bf16.msra.mxu0 0
        %766 = vmatprep.subr.bf16.mxu0 0
        %767 = vmatpush1.bf16.msra.mxu0 0
        %768 = vmatprep.subr.bf16.mxu0 0
        %769 = vmatpush1.bf16.msra.mxu0 0
        %770 = vmatprep.subr.bf16.mxu0 0
        %771 = vmatpush1.bf16.msra.mxu0 0
        %772 = vmatprep.subr.bf16.mxu0 0
        %773 = vmatpush1.bf16.msra.mxu0 0
        %774 = vmatprep.subr.bf16.mxu0 0
        %775 = vmatpush1.bf16.msra.mxu0 0
        %776 = vmatprep.subr.bf16.mxu0 0
        %777 = vmatpush1.bf16.msra.mxu0 0
        %778 = vmatprep.subr.bf16.mxu0 0
        %779 = vmatpush1.bf16.msra.mxu0 0
        %780 = vmatprep.subr.bf16.mxu0 0
        %781 = vmatpush1.bf16.msra.mxu0 0
        %782 = vmatprep.mubr.bf16.mxu0 0
        %783 = vmatmul.mubr.bf16.gmra.mrb[0].mxu0 %v748
        %v784 = vpop.f32.mrb[0].mxu0
        %v785 = vadd.f32 0.0, %v784
        %v786 = vpop.f32.mrb[0].mxu0
        %v787 = vpop.f32.mrb[0].mxu0
        %v788 = vadd.f32 0.0, %v787
        %v789 = vpop.f32.mrb[0].mxu0
        %790 = vdwg.mxu0
        %v791 = vpack.c.bf16 %v788, %v785
        %s792 = scalar_lea.vmem %s3, 32
        %v793 = vld [vmem:[%s792] sm:$0xf]
        %v794 = vld [vmem:[%s792 + $0x4] sm:$0xf]
        %v795 = vld [vmem:[%s792 + $0x8] sm:$0xf]
        %v796 = vld [vmem:[%s792 + $0xc] sm:$0xf]
        %v801 = vunpack.c.l.b16 %v793
        %v802 = vunpack.c.l.b16 %v794
        %v803 = vunpack.c.l.b16 %v795
        %v804 = vunpack.c.l.b16 %v796
        %v805 = vpack.c.b16 %v802, %v801
        %v806 = vpack.c.b16 %v804, %v803
        %v810 = vsel %vm646, %v791, 0
        %812 = vmatprep.subr.bf16.mxu0 0
        %813 = vmatpush1.bf16.msra.mxu0 %v805
        %814 = vmatprep.subr.bf16.mxu0 0
        %815 = vmatpush1.bf16.msra.mxu0 %v806
        %816 = vmatprep.subr.bf16.mxu0 0
        %817 = vmatpush1.bf16.msra.mxu0 0
        %818 = vmatprep.subr.bf16.mxu0 0
        %819 = vmatpush1.bf16.msra.mxu0 0
        %820 = vmatprep.subr.bf16.mxu0 0
        %821 = vmatpush1.bf16.msra.mxu0 0
        %822 = vmatprep.subr.bf16.mxu0 0
        %823 = vmatpush1.bf16.msra.mxu0 0
        %824 = vmatprep.subr.bf16.mxu0 0
        %825 = vmatpush1.bf16.msra.mxu0 0
        %826 = vmatprep.subr.bf16.mxu0 0
        %827 = vmatpush1.bf16.msra.mxu0 0
        %828 = vmatprep.subr.bf16.mxu0 0
        %829 = vmatpush1.bf16.msra.mxu0 0
        %830 = vmatprep.subr.bf16.mxu0 0
        %831 = vmatpush1.bf16.msra.mxu0 0
        %832 = vmatprep.subr.bf16.mxu0 0
        %833 = vmatpush1.bf16.msra.mxu0 0
        %834 = vmatprep.subr.bf16.mxu0 0
        %835 = vmatpush1.bf16.msra.mxu0 0
        %836 = vmatprep.subr.bf16.mxu0 0
        %837 = vmatpush1.bf16.msra.mxu0 0
        %838 = vmatprep.subr.bf16.mxu0 0
        %839 = vmatpush1.bf16.msra.mxu0 0
        %840 = vmatprep.subr.bf16.mxu0 0
        %841 = vmatpush1.bf16.msra.mxu0 0
        %842 = vmatprep.subr.bf16.mxu0 0
        %843 = vmatpush1.bf16.msra.mxu0 0
        %844 = vmatprep.mubr.bf16.mxu0 0
        %845 = vmatmul.mubr.bf16.gmra.mrb[0].mxu0 %v810
        %v846 = vpop.f32.mrb[0].mxu0
        %v847 = vadd.f32 0.0, %v846
        %v848 = vpop.f32.mrb[0].mxu0
        %v849 = vpop.f32.mrb[0].mxu0
        %v850 = vadd.f32 0.0, %v849
        %v851 = vpop.f32.mrb[0].mxu0
        %852 = vdwg.mxu0
        %v853 = vadd.f32 %v741, %v847
        %v854 = vadd.f32 %v744, %v850
        %v856 = vsel %vm527, %v500, 0
        %858 = vmatprep.subr.bf16.mxu0 0
        %859 = vmatpush1.bf16.msra.mxu0 %v524
        %860 = vmatprep.subr.bf16.mxu0 0
        %861 = vmatpush1.bf16.msra.mxu0 %v536
        %862 = vmatprep.subr.bf16.mxu0 0
        %863 = vmatpush1.bf16.msra.mxu0 0
        %864 = vmatprep.subr.bf16.mxu0 0
        %865 = vmatpush1.bf16.msra.mxu0 0
        %866 = vmatprep.subr.bf16.mxu0 0
        %867 = vmatpush1.bf16.msra.mxu0 0
        %868 = vmatprep.subr.bf16.mxu0 0
        %869 = vmatpush1.bf16.msra.mxu0 0
        %870 = vmatprep.subr.bf16.mxu0 0
        %871 = vmatpush1.bf16.msra.mxu0 0
        %872 = vmatprep.subr.bf16.mxu0 0
        %873 = vmatpush1.bf16.msra.mxu0 0
        %874 = vmatprep.subr.bf16.mxu0 0
        %875 = vmatpush1.bf16.msra.mxu0 0
        %876 = vmatprep.subr.bf16.mxu0 0
        %877 = vmatpush1.bf16.msra.mxu0 0
        %878 = vmatprep.subr.bf16.mxu0 0
        %879 = vmatpush1.bf16.msra.mxu0 0
        %880 = vmatprep.subr.bf16.mxu0 0
        %881 = vmatpush1.bf16.msra.mxu0 0
        %882 = vmatprep.subr.bf16.mxu0 0
        %883 = vmatpush1.bf16.msra.mxu0 0
        %884 = vmatprep.subr.bf16.mxu0 0
        %885 = vmatpush1.bf16.msra.mxu0 0
        %886 = vmatprep.subr.bf16.mxu0 0
        %887 = vmatpush1.bf16.msra.mxu0 0
        %888 = vmatprep.subr.bf16.mxu0 0
        %889 = vmatpush1.bf16.msra.mxu0 0
        %890 = vmatprep.mubr.bf16.mxu0 0
        %891 = vmatmul.mubr.bf16.gmra.mrb[0].mxu0 %v856
        %v892 = vpop.f32.mrb[0].mxu0
        %v893 = vadd.f32 0.0, %v892
        %v894 = vpop.f32.mrb[0].mxu0
        %v895 = vpop.f32.mrb[0].mxu0
        %v896 = vadd.f32 0.0, %v895
        %v897 = vpop.f32.mrb[0].mxu0
        %898 = vdwg.mxu0
        %v899 = vpack.c.bf16 %v896, %v893
        %s900 = scalar_lea.vmem %s3, 48
        %v901 = vld [vmem:[%s900] sm:$0xf]
        %v902 = vld [vmem:[%s900 + $0x4] sm:$0xf]
        %v903 = vld [vmem:[%s900 + $0x8] sm:$0xf]
        %v904 = vld [vmem:[%s900 + $0xc] sm:$0xf]
        %v909 = vunpack.c.l.b16 %v901
        %v910 = vunpack.c.l.b16 %v902
        %v911 = vunpack.c.l.b16 %v903
        %v912 = vunpack.c.l.b16 %v904
        %v913 = vpack.c.b16 %v910, %v909
        %v914 = vpack.c.b16 %v912, %v911
        %v918 = vsel %vm646, %v899, 0
        %920 = vmatprep.subr.bf16.mxu0 0
        %921 = vmatpush1.bf16.msra.mxu0 %v913
        %922 = vmatprep.subr.bf16.mxu0 0
        %923 = vmatpush1.bf16.msra.mxu0 %v914
        %924 = vmatprep.subr.bf16.mxu0 0
        %925 = vmatpush1.bf16.msra.mxu0 0
        %926 = vmatprep.subr.bf16.mxu0 0
        %927 = vmatpush1.bf16.msra.mxu0 0
        %928 = vmatprep.subr.bf16.mxu0 0
        %929 = vmatpush1.bf16.msra.mxu0 0
        %930 = vmatprep.subr.bf16.mxu0 0
        %931 = vmatpush1.bf16.msra.mxu0 0
        %932 = vmatprep.subr.bf16.mxu0 0
        %933 = vmatpush1.bf16.msra.mxu0 0
        %934 = vmatprep.subr.bf16.mxu0 0
        %935 = vmatpush1.bf16.msra.mxu0 0
        %936 = vmatprep.subr.bf16.mxu0 0
        %937 = vmatpush1.bf16.msra.mxu0 0
        %938 = vmatprep.subr.bf16.mxu0 0
        %939 = vmatpush1.bf16.msra.mxu0 0
        %940 = vmatprep.subr.bf16.mxu0 0
        %941 = vmatpush1.bf16.msra.mxu0 0
        %942 = vmatprep.subr.bf16.mxu0 0
        %943 = vmatpush1.bf16.msra.mxu0 0
        %944 = vmatprep.subr.bf16.mxu0 0
        %945 = vmatpush1.bf16.msra.mxu0 0
        %946 = vmatprep.subr.bf16.mxu0 0
        %947 = vmatpush1.bf16.msra.mxu0 0
        %948 = vmatprep.subr.bf16.mxu0 0
        %949 = vmatpush1.bf16.msra.mxu0 0
        %950 = vmatprep.subr.bf16.mxu0 0
        %951 = vmatpush1.bf16.msra.mxu0 0
        %952 = vmatprep.mubr.bf16.mxu0 0
        %953 = vmatmul.mubr.bf16.gmra.mrb[0].mxu0 %v918
        %v954 = vpop.f32.mrb[0].mxu0
        %v955 = vadd.f32 0.0, %v954
        %v956 = vpop.f32.mrb[0].mxu0
        %v957 = vpop.f32.mrb[0].mxu0
        %v958 = vadd.f32 0.0, %v957
        %v959 = vpop.f32.mrb[0].mxu0
        %960 = vdwg.mxu0
        %v961 = vadd.f32 %v853, %v955
        %v962 = vadd.f32 %v854, %v958
        %s963 = sadd.s32 %s508, 1
        %s964 = smul.u32 %s963, 4
        %s965 = smul.addr %s964, 4
        %s966 = scalar_lea.vmem [#allocation2], %s965
        %v967 = vld [vmem:[%s966] sm:$0xf]
        %v968 = vld [vmem:[%s966 + $0x4] sm:$0xf]
        %v969 = vld [vmem:[%s966 + $0x8] sm:$0xf]
        %v970 = vld [vmem:[%s966 + $0xc] sm:$0xf]
        %v975 = vunpack.c.l.b16 %v967
        %v976 = vunpack.c.l.b16 %v968
        %v977 = vunpack.c.l.b16 %v969
        %v978 = vunpack.c.l.b16 %v970
        %v979 = vpack.c.b16 %v976, %v975
        %v980 = vpack.c.b16 %v978, %v977
        %v983 = vand.u32 %v980, %v534
        %985 = vmatprep.subr.bf16.mxu0 0
        %986 = vmatpush1.bf16.msra.mxu0 %v979
        %987 = vmatprep.subr.bf16.mxu0 0
        %988 = vmatpush1.bf16.msra.mxu0 %v983
        %989 = vmatprep.subr.bf16.mxu0 0
        %990 = vmatpush1.bf16.msra.mxu0 0
        %991 = vmatprep.subr.bf16.mxu0 0
        %992 = vmatpush1.bf16.msra.mxu0 0
        %993 = vmatprep.subr.bf16.mxu0 0
        %994 = vmatpush1.bf16.msra.mxu0 0
        %995 = vmatprep.subr.bf16.mxu0 0
        %996 = vmatpush1.bf16.msra.mxu0 0
        %997 = vmatprep.subr.bf16.mxu0 0
        %998 = vmatpush1.bf16.msra.mxu0 0
        %999 = vmatprep.subr.bf16.mxu0 0
        %1000 = vmatpush1.bf16.msra.mxu0 0
        %1001 = vmatprep.subr.bf16.mxu0 0
        %1002 = vmatpush1.bf16.msra.mxu0 0
        %1003 = vmatprep.subr.bf16.mxu0 0
        %1004 = vmatpush1.bf16.msra.mxu0 0
        %1005 = vmatprep.subr.bf16.mxu0 0
        %1006 = vmatpush1.bf16.msra.mxu0 0
        %1007 = vmatprep.subr.bf16.mxu0 0
        %1008 = vmatpush1.bf16.msra.mxu0 0
        %1009 = vmatprep.subr.bf16.mxu0 0
        %1010 = vmatpush1.bf16.msra.mxu0 0
        %1011 = vmatprep.subr.bf16.mxu0 0
        %1012 = vmatpush1.bf16.msra.mxu0 0
        %1013 = vmatprep.subr.bf16.mxu0 0
        %1014 = vmatpush1.bf16.msra.mxu0 0
        %1015 = vmatprep.subr.bf16.mxu0 0
        %1016 = vmatpush1.bf16.msra.mxu0 0
        %1017 = vmatprep.mubr.bf16.mxu0 0
        %1018 = vmatmul.mubr.bf16.gmra.mrb[0].mxu0 %v529
        %v1019 = vpop.f32.mrb[0].mxu0
        %v1020 = vadd.f32 0.0, %v1019
        %v1021 = vpop.f32.mrb[0].mxu0
        %v1022 = vpop.f32.mrb[0].mxu0
        %v1023 = vadd.f32 0.0, %v1022
        %v1024 = vpop.f32.mrb[0].mxu0
        %1025 = vdwg.mxu0
        %v1026 = vpack.c.bf16 %v1023, %v1020
        %s1027 = scalar_lea.vmem %s3, 64
        %v1028 = vld [vmem:[%s1027] sm:$0xf]
        %v1029 = vld [vmem:[%s1027 + $0x4] sm:$0xf]
        %v1030 = vld [vmem:[%s1027 + $0x8] sm:$0xf]
        %v1031 = vld [vmem:[%s1027 + $0xc] sm:$0xf]
        %v1036 = vunpack.c.l.b16 %v1028
        %v1037 = vunpack.c.l.b16 %v1029
        %v1038 = vunpack.c.l.b16 %v1030
        %v1039 = vunpack.c.l.b16 %v1031
        %v1040 = vpack.c.b16 %v1037, %v1036
        %v1041 = vpack.c.b16 %v1039, %v1038
        %v1045 = vsel %vm646, %v1026, 0
        %1047 = vmatprep.subr.bf16.mxu0 0
        %1048 = vmatpush1.bf16.msra.mxu0 %v1040
        %1049 = vmatprep.subr.bf16.mxu0 0
        %1050 = vmatpush1.bf16.msra.mxu0 %v1041
        %1051 = vmatprep.subr.bf16.mxu0 0
        %1052 = vmatpush1.bf16.msra.mxu0 0
        %1053 = vmatprep.subr.bf16.mxu0 0
        %1054 = vmatpush1.bf16.msra.mxu0 0
        %1055 = vmatprep.subr.bf16.mxu0 0
        %1056 = vmatpush1.bf16.msra.mxu0 0
        %1057 = vmatprep.subr.bf16.mxu0 0
        %1058 = vmatpush1.bf16.msra.mxu0 0
        %1059 = vmatprep.subr.bf16.mxu0 0
        %1060 = vmatpush1.bf16.msra.mxu0 0
        %1061 = vmatprep.subr.bf16.mxu0 0
        %1062 = vmatpush1.bf16.msra.mxu0 0
        %1063 = vmatprep.subr.bf16.mxu0 0
        %1064 = vmatpush1.bf16.msra.mxu0 0
        %1065 = vmatprep.subr.bf16.mxu0 0
        %1066 = vmatpush1.bf16.msra.mxu0 0
        %1067 = vmatprep.subr.bf16.mxu0 0
        %1068 = vmatpush1.bf16.msra.mxu0 0
        %1069 = vmatprep.subr.bf16.mxu0 0
        %1070 = vmatpush1.bf16.msra.mxu0 0
        %1071 = vmatprep.subr.bf16.mxu0 0
        %1072 = vmatpush1.bf16.msra.mxu0 0
        %1073 = vmatprep.subr.bf16.mxu0 0
        %1074 = vmatpush1.bf16.msra.mxu0 0
        %1075 = vmatprep.subr.bf16.mxu0 0
        %1076 = vmatpush1.bf16.msra.mxu0 0
        %1077 = vmatprep.subr.bf16.mxu0 0
        %1078 = vmatpush1.bf16.msra.mxu0 0
        %1079 = vmatprep.mubr.bf16.mxu0 0
        %1080 = vmatmul.mubr.bf16.gmra.mrb[0].mxu0 %v1045
        %v1081 = vpop.f32.mrb[0].mxu0
        %v1082 = vadd.f32 0.0, %v1081
        %v1083 = vpop.f32.mrb[0].mxu0
        %v1084 = vpop.f32.mrb[0].mxu0
        %v1085 = vadd.f32 0.0, %v1084
        %v1086 = vpop.f32.mrb[0].mxu0
        %1087 = vdwg.mxu0
        %v1088 = vadd.f32 %v961, %v1082
        %v1089 = vadd.f32 %v962, %v1085
        %1090 = vmatprep.subr.bf16.mxu0 0
        %1091 = vmatpush1.bf16.msra.mxu0 %v979
        %1092 = vmatprep.subr.bf16.mxu0 0
        %1093 = vmatpush1.bf16.msra.mxu0 %v983
        %1094 = vmatprep.subr.bf16.mxu0 0
        %1095 = vmatpush1.bf16.msra.mxu0 0
        %1096 = vmatprep.subr.bf16.mxu0 0
        %1097 = vmatpush1.bf16.msra.mxu0 0
        %1098 = vmatprep.subr.bf16.mxu0 0
        %1099 = vmatpush1.bf16.msra.mxu0 0
        %1100 = vmatprep.subr.bf16.mxu0 0
        %1101 = vmatpush1.bf16.msra.mxu0 0
        %1102 = vmatprep.subr.bf16.mxu0 0
        %1103 = vmatpush1.bf16.msra.mxu0 0
        %1104 = vmatprep.subr.bf16.mxu0 0
        %1105 = vmatpush1.bf16.msra.mxu0 0
        %1106 = vmatprep.subr.bf16.mxu0 0
        %1107 = vmatpush1.bf16.msra.mxu0 0
        %1108 = vmatprep.subr.bf16.mxu0 0
        %1109 = vmatpush1.bf16.msra.mxu0 0
        %1110 = vmatprep.subr.bf16.mxu0 0
        %1111 = vmatpush1.bf16.msra.mxu0 0
        %1112 = vmatprep.subr.bf16.mxu0 0
        %1113 = vmatpush1.bf16.msra.mxu0 0
        %1114 = vmatprep.subr.bf16.mxu0 0
        %1115 = vmatpush1.bf16.msra.mxu0 0
        %1116 = vmatprep.subr.bf16.mxu0 0
        %1117 = vmatpush1.bf16.msra.mxu0 0
        %1118 = vmatprep.subr.bf16.mxu0 0
        %1119 = vmatpush1.bf16.msra.mxu0 0
        %1120 = vmatprep.subr.bf16.mxu0 0
        %1121 = vmatpush1.bf16.msra.mxu0 0
        %1122 = vmatprep.mubr.bf16.mxu0 0
        %1123 = vmatmul.mubr.bf16.gmra.mrb[0].mxu0 %v585
        %v1124 = vpop.f32.mrb[0].mxu0
        %v1125 = vadd.f32 0.0, %v1124
        %v1126 = vpop.f32.mrb[0].mxu0
        %v1127 = vpop.f32.mrb[0].mxu0
        %v1128 = vadd.f32 0.0, %v1127
        %v1129 = vpop.f32.mrb[0].mxu0
        %1130 = vdwg.mxu0
        %v1131 = vpack.c.bf16 %v1128, %v1125
        %s1132 = scalar_lea.vmem %s3, 80
        %v1133 = vld [vmem:[%s1132] sm:$0xf]
        %v1134 = vld [vmem:[%s1132 + $0x4] sm:$0xf]
        %v1135 = vld [vmem:[%s1132 + $0x8] sm:$0xf]
        %v1136 = vld [vmem:[%s1132 + $0xc] sm:$0xf]
        %v1141 = vunpack.c.l.b16 %v1133
        %v1142 = vunpack.c.l.b16 %v1134
        %v1143 = vunpack.c.l.b16 %v1135
        %v1144 = vunpack.c.l.b16 %v1136
        %v1145 = vpack.c.b16 %v1142, %v1141
        %v1146 = vpack.c.b16 %v1144, %v1143
        %v1150 = vsel %vm646, %v1131, 0
        %1152 = vmatprep.subr.bf16.mxu0 0
        %1153 = vmatpush1.bf16.msra.mxu0 %v1145
        %1154 = vmatprep.subr.bf16.mxu0 0
        %1155 = vmatpush1.bf16.msra.mxu0 %v1146
        %1156 = vmatprep.subr.bf16.mxu0 0
        %1157 = vmatpush1.bf16.msra.mxu0 0
        %1158 = vmatprep.subr.bf16.mxu0 0
        %1159 = vmatpush1.bf16.msra.mxu0 0
        %1160 = vmatprep.subr.bf16.mxu0 0
        %1161 = vmatpush1.bf16.msra.mxu0 0
        %1162 = vmatprep.subr.bf16.mxu0 0
        %1163 = vmatpush1.bf16.msra.mxu0 0
        %1164 = vmatprep.subr.bf16.mxu0 0
        %1165 = vmatpush1.bf16.msra.mxu0 0
        %1166 = vmatprep.subr.bf16.mxu0 0
        %1167 = vmatpush1.bf16.msra.mxu0 0
        %1168 = vmatprep.subr.bf16.mxu0 0
        %1169 = vmatpush1.bf16.msra.mxu0 0
        %1170 = vmatprep.subr.bf16.mxu0 0
        %1171 = vmatpush1.bf16.msra.mxu0 0
        %1172 = vmatprep.subr.bf16.mxu0 0
        %1173 = vmatpush1.bf16.msra.mxu0 0
        %1174 = vmatprep.subr.bf16.mxu0 0
        %1175 = vmatpush1.bf16.msra.mxu0 0
        %1176 = vmatprep.subr.bf16.mxu0 0
        %1177 = vmatpush1.bf16.msra.mxu0 0
        %1178 = vmatprep.subr.bf16.mxu0 0
        %1179 = vmatpush1.bf16.msra.mxu0 0
        %1180 = vmatprep.subr.bf16.mxu0 0
        %1181 = vmatpush1.bf16.msra.mxu0 0
        %1182 = vmatprep.subr.bf16.mxu0 0
        %1183 = vmatpush1.bf16.msra.mxu0 0
        %1184 = vmatprep.mubr.bf16.mxu0 0
        %1185 = vmatmul.mubr.bf16.gmra.mrb[0].mxu0 %v1150
        %v1186 = vpop.f32.mrb[0].mxu0
        %v1187 = vadd.f32 0.0, %v1186
        %v1188 = vpop.f32.mrb[0].mxu0
        %v1189 = vpop.f32.mrb[0].mxu0
        %v1190 = vadd.f32 0.0, %v1189
        %v1191 = vpop.f32.mrb[0].mxu0
        %1192 = vdwg.mxu0
        %v1193 = vadd.f32 %v1088, %v1187
        %v1194 = vadd.f32 %v1089, %v1190
        %1195 = vmatprep.subr.bf16.mxu0 0
        %1196 = vmatpush1.bf16.msra.mxu0 %v979
        %1197 = vmatprep.subr.bf16.mxu0 0
        %1198 = vmatpush1.bf16.msra.mxu0 %v983
        %1199 = vmatprep.subr.bf16.mxu0 0
        %1200 = vmatpush1.bf16.msra.mxu0 0
        %1201 = vmatprep.subr.bf16.mxu0 0
        %1202 = vmatpush1.bf16.msra.mxu0 0
        %1203 = vmatprep.subr.bf16.mxu0 0
        %1204 = vmatpush1.bf16.msra.mxu0 0
        %1205 = vmatprep.subr.bf16.mxu0 0
        %1206 = vmatpush1.bf16.msra.mxu0 0
        %1207 = vmatprep.subr.bf16.mxu0 0
        %1208 = vmatpush1.bf16.msra.mxu0 0
        %1209 = vmatprep.subr.bf16.mxu0 0
        %1210 = vmatpush1.bf16.msra.mxu0 0
        %1211 = vmatprep.subr.bf16.mxu0 0
        %1212 = vmatpush1.bf16.msra.mxu0 0
        %1213 = vmatprep.subr.bf16.mxu0 0
        %1214 = vmatpush1.bf16.msra.mxu0 0
        %1215 = vmatprep.subr.bf16.mxu0 0
        %1216 = vmatpush1.bf16.msra.mxu0 0
        %1217 = vmatprep.subr.bf16.mxu0 0
        %1218 = vmatpush1.bf16.msra.mxu0 0
        %1219 = vmatprep.subr.bf16.mxu0 0
        %1220 = vmatpush1.bf16.msra.mxu0 0
        %1221 = vmatprep.subr.bf16.mxu0 0
        %1222 = vmatpush1.bf16.msra.mxu0 0
        %1223 = vmatprep.subr.bf16.mxu0 0
        %1224 = vmatpush1.bf16.msra.mxu0 0
        %1225 = vmatprep.subr.bf16.mxu0 0
        %1226 = vmatpush1.bf16.msra.mxu0 0
        %1227 = vmatprep.mubr.bf16.mxu0 0
        %1228 = vmatmul.mubr.bf16.gmra.mrb[0].mxu0 %v748
        %v1229 = vpop.f32.mrb[0].mxu0
        %v1230 = vadd.f32 0.0, %v1229
        %v1231 = vpop.f32.mrb[0].mxu0
        %v1232 = vpop.f32.mrb[0].mxu0
        %v1233 = vadd.f32 0.0, %v1232
        %v1234 = vpop.f32.mrb[0].mxu0
        %1235 = vdwg.mxu0
        %v1236 = vpack.c.bf16 %v1233, %v1230
        %s1237 = scalar_lea.vmem %s3, 96
        %v1238 = vld [vmem:[%s1237] sm:$0xf]
        %v1239 = vld [vmem:[%s1237 + $0x4] sm:$0xf]
        %v1240 = vld [vmem:[%s1237 + $0x8] sm:$0xf]
        %v1241 = vld [vmem:[%s1237 + $0xc] sm:$0xf]
        %v1246 = vunpack.c.l.b16 %v1238
        %v1247 = vunpack.c.l.b16 %v1239
        %v1248 = vunpack.c.l.b16 %v1240
        %v1249 = vunpack.c.l.b16 %v1241
        %v1250 = vpack.c.b16 %v1247, %v1246
        %v1251 = vpack.c.b16 %v1249, %v1248
        %v1255 = vsel %vm646, %v1236, 0
        %1257 = vmatprep.subr.bf16.mxu0 0
        %1258 = vmatpush1.bf16.msra.mxu0 %v1250
        %1259 = vmatprep.subr.bf16.mxu0 0
        %1260 = vmatpush1.bf16.msra.mxu0 %v1251
        %1261 = vmatprep.subr.bf16.mxu0 0
        %1262 = vmatpush1.bf16.msra.mxu0 0
        %1263 = vmatprep.subr.bf16.mxu0 0
        %1264 = vmatpush1.bf16.msra.mxu0 0
        %1265 = vmatprep.subr.bf16.mxu0 0
        %1266 = vmatpush1.bf16.msra.mxu0 0
        %1267 = vmatprep.subr.bf16.mxu0 0
        %1268 = vmatpush1.bf16.msra.mxu0 0
        %1269 = vmatprep.subr.bf16.mxu0 0
        %1270 = vmatpush1.bf16.msra.mxu0 0
        %1271 = vmatprep.subr.bf16.mxu0 0
        %1272 = vmatpush1.bf16.msra.mxu0 0
        %1273 = vmatprep.subr.bf16.mxu0 0
        %1274 = vmatpush1.bf16.msra.mxu0 0
        %1275 = vmatprep.subr.bf16.mxu0 0
        %1276 = vmatpush1.bf16.msra.mxu0 0
        %1277 = vmatprep.subr.bf16.mxu0 0
        %1278 = vmatpush1.bf16.msra.mxu0 0
        %1279 = vmatprep.subr.bf16.mxu0 0
        %1280 = vmatpush1.bf16.msra.mxu0 0
        %1281 = vmatprep.subr.bf16.mxu0 0
        %1282 = vmatpush1.bf16.msra.mxu0 0
        %1283 = vmatprep.subr.bf16.mxu0 0
        %1284 = vmatpush1.bf16.msra.mxu0 0
        %1285 = vmatprep.subr.bf16.mxu0 0
        %1286 = vmatpush1.bf16.msra.mxu0 0
        %1287 = vmatprep.subr.bf16.mxu0 0
        %1288 = vmatpush1.bf16.msra.mxu0 0
        %1289 = vmatprep.mubr.bf16.mxu0 0
        %1290 = vmatmul.mubr.bf16.gmra.mrb[0].mxu0 %v1255
        %v1291 = vpop.f32.mrb[0].mxu0
        %v1292 = vadd.f32 0.0, %v1291
        %v1293 = vpop.f32.mrb[0].mxu0
        %v1294 = vpop.f32.mrb[0].mxu0
        %v1295 = vadd.f32 0.0, %v1294
        %v1296 = vpop.f32.mrb[0].mxu0
        %1297 = vdwg.mxu0
        %v1298 = vadd.f32 %v1193, %v1292
        %v1299 = vadd.f32 %v1194, %v1295
        %1300 = vmatprep.subr.bf16.mxu0 0
        %1301 = vmatpush1.bf16.msra.mxu0 %v979
        %1302 = vmatprep.subr.bf16.mxu0 0
        %1303 = vmatpush1.bf16.msra.mxu0 %v983
        %1304 = vmatprep.subr.bf16.mxu0 0
        %1305 = vmatpush1.bf16.msra.mxu0 0
        %1306 = vmatprep.subr.bf16.mxu0 0
        %1307 = vmatpush1.bf16.msra.mxu0 0
        %1308 = vmatprep.subr.bf16.mxu0 0
        %1309 = vmatpush1.bf16.msra.mxu0 0
        %1310 = vmatprep.subr.bf16.mxu0 0
        %1311 = vmatpush1.bf16.msra.mxu0 0
        %1312 = vmatprep.subr.bf16.mxu0 0
        %1313 = vmatpush1.bf16.msra.mxu0 0
        %1314 = vmatprep.subr.bf16.mxu0 0
        %1315 = vmatpush1.bf16.msra.mxu0 0
        %1316 = vmatprep.subr.bf16.mxu0 0
        %1317 = vmatpush1.bf16.msra.mxu0 0
        %1318 = vmatprep.subr.bf16.mxu0 0
        %1319 = vmatpush1.bf16.msra.mxu0 0
        %1320 = vmatprep.subr.bf16.mxu0 0
        %1321 = vmatpush1.bf16.msra.mxu0 0
        %1322 = vmatprep.subr.bf16.mxu0 0
        %1323 = vmatpush1.bf16.msra.mxu0 0
        %1324 = vmatprep.subr.bf16.mxu0 0
        %1325 = vmatpush1.bf16.msra.mxu0 0
        %1326 = vmatprep.subr.bf16.mxu0 0
        %1327 = vmatpush1.bf16.msra.mxu0 0
        %1328 = vmatprep.subr.bf16.mxu0 0
        %1329 = vmatpush1.bf16.msra.mxu0 0
        %1330 = vmatprep.subr.bf16.mxu0 0
        %1331 = vmatpush1.bf16.msra.mxu0 0
        %1332 = vmatprep.mubr.bf16.mxu0 0
        %1333 = vmatmul.mubr.bf16.gmra.mrb[0].mxu0 %v856
        %v1334 = vpop.f32.mrb[0].mxu0
        %v1335 = vadd.f32 0.0, %v1334
        %v1336 = vpop.f32.mrb[0].mxu0
        %v1337 = vpop.f32.mrb[0].mxu0
        %v1338 = vadd.f32 0.0, %v1337
        %v1339 = vpop.f32.mrb[0].mxu0
        %1340 = vdwg.mxu0
        %v1341 = vpack.c.bf16 %v1338, %v1335
        %s1342 = scalar_lea.vmem %s3, 112
        %v1343 = vld [vmem:[%s1342] sm:$0xf]
        %v1344 = vld [vmem:[%s1342 + $0x4] sm:$0xf]
        %v1345 = vld [vmem:[%s1342 + $0x8] sm:$0xf]
        %v1346 = vld [vmem:[%s1342 + $0xc] sm:$0xf]
        %v1351 = vunpack.c.l.b16 %v1343
        %v1352 = vunpack.c.l.b16 %v1344
        %v1353 = vunpack.c.l.b16 %v1345
        %v1354 = vunpack.c.l.b16 %v1346
        %v1355 = vpack.c.b16 %v1352, %v1351
        %v1356 = vpack.c.b16 %v1354, %v1353
        %v1360 = vsel %vm646, %v1341, 0
        %1362 = vmatprep.subr.bf16.mxu0 0
        %1363 = vmatpush1.bf16.msra.mxu0 %v1355
        %1364 = vmatprep.subr.bf16.mxu0 0
        %1365 = vmatpush1.bf16.msra.mxu0 %v1356
        %1366 = vmatprep.subr.bf16.mxu0 0
        %1367 = vmatpush1.bf16.msra.mxu0 0
        %1368 = vmatprep.subr.bf16.mxu0 0
        %1369 = vmatpush1.bf16.msra.mxu0 0
        %1370 = vmatprep.subr.bf16.mxu0 0
        %1371 = vmatpush1.bf16.msra.mxu0 0
        %1372 = vmatprep.subr.bf16.mxu0 0
        %1373 = vmatpush1.bf16.msra.mxu0 0
        %1374 = vmatprep.subr.bf16.mxu0 0
        %1375 = vmatpush1.bf16.msra.mxu0 0
        %1376 = vmatprep.subr.bf16.mxu0 0
        %1377 = vmatpush1.bf16.msra.mxu0 0
        %1378 = vmatprep.subr.bf16.mxu0 0
        %1379 = vmatpush1.bf16.msra.mxu0 0
        %1380 = vmatprep.subr.bf16.mxu0 0
        %1381 = vmatpush1.bf16.msra.mxu0 0
        %1382 = vmatprep.subr.bf16.mxu0 0
        %1383 = vmatpush1.bf16.msra.mxu0 0
        %1384 = vmatprep.subr.bf16.mxu0 0
        %1385 = vmatpush1.bf16.msra.mxu0 0
        %1386 = vmatprep.subr.bf16.mxu0 0
        %1387 = vmatpush1.bf16.msra.mxu0 0
        %1388 = vmatprep.subr.bf16.mxu0 0
        %1389 = vmatpush1.bf16.msra.mxu0 0
        %1390 = vmatprep.subr.bf16.mxu0 0
        %1391 = vmatpush1.bf16.msra.mxu0 0
        %1392 = vmatprep.subr.bf16.mxu0 0
        %1393 = vmatpush1.bf16.msra.mxu0 0
        %1394 = vmatprep.mubr.bf16.mxu0 0
        %1395 = vmatmul.mubr.bf16.gmra.mrb[0].mxu0 %v1360
        %v1396 = vpop.f32.mrb[0].mxu0
        %v1397 = vadd.f32 0.0, %v1396
        %v1398 = vpop.f32.mrb[0].mxu0
        %v1399 = vpop.f32.mrb[0].mxu0
        %v1400 = vadd.f32 0.0, %v1399
        %v1401 = vpop.f32.mrb[0].mxu0
        %1402 = vdwg.mxu0
        %v1403 = vadd.f32 %v1298, %v1397
        %v1404 = vadd.f32 %v1299, %v1400
        %s1405 = sadd.s32 %s508, 2
        %s1406 = smul.u32 %s1405, 4
        %s1407 = smul.addr %s1406, 4
        %s1408 = scalar_lea.vmem [#allocation2], %s1407
        %v1409 = vld [vmem:[%s1408] sm:$0xf]
        %v1410 = vld [vmem:[%s1408 + $0x4] sm:$0xf]
        %v1411 = vld [vmem:[%s1408 + $0x8] sm:$0xf]
        %v1412 = vld [vmem:[%s1408 + $0xc] sm:$0xf]
        %v1417 = vunpack.c.l.b16 %v1409
        %v1418 = vunpack.c.l.b16 %v1410
        %v1419 = vunpack.c.l.b16 %v1411
        %v1420 = vunpack.c.l.b16 %v1412
        %v1421 = vpack.c.b16 %v1418, %v1417
        %v1422 = vpack.c.b16 %v1420, %v1419
        %v1425 = vand.u32 %v1422, %v534
        %1427 = vmatprep.subr.bf16.mxu0 0
        %1428 = vmatpush1.bf16.msra.mxu0 %v1421
        %1429 = vmatprep.subr.bf16.mxu0 0
        %1430 = vmatpush1.bf16.msra.mxu0 %v1425
        %1431 = vmatprep.subr.bf16.mxu0 0
        %1432 = vmatpush1.bf16.msra.mxu0 0
        %1433 = vmatprep.subr.bf16.mxu0 0
        %1434 = vmatpush1.bf16.msra.mxu0 0
        %1435 = vmatprep.subr.bf16.mxu0 0
        %1436 = vmatpush1.bf16.msra.mxu0 0
        %1437 = vmatprep.subr.bf16.mxu0 0
        %1438 = vmatpush1.bf16.msra.mxu0 0
        %1439 = vmatprep.subr.bf16.mxu0 0
        %1440 = vmatpush1.bf16.msra.mxu0 0
        %1441 = vmatprep.subr.bf16.mxu0 0
        %1442 = vmatpush1.bf16.msra.mxu0 0
        %1443 = vmatprep.subr.bf16.mxu0 0
        %1444 = vmatpush1.bf16.msra.mxu0 0
        %1445 = vmatprep.subr.bf16.mxu0 0
        %1446 = vmatpush1.bf16.msra.mxu0 0
        %1447 = vmatprep.subr.bf16.mxu0 0
        %1448 = vmatpush1.bf16.msra.mxu0 0
        %1449 = vmatprep.subr.bf16.mxu0 0
        %1450 = vmatpush1.bf16.msra.mxu0 0
        %1451 = vmatprep.subr.bf16.mxu0 0
        %1452 = vmatpush1.bf16.msra.mxu0 0
        %1453 = vmatprep.subr.bf16.mxu0 0
        %1454 = vmatpush1.bf16.msra.mxu0 0
        %1455 = vmatprep.subr.bf16.mxu0 0
        %1456 = vmatpush1.bf16.msra.mxu0 0
        %1457 = vmatprep.subr.bf16.mxu0 0
        %1458 = vmatpush1.bf16.msra.mxu0 0
        %1459 = vmatprep.mubr.bf16.mxu0 0
        %1460 = vmatmul.mubr.bf16.gmra.mrb[0].mxu0 %v529
        %v1461 = vpop.f32.mrb[0].mxu0
        %v1462 = vadd.f32 0.0, %v1461
        %v1463 = vpop.f32.mrb[0].mxu0
        %v1464 = vpop.f32.mrb[0].mxu0
        %v1465 = vadd.f32 0.0, %v1464
        %v1466 = vpop.f32.mrb[0].mxu0
        %1467 = vdwg.mxu0
        %v1468 = vpack.c.bf16 %v1465, %v1462
        %s1469 = scalar_lea.vmem %s3, 128
        %v1470 = vld [vmem:[%s1469] sm:$0xf]
        %v1471 = vld [vmem:[%s1469 + $0x4] sm:$0xf]
        %v1472 = vld [vmem:[%s1469 + $0x8] sm:$0xf]
        %v1473 = vld [vmem:[%s1469 + $0xc] sm:$0xf]
        %v1478 = vunpack.c.l.b16 %v1470
        %v1479 = vunpack.c.l.b16 %v1471
        %v1480 = vunpack.c.l.b16 %v1472
        %v1481 = vunpack.c.l.b16 %v1473
        %v1482 = vpack.c.b16 %v1479, %v1478
        %v1483 = vpack.c.b16 %v1481, %v1480
        %v1487 = vsel %vm646, %v1468, 0
        %1489 = vmatprep.subr.bf16.mxu0 0
        %1490 = vmatpush1.bf16.msra.mxu0 %v1482
        %1491 = vmatprep.subr.bf16.mxu0 0
        %1492 = vmatpush1.bf16.msra.mxu0 %v1483
        %1493 = vmatprep.subr.bf16.mxu0 0
        %1494 = vmatpush1.bf16.msra.mxu0 0
        %1495 = vmatprep.subr.bf16.mxu0 0
        %1496 = vmatpush1.bf16.msra.mxu0 0
        %1497 = vmatprep.subr.bf16.mxu0 0
        %1498 = vmatpush1.bf16.msra.mxu0 0
        %1499 = vmatprep.subr.bf16.mxu0 0
        %1500 = vmatpush1.bf16.msra.mxu0 0
        %1501 = vmatprep.subr.bf16.mxu0 0
        %1502 = vmatpush1.bf16.msra.mxu0 0
        %1503 = vmatprep.subr.bf16.mxu0 0
        %1504 = vmatpush1.bf16.msra.mxu0 0
        %1505 = vmatprep.subr.bf16.mxu0 0
        %1506 = vmatpush1.bf16.msra.mxu0 0
        %1507 = vmatprep.subr.bf16.mxu0 0
        %1508 = vmatpush1.bf16.msra.mxu0 0
        %1509 = vmatprep.subr.bf16.mxu0 0
        %1510 = vmatpush1.bf16.msra.mxu0 0
        %1511 = vmatprep.subr.bf16.mxu0 0
        %1512 = vmatpush1.bf16.msra.mxu0 0
        %1513 = vmatprep.subr.bf16.mxu0 0
        %1514 = vmatpush1.bf16.msra.mxu0 0
        %1515 = vmatprep.subr.bf16.mxu0 0
        %1516 = vmatpush1.bf16.msra.mxu0 0
        %1517 = vmatprep.subr.bf16.mxu0 0
        %1518 = vmatpush1.bf16.msra.mxu0 0
        %1519 = vmatprep.subr.bf16.mxu0 0
        %1520 = vmatpush1.bf16.msra.mxu0 0
        %1521 = vmatprep.mubr.bf16.mxu0 0
        %1522 = vmatmul.mubr.bf16.gmra.mrb[0].mxu0 %v1487
        %v1523 = vpop.f32.mrb[0].mxu0
        %v1524 = vadd.f32 0.0, %v1523
        %v1525 = vpop.f32.mrb[0].mxu0
        %v1526 = vpop.f32.mrb[0].mxu0
        %v1527 = vadd.f32 0.0, %v1526
        %v1528 = vpop.f32.mrb[0].mxu0
        %1529 = vdwg.mxu0
        %v1530 = vadd.f32 %v1403, %v1524
        %v1531 = vadd.f32 %v1404, %v1527
        %1532 = vmatprep.subr.bf16.mxu0 0
        %1533 = vmatpush1.bf16.msra.mxu0 %v1421
        %1534 = vmatprep.subr.bf16.mxu0 0
        %1535 = vmatpush1.bf16.msra.mxu0 %v1425
        %1536 = vmatprep.subr.bf16.mxu0 0
        %1537 = vmatpush1.bf16.msra.mxu0 0
        %1538 = vmatprep.subr.bf16.mxu0 0
        %1539 = vmatpush1.bf16.msra.mxu0 0
        %1540 = vmatprep.subr.bf16.mxu0 0
        %1541 = vmatpush1.bf16.msra.mxu0 0
        %1542 = vmatprep.subr.bf16.mxu0 0
        %1543 = vmatpush1.bf16.msra.mxu0 0
        %1544 = vmatprep.subr.bf16.mxu0 0
        %1545 = vmatpush1.bf16.msra.mxu0 0
        %1546 = vmatprep.subr.bf16.mxu0 0
        %1547 = vmatpush1.bf16.msra.mxu0 0
        %1548 = vmatprep.subr.bf16.mxu0 0
        %1549 = vmatpush1.bf16.msra.mxu0 0
        %1550 = vmatprep.subr.bf16.mxu0 0
        %1551 = vmatpush1.bf16.msra.mxu0 0
        %1552 = vmatprep.subr.bf16.mxu0 0
        %1553 = vmatpush1.bf16.msra.mxu0 0
        %1554 = vmatprep.subr.bf16.mxu0 0
        %1555 = vmatpush1.bf16.msra.mxu0 0
        %1556 = vmatprep.subr.bf16.mxu0 0
        %1557 = vmatpush1.bf16.msra.mxu0 0
        %1558 = vmatprep.subr.bf16.mxu0 0
        %1559 = vmatpush1.bf16.msra.mxu0 0
        %1560 = vmatprep.subr.bf16.mxu0 0
        %1561 = vmatpush1.bf16.msra.mxu0 0
        %1562 = vmatprep.subr.bf16.mxu0 0
        %1563 = vmatpush1.bf16.msra.mxu0 0
        %1564 = vmatprep.mubr.bf16.mxu0 0
        %1565 = vmatmul.mubr.bf16.gmra.mrb[0].mxu0 %v585
        %v1566 = vpop.f32.mrb[0].mxu0
        %v1567 = vadd.f32 0.0, %v1566
        %v1568 = vpop.f32.mrb[0].mxu0
        %v1569 = vpop.f32.mrb[0].mxu0
        %v1570 = vadd.f32 0.0, %v1569
        %v1571 = vpop.f32.mrb[0].mxu0
        %1572 = vdwg.mxu0
        %v1573 = vpack.c.bf16 %v1570, %v1567
        %s1574 = scalar_lea.vmem %s3, 144
        %v1575 = vld [vmem:[%s1574] sm:$0xf]
        %v1576 = vld [vmem:[%s1574 + $0x4] sm:$0xf]
        %v1577 = vld [vmem:[%s1574 + $0x8] sm:$0xf]
        %v1578 = vld [vmem:[%s1574 + $0xc] sm:$0xf]
        %v1583 = vunpack.c.l.b16 %v1575
        %v1584 = vunpack.c.l.b16 %v1576
        %v1585 = vunpack.c.l.b16 %v1577
        %v1586 = vunpack.c.l.b16 %v1578
        %v1587 = vpack.c.b16 %v1584, %v1583
        %v1588 = vpack.c.b16 %v1586, %v1585
        %v1592 = vsel %vm646, %v1573, 0
        %1594 = vmatprep.subr.bf16.mxu0 0
        %1595 = vmatpush1.bf16.msra.mxu0 %v1587
        %1596 = vmatprep.subr.bf16.mxu0 0
        %1597 = vmatpush1.bf16.msra.mxu0 %v1588
        %1598 = vmatprep.subr.bf16.mxu0 0
        %1599 = vmatpush1.bf16.msra.mxu0 0
        %1600 = vmatprep.subr.bf16.mxu0 0
        %1601 = vmatpush1.bf16.msra.mxu0 0
        %1602 = vmatprep.subr.bf16.mxu0 0
        %1603 = vmatpush1.bf16.msra.mxu0 0
        %1604 = vmatprep.subr.bf16.mxu0 0
        %1605 = vmatpush1.bf16.msra.mxu0 0
        %1606 = vmatprep.subr.bf16.mxu0 0
        %1607 = vmatpush1.bf16.msra.mxu0 0
        %1608 = vmatprep.subr.bf16.mxu0 0
        %1609 = vmatpush1.bf16.msra.mxu0 0
        %1610 = vmatprep.subr.bf16.mxu0 0
        %1611 = vmatpush1.bf16.msra.mxu0 0
        %1612 = vmatprep.subr.bf16.mxu0 0
        %1613 = vmatpush1.bf16.msra.mxu0 0
        %1614 = vmatprep.subr.bf16.mxu0 0
        %1615 = vmatpush1.bf16.msra.mxu0 0
        %1616 = vmatprep.subr.bf16.mxu0 0
        %1617 = vmatpush1.bf16.msra.mxu0 0
        %1618 = vmatprep.subr.bf16.mxu0 0
        %1619 = vmatpush1.bf16.msra.mxu0 0
        %1620 = vmatprep.subr.bf16.mxu0 0
        %1621 = vmatpush1.bf16.msra.mxu0 0
        %1622 = vmatprep.subr.bf16.mxu0 0
        %1623 = vmatpush1.bf16.msra.mxu0 0
        %1624 = vmatprep.subr.bf16.mxu0 0
        %1625 = vmatpush1.bf16.msra.mxu0 0
        %1626 = vmatprep.mubr.bf16.mxu0 0
        %1627 = vmatmul.mubr.bf16.gmra.mrb[0].mxu0 %v1592
        %v1628 = vpop.f32.mrb[0].mxu0
        %v1629 = vadd.f32 0.0, %v1628
        %v1630 = vpop.f32.mrb[0].mxu0
        %v1631 = vpop.f32.mrb[0].mxu0
        %v1632 = vadd.f32 0.0, %v1631
        %v1633 = vpop.f32.mrb[0].mxu0
        %1634 = vdwg.mxu0
        %v1635 = vadd.f32 %v1530, %v1629
        %v1636 = vadd.f32 %v1531, %v1632
        %1637 = vmatprep.subr.bf16.mxu0 0
        %1638 = vmatpush1.bf16.msra.mxu0 %v1421
        %1639 = vmatprep.subr.bf16.mxu0 0
        %1640 = vmatpush1.bf16.msra.mxu0 %v1425
        %1641 = vmatprep.subr.bf16.mxu0 0
        %1642 = vmatpush1.bf16.msra.mxu0 0
        %1643 = vmatprep.subr.bf16.mxu0 0
        %1644 = vmatpush1.bf16.msra.mxu0 0
        %1645 = vmatprep.subr.bf16.mxu0 0
        %1646 = vmatpush1.bf16.msra.mxu0 0
        %1647 = vmatprep.subr.bf16.mxu0 0
        %1648 = vmatpush1.bf16.msra.mxu0 0
        %1649 = vmatprep.subr.bf16.mxu0 0
        %1650 = vmatpush1.bf16.msra.mxu0 0
        %1651 = vmatprep.subr.bf16.mxu0 0
        %1652 = vmatpush1.bf16.msra.mxu0 0
        %1653 = vmatprep.subr.bf16.mxu0 0
        %1654 = vmatpush1.bf16.msra.mxu0 0
        %1655 = vmatprep.subr.bf16.mxu0 0
        %1656 = vmatpush1.bf16.msra.mxu0 0
        %1657 = vmatprep.subr.bf16.mxu0 0
        %1658 = vmatpush1.bf16.msra.mxu0 0
        %1659 = vmatprep.subr.bf16.mxu0 0
        %1660 = vmatpush1.bf16.msra.mxu0 0
        %1661 = vmatprep.subr.bf16.mxu0 0
        %1662 = vmatpush1.bf16.msra.mxu0 0
        %1663 = vmatprep.subr.bf16.mxu0 0
        %1664 = vmatpush1.bf16.msra.mxu0 0
        %1665 = vmatprep.subr.bf16.mxu0 0
        %1666 = vmatpush1.bf16.msra.mxu0 0
        %1667 = vmatprep.subr.bf16.mxu0 0
        %1668 = vmatpush1.bf16.msra.mxu0 0
        %1669 = vmatprep.mubr.bf16.mxu0 0
        %1670 = vmatmul.mubr.bf16.gmra.mrb[0].mxu0 %v748
        %v1671 = vpop.f32.mrb[0].mxu0
        %v1672 = vadd.f32 0.0, %v1671
        %v1673 = vpop.f32.mrb[0].mxu0
        %v1674 = vpop.f32.mrb[0].mxu0
        %v1675 = vadd.f32 0.0, %v1674
        %v1676 = vpop.f32.mrb[0].mxu0
        %1677 = vdwg.mxu0
        %v1678 = vpack.c.bf16 %v1675, %v1672
        %s1679 = scalar_lea.vmem %s3, 160
        %v1680 = vld [vmem:[%s1679] sm:$0xf]
        %v1681 = vld [vmem:[%s1679 + $0x4] sm:$0xf]
        %v1682 = vld [vmem:[%s1679 + $0x8] sm:$0xf]
        %v1683 = vld [vmem:[%s1679 + $0xc] sm:$0xf]
        %v1688 = vunpack.c.l.b16 %v1680
        %v1689 = vunpack.c.l.b16 %v1681
        %v1690 = vunpack.c.l.b16 %v1682
        %v1691 = vunpack.c.l.b16 %v1683
        %v1692 = vpack.c.b16 %v1689, %v1688
        %v1693 = vpack.c.b16 %v1691, %v1690
        %v1697 = vsel %vm646, %v1678, 0
        %1699 = vmatprep.subr.bf16.mxu0 0
        %1700 = vmatpush1.bf16.msra.mxu0 %v1692
        %1701 = vmatprep.subr.bf16.mxu0 0
        %1702 = vmatpush1.bf16.msra.mxu0 %v1693
        %1703 = vmatprep.subr.bf16.mxu0 0
        %1704 = vmatpush1.bf16.msra.mxu0 0
        %1705 = vmatprep.subr.bf16.mxu0 0
        %1706 = vmatpush1.bf16.msra.mxu0 0
        %1707 = vmatprep.subr.bf16.mxu0 0
        %1708 = vmatpush1.bf16.msra.mxu0 0
        %1709 = vmatprep.subr.bf16.mxu0 0
        %1710 = vmatpush1.bf16.msra.mxu0 0
        %1711 = vmatprep.subr.bf16.mxu0 0
        %1712 = vmatpush1.bf16.msra.mxu0 0
        %1713 = vmatprep.subr.bf16.mxu0 0
        %1714 = vmatpush1.bf16.msra.mxu0 0
        %1715 = vmatprep.subr.bf16.mxu0 0
        %1716 = vmatpush1.bf16.msra.mxu0 0
        %1717 = vmatprep.subr.bf16.mxu0 0
        %1718 = vmatpush1.bf16.msra.mxu0 0
        %1719 = vmatprep.subr.bf16.mxu0 0
        %1720 = vmatpush1.bf16.msra.mxu0 0
        %1721 = vmatprep.subr.bf16.mxu0 0
        %1722 = vmatpush1.bf16.msra.mxu0 0
        %1723 = vmatprep.subr.bf16.mxu0 0
        %1724 = vmatpush1.bf16.msra.mxu0 0
        %1725 = vmatprep.subr.bf16.mxu0 0
        %1726 = vmatpush1.bf16.msra.mxu0 0
        %1727 = vmatprep.subr.bf16.mxu0 0
        %1728 = vmatpush1.bf16.msra.mxu0 0
        %1729 = vmatprep.subr.bf16.mxu0 0
        %1730 = vmatpush1.bf16.msra.mxu0 0
        %1731 = vmatprep.mubr.bf16.mxu0 0
        %1732 = vmatmul.mubr.bf16.gmra.mrb[0].mxu0 %v1697
        %v1733 = vpop.f32.mrb[0].mxu0
        %v1734 = vadd.f32 0.0, %v1733
        %v1735 = vpop.f32.mrb[0].mxu0
        %v1736 = vpop.f32.mrb[0].mxu0
        %v1737 = vadd.f32 0.0, %v1736
        %v1738 = vpop.f32.mrb[0].mxu0
        %1739 = vdwg.mxu0
        %v1740 = vadd.f32 %v1635, %v1734
        %v1741 = vadd.f32 %v1636, %v1737
        %1742 = vmatprep.subr.bf16.mxu0 0
        %1743 = vmatpush1.bf16.msra.mxu0 %v1421
        %1744 = vmatprep.subr.bf16.mxu0 0
        %1745 = vmatpush1.bf16.msra.mxu0 %v1425
        %1746 = vmatprep.subr.bf16.mxu0 0
        %1747 = vmatpush1.bf16.msra.mxu0 0
        %1748 = vmatprep.subr.bf16.mxu0 0
        %1749 = vmatpush1.bf16.msra.mxu0 0
        %1750 = vmatprep.subr.bf16.mxu0 0
        %1751 = vmatpush1.bf16.msra.mxu0 0
        %1752 = vmatprep.subr.bf16.mxu0 0
        %1753 = vmatpush1.bf16.msra.mxu0 0
        %1754 = vmatprep.subr.bf16.mxu0 0
        %1755 = vmatpush1.bf16.msra.mxu0 0
        %1756 = vmatprep.subr.bf16.mxu0 0
        %1757 = vmatpush1.bf16.msra.mxu0 0
        %1758 = vmatprep.subr.bf16.mxu0 0
        %1759 = vmatpush1.bf16.msra.mxu0 0
        %1760 = vmatprep.subr.bf16.mxu0 0
        %1761 = vmatpush1.bf16.msra.mxu0 0
        %1762 = vmatprep.subr.bf16.mxu0 0
        %1763 = vmatpush1.bf16.msra.mxu0 0
        %1764 = vmatprep.subr.bf16.mxu0 0
        %1765 = vmatpush1.bf16.msra.mxu0 0
        %1766 = vmatprep.subr.bf16.mxu0 0
        %1767 = vmatpush1.bf16.msra.mxu0 0
        %1768 = vmatprep.subr.bf16.mxu0 0
        %1769 = vmatpush1.bf16.msra.mxu0 0
        %1770 = vmatprep.subr.bf16.mxu0 0
        %1771 = vmatpush1.bf16.msra.mxu0 0
        %1772 = vmatprep.subr.bf16.mxu0 0
        %1773 = vmatpush1.bf16.msra.mxu0 0
        %1774 = vmatprep.mubr.bf16.mxu0 0
        %1775 = vmatmul.mubr.bf16.gmra.mrb[0].mxu0 %v856
        %v1776 = vpop.f32.mrb[0].mxu0
        %v1777 = vadd.f32 0.0, %v1776
        %v1778 = vpop.f32.mrb[0].mxu0
        %v1779 = vpop.f32.mrb[0].mxu0
        %v1780 = vadd.f32 0.0, %v1779
        %v1781 = vpop.f32.mrb[0].mxu0
        %1782 = vdwg.mxu0
        %v1783 = vpack.c.bf16 %v1780, %v1777
        %s1784 = scalar_lea.vmem %s3, 176
        %v1785 = vld [vmem:[%s1784] sm:$0xf]
        %v1786 = vld [vmem:[%s1784 + $0x4] sm:$0xf]
        %v1787 = vld [vmem:[%s1784 + $0x8] sm:$0xf]
        %v1788 = vld [vmem:[%s1784 + $0xc] sm:$0xf]
        %v1793 = vunpack.c.l.b16 %v1785
        %v1794 = vunpack.c.l.b16 %v1786
        %v1795 = vunpack.c.l.b16 %v1787
        %v1796 = vunpack.c.l.b16 %v1788
        %v1797 = vpack.c.b16 %v1794, %v1793
        %v1798 = vpack.c.b16 %v1796, %v1795
        %v1802 = vsel %vm646, %v1783, 0
        %1804 = vmatprep.subr.bf16.mxu0 0
        %1805 = vmatpush1.bf16.msra.mxu0 %v1797
        %1806 = vmatprep.subr.bf16.mxu0 0
        %1807 = vmatpush1.bf16.msra.mxu0 %v1798
        %1808 = vmatprep.subr.bf16.mxu0 0
        %1809 = vmatpush1.bf16.msra.mxu0 0
        %1810 = vmatprep.subr.bf16.mxu0 0
        %1811 = vmatpush1.bf16.msra.mxu0 0
        %1812 = vmatprep.subr.bf16.mxu0 0
        %1813 = vmatpush1.bf16.msra.mxu0 0
        %1814 = vmatprep.subr.bf16.mxu0 0
        %1815 = vmatpush1.bf16.msra.mxu0 0
        %1816 = vmatprep.subr.bf16.mxu0 0
        %1817 = vmatpush1.bf16.msra.mxu0 0
        %1818 = vmatprep.subr.bf16.mxu0 0
        %1819 = vmatpush1.bf16.msra.mxu0 0
        %1820 = vmatprep.subr.bf16.mxu0 0
        %1821 = vmatpush1.bf16.msra.mxu0 0
        %1822 = vmatprep.subr.bf16.mxu0 0
        %1823 = vmatpush1.bf16.msra.mxu0 0
        %1824 = vmatprep.subr.bf16.mxu0 0
        %1825 = vmatpush1.bf16.msra.mxu0 0
        %1826 = vmatprep.subr.bf16.mxu0 0
        %1827 = vmatpush1.bf16.msra.mxu0 0
        %1828 = vmatprep.subr.bf16.mxu0 0
        %1829 = vmatpush1.bf16.msra.mxu0 0
        %1830 = vmatprep.subr.bf16.mxu0 0
        %1831 = vmatpush1.bf16.msra.mxu0 0
        %1832 = vmatprep.subr.bf16.mxu0 0
        %1833 = vmatpush1.bf16.msra.mxu0 0
        %1834 = vmatprep.subr.bf16.mxu0 0
        %1835 = vmatpush1.bf16.msra.mxu0 0
        %1836 = vmatprep.mubr.bf16.mxu0 0
        %1837 = vmatmul.mubr.bf16.gmra.mrb[0].mxu0 %v1802
        %v1838 = vpop.f32.mrb[0].mxu0
        %v1839 = vadd.f32 0.0, %v1838
        %v1840 = vpop.f32.mrb[0].mxu0
        %v1841 = vpop.f32.mrb[0].mxu0
        %v1842 = vadd.f32 0.0, %v1841
        %v1843 = vpop.f32.mrb[0].mxu0
        %1844 = vdwg.mxu0
        %v1845 = vadd.f32 %v1740, %v1839
        %v1846 = vadd.f32 %v1741, %v1842
        %s1847 = sadd.s32 %s508, 3
        %s1848 = smul.u32 %s1847, 4
        %s1849 = smul.addr %s1848, 4
        %s1850 = scalar_lea.vmem [#allocation2], %s1849
        %v1851 = vld [vmem:[%s1850] sm:$0xf]
        %v1852 = vld [vmem:[%s1850 + $0x4] sm:$0xf]
        %v1853 = vld [vmem:[%s1850 + $0x8] sm:$0xf]
        %v1854 = vld [vmem:[%s1850 + $0xc] sm:$0xf]
        %v1859 = vunpack.c.l.b16 %v1851
        %v1860 = vunpack.c.l.b16 %v1852
        %v1861 = vunpack.c.l.b16 %v1853
        %v1862 = vunpack.c.l.b16 %v1854
        %v1863 = vpack.c.b16 %v1860, %v1859
        %v1864 = vpack.c.b16 %v1862, %v1861
        %v1867 = vand.u32 %v1864, %v534
        %1869 = vmatprep.subr.bf16.mxu0 0
        %1870 = vmatpush1.bf16.msra.mxu0 %v1863
        %1871 = vmatprep.subr.bf16.mxu0 0
        %1872 = vmatpush1.bf16.msra.mxu0 %v1867
        %1873 = vmatprep.subr.bf16.mxu0 0
        %1874 = vmatpush1.bf16.msra.mxu0 0
        %1875 = vmatprep.subr.bf16.mxu0 0
        %1876 = vmatpush1.bf16.msra.mxu0 0
        %1877 = vmatprep.subr.bf16.mxu0 0
        %1878 = vmatpush1.bf16.msra.mxu0 0
        %1879 = vmatprep.subr.bf16.mxu0 0
        %1880 = vmatpush1.bf16.msra.mxu0 0
        %1881 = vmatprep.subr.bf16.mxu0 0
        %1882 = vmatpush1.bf16.msra.mxu0 0
        %1883 = vmatprep.subr.bf16.mxu0 0
        %1884 = vmatpush1.bf16.msra.mxu0 0
        %1885 = vmatprep.subr.bf16.mxu0 0
        %1886 = vmatpush1.bf16.msra.mxu0 0
        %1887 = vmatprep.subr.bf16.mxu0 0
        %1888 = vmatpush1.bf16.msra.mxu0 0
        %1889 = vmatprep.subr.bf16.mxu0 0
        %1890 = vmatpush1.bf16.msra.mxu0 0
        %1891 = vmatprep.subr.bf16.mxu0 0
        %1892 = vmatpush1.bf16.msra.mxu0 0
        %1893 = vmatprep.subr.bf16.mxu0 0
        %1894 = vmatpush1.bf16.msra.mxu0 0
        %1895 = vmatprep.subr.bf16.mxu0 0
        %1896 = vmatpush1.bf16.msra.mxu0 0
        %1897 = vmatprep.subr.bf16.mxu0 0
        %1898 = vmatpush1.bf16.msra.mxu0 0
        %1899 = vmatprep.subr.bf16.mxu0 0
        %1900 = vmatpush1.bf16.msra.mxu0 0
        %1901 = vmatprep.mubr.bf16.mxu0 0
        %1902 = vmatmul.mubr.bf16.gmra.mrb[0].mxu0 %v529
        %v1903 = vpop.f32.mrb[0].mxu0
        %v1904 = vadd.f32 0.0, %v1903
        %v1905 = vpop.f32.mrb[0].mxu0
        %v1906 = vpop.f32.mrb[0].mxu0
        %v1907 = vadd.f32 0.0, %v1906
        %v1908 = vpop.f32.mrb[0].mxu0
        %1909 = vdwg.mxu0
        %v1910 = vpack.c.bf16 %v1907, %v1904
        %s1911 = scalar_lea.vmem %s3, 192
        %v1912 = vld [vmem:[%s1911] sm:$0xf]
        %v1913 = vld [vmem:[%s1911 + $0x4] sm:$0xf]
        %v1914 = vld [vmem:[%s1911 + $0x8] sm:$0xf]
        %v1915 = vld [vmem:[%s1911 + $0xc] sm:$0xf]
        %v1920 = vunpack.c.l.b16 %v1912
        %v1921 = vunpack.c.l.b16 %v1913
        %v1922 = vunpack.c.l.b16 %v1914
        %v1923 = vunpack.c.l.b16 %v1915
        %v1924 = vpack.c.b16 %v1921, %v1920
        %v1925 = vpack.c.b16 %v1923, %v1922
        %v1929 = vsel %vm646, %v1910, 0
        %1931 = vmatprep.subr.bf16.mxu0 0
        %1932 = vmatpush1.bf16.msra.mxu0 %v1924
        %1933 = vmatprep.subr.bf16.mxu0 0
        %1934 = vmatpush1.bf16.msra.mxu0 %v1925
        %1935 = vmatprep.subr.bf16.mxu0 0
        %1936 = vmatpush1.bf16.msra.mxu0 0
        %1937 = vmatprep.subr.bf16.mxu0 0
        %1938 = vmatpush1.bf16.msra.mxu0 0
        %1939 = vmatprep.subr.bf16.mxu0 0
        %1940 = vmatpush1.bf16.msra.mxu0 0
        %1941 = vmatprep.subr.bf16.mxu0 0
        %1942 = vmatpush1.bf16.msra.mxu0 0
        %1943 = vmatprep.subr.bf16.mxu0 0
        %1944 = vmatpush1.bf16.msra.mxu0 0
        %1945 = vmatprep.subr.bf16.mxu0 0
        %1946 = vmatpush1.bf16.msra.mxu0 0
        %1947 = vmatprep.subr.bf16.mxu0 0
        %1948 = vmatpush1.bf16.msra.mxu0 0
        %1949 = vmatprep.subr.bf16.mxu0 0
        %1950 = vmatpush1.bf16.msra.mxu0 0
        %1951 = vmatprep.subr.bf16.mxu0 0
        %1952 = vmatpush1.bf16.msra.mxu0 0
        %1953 = vmatprep.subr.bf16.mxu0 0
        %1954 = vmatpush1.bf16.msra.mxu0 0
        %1955 = vmatprep.subr.bf16.mxu0 0
        %1956 = vmatpush1.bf16.msra.mxu0 0
        %1957 = vmatprep.subr.bf16.mxu0 0
        %1958 = vmatpush1.bf16.msra.mxu0 0
        %1959 = vmatprep.subr.bf16.mxu0 0
        %1960 = vmatpush1.bf16.msra.mxu0 0
        %1961 = vmatprep.subr.bf16.mxu0 0
        %1962 = vmatpush1.bf16.msra.mxu0 0
        %1963 = vmatprep.mubr.bf16.mxu0 0
        %1964 = vmatmul.mubr.bf16.gmra.mrb[0].mxu0 %v1929
        %v1965 = vpop.f32.mrb[0].mxu0
        %v1966 = vadd.f32 0.0, %v1965
        %v1967 = vpop.f32.mrb[0].mxu0
        %v1968 = vpop.f32.mrb[0].mxu0
        %v1969 = vadd.f32 0.0, %v1968
        %v1970 = vpop.f32.mrb[0].mxu0
        %1971 = vdwg.mxu0
        %v1972 = vadd.f32 %v1845, %v1966
        %v1973 = vadd.f32 %v1846, %v1969
        %1974 = vmatprep.subr.bf16.mxu0 0
        %1975 = vmatpush1.bf16.msra.mxu0 %v1863
        %1976 = vmatprep.subr.bf16.mxu0 0
        %1977 = vmatpush1.bf16.msra.mxu0 %v1867
        %1978 = vmatprep.subr.bf16.mxu0 0
        %1979 = vmatpush1.bf16.msra.mxu0 0
        %1980 = vmatprep.subr.bf16.mxu0 0
        %1981 = vmatpush1.bf16.msra.mxu0 0
        %1982 = vmatprep.subr.bf16.mxu0 0
        %1983 = vmatpush1.bf16.msra.mxu0 0
        %1984 = vmatprep.subr.bf16.mxu0 0
        %1985 = vmatpush1.bf16.msra.mxu0 0
        %1986 = vmatprep.subr.bf16.mxu0 0
        %1987 = vmatpush1.bf16.msra.mxu0 0
        %1988 = vmatprep.subr.bf16.mxu0 0
        %1989 = vmatpush1.bf16.msra.mxu0 0
        %1990 = vmatprep.subr.bf16.mxu0 0
        %1991 = vmatpush1.bf16.msra.mxu0 0
        %1992 = vmatprep.subr.bf16.mxu0 0
        %1993 = vmatpush1.bf16.msra.mxu0 0
        %1994 = vmatprep.subr.bf16.mxu0 0
        %1995 = vmatpush1.bf16.msra.mxu0 0
        %1996 = vmatprep.subr.bf16.mxu0 0
        %1997 = vmatpush1.bf16.msra.mxu0 0
        %1998 = vmatprep.subr.bf16.mxu0 0
        %1999 = vmatpush1.bf16.msra.mxu0 0
        %2000 = vmatprep.subr.bf16.mxu0 0
        %2001 = vmatpush1.bf16.msra.mxu0 0
        %2002 = vmatprep.subr.bf16.mxu0 0
        %2003 = vmatpush1.bf16.msra.mxu0 0
        %2004 = vmatprep.subr.bf16.mxu0 0
        %2005 = vmatpush1.bf16.msra.mxu0 0
        %2006 = vmatprep.mubr.bf16.mxu0 0
        %2007 = vmatmul.mubr.bf16.gmra.mrb[0].mxu0 %v585
        %v2008 = vpop.f32.mrb[0].mxu0
        %v2009 = vadd.f32 0.0, %v2008
        %v2010 = vpop.f32.mrb[0].mxu0
        %v2011 = vpop.f32.mrb[0].mxu0
        %v2012 = vadd.f32 0.0, %v2011
        %v2013 = vpop.f32.mrb[0].mxu0
        %2014 = vdwg.mxu0
        %v2015 = vpack.c.bf16 %v2012, %v2009
        %s2016 = scalar_lea.vmem %s3, 208
        %v2017 = vld [vmem:[%s2016] sm:$0xf]
        %v2018 = vld [vmem:[%s2016 + $0x4] sm:$0xf]
        %v2019 = vld [vmem:[%s2016 + $0x8] sm:$0xf]
        %v2020 = vld [vmem:[%s2016 + $0xc] sm:$0xf]
        %v2025 = vunpack.c.l.b16 %v2017
        %v2026 = vunpack.c.l.b16 %v2018
        %v2027 = vunpack.c.l.b16 %v2019
        %v2028 = vunpack.c.l.b16 %v2020
        %v2029 = vpack.c.b16 %v2026, %v2025
        %v2030 = vpack.c.b16 %v2028, %v2027
        %v2034 = vsel %vm646, %v2015, 0
        %2036 = vmatprep.subr.bf16.mxu0 0
        %2037 = vmatpush1.bf16.msra.mxu0 %v2029
        %2038 = vmatprep.subr.bf16.mxu0 0
        %2039 = vmatpush1.bf16.msra.mxu0 %v2030
        %2040 = vmatprep.subr.bf16.mxu0 0
        %2041 = vmatpush1.bf16.msra.mxu0 0
        %2042 = vmatprep.subr.bf16.mxu0 0
        %2043 = vmatpush1.bf16.msra.mxu0 0
        %2044 = vmatprep.subr.bf16.mxu0 0
        %2045 = vmatpush1.bf16.msra.mxu0 0
        %2046 = vmatprep.subr.bf16.mxu0 0
        %2047 = vmatpush1.bf16.msra.mxu0 0
        %2048 = vmatprep.subr.bf16.mxu0 0
        %2049 = vmatpush1.bf16.msra.mxu0 0
        %2050 = vmatprep.subr.bf16.mxu0 0
        %2051 = vmatpush1.bf16.msra.mxu0 0
        %2052 = vmatprep.subr.bf16.mxu0 0
        %2053 = vmatpush1.bf16.msra.mxu0 0
        %2054 = vmatprep.subr.bf16.mxu0 0
        %2055 = vmatpush1.bf16.msra.mxu0 0
        %2056 = vmatprep.subr.bf16.mxu0 0
        %2057 = vmatpush1.bf16.msra.mxu0 0
        %2058 = vmatprep.subr.bf16.mxu0 0
        %2059 = vmatpush1.bf16.msra.mxu0 0
        %2060 = vmatprep.subr.bf16.mxu0 0
        %2061 = vmatpush1.bf16.msra.mxu0 0
        %2062 = vmatprep.subr.bf16.mxu0 0
        %2063 = vmatpush1.bf16.msra.mxu0 0
        %2064 = vmatprep.subr.bf16.mxu0 0
        %2065 = vmatpush1.bf16.msra.mxu0 0
        %2066 = vmatprep.subr.bf16.mxu0 0
        %2067 = vmatpush1.bf16.msra.mxu0 0
        %2068 = vmatprep.mubr.bf16.mxu0 0
        %2069 = vmatmul.mubr.bf16.gmra.mrb[0].mxu0 %v2034
        %v2070 = vpop.f32.mrb[0].mxu0
        %v2071 = vadd.f32 0.0, %v2070
        %v2072 = vpop.f32.mrb[0].mxu0
        %v2073 = vpop.f32.mrb[0].mxu0
        %v2074 = vadd.f32 0.0, %v2073
        %v2075 = vpop.f32.mrb[0].mxu0
        %2076 = vdwg.mxu0
        %v2077 = vadd.f32 %v1972, %v2071
        %v2078 = vadd.f32 %v1973, %v2074
        %2079 = vmatprep.subr.bf16.mxu0 0
        %2080 = vmatpush1.bf16.msra.mxu0 %v1863
        %2081 = vmatprep.subr.bf16.mxu0 0
        %2082 = vmatpush1.bf16.msra.mxu0 %v1867
        %2083 = vmatprep.subr.bf16.mxu0 0
        %2084 = vmatpush1.bf16.msra.mxu0 0
        %2085 = vmatprep.subr.bf16.mxu0 0
        %2086 = vmatpush1.bf16.msra.mxu0 0
        %2087 = vmatprep.subr.bf16.mxu0 0
        %2088 = vmatpush1.bf16.msra.mxu0 0
        %2089 = vmatprep.subr.bf16.mxu0 0
        %2090 = vmatpush1.bf16.msra.mxu0 0
        %2091 = vmatprep.subr.bf16.mxu0 0
        %2092 = vmatpush1.bf16.msra.mxu0 0
        %2093 = vmatprep.subr.bf16.mxu0 0
        %2094 = vmatpush1.bf16.msra.mxu0 0
        %2095 = vmatprep.subr.bf16.mxu0 0
        %2096 = vmatpush1.bf16.msra.mxu0 0
        %2097 = vmatprep.subr.bf16.mxu0 0
        %2098 = vmatpush1.bf16.msra.mxu0 0
        %2099 = vmatprep.subr.bf16.mxu0 0
        %2100 = vmatpush1.bf16.msra.mxu0 0
        %2101 = vmatprep.subr.bf16.mxu0 0
        %2102 = vmatpush1.bf16.msra.mxu0 0
        %2103 = vmatprep.subr.bf16.mxu0 0
        %2104 = vmatpush1.bf16.msra.mxu0 0
        %2105 = vmatprep.subr.bf16.mxu0 0
        %2106 = vmatpush1.bf16.msra.mxu0 0
        %2107 = vmatprep.subr.bf16.mxu0 0
        %2108 = vmatpush1.bf16.msra.mxu0 0
        %2109 = vmatprep.subr.bf16.mxu0 0
        %2110 = vmatpush1.bf16.msra.mxu0 0
        %2111 = vmatprep.mubr.bf16.mxu0 0
        %2112 = vmatmul.mubr.bf16.gmra.mrb[0].mxu0 %v748
        %v2113 = vpop.f32.mrb[0].mxu0
        %v2114 = vadd.f32 0.0, %v2113
        %v2115 = vpop.f32.mrb[0].mxu0
        %v2116 = vpop.f32.mrb[0].mxu0
        %v2117 = vadd.f32 0.0, %v2116
        %v2118 = vpop.f32.mrb[0].mxu0
        %2119 = vdwg.mxu0
        %v2120 = vpack.c.bf16 %v2117, %v2114
        %s2121 = scalar_lea.vmem %s3, 224
        %v2122 = vld [vmem:[%s2121] sm:$0xf]
        %v2123 = vld [vmem:[%s2121 + $0x4] sm:$0xf]
        %v2124 = vld [vmem:[%s2121 + $0x8] sm:$0xf]
        %v2125 = vld [vmem:[%s2121 + $0xc] sm:$0xf]
        %v2130 = vunpack.c.l.b16 %v2122
        %v2131 = vunpack.c.l.b16 %v2123
        %v2132 = vunpack.c.l.b16 %v2124
        %v2133 = vunpack.c.l.b16 %v2125
        %v2134 = vpack.c.b16 %v2131, %v2130
        %v2135 = vpack.c.b16 %v2133, %v2132
        %v2139 = vsel %vm646, %v2120, 0
        %2141 = vmatprep.subr.bf16.mxu0 0
        %2142 = vmatpush1.bf16.msra.mxu0 %v2134
        %2143 = vmatprep.subr.bf16.mxu0 0
        %2144 = vmatpush1.bf16.msra.mxu0 %v2135
        %2145 = vmatprep.subr.bf16.mxu0 0
        %2146 = vmatpush1.bf16.msra.mxu0 0
        %2147 = vmatprep.subr.bf16.mxu0 0
        %2148 = vmatpush1.bf16.msra.mxu0 0
        %2149 = vmatprep.subr.bf16.mxu0 0
        %2150 = vmatpush1.bf16.msra.mxu0 0
        %2151 = vmatprep.subr.bf16.mxu0 0
        %2152 = vmatpush1.bf16.msra.mxu0 0
        %2153 = vmatprep.subr.bf16.mxu0 0
        %2154 = vmatpush1.bf16.msra.mxu0 0
        %2155 = vmatprep.subr.bf16.mxu0 0
        %2156 = vmatpush1.bf16.msra.mxu0 0
        %2157 = vmatprep.subr.bf16.mxu0 0
        %2158 = vmatpush1.bf16.msra.mxu0 0
        %2159 = vmatprep.subr.bf16.mxu0 0
        %2160 = vmatpush1.bf16.msra.mxu0 0
        %2161 = vmatprep.subr.bf16.mxu0 0
        %2162 = vmatpush1.bf16.msra.mxu0 0
        %2163 = vmatprep.subr.bf16.mxu0 0
        %2164 = vmatpush1.bf16.msra.mxu0 0
        %2165 = vmatprep.subr.bf16.mxu0 0
        %2166 = vmatpush1.bf16.msra.mxu0 0
        %2167 = vmatprep.subr.bf16.mxu0 0
        %2168 = vmatpush1.bf16.msra.mxu0 0
        %2169 = vmatprep.subr.bf16.mxu0 0
        %2170 = vmatpush1.bf16.msra.mxu0 0
        %2171 = vmatprep.subr.bf16.mxu0 0
        %2172 = vmatpush1.bf16.msra.mxu0 0
        %2173 = vmatprep.mubr.bf16.mxu0 0
        %2174 = vmatmul.mubr.bf16.gmra.mrb[0].mxu0 %v2139
        %v2175 = vpop.f32.mrb[0].mxu0
        %v2176 = vadd.f32 0.0, %v2175
        %v2177 = vpop.f32.mrb[0].mxu0
        %v2178 = vpop.f32.mrb[0].mxu0
        %v2179 = vadd.f32 0.0, %v2178
        %v2180 = vpop.f32.mrb[0].mxu0
        %2181 = vdwg.mxu0
        %v2182 = vadd.f32 %v2077, %v2176
        %v2183 = vadd.f32 %v2078, %v2179
        %2184 = vmatprep.subr.bf16.mxu0 0
        %2185 = vmatpush1.bf16.msra.mxu0 %v1863
        %2186 = vmatprep.subr.bf16.mxu0 0
        %2187 = vmatpush1.bf16.msra.mxu0 %v1867
        %2188 = vmatprep.subr.bf16.mxu0 0
        %2189 = vmatpush1.bf16.msra.mxu0 0
        %2190 = vmatprep.subr.bf16.mxu0 0
        %2191 = vmatpush1.bf16.msra.mxu0 0
        %2192 = vmatprep.subr.bf16.mxu0 0
        %2193 = vmatpush1.bf16.msra.mxu0 0
        %2194 = vmatprep.subr.bf16.mxu0 0
        %2195 = vmatpush1.bf16.msra.mxu0 0
        %2196 = vmatprep.subr.bf16.mxu0 0
        %2197 = vmatpush1.bf16.msra.mxu0 0
        %2198 = vmatprep.subr.bf16.mxu0 0
        %2199 = vmatpush1.bf16.msra.mxu0 0
        %2200 = vmatprep.subr.bf16.mxu0 0
        %2201 = vmatpush1.bf16.msra.mxu0 0
        %2202 = vmatprep.subr.bf16.mxu0 0
        %2203 = vmatpush1.bf16.msra.mxu0 0
        %2204 = vmatprep.subr.bf16.mxu0 0
        %2205 = vmatpush1.bf16.msra.mxu0 0
        %2206 = vmatprep.subr.bf16.mxu0 0
        %2207 = vmatpush1.bf16.msra.mxu0 0
        %2208 = vmatprep.subr.bf16.mxu0 0
        %2209 = vmatpush1.bf16.msra.mxu0 0
        %2210 = vmatprep.subr.bf16.mxu0 0
        %2211 = vmatpush1.bf16.msra.mxu0 0
        %2212 = vmatprep.subr.bf16.mxu0 0
        %2213 = vmatpush1.bf16.msra.mxu0 0
        %2214 = vmatprep.subr.bf16.mxu0 0
        %2215 = vmatpush1.bf16.msra.mxu0 0
        %2216 = vmatprep.mubr.bf16.mxu0 0
        %2217 = vmatmul.mubr.bf16.gmra.mrb[0].mxu0 %v856
        %v2218 = vpop.f32.mrb[0].mxu0
        %v2219 = vadd.f32 0.0, %v2218
        %v2220 = vpop.f32.mrb[0].mxu0
        %v2221 = vpop.f32.mrb[0].mxu0
        %v2222 = vadd.f32 0.0, %v2221
        %v2223 = vpop.f32.mrb[0].mxu0
        %2224 = vdwg.mxu0
        %v2225 = vpack.c.bf16 %v2222, %v2219
        %s2226 = scalar_lea.vmem %s3, 240
        %v2227 = vld [vmem:[%s2226] sm:$0xf]
        %v2228 = vld [vmem:[%s2226 + $0x4] sm:$0xf]
        %v2229 = vld [vmem:[%s2226 + $0x8] sm:$0xf]
        %v2230 = vld [vmem:[%s2226 + $0xc] sm:$0xf]
        %v2235 = vunpack.c.l.b16 %v2227
        %v2236 = vunpack.c.l.b16 %v2228
        %v2237 = vunpack.c.l.b16 %v2229
        %v2238 = vunpack.c.l.b16 %v2230
        %v2239 = vpack.c.b16 %v2236, %v2235
        %v2240 = vpack.c.b16 %v2238, %v2237
        %v2244 = vsel %vm646, %v2225, 0
        %2246 = vmatprep.subr.bf16.mxu0 0
        %2247 = vmatpush1.bf16.msra.mxu0 %v2239
        %2248 = vmatprep.subr.bf16.mxu0 0
        %2249 = vmatpush1.bf16.msra.mxu0 %v2240
        %2250 = vmatprep.subr.bf16.mxu0 0
        %2251 = vmatpush1.bf16.msra.mxu0 0
        %2252 = vmatprep.subr.bf16.mxu0 0
        %2253 = vmatpush1.bf16.msra.mxu0 0
        %2254 = vmatprep.subr.bf16.mxu0 0
        %2255 = vmatpush1.bf16.msra.mxu0 0
        %2256 = vmatprep.subr.bf16.mxu0 0
        %2257 = vmatpush1.bf16.msra.mxu0 0
        %2258 = vmatprep.subr.bf16.mxu0 0
        %2259 = vmatpush1.bf16.msra.mxu0 0
        %2260 = vmatprep.subr.bf16.mxu0 0
        %2261 = vmatpush1.bf16.msra.mxu0 0
        %2262 = vmatprep.subr.bf16.mxu0 0
        %2263 = vmatpush1.bf16.msra.mxu0 0
        %2264 = vmatprep.subr.bf16.mxu0 0
        %2265 = vmatpush1.bf16.msra.mxu0 0
        %2266 = vmatprep.subr.bf16.mxu0 0
        %2267 = vmatpush1.bf16.msra.mxu0 0
        %2268 = vmatprep.subr.bf16.mxu0 0
        %2269 = vmatpush1.bf16.msra.mxu0 0
        %2270 = vmatprep.subr.bf16.mxu0 0
        %2271 = vmatpush1.bf16.msra.mxu0 0
        %2272 = vmatprep.subr.bf16.mxu0 0
        %2273 = vmatpush1.bf16.msra.mxu0 0
        %2274 = vmatprep.subr.bf16.mxu0 0
        %2275 = vmatpush1.bf16.msra.mxu0 0
        %2276 = vmatprep.subr.bf16.mxu0 0
        %2277 = vmatpush1.bf16.msra.mxu0 0
        %2278 = vmatprep.mubr.bf16.mxu0 0
        %2279 = vmatmul.mubr.bf16.gmra.mrb[0].mxu0 %v2244
        %v2280 = vpop.f32.mrb[0].mxu0
        %v2281 = vadd.f32 0.0, %v2280
        %v2282 = vpop.f32.mrb[0].mxu0
        %v2283 = vpop.f32.mrb[0].mxu0
        %v2284 = vadd.f32 0.0, %v2283
        %v2285 = vpop.f32.mrb[0].mxu0
        %2286 = vdwg.mxu0
        %v2287 = vadd.f32 %v2182, %v2281
        %v2288 = vadd.f32 %v2183, %v2284
        %v2290 = vlaneseq
        %v2291 = vshrl.u32 %v2290, 7
        %v2292 = vsub.s32 0, %v2291
        %v2293 = vrot.slane %v501, %v2292
        %v2295 = vadd.f32 %v2287, %v2293
        %v2296 = vadd.f32 %v2288, %v2293
        %v2297 = vmax.f32 %v2295, 0.0
        %v2298 = vmax.f32 %v2296, 0.0
        %v2299 = vpack.c.bf16 %v2298, %v2297
        %v2301 = vunpack.c.l.b16 %v2299
        %v2302 = vunpack.c.h.b16 %v2299
        %v2303 = vpack.c.b16 %v2301, %v2301
        %v2304 = vpack.c.b16 %v2302, %v2302
        %s2307 = smul.addr %s508, 4
        %s2308 = scalar_lea.vmem [#allocation3], %s2307
        %vm2309 = vcmask 519168
        %2310 = vst.msk [vmem:[%s2308] sm:$0xf] %vm2309, %v2303
        %vm2311 = vcmask 518144
        %2312 = vst.msk [vmem:[%s2308 + $0x4] sm:$0x7] %vm2311, %v2304
      $region68: #{conv_encoder_forward.1} parent=55 // loop_footer
        %s507 = sadd.s32 1, %s503
      $region69: #{conv_encoder_forward.1} parent=55 // loop_footer_branch
        %502 = sbr.rel target = $region65
      $region70: #{conv_encoder_forward.1} parent=55 // loop_exit
        _
      %v2313 = vpack.c.bf16 %v477, %v477
      %v2314 = vpack.c.bf16 %v484, %v484
      %v2315 = vpack.c.bf16 %v491, %v491
      %v2316 = vpack.c.bf16 %v498, %v498
      %v2317 = vld [vmem:[%s6] sm:$0x1]
      loop: start=0, step=1, limit=6
      $region71: #{conv_encoder_forward.1} parent=55 // loop_pre_header
        _
      $region72: #{conv_encoder_forward.1} parent=55 // loop_header
        %s2319 = sphi 0, %s2323
        %p2320 = scmp.ge.s32.totalorder %s2319, 6
      $region73: #{conv_encoder_forward.1} parent=55 // loop_header_branch
        %2322 = sbr.rel (%p2320) target = $region77
      $region74: #{conv_encoder_forward.1} parent=55 // loop_body
        %s2324 = smul.u32 %s2319, 2
        %s2325 = smul.u32 %s2324, 2
        %s2326 = smul.addr %s2325, 4
        %s2327 = scalar_lea.vmem [#allocation3], %s2326
        %v2328 = vld [vmem:[%s2327] sm:$0xf]
        %v2329 = vld [vmem:[%s2327 + $0x4] sm:$0x7]
        %v2332 = vunpack.c.l.b16 %v2328
        %v2333 = vunpack.c.l.b16 %v2329
        %v2334 = vpack.c.b16 %v2333, %v2332
        %vm2335 = vcmask 113664
        %v2337 = vsel %vm2335, %v2313, 0
        %vm2339 = vcmask 1046528
        %v2341 = vsel %vm2339, %v2334, 0
        %2343 = vmatprep.subr.bf16.mxu0 0
        %2344 = vmatpush1.bf16.msra.mxu0 %v2341
        %2345 = vmatprep.subr.bf16.mxu0 0
        %2346 = vmatpush1.bf16.msra.mxu0 0
        %2347 = vmatprep.subr.bf16.mxu0 0
        %2348 = vmatpush1.bf16.msra.mxu0 0
        %2349 = vmatprep.subr.bf16.mxu0 0
        %2350 = vmatpush1.bf16.msra.mxu0 0
        %2351 = vmatprep.subr.bf16.mxu0 0
        %2352 = vmatpush1.bf16.msra.mxu0 0
        %2353 = vmatprep.subr.bf16.mxu0 0
        %2354 = vmatpush1.bf16.msra.mxu0 0
        %2355 = vmatprep.subr.bf16.mxu0 0
        %2356 = vmatpush1.bf16.msra.mxu0 0
        %2357 = vmatprep.subr.bf16.mxu0 0
        %2358 = vmatpush1.bf16.msra.mxu0 0
        %2359 = vmatprep.subr.bf16.mxu0 0
        %2360 = vmatpush1.bf16.msra.mxu0 0
        %2361 = vmatprep.subr.bf16.mxu0 0
        %2362 = vmatpush1.bf16.msra.mxu0 0
        %2363 = vmatprep.subr.bf16.mxu0 0
        %2364 = vmatpush1.bf16.msra.mxu0 0
        %2365 = vmatprep.subr.bf16.mxu0 0
        %2366 = vmatpush1.bf16.msra.mxu0 0
        %2367 = vmatprep.subr.bf16.mxu0 0
        %2368 = vmatpush1.bf16.msra.mxu0 0
        %2369 = vmatprep.subr.bf16.mxu0 0
        %2370 = vmatpush1.bf16.msra.mxu0 0
        %2371 = vmatprep.subr.bf16.mxu0 0
        %2372 = vmatpush1.bf16.msra.mxu0 0
        %2373 = vmatprep.subr.bf16.mxu0 0
        %2374 = vmatpush1.bf16.msra.mxu0 0
        %2375 = vmatprep.mubr.bf16.mxu0 0
        %2376 = vmatmul.mubr.bf16.gmra.mrb[0].mxu0 %v2337
        %v2377 = vpop.f32.mrb[0].mxu0
        %v2378 = vadd.f32 0.0, %v2377
        %v2379 = vpop.f32.mrb[0].mxu0
        %v2380 = vpop.f32.mrb[0].mxu0
        %v2381 = vpop.f32.mrb[0].mxu0
        %2382 = vdwg.mxu0
        %v2383 = vpack.c.bf16 %v2378, %v2378
        %v2384 = vld [vmem:[%s5] sm:$0xf]
        %v2385 = vld [vmem:[%s5 + $0x4] sm:$0xf]
        %v2386 = vld [vmem:[%s5 + $0x8] sm:$0xf]
        %v2387 = vld [vmem:[%s5 + $0xc] sm:$0xf]
        %v2388 = vld [vmem:[%s5 + $0x10] sm:$0xf]
        %v2389 = vld [vmem:[%s5 + $0x14] sm:$0xf]
        %v2390 = vld [vmem:[%s5 + $0x18] sm:$0xf]
        %v2391 = vld [vmem:[%s5 + $0x1c] sm:$0xf]
        %v2393 = vsel %vm2335, %v2314, 0
        %2395 = vmatprep.subr.bf16.mxu0 0
        %2396 = vmatpush1.bf16.msra.mxu0 %v2341
        %2397 = vmatprep.subr.bf16.mxu0 0
        %2398 = vmatpush1.bf16.msra.mxu0 0
        %2399 = vmatprep.subr.bf16.mxu0 0
        %2400 = vmatpush1.bf16.msra.mxu0 0
        %2401 = vmatprep.subr.bf16.mxu0 0
        %2402 = vmatpush1.bf16.msra.mxu0 0
        %2403 = vmatprep.subr.bf16.mxu0 0
        %2404 = vmatpush1.bf16.msra.mxu0 0
        %2405 = vmatprep.subr.bf16.mxu0 0
        %2406 = vmatpush1.bf16.msra.mxu0 0
        %2407 = vmatprep.subr.bf16.mxu0 0
        %2408 = vmatpush1.bf16.msra.mxu0 0
        %2409 = vmatprep.subr.bf16.mxu0 0
        %2410 = vmatpush1.bf16.msra.mxu0 0
        %2411 = vmatprep.subr.bf16.mxu0 0
        %2412 = vmatpush1.bf16.msra.mxu0 0
        %2413 = vmatprep.subr.bf16.mxu0 0
        %2414 = vmatpush1.bf16.msra.mxu0 0
        %2415 = vmatprep.subr.bf16.mxu0 0
        %2416 = vmatpush1.bf16.msra.mxu0 0
        %2417 = vmatprep.subr.bf16.mxu0 0
        %2418 = vmatpush1.bf16.msra.mxu0 0
        %2419 = vmatprep.subr.bf16.mxu0 0
        %2420 = vmatpush1.bf16.msra.mxu0 0
        %2421 = vmatprep.subr.bf16.mxu0 0
        %2422 = vmatpush1.bf16.msra.mxu0 0
        %2423 = vmatprep.subr.bf16.mxu0 0
        %2424 = vmatpush1.bf16.msra.mxu0 0
        %2425 = vmatprep.subr.bf16.mxu0 0
        %2426 = vmatpush1.bf16.msra.mxu0 0
        %2427 = vmatprep.mubr.bf16.mxu0 0
        %2428 = vmatmul.mubr.bf16.gmra.mrb[0].mxu0 %v2393
        %v2429 = vpop.f32.mrb[0].mxu0
        %v2430 = vadd.f32 0.0, %v2429
        %v2431 = vpop.f32.mrb[0].mxu0
        %v2432 = vpop.f32.mrb[0].mxu0
        %v2433 = vpop.f32.mrb[0].mxu0
        %2434 = vdwg.mxu0
        %v2435 = vpack.c.bf16 %v2430, %v2430
        %s2436 = scalar_lea.vmem %s5, 32
        %v2437 = vld [vmem:[%s2436] sm:$0xf]
        %v2438 = vld [vmem:[%s2436 + $0x4] sm:$0xf]
        %v2439 = vld [vmem:[%s2436 + $0x8] sm:$0xf]
        %v2440 = vld [vmem:[%s2436 + $0xc] sm:$0xf]
        %v2441 = vld [vmem:[%s2436 + $0x10] sm:$0xf]
        %v2442 = vld [vmem:[%s2436 + $0x14] sm:$0xf]
        %v2443 = vld [vmem:[%s2436 + $0x18] sm:$0xf]
        %v2444 = vld [vmem:[%s2436 + $0x1c] sm:$0xf]
        %v2453 = vunpack.c.l.b16 %v2437
        %v2454 = vunpack.c.l.b16 %v2438
        %v2455 = vunpack.c.l.b16 %v2439
        %v2456 = vunpack.c.l.b16 %v2440
        %v2457 = vunpack.c.l.b16 %v2441
        %v2458 = vunpack.c.l.b16 %v2442
        %v2459 = vunpack.c.l.b16 %v2443
        %v2460 = vunpack.c.l.b16 %v2444
        %v2461 = vpack.c.b16 %v2454, %v2453
        %v2462 = vpack.c.b16 %v2456, %v2455
        %v2463 = vpack.c.b16 %v2458, %v2457
        %v2464 = vpack.c.b16 %v2460, %v2459
        %vm2469 = vcmask 523264
        %v2471 = vsel %vm2469, %v2435, 0
        %2473 = vmatprep.subr.bf16.mxu0 0
        %2474 = vmatpush1.bf16.msra.mxu0 %v2461
        %2475 = vmatprep.subr.bf16.mxu0 0
        %2476 = vmatpush1.bf16.msra.mxu0 %v2462
        %2477 = vmatprep.subr.bf16.mxu0 0
        %2478 = vmatpush1.bf16.msra.mxu0 %v2463
        %2479 = vmatprep.subr.bf16.mxu0 0
        %2480 = vmatpush1.bf16.msra.mxu0 %v2464
        %2481 = vmatprep.subr.bf16.mxu0 0
        %2482 = vmatpush1.bf16.msra.mxu0 0
        %2483 = vmatprep.subr.bf16.mxu0 0
        %2484 = vmatpush1.bf16.msra.mxu0 0
        %2485 = vmatprep.subr.bf16.mxu0 0
        %2486 = vmatpush1.bf16.msra.mxu0 0
        %2487 = vmatprep.subr.bf16.mxu0 0
        %2488 = vmatpush1.bf16.msra.mxu0 0
        %2489 = vmatprep.subr.bf16.mxu0 0
        %2490 = vmatpush1.bf16.msra.mxu0 0
        %2491 = vmatprep.subr.bf16.mxu0 0
        %2492 = vmatpush1.bf16.msra.mxu0 0
        %2493 = vmatprep.subr.bf16.mxu0 0
        %2494 = vmatpush1.bf16.msra.mxu0 0
        %2495 = vmatprep.subr.bf16.mxu0 0
        %2496 = vmatpush1.bf16.msra.mxu0 0
        %2497 = vmatprep.subr.bf16.mxu0 0
        %2498 = vmatpush1.bf16.msra.mxu0 0
        %2499 = vmatprep.subr.bf16.mxu0 0
        %2500 = vmatpush1.bf16.msra.mxu0 0
        %2501 = vmatprep.subr.bf16.mxu0 0
        %2502 = vmatpush1.bf16.msra.mxu0 0
        %2503 = vmatprep.subr.bf16.mxu0 0
        %2504 = vmatpush1.bf16.msra.mxu0 0
        %2505 = vmatprep.mubr.bf16.mxu0 0
        %2506 = vmatmul.mubr.bf16.gmra.mrb[0].mxu0 %v2471
        %v2507 = vpop.f32.mrb[0].mxu0
        %v2508 = vadd.f32 0.0, %v2507
        %v2509 = vpop.f32.mrb[0].mxu0
        %v2510 = vpop.f32.mrb[0].mxu0
        %v2511 = vpop.f32.mrb[0].mxu0
        %2512 = vdwg.mxu0
        %v2521 = vunpack.c.l.b16 %v2384
        %v2522 = vunpack.c.l.b16 %v2385
        %v2523 = vunpack.c.l.b16 %v2386
        %v2524 = vunpack.c.l.b16 %v2387
        %v2525 = vunpack.c.l.b16 %v2388
        %v2526 = vunpack.c.l.b16 %v2389
        %v2527 = vunpack.c.l.b16 %v2390
        %v2528 = vunpack.c.l.b16 %v2391
        %v2529 = vpack.c.b16 %v2522, %v2521
        %v2530 = vpack.c.b16 %v2524, %v2523
        %v2531 = vpack.c.b16 %v2526, %v2525
        %v2532 = vpack.c.b16 %v2528, %v2527
        %v2538 = vsel %vm2469, %v2383, 0
        %2540 = vmatprep.subr.bf16.mxu0 0
        %2541 = vmatpush1.bf16.msra.mxu0 %v2529
        %2542 = vmatprep.subr.bf16.mxu0 0
        %2543 = vmatpush1.bf16.msra.mxu0 %v2530
        %2544 = vmatprep.subr.bf16.mxu0 0
        %2545 = vmatpush1.bf16.msra.mxu0 %v2531
        %2546 = vmatprep.subr.bf16.mxu0 0
        %2547 = vmatpush1.bf16.msra.mxu0 %v2532
        %2548 = vmatprep.subr.bf16.mxu0 0
        %2549 = vmatpush1.bf16.msra.mxu0 0
        %2550 = vmatprep.subr.bf16.mxu0 0
        %2551 = vmatpush1.bf16.msra.mxu0 0
        %2552 = vmatprep.subr.bf16.mxu0 0
        %2553 = vmatpush1.bf16.msra.mxu0 0
        %2554 = vmatprep.subr.bf16.mxu0 0
        %2555 = vmatpush1.bf16.msra.mxu0 0
        %2556 = vmatprep.subr.bf16.mxu0 0
        %2557 = vmatpush1.bf16.msra.mxu0 0
        %2558 = vmatprep.subr.bf16.mxu0 0
        %2559 = vmatpush1.bf16.msra.mxu0 0
        %2560 = vmatprep.subr.bf16.mxu0 0
        %2561 = vmatpush1.bf16.msra.mxu0 0
        %2562 = vmatprep.subr.bf16.mxu0 0
        %2563 = vmatpush1.bf16.msra.mxu0 0
        %2564 = vmatprep.subr.bf16.mxu0 0
        %2565 = vmatpush1.bf16.msra.mxu0 0
        %2566 = vmatprep.subr.bf16.mxu0 0
        %2567 = vmatpush1.bf16.msra.mxu0 0
        %2568 = vmatprep.subr.bf16.mxu0 0
        %2569 = vmatpush1.bf16.msra.mxu0 0
        %2570 = vmatprep.subr.bf16.mxu0 0
        %2571 = vmatpush1.bf16.msra.mxu0 0
        %2572 = vmatprep.mubr.bf16.mxu0 0
        %2573 = vmatmul.mubr.bf16.gmra.mrb[0].mxu0 %v2538
        %v2574 = vpop.f32.mrb[0].mxu0
        %v2575 = vadd.f32 %v2508, %v2574
        %v2576 = vpop.f32.mrb[0].mxu0
        %v2577 = vpop.f32.mrb[0].mxu0
        %v2578 = vpop.f32.mrb[0].mxu0
        %2579 = vdwg.mxu0
        %v2581 = vsel %vm2335, %v2315, 0
        %2583 = vmatprep.subr.bf16.mxu0 0
        %2584 = vmatpush1.bf16.msra.mxu0 %v2341
        %2585 = vmatprep.subr.bf16.mxu0 0
        %2586 = vmatpush1.bf16.msra.mxu0 0
        %2587 = vmatprep.subr.bf16.mxu0 0
        %2588 = vmatpush1.bf16.msra.mxu0 0
        %2589 = vmatprep.subr.bf16.mxu0 0
        %2590 = vmatpush1.bf16.msra.mxu0 0
        %2591 = vmatprep.subr.bf16.mxu0 0
        %2592 = vmatpush1.bf16.msra.mxu0 0
        %2593 = vmatprep.subr.bf16.mxu0 0
        %2594 = vmatpush1.bf16.msra.mxu0 0
        %2595 = vmatprep.subr.bf16.mxu0 0
        %2596 = vmatpush1.bf16.msra.mxu0 0
        %2597 = vmatprep.subr.bf16.mxu0 0
        %2598 = vmatpush1.bf16.msra.mxu0 0
        %2599 = vmatprep.subr.bf16.mxu0 0
        %2600 = vmatpush1.bf16.msra.mxu0 0
        %2601 = vmatprep.subr.bf16.mxu0 0
        %2602 = vmatpush1.bf16.msra.mxu0 0
        %2603 = vmatprep.subr.bf16.mxu0 0
        %2604 = vmatpush1.bf16.msra.mxu0 0
        %2605 = vmatprep.subr.bf16.mxu0 0
        %2606 = vmatpush1.bf16.msra.mxu0 0
        %2607 = vmatprep.subr.bf16.mxu0 0
        %2608 = vmatpush1.bf16.msra.mxu0 0
        %2609 = vmatprep.subr.bf16.mxu0 0
        %2610 = vmatpush1.bf16.msra.mxu0 0
        %2611 = vmatprep.subr.bf16.mxu0 0
        %2612 = vmatpush1.bf16.msra.mxu0 0
        %2613 = vmatprep.subr.bf16.mxu0 0
        %2614 = vmatpush1.bf16.msra.mxu0 0
        %2615 = vmatprep.mubr.bf16.mxu0 0
        %2616 = vmatmul.mubr.bf16.gmra.mrb[0].mxu0 %v2581
        %v2617 = vpop.f32.mrb[0].mxu0
        %v2618 = vadd.f32 0.0, %v2617
        %v2619 = vpop.f32.mrb[0].mxu0
        %v2620 = vpop.f32.mrb[0].mxu0
        %v2621 = vpop.f32.mrb[0].mxu0
        %2622 = vdwg.mxu0
        %v2623 = vpack.c.bf16 %v2618, %v2618
        %s2624 = scalar_lea.vmem %s5, 64
        %v2625 = vld [vmem:[%s2624] sm:$0xf]
        %v2626 = vld [vmem:[%s2624 + $0x4] sm:$0xf]
        %v2627 = vld [vmem:[%s2624 + $0x8] sm:$0xf]
        %v2628 = vld [vmem:[%s2624 + $0xc] sm:$0xf]
        %v2629 = vld [vmem:[%s2624 + $0x10] sm:$0xf]
        %v2630 = vld [vmem:[%s2624 + $0x14] sm:$0xf]
        %v2631 = vld [vmem:[%s2624 + $0x18] sm:$0xf]
        %v2632 = vld [vmem:[%s2624 + $0x1c] sm:$0xf]
        %v2641 = vunpack.c.l.b16 %v2625
        %v2642 = vunpack.c.l.b16 %v2626
        %v2643 = vunpack.c.l.b16 %v2627
        %v2644 = vunpack.c.l.b16 %v2628
        %v2645 = vunpack.c.l.b16 %v2629
        %v2646 = vunpack.c.l.b16 %v2630
        %v2647 = vunpack.c.l.b16 %v2631
        %v2648 = vunpack.c.l.b16 %v2632
        %v2649 = vpack.c.b16 %v2642, %v2641
        %v2650 = vpack.c.b16 %v2644, %v2643
        %v2651 = vpack.c.b16 %v2646, %v2645
        %v2652 = vpack.c.b16 %v2648, %v2647
        %v2658 = vsel %vm2469, %v2623, 0
        %2660 = vmatprep.subr.bf16.mxu0 0
        %2661 = vmatpush1.bf16.msra.mxu0 %v2649
        %2662 = vmatprep.subr.bf16.mxu0 0
        %2663 = vmatpush1.bf16.msra.mxu0 %v2650
        %2664 = vmatprep.subr.bf16.mxu0 0
        %2665 = vmatpush1.bf16.msra.mxu0 %v2651
        %2666 = vmatprep.subr.bf16.mxu0 0
        %2667 = vmatpush1.bf16.msra.mxu0 %v2652
        %2668 = vmatprep.subr.bf16.mxu0 0
        %2669 = vmatpush1.bf16.msra.mxu0 0
        %2670 = vmatprep.subr.bf16.mxu0 0
        %2671 = vmatpush1.bf16.msra.mxu0 0
        %2672 = vmatprep.subr.bf16.mxu0 0
        %2673 = vmatpush1.bf16.msra.mxu0 0
        %2674 = vmatprep.subr.bf16.mxu0 0
        %2675 = vmatpush1.bf16.msra.mxu0 0
        %2676 = vmatprep.subr.bf16.mxu0 0
        %2677 = vmatpush1.bf16.msra.mxu0 0
        %2678 = vmatprep.subr.bf16.mxu0 0
        %2679 = vmatpush1.bf16.msra.mxu0 0
        %2680 = vmatprep.subr.bf16.mxu0 0
        %2681 = vmatpush1.bf16.msra.mxu0 0
        %2682 = vmatprep.subr.bf16.mxu0 0
        %2683 = vmatpush1.bf16.msra.mxu0 0
        %2684 = vmatprep.subr.bf16.mxu0 0
        %2685 = vmatpush1.bf16.msra.mxu0 0
        %2686 = vmatprep.subr.bf16.mxu0 0
        %2687 = vmatpush1.bf16.msra.mxu0 0
        %2688 = vmatprep.subr.bf16.mxu0 0
        %2689 = vmatpush1.bf16.msra.mxu0 0
        %2690 = vmatprep.subr.bf16.mxu0 0
        %2691 = vmatpush1.bf16.msra.mxu0 0
        %2692 = vmatprep.mubr.bf16.mxu0 0
        %2693 = vmatmul.mubr.bf16.gmra.mrb[0].mxu0 %v2658
        %v2694 = vpop.f32.mrb[0].mxu0
        %v2695 = vadd.f32 0.0, %v2694
        %v2696 = vpop.f32.mrb[0].mxu0
        %v2697 = vpop.f32.mrb[0].mxu0
        %v2698 = vpop.f32.mrb[0].mxu0
        %2699 = vdwg.mxu0
        %v2700 = vadd.f32 %v2575, %v2695
        %v2702 = vsel %vm2335, %v2316, 0
        %2704 = vmatprep.subr.bf16.mxu0 0
        %2705 = vmatpush1.bf16.msra.mxu0 %v2341
        %2706 = vmatprep.subr.bf16.mxu0 0
        %2707 = vmatpush1.bf16.msra.mxu0 0
        %2708 = vmatprep.subr.bf16.mxu0 0
        %2709 = vmatpush1.bf16.msra.mxu0 0
        %2710 = vmatprep.subr.bf16.mxu0 0
        %2711 = vmatpush1.bf16.msra.mxu0 0
        %2712 = vmatprep.subr.bf16.mxu0 0
        %2713 = vmatpush1.bf16.msra.mxu0 0
        %2714 = vmatprep.subr.bf16.mxu0 0
        %2715 = vmatpush1.bf16.msra.mxu0 0
        %2716 = vmatprep.subr.bf16.mxu0 0
        %2717 = vmatpush1.bf16.msra.mxu0 0
        %2718 = vmatprep.subr.bf16.mxu0 0
        %2719 = vmatpush1.bf16.msra.mxu0 0
        %2720 = vmatprep.subr.bf16.mxu0 0
        %2721 = vmatpush1.bf16.msra.mxu0 0
        %2722 = vmatprep.subr.bf16.mxu0 0
        %2723 = vmatpush1.bf16.msra.mxu0 0
        %2724 = vmatprep.subr.bf16.mxu0 0
        %2725 = vmatpush1.bf16.msra.mxu0 0
        %2726 = vmatprep.subr.bf16.mxu0 0
        %2727 = vmatpush1.bf16.msra.mxu0 0
        %2728 = vmatprep.subr.bf16.mxu0 0
        %2729 = vmatpush1.bf16.msra.mxu0 0
        %2730 = vmatprep.subr.bf16.mxu0 0
        %2731 = vmatpush1.bf16.msra.mxu0 0
        %2732 = vmatprep.subr.bf16.mxu0 0
        %2733 = vmatpush1.bf16.msra.mxu0 0
        %2734 = vmatprep.subr.bf16.mxu0 0
        %2735 = vmatpush1.bf16.msra.mxu0 0
        %2736 = vmatprep.mubr.bf16.mxu0 0
        %2737 = vmatmul.mubr.bf16.gmra.mrb[0].mxu0 %v2702
        %v2738 = vpop.f32.mrb[0].mxu0
        %v2739 = vadd.f32 0.0, %v2738
        %v2740 = vpop.f32.mrb[0].mxu0
        %v2741 = vpop.f32.mrb[0].mxu0
        %v2742 = vpop.f32.mrb[0].mxu0
        %2743 = vdwg.mxu0
        %v2744 = vpack.c.bf16 %v2739, %v2739
        %s2745 = scalar_lea.vmem %s5, 96
        %v2746 = vld [vmem:[%s2745] sm:$0xf]
        %v2747 = vld [vmem:[%s2745 + $0x4] sm:$0xf]
        %v2748 = vld [vmem:[%s2745 + $0x8] sm:$0xf]
        %v2749 = vld [vmem:[%s2745 + $0xc] sm:$0xf]
        %v2750 = vld [vmem:[%s2745 + $0x10] sm:$0xf]
        %v2751 = vld [vmem:[%s2745 + $0x14] sm:$0xf]
        %v2752 = vld [vmem:[%s2745 + $0x18] sm:$0xf]
        %v2753 = vld [vmem:[%s2745 + $0x1c] sm:$0xf]
        %v2762 = vunpack.c.l.b16 %v2746
        %v2763 = vunpack.c.l.b16 %v2747
        %v2764 = vunpack.c.l.b16 %v2748
        %v2765 = vunpack.c.l.b16 %v2749
        %v2766 = vunpack.c.l.b16 %v2750
        %v2767 = vunpack.c.l.b16 %v2751
        %v2768 = vunpack.c.l.b16 %v2752
        %v2769 = vunpack.c.l.b16 %v2753
        %v2770 = vpack.c.b16 %v2763, %v2762
        %v2771 = vpack.c.b16 %v2765, %v2764
        %v2772 = vpack.c.b16 %v2767, %v2766
        %v2773 = vpack.c.b16 %v2769, %v2768
        %v2779 = vsel %vm2469, %v2744, 0
        %2781 = vmatprep.subr.bf16.mxu0 0
        %2782 = vmatpush1.bf16.msra.mxu0 %v2770
        %2783 = vmatprep.subr.bf16.mxu0 0
        %2784 = vmatpush1.bf16.msra.mxu0 %v2771
        %2785 = vmatprep.subr.bf16.mxu0 0
        %2786 = vmatpush1.bf16.msra.mxu0 %v2772
        %2787 = vmatprep.subr.bf16.mxu0 0
        %2788 = vmatpush1.bf16.msra.mxu0 %v2773
        %2789 = vmatprep.subr.bf16.mxu0 0
        %2790 = vmatpush1.bf16.msra.mxu0 0
        %2791 = vmatprep.subr.bf16.mxu0 0
        %2792 = vmatpush1.bf16.msra.mxu0 0
        %2793 = vmatprep.subr.bf16.mxu0 0
        %2794 = vmatpush1.bf16.msra.mxu0 0
        %2795 = vmatprep.subr.bf16.mxu0 0
        %2796 = vmatpush1.bf16.msra.mxu0 0
        %2797 = vmatprep.subr.bf16.mxu0 0
        %2798 = vmatpush1.bf16.msra.mxu0 0
        %2799 = vmatprep.subr.bf16.mxu0 0
        %2800 = vmatpush1.bf16.msra.mxu0 0
        %2801 = vmatprep.subr.bf16.mxu0 0
        %2802 = vmatpush1.bf16.msra.mxu0 0
        %2803 = vmatprep.subr.bf16.mxu0 0
        %2804 = vmatpush1.bf16.msra.mxu0 0
        %2805 = vmatprep.subr.bf16.mxu0 0
        %2806 = vmatpush1.bf16.msra.mxu0 0
        %2807 = vmatprep.subr.bf16.mxu0 0
        %2808 = vmatpush1.bf16.msra.mxu0 0
        %2809 = vmatprep.subr.bf16.mxu0 0
        %2810 = vmatpush1.bf16.msra.mxu0 0
        %2811 = vmatprep.subr.bf16.mxu0 0
        %2812 = vmatpush1.bf16.msra.mxu0 0
        %2813 = vmatprep.mubr.bf16.mxu0 0
        %2814 = vmatmul.mubr.bf16.gmra.mrb[0].mxu0 %v2779
        %v2815 = vpop.f32.mrb[0].mxu0
        %v2816 = vadd.f32 0.0, %v2815
        %v2817 = vpop.f32.mrb[0].mxu0
        %v2818 = vpop.f32.mrb[0].mxu0
        %v2819 = vpop.f32.mrb[0].mxu0
        %2820 = vdwg.mxu0
        %v2821 = vadd.f32 %v2700, %v2816
        %s2822 = sadd.s32 %s2324, 1
        %s2823 = smul.u32 %s2822, 2
        %s2824 = smul.addr %s2823, 4
        %s2825 = scalar_lea.vmem [#allocation3], %s2824
        %v2826 = vld [vmem:[%s2825] sm:$0xf]
        %v2827 = vld [vmem:[%s2825 + $0x4] sm:$0x7]
        %v2830 = vunpack.c.l.b16 %v2826
        %v2831 = vunpack.c.l.b16 %v2827
        %v2832 = vpack.c.b16 %v2831, %v2830
        %v2834 = vsel %vm2339, %v2832, 0
        %2836 = vmatprep.subr.bf16.mxu0 0
        %2837 = vmatpush1.bf16.msra.mxu0 %v2834
        %2838 = vmatprep.subr.bf16.mxu0 0
        %2839 = vmatpush1.bf16.msra.mxu0 0
        %2840 = vmatprep.subr.bf16.mxu0 0
        %2841 = vmatpush1.bf16.msra.mxu0 0
        %2842 = vmatprep.subr.bf16.mxu0 0
        %2843 = vmatpush1.bf16.msra.mxu0 0
        %2844 = vmatprep.subr.bf16.mxu0 0
        %2845 = vmatpush1.bf16.msra.mxu0 0
        %2846 = vmatprep.subr.bf16.mxu0 0
        %2847 = vmatpush1.bf16.msra.mxu0 0
        %2848 = vmatprep.subr.bf16.mxu0 0
        %2849 = vmatpush1.bf16.msra.mxu0 0
        %2850 = vmatprep.subr.bf16.mxu0 0
        %2851 = vmatpush1.bf16.msra.mxu0 0
        %2852 = vmatprep.subr.bf16.mxu0 0
        %2853 = vmatpush1.bf16.msra.mxu0 0
        %2854 = vmatprep.subr.bf16.mxu0 0
        %2855 = vmatpush1.bf16.msra.mxu0 0
        %2856 = vmatprep.subr.bf16.mxu0 0
        %2857 = vmatpush1.bf16.msra.mxu0 0
        %2858 = vmatprep.subr.bf16.mxu0 0
        %2859 = vmatpush1.bf16.msra.mxu0 0
        %2860 = vmatprep.subr.bf16.mxu0 0
        %2861 = vmatpush1.bf16.msra.mxu0 0
        %2862 = vmatprep.subr.bf16.mxu0 0
        %2863 = vmatpush1.bf16.msra.mxu0 0
        %2864 = vmatprep.subr.bf16.mxu0 0
        %2865 = vmatpush1.bf16.msra.mxu0 0
        %2866 = vmatprep.subr.bf16.mxu0 0
        %2867 = vmatpush1.bf16.msra.mxu0 0
        %2868 = vmatprep.mubr.bf16.mxu0 0
        %2869 = vmatmul.mubr.bf16.gmra.mrb[0].mxu0 %v2337
        %v2870 = vpop.f32.mrb[0].mxu0
        %v2871 = vadd.f32 0.0, %v2870
        %v2872 = vpop.f32.mrb[0].mxu0
        %v2873 = vpop.f32.mrb[0].mxu0
        %v2874 = vpop.f32.mrb[0].mxu0
        %2875 = vdwg.mxu0
        %v2876 = vpack.c.bf16 %v2871, %v2871
        %s2877 = scalar_lea.vmem %s5, 128
        %v2878 = vld [vmem:[%s2877] sm:$0xf]
        %v2879 = vld [vmem:[%s2877 + $0x4] sm:$0xf]
        %v2880 = vld [vmem:[%s2877 + $0x8] sm:$0xf]
        %v2881 = vld [vmem:[%s2877 + $0xc] sm:$0xf]
        %v2882 = vld [vmem:[%s2877 + $0x10] sm:$0xf]
        %v2883 = vld [vmem:[%s2877 + $0x14] sm:$0xf]
        %v2884 = vld [vmem:[%s2877 + $0x18] sm:$0xf]
        %v2885 = vld [vmem:[%s2877 + $0x1c] sm:$0xf]
        %v2894 = vunpack.c.l.b16 %v2878
        %v2895 = vunpack.c.l.b16 %v2879
        %v2896 = vunpack.c.l.b16 %v2880
        %v2897 = vunpack.c.l.b16 %v2881
        %v2898 = vunpack.c.l.b16 %v2882
        %v2899 = vunpack.c.l.b16 %v2883
        %v2900 = vunpack.c.l.b16 %v2884
        %v2901 = vunpack.c.l.b16 %v2885
        %v2902 = vpack.c.b16 %v2895, %v2894
        %v2903 = vpack.c.b16 %v2897, %v2896
        %v2904 = vpack.c.b16 %v2899, %v2898
        %v2905 = vpack.c.b16 %v2901, %v2900
        %v2911 = vsel %vm2469, %v2876, 0
        %2913 = vmatprep.subr.bf16.mxu0 0
        %2914 = vmatpush1.bf16.msra.mxu0 %v2902
        %2915 = vmatprep.subr.bf16.mxu0 0
        %2916 = vmatpush1.bf16.msra.mxu0 %v2903
        %2917 = vmatprep.subr.bf16.mxu0 0
        %2918 = vmatpush1.bf16.msra.mxu0 %v2904
        %2919 = vmatprep.subr.bf16.mxu0 0
        %2920 = vmatpush1.bf16.msra.mxu0 %v2905
        %2921 = vmatprep.subr.bf16.mxu0 0
        %2922 = vmatpush1.bf16.msra.mxu0 0
        %2923 = vmatprep.subr.bf16.mxu0 0
        %2924 = vmatpush1.bf16.msra.mxu0 0
        %2925 = vmatprep.subr.bf16.mxu0 0
        %2926 = vmatpush1.bf16.msra.mxu0 0
        %2927 = vmatprep.subr.bf16.mxu0 0
        %2928 = vmatpush1.bf16.msra.mxu0 0
        %2929 = vmatprep.subr.bf16.mxu0 0
        %2930 = vmatpush1.bf16.msra.mxu0 0
        %2931 = vmatprep.subr.bf16.mxu0 0
        %2932 = vmatpush1.bf16.msra.mxu0 0
        %2933 = vmatprep.subr.bf16.mxu0 0
        %2934 = vmatpush1.bf16.msra.mxu0 0
        %2935 = vmatprep.subr.bf16.mxu0 0
        %2936 = vmatpush1.bf16.msra.mxu0 0
        %2937 = vmatprep.subr.bf16.mxu0 0
        %2938 = vmatpush1.bf16.msra.mxu0 0
        %2939 = vmatprep.subr.bf16.mxu0 0
        %2940 = vmatpush1.bf16.msra.mxu0 0
        %2941 = vmatprep.subr.bf16.mxu0 0
        %2942 = vmatpush1.bf16.msra.mxu0 0
        %2943 = vmatprep.subr.bf16.mxu0 0
        %2944 = vmatpush1.bf16.msra.mxu0 0
        %2945 = vmatprep.mubr.bf16.mxu0 0
        %2946 = vmatmul.mubr.bf16.gmra.mrb[0].mxu0 %v2911
        %v2947 = vpop.f32.mrb[0].mxu0
        %v2948 = vadd.f32 0.0, %v2947
        %v2949 = vpop.f32.mrb[0].mxu0
        %v2950 = vpop.f32.mrb[0].mxu0
        %v2951 = vpop.f32.mrb[0].mxu0
        %2952 = vdwg.mxu0
        %v2953 = vadd.f32 %v2821, %v2948
        %2954 = vmatprep.subr.bf16.mxu0 0
        %2955 = vmatpush1.bf16.msra.mxu0 %v2834
        %2956 = vmatprep.subr.bf16.mxu0 0
        %2957 = vmatpush1.bf16.msra.mxu0 0
        %2958 = vmatprep.subr.bf16.mxu0 0
        %2959 = vmatpush1.bf16.msra.mxu0 0
        %2960 = vmatprep.subr.bf16.mxu0 0
        %2961 = vmatpush1.bf16.msra.mxu0 0
        %2962 = vmatprep.subr.bf16.mxu0 0
        %2963 = vmatpush1.bf16.msra.mxu0 0
        %2964 = vmatprep.subr.bf16.mxu0 0
        %2965 = vmatpush1.bf16.msra.mxu0 0
        %2966 = vmatprep.subr.bf16.mxu0 0
        %2967 = vmatpush1.bf16.msra.mxu0 0
        %2968 = vmatprep.subr.bf16.mxu0 0
        %2969 = vmatpush1.bf16.msra.mxu0 0
        %2970 = vmatprep.subr.bf16.mxu0 0
        %2971 = vmatpush1.bf16.msra.mxu0 0
        %2972 = vmatprep.subr.bf16.mxu0 0
        %2973 = vmatpush1.bf16.msra.mxu0 0
        %2974 = vmatprep.subr.bf16.mxu0 0
        %2975 = vmatpush1.bf16.msra.mxu0 0
        %2976 = vmatprep.subr.bf16.mxu0 0
        %2977 = vmatpush1.bf16.msra.mxu0 0
        %2978 = vmatprep.subr.bf16.mxu0 0
        %2979 = vmatpush1.bf16.msra.mxu0 0
        %2980 = vmatprep.subr.bf16.mxu0 0
        %2981 = vmatpush1.bf16.msra.mxu0 0
        %2982 = vmatprep.subr.bf16.mxu0 0
        %2983 = vmatpush1.bf16.msra.mxu0 0
        %2984 = vmatprep.subr.bf16.mxu0 0
        %2985 = vmatpush1.bf16.msra.mxu0 0
        %2986 = vmatprep.mubr.bf16.mxu0 0
        %2987 = vmatmul.mubr.bf16.gmra.mrb[0].mxu0 %v2393
        %v2988 = vpop.f32.mrb[0].mxu0
        %v2989 = vadd.f32 0.0, %v2988
        %v2990 = vpop.f32.mrb[0].mxu0
        %v2991 = vpop.f32.mrb[0].mxu0
        %v2992 = vpop.f32.mrb[0].mxu0
        %2993 = vdwg.mxu0
        %v2994 = vpack.c.bf16 %v2989, %v2989
        %s2995 = scalar_lea.vmem %s5, 160
        %v2996 = vld [vmem:[%s2995] sm:$0xf]
        %v2997 = vld [vmem:[%s2995 + $0x4] sm:$0xf]
        %v2998 = vld [vmem:[%s2995 + $0x8] sm:$0xf]
        %v2999 = vld [vmem:[%s2995 + $0xc] sm:$0xf]
        %v3000 = vld [vmem:[%s2995 + $0x10] sm:$0xf]
        %v3001 = vld [vmem:[%s2995 + $0x14] sm:$0xf]
        %v3002 = vld [vmem:[%s2995 + $0x18] sm:$0xf]
        %v3003 = vld [vmem:[%s2995 + $0x1c] sm:$0xf]
        %v3012 = vunpack.c.l.b16 %v2996
        %v3013 = vunpack.c.l.b16 %v2997
        %v3014 = vunpack.c.l.b16 %v2998
        %v3015 = vunpack.c.l.b16 %v2999
        %v3016 = vunpack.c.l.b16 %v3000
        %v3017 = vunpack.c.l.b16 %v3001
        %v3018 = vunpack.c.l.b16 %v3002
        %v3019 = vunpack.c.l.b16 %v3003
        %v3020 = vpack.c.b16 %v3013, %v3012
        %v3021 = vpack.c.b16 %v3015, %v3014
        %v3022 = vpack.c.b16 %v3017, %v3016
        %v3023 = vpack.c.b16 %v3019, %v3018
        %v3029 = vsel %vm2469, %v2994, 0
        %3031 = vmatprep.subr.bf16.mxu0 0
        %3032 = vmatpush1.bf16.msra.mxu0 %v3020
        %3033 = vmatprep.subr.bf16.mxu0 0
        %3034 = vmatpush1.bf16.msra.mxu0 %v3021
        %3035 = vmatprep.subr.bf16.mxu0 0
        %3036 = vmatpush1.bf16.msra.mxu0 %v3022
        %3037 = vmatprep.subr.bf16.mxu0 0
        %3038 = vmatpush1.bf16.msra.mxu0 %v3023
        %3039 = vmatprep.subr.bf16.mxu0 0
        %3040 = vmatpush1.bf16.msra.mxu0 0
        %3041 = vmatprep.subr.bf16.mxu0 0
        %3042 = vmatpush1.bf16.msra.mxu0 0
        %3043 = vmatprep.subr.bf16.mxu0 0
        %3044 = vmatpush1.bf16.msra.mxu0 0
        %3045 = vmatprep.subr.bf16.mxu0 0
        %3046 = vmatpush1.bf16.msra.mxu0 0
        %3047 = vmatprep.subr.bf16.mxu0 0
        %3048 = vmatpush1.bf16.msra.mxu0 0
        %3049 = vmatprep.subr.bf16.mxu0 0
        %3050 = vmatpush1.bf16.msra.mxu0 0
        %3051 = vmatprep.subr.bf16.mxu0 0
        %3052 = vmatpush1.bf16.msra.mxu0 0
        %3053 = vmatprep.subr.bf16.mxu0 0
        %3054 = vmatpush1.bf16.msra.mxu0 0
        %3055 = vmatprep.subr.bf16.mxu0 0
        %3056 = vmatpush1.bf16.msra.mxu0 0
        %3057 = vmatprep.subr.bf16.mxu0 0
        %3058 = vmatpush1.bf16.msra.mxu0 0
        %3059 = vmatprep.subr.bf16.mxu0 0
        %3060 = vmatpush1.bf16.msra.mxu0 0
        %3061 = vmatprep.subr.bf16.mxu0 0
        %3062 = vmatpush1.bf16.msra.mxu0 0
        %3063 = vmatprep.mubr.bf16.mxu0 0
        %3064 = vmatmul.mubr.bf16.gmra.mrb[0].mxu0 %v3029
        %v3065 = vpop.f32.mrb[0].mxu0
        %v3066 = vadd.f32 0.0, %v3065
        %v3067 = vpop.f32.mrb[0].mxu0
        %v3068 = vpop.f32.mrb[0].mxu0
        %v3069 = vpop.f32.mrb[0].mxu0
        %3070 = vdwg.mxu0
        %v3071 = vadd.f32 %v2953, %v3066
        %3072 = vmatprep.subr.bf16.mxu0 0
        %3073 = vmatpush1.bf16.msra.mxu0 %v2834
        %3074 = vmatprep.subr.bf16.mxu0 0
        %3075 = vmatpush1.bf16.msra.mxu0 0
        %3076 = vmatprep.subr.bf16.mxu0 0
        %3077 = vmatpush1.bf16.msra.mxu0 0
        %3078 = vmatprep.subr.bf16.mxu0 0
        %3079 = vmatpush1.bf16.msra.mxu0 0
        %3080 = vmatprep.subr.bf16.mxu0 0
        %3081 = vmatpush1.bf16.msra.mxu0 0
        %3082 = vmatprep.subr.bf16.mxu0 0
        %3083 = vmatpush1.bf16.msra.mxu0 0
        %3084 = vmatprep.subr.bf16.mxu0 0
        %3085 = vmatpush1.bf16.msra.mxu0 0
        %3086 = vmatprep.subr.bf16.mxu0 0
        %3087 = vmatpush1.bf16.msra.mxu0 0
        %3088 = vmatprep.subr.bf16.mxu0 0
        %3089 = vmatpush1.bf16.msra.mxu0 0
        %3090 = vmatprep.subr.bf16.mxu0 0
        %3091 = vmatpush1.bf16.msra.mxu0 0
        %3092 = vmatprep.subr.bf16.mxu0 0
        %3093 = vmatpush1.bf16.msra.mxu0 0
        %3094 = vmatprep.subr.bf16.mxu0 0
        %3095 = vmatpush1.bf16.msra.mxu0 0
        %3096 = vmatprep.subr.bf16.mxu0 0
        %3097 = vmatpush1.bf16.msra.mxu0 0
        %3098 = vmatprep.subr.bf16.mxu0 0
        %3099 = vmatpush1.bf16.msra.mxu0 0
        %3100 = vmatprep.subr.bf16.mxu0 0
        %3101 = vmatpush1.bf16.msra.mxu0 0
        %3102 = vmatprep.subr.bf16.mxu0 0
        %3103 = vmatpush1.bf16.msra.mxu0 0
        %3104 = vmatprep.mubr.bf16.mxu0 0
        %3105 = vmatmul.mubr.bf16.gmra.mrb[0].mxu0 %v2581
        %v3106 = vpop.f32.mrb[0].mxu0
        %v3107 = vadd.f32 0.0, %v3106
        %v3108 = vpop.f32.mrb[0].mxu0
        %v3109 = vpop.f32.mrb[0].mxu0
        %v3110 = vpop.f32.mrb[0].mxu0
        %3111 = vdwg.mxu0
        %v3112 = vpack.c.bf16 %v3107, %v3107
        %s3113 = scalar_lea.vmem %s5, 192
        %v3114 = vld [vmem:[%s3113] sm:$0xf]
        %v3115 = vld [vmem:[%s3113 + $0x4] sm:$0xf]
        %v3116 = vld [vmem:[%s3113 + $0x8] sm:$0xf]
        %v3117 = vld [vmem:[%s3113 + $0xc] sm:$0xf]
        %v3118 = vld [vmem:[%s3113 + $0x10] sm:$0xf]
        %v3119 = vld [vmem:[%s3113 + $0x14] sm:$0xf]
        %v3120 = vld [vmem:[%s3113 + $0x18] sm:$0xf]
        %v3121 = vld [vmem:[%s3113 + $0x1c] sm:$0xf]
        %v3130 = vunpack.c.l.b16 %v3114
        %v3131 = vunpack.c.l.b16 %v3115
        %v3132 = vunpack.c.l.b16 %v3116
        %v3133 = vunpack.c.l.b16 %v3117
        %v3134 = vunpack.c.l.b16 %v3118
        %v3135 = vunpack.c.l.b16 %v3119
        %v3136 = vunpack.c.l.b16 %v3120
        %v3137 = vunpack.c.l.b16 %v3121
        %v3138 = vpack.c.b16 %v3131, %v3130
        %v3139 = vpack.c.b16 %v3133, %v3132
        %v3140 = vpack.c.b16 %v3135, %v3134
        %v3141 = vpack.c.b16 %v3137, %v3136
        %v3147 = vsel %vm2469, %v3112, 0
        %3149 = vmatprep.subr.bf16.mxu0 0
        %3150 = vmatpush1.bf16.msra.mxu0 %v3138
        %3151 = vmatprep.subr.bf16.mxu0 0
        %3152 = vmatpush1.bf16.msra.mxu0 %v3139
        %3153 = vmatprep.subr.bf16.mxu0 0
        %3154 = vmatpush1.bf16.msra.mxu0 %v3140
        %3155 = vmatprep.subr.bf16.mxu0 0
        %3156 = vmatpush1.bf16.msra.mxu0 %v3141
        %3157 = vmatprep.subr.bf16.mxu0 0
        %3158 = vmatpush1.bf16.msra.mxu0 0
        %3159 = vmatprep.subr.bf16.mxu0 0
        %3160 = vmatpush1.bf16.msra.mxu0 0
        %3161 = vmatprep.subr.bf16.mxu0 0
        %3162 = vmatpush1.bf16.msra.mxu0 0
        %3163 = vmatprep.subr.bf16.mxu0 0
        %3164 = vmatpush1.bf16.msra.mxu0 0
        %3165 = vmatprep.subr.bf16.mxu0 0
        %3166 = vmatpush1.bf16.msra.mxu0 0
        %3167 = vmatprep.subr.bf16.mxu0 0
        %3168 = vmatpush1.bf16.msra.mxu0 0
        %3169 = vmatprep.subr.bf16.mxu0 0
        %3170 = vmatpush1.bf16.msra.mxu0 0
        %3171 = vmatprep.subr.bf16.mxu0 0
        %3172 = vmatpush1.bf16.msra.mxu0 0
        %3173 = vmatprep.subr.bf16.mxu0 0
        %3174 = vmatpush1.bf16.msra.mxu0 0
        %3175 = vmatprep.subr.bf16.mxu0 0
        %3176 = vmatpush1.bf16.msra.mxu0 0
        %3177 = vmatprep.subr.bf16.mxu0 0
        %3178 = vmatpush1.bf16.msra.mxu0 0
        %3179 = vmatprep.subr.bf16.mxu0 0
        %3180 = vmatpush1.bf16.msra.mxu0 0
        %3181 = vmatprep.mubr.bf16.mxu0 0
        %3182 = vmatmul.mubr.bf16.gmra.mrb[0].mxu0 %v3147
        %v3183 = vpop.f32.mrb[0].mxu0
        %v3184 = vadd.f32 0.0, %v3183
        %v3185 = vpop.f32.mrb[0].mxu0
        %v3186 = vpop.f32.mrb[0].mxu0
        %v3187 = vpop.f32.mrb[0].mxu0
        %3188 = vdwg.mxu0
        %v3189 = vadd.f32 %v3071, %v3184
        %3190 = vmatprep.subr.bf16.mxu0 0
        %3191 = vmatpush1.bf16.msra.mxu0 %v2834
        %3192 = vmatprep.subr.bf16.mxu0 0
        %3193 = vmatpush1.bf16.msra.mxu0 0
        %3194 = vmatprep.subr.bf16.mxu0 0
        %3195 = vmatpush1.bf16.msra.mxu0 0
        %3196 = vmatprep.subr.bf16.mxu0 0
        %3197 = vmatpush1.bf16.msra.mxu0 0
        %3198 = vmatprep.subr.bf16.mxu0 0
        %3199 = vmatpush1.bf16.msra.mxu0 0
        %3200 = vmatprep.subr.bf16.mxu0 0
        %3201 = vmatpush1.bf16.msra.mxu0 0
        %3202 = vmatprep.subr.bf16.mxu0 0
        %3203 = vmatpush1.bf16.msra.mxu0 0
        %3204 = vmatprep.subr.bf16.mxu0 0
        %3205 = vmatpush1.bf16.msra.mxu0 0
        %3206 = vmatprep.subr.bf16.mxu0 0
        %3207 = vmatpush1.bf16.msra.mxu0 0
        %3208 = vmatprep.subr.bf16.mxu0 0
        %3209 = vmatpush1.bf16.msra.mxu0 0
        %3210 = vmatprep.subr.bf16.mxu0 0
        %3211 = vmatpush1.bf16.msra.mxu0 0
        %3212 = vmatprep.subr.bf16.mxu0 0
        %3213 = vmatpush1.bf16.msra.mxu0 0
        %3214 = vmatprep.subr.bf16.mxu0 0
        %3215 = vmatpush1.bf16.msra.mxu0 0
        %3216 = vmatprep.subr.bf16.mxu0 0
        %3217 = vmatpush1.bf16.msra.mxu0 0
        %3218 = vmatprep.subr.bf16.mxu0 0
        %3219 = vmatpush1.bf16.msra.mxu0 0
        %3220 = vmatprep.subr.bf16.mxu0 0
        %3221 = vmatpush1.bf16.msra.mxu0 0
        %3222 = vmatprep.mubr.bf16.mxu0 0
        %3223 = vmatmul.mubr.bf16.gmra.mrb[0].mxu0 %v2702
        %v3224 = vpop.f32.mrb[0].mxu0
        %v3225 = vadd.f32 0.0, %v3224
        %v3226 = vpop.f32.mrb[0].mxu0
        %v3227 = vpop.f32.mrb[0].mxu0
        %v3228 = vpop.f32.mrb[0].mxu0
        %3229 = vdwg.mxu0
        %v3230 = vpack.c.bf16 %v3225, %v3225
        %s3231 = scalar_lea.vmem %s5, 224
        %v3232 = vld [vmem:[%s3231] sm:$0xf]
        %v3233 = vld [vmem:[%s3231 + $0x4] sm:$0xf]
        %v3234 = vld [vmem:[%s3231 + $0x8] sm:$0xf]
        %v3235 = vld [vmem:[%s3231 + $0xc] sm:$0xf]
        %v3236 = vld [vmem:[%s3231 + $0x10] sm:$0xf]
        %v3237 = vld [vmem:[%s3231 + $0x14] sm:$0xf]
        %v3238 = vld [vmem:[%s3231 + $0x18] sm:$0xf]
        %v3239 = vld [vmem:[%s3231 + $0x1c] sm:$0xf]
        %v3248 = vunpack.c.l.b16 %v3232
        %v3249 = vunpack.c.l.b16 %v3233
        %v3250 = vunpack.c.l.b16 %v3234
        %v3251 = vunpack.c.l.b16 %v3235
        %v3252 = vunpack.c.l.b16 %v3236
        %v3253 = vunpack.c.l.b16 %v3237
        %v3254 = vunpack.c.l.b16 %v3238
        %v3255 = vunpack.c.l.b16 %v3239
        %v3256 = vpack.c.b16 %v3249, %v3248
        %v3257 = vpack.c.b16 %v3251, %v3250
        %v3258 = vpack.c.b16 %v3253, %v3252
        %v3259 = vpack.c.b16 %v3255, %v3254
        %v3265 = vsel %vm2469, %v3230, 0
        %3267 = vmatprep.subr.bf16.mxu0 0
        %3268 = vmatpush1.bf16.msra.mxu0 %v3256
        %3269 = vmatprep.subr.bf16.mxu0 0
        %3270 = vmatpush1.bf16.msra.mxu0 %v3257
        %3271 = vmatprep.subr.bf16.mxu0 0
        %3272 = vmatpush1.bf16.msra.mxu0 %v3258
        %3273 = vmatprep.subr.bf16.mxu0 0
        %3274 = vmatpush1.bf16.msra.mxu0 %v3259
        %3275 = vmatprep.subr.bf16.mxu0 0
        %3276 = vmatpush1.bf16.msra.mxu0 0
        %3277 = vmatprep.subr.bf16.mxu0 0
        %3278 = vmatpush1.bf16.msra.mxu0 0
        %3279 = vmatprep.subr.bf16.mxu0 0
        %3280 = vmatpush1.bf16.msra.mxu0 0
        %3281 = vmatprep.subr.bf16.mxu0 0
        %3282 = vmatpush1.bf16.msra.mxu0 0
        %3283 = vmatprep.subr.bf16.mxu0 0
        %3284 = vmatpush1.bf16.msra.mxu0 0
        %3285 = vmatprep.subr.bf16.mxu0 0
        %3286 = vmatpush1.bf16.msra.mxu0 0
        %3287 = vmatprep.subr.bf16.mxu0 0
        %3288 = vmatpush1.bf16.msra.mxu0 0
        %3289 = vmatprep.subr.bf16.mxu0 0
        %3290 = vmatpush1.bf16.msra.mxu0 0
        %3291 = vmatprep.subr.bf16.mxu0 0
        %3292 = vmatpush1.bf16.msra.mxu0 0
        %3293 = vmatprep.subr.bf16.mxu0 0
        %3294 = vmatpush1.bf16.msra.mxu0 0
        %3295 = vmatprep.subr.bf16.mxu0 0
        %3296 = vmatpush1.bf16.msra.mxu0 0
        %3297 = vmatprep.subr.bf16.mxu0 0
        %3298 = vmatpush1.bf16.msra.mxu0 0
        %3299 = vmatprep.mubr.bf16.mxu0 0
        %3300 = vmatmul.mubr.bf16.gmra.mrb[0].mxu0 %v3265
        %v3301 = vpop.f32.mrb[0].mxu0
        %v3302 = vadd.f32 0.0, %v3301
        %v3303 = vpop.f32.mrb[0].mxu0
        %v3304 = vpop.f32.mrb[0].mxu0
        %v3305 = vpop.f32.mrb[0].mxu0
        %3306 = vdwg.mxu0
        %v3307 = vadd.f32 %v3189, %v3302
        %s3308 = sadd.s32 %s2324, 2
        %s3309 = smul.u32 %s3308, 2
        %s3310 = smul.addr %s3309, 4
        %s3311 = scalar_lea.vmem [#allocation3], %s3310
        %v3312 = vld [vmem:[%s3311] sm:$0xf]
        %v3313 = vld [vmem:[%s3311 + $0x4] sm:$0x7]
        %v3316 = vunpack.c.l.b16 %v3312
        %v3317 = vunpack.c.l.b16 %v3313
        %v3318 = vpack.c.b16 %v3317, %v3316
        %v3320 = vsel %vm2339, %v3318, 0
        %3322 = vmatprep.subr.bf16.mxu0 0
        %3323 = vmatpush1.bf16.msra.mxu0 %v3320
        %3324 = vmatprep.subr.bf16.mxu0 0
        %3325 = vmatpush1.bf16.msra.mxu0 0
        %3326 = vmatprep.subr.bf16.mxu0 0
        %3327 = vmatpush1.bf16.msra.mxu0 0
        %3328 = vmatprep.subr.bf16.mxu0 0
        %3329 = vmatpush1.bf16.msra.mxu0 0
        %3330 = vmatprep.subr.bf16.mxu0 0
        %3331 = vmatpush1.bf16.msra.mxu0 0
        %3332 = vmatprep.subr.bf16.mxu0 0
        %3333 = vmatpush1.bf16.msra.mxu0 0
        %3334 = vmatprep.subr.bf16.mxu0 0
        %3335 = vmatpush1.bf16.msra.mxu0 0
        %3336 = vmatprep.subr.bf16.mxu0 0
        %3337 = vmatpush1.bf16.msra.mxu0 0
        %3338 = vmatprep.subr.bf16.mxu0 0
        %3339 = vmatpush1.bf16.msra.mxu0 0
        %3340 = vmatprep.subr.bf16.mxu0 0
        %3341 = vmatpush1.bf16.msra.mxu0 0
        %3342 = vmatprep.subr.bf16.mxu0 0
        %3343 = vmatpush1.bf16.msra.mxu0 0
        %3344 = vmatprep.subr.bf16.mxu0 0
        %3345 = vmatpush1.bf16.msra.mxu0 0
        %3346 = vmatprep.subr.bf16.mxu0 0
        %3347 = vmatpush1.bf16.msra.mxu0 0
        %3348 = vmatprep.subr.bf16.mxu0 0
        %3349 = vmatpush1.bf16.msra.mxu0 0
        %3350 = vmatprep.subr.bf16.mxu0 0
        %3351 = vmatpush1.bf16.msra.mxu0 0
        %3352 = vmatprep.subr.bf16.mxu0 0
        %3353 = vmatpush1.bf16.msra.mxu0 0
        %3354 = vmatprep.mubr.bf16.mxu0 0
        %3355 = vmatmul.mubr.bf16.gmra.mrb[0].mxu0 %v2337
        %v3356 = vpop.f32.mrb[0].mxu0
        %v3357 = vadd.f32 0.0, %v3356
        %v3358 = vpop.f32.mrb[0].mxu0
        %v3359 = vpop.f32.mrb[0].mxu0
        %v3360 = vpop.f32.mrb[0].mxu0
        %3361 = vdwg.mxu0
        %v3362 = vpack.c.bf16 %v3357, %v3357
        %s3363 = scalar_lea.vmem %s5, 256
        %v3364 = vld [vmem:[%s3363] sm:$0xf]
        %v3365 = vld [vmem:[%s3363 + $0x4] sm:$0xf]
        %v3366 = vld [vmem:[%s3363 + $0x8] sm:$0xf]
        %v3367 = vld [vmem:[%s3363 + $0xc] sm:$0xf]
        %v3368 = vld [vmem:[%s3363 + $0x10] sm:$0xf]
        %v3369 = vld [vmem:[%s3363 + $0x14] sm:$0xf]
        %v3370 = vld [vmem:[%s3363 + $0x18] sm:$0xf]
        %v3371 = vld [vmem:[%s3363 + $0x1c] sm:$0xf]
        %v3380 = vunpack.c.l.b16 %v3364
        %v3381 = vunpack.c.l.b16 %v3365
        %v3382 = vunpack.c.l.b16 %v3366
        %v3383 = vunpack.c.l.b16 %v3367
        %v3384 = vunpack.c.l.b16 %v3368
        %v3385 = vunpack.c.l.b16 %v3369
        %v3386 = vunpack.c.l.b16 %v3370
        %v3387 = vunpack.c.l.b16 %v3371
        %v3388 = vpack.c.b16 %v3381, %v3380
        %v3389 = vpack.c.b16 %v3383, %v3382
        %v3390 = vpack.c.b16 %v3385, %v3384
        %v3391 = vpack.c.b16 %v3387, %v3386
        %v3397 = vsel %vm2469, %v3362, 0
        %3399 = vmatprep.subr.bf16.mxu0 0
        %3400 = vmatpush1.bf16.msra.mxu0 %v3388
        %3401 = vmatprep.subr.bf16.mxu0 0
        %3402 = vmatpush1.bf16.msra.mxu0 %v3389
        %3403 = vmatprep.subr.bf16.mxu0 0
        %3404 = vmatpush1.bf16.msra.mxu0 %v3390
        %3405 = vmatprep.subr.bf16.mxu0 0
        %3406 = vmatpush1.bf16.msra.mxu0 %v3391
        %3407 = vmatprep.subr.bf16.mxu0 0
        %3408 = vmatpush1.bf16.msra.mxu0 0
        %3409 = vmatprep.subr.bf16.mxu0 0
        %3410 = vmatpush1.bf16.msra.mxu0 0
        %3411 = vmatprep.subr.bf16.mxu0 0
        %3412 = vmatpush1.bf16.msra.mxu0 0
        %3413 = vmatprep.subr.bf16.mxu0 0
        %3414 = vmatpush1.bf16.msra.mxu0 0
        %3415 = vmatprep.subr.bf16.mxu0 0
        %3416 = vmatpush1.bf16.msra.mxu0 0
        %3417 = vmatprep.subr.bf16.mxu0 0
        %3418 = vmatpush1.bf16.msra.mxu0 0
        %3419 = vmatprep.subr.bf16.mxu0 0
        %3420 = vmatpush1.bf16.msra.mxu0 0
        %3421 = vmatprep.subr.bf16.mxu0 0
        %3422 = vmatpush1.bf16.msra.mxu0 0
        %3423 = vmatprep.subr.bf16.mxu0 0
        %3424 = vmatpush1.bf16.msra.mxu0 0
        %3425 = vmatprep.subr.bf16.mxu0 0
        %3426 = vmatpush1.bf16.msra.mxu0 0
        %3427 = vmatprep.subr.bf16.mxu0 0
        %3428 = vmatpush1.bf16.msra.mxu0 0
        %3429 = vmatprep.subr.bf16.mxu0 0
        %3430 = vmatpush1.bf16.msra.mxu0 0
        %3431 = vmatprep.mubr.bf16.mxu0 0
        %3432 = vmatmul.mubr.bf16.gmra.mrb[0].mxu0 %v3397
        %v3433 = vpop.f32.mrb[0].mxu0
        %v3434 = vadd.f32 0.0, %v3433
        %v3435 = vpop.f32.mrb[0].mxu0
        %v3436 = vpop.f32.mrb[0].mxu0
        %v3437 = vpop.f32.mrb[0].mxu0
        %3438 = vdwg.mxu0
        %v3439 = vadd.f32 %v3307, %v3434
        %3440 = vmatprep.subr.bf16.mxu0 0
        %3441 = vmatpush1.bf16.msra.mxu0 %v3320
        %3442 = vmatprep.subr.bf16.mxu0 0
        %3443 = vmatpush1.bf16.msra.mxu0 0
        %3444 = vmatprep.subr.bf16.mxu0 0
        %3445 = vmatpush1.bf16.msra.mxu0 0
        %3446 = vmatprep.subr.bf16.mxu0 0
        %3447 = vmatpush1.bf16.msra.mxu0 0
        %3448 = vmatprep.subr.bf16.mxu0 0
        %3449 = vmatpush1.bf16.msra.mxu0 0
        %3450 = vmatprep.subr.bf16.mxu0 0
        %3451 = vmatpush1.bf16.msra.mxu0 0
        %3452 = vmatprep.subr.bf16.mxu0 0
        %3453 = vmatpush1.bf16.msra.mxu0 0
        %3454 = vmatprep.subr.bf16.mxu0 0
        %3455 = vmatpush1.bf16.msra.mxu0 0
        %3456 = vmatprep.subr.bf16.mxu0 0
        %3457 = vmatpush1.bf16.msra.mxu0 0
        %3458 = vmatprep.subr.bf16.mxu0 0
        %3459 = vmatpush1.bf16.msra.mxu0 0
        %3460 = vmatprep.subr.bf16.mxu0 0
        %3461 = vmatpush1.bf16.msra.mxu0 0
        %3462 = vmatprep.subr.bf16.mxu0 0
        %3463 = vmatpush1.bf16.msra.mxu0 0
        %3464 = vmatprep.subr.bf16.mxu0 0
        %3465 = vmatpush1.bf16.msra.mxu0 0
        %3466 = vmatprep.subr.bf16.mxu0 0
        %3467 = vmatpush1.bf16.msra.mxu0 0
        %3468 = vmatprep.subr.bf16.mxu0 0
        %3469 = vmatpush1.bf16.msra.mxu0 0
        %3470 = vmatprep.subr.bf16.mxu0 0
        %3471 = vmatpush1.bf16.msra.mxu0 0
        %3472 = vmatprep.mubr.bf16.mxu0 0
        %3473 = vmatmul.mubr.bf16.gmra.mrb[0].mxu0 %v2393
        %v3474 = vpop.f32.mrb[0].mxu0
        %v3475 = vadd.f32 0.0, %v3474
        %v3476 = vpop.f32.mrb[0].mxu0
        %v3477 = vpop.f32.mrb[0].mxu0
        %v3478 = vpop.f32.mrb[0].mxu0
        %3479 = vdwg.mxu0
        %v3480 = vpack.c.bf16 %v3475, %v3475
        %s3481 = scalar_lea.vmem %s5, 288
        %v3482 = vld [vmem:[%s3481] sm:$0xf]
        %v3483 = vld [vmem:[%s3481 + $0x4] sm:$0xf]
        %v3484 = vld [vmem:[%s3481 + $0x8] sm:$0xf]
        %v3485 = vld [vmem:[%s3481 + $0xc] sm:$0xf]
        %v3486 = vld [vmem:[%s3481 + $0x10] sm:$0xf]
        %v3487 = vld [vmem:[%s3481 + $0x14] sm:$0xf]
        %v3488 = vld [vmem:[%s3481 + $0x18] sm:$0xf]
        %v3489 = vld [vmem:[%s3481 + $0x1c] sm:$0xf]
        %v3498 = vunpack.c.l.b16 %v3482
        %v3499 = vunpack.c.l.b16 %v3483
        %v3500 = vunpack.c.l.b16 %v3484
        %v3501 = vunpack.c.l.b16 %v3485
        %v3502 = vunpack.c.l.b16 %v3486
        %v3503 = vunpack.c.l.b16 %v3487
        %v3504 = vunpack.c.l.b16 %v3488
        %v3505 = vunpack.c.l.b16 %v3489
        %v3506 = vpack.c.b16 %v3499, %v3498
        %v3507 = vpack.c.b16 %v3501, %v3500
        %v3508 = vpack.c.b16 %v3503, %v3502
        %v3509 = vpack.c.b16 %v3505, %v3504
        %v3515 = vsel %vm2469, %v3480, 0
        %3517 = vmatprep.subr.bf16.mxu0 0
        %3518 = vmatpush1.bf16.msra.mxu0 %v3506
        %3519 = vmatprep.subr.bf16.mxu0 0
        %3520 = vmatpush1.bf16.msra.mxu0 %v3507
        %3521 = vmatprep.subr.bf16.mxu0 0
        %3522 = vmatpush1.bf16.msra.mxu0 %v3508
        %3523 = vmatprep.subr.bf16.mxu0 0
        %3524 = vmatpush1.bf16.msra.mxu0 %v3509
        %3525 = vmatprep.subr.bf16.mxu0 0
        %3526 = vmatpush1.bf16.msra.mxu0 0
        %3527 = vmatprep.subr.bf16.mxu0 0
        %3528 = vmatpush1.bf16.msra.mxu0 0
        %3529 = vmatprep.subr.bf16.mxu0 0
        %3530 = vmatpush1.bf16.msra.mxu0 0
        %3531 = vmatprep.subr.bf16.mxu0 0
        %3532 = vmatpush1.bf16.msra.mxu0 0
        %3533 = vmatprep.subr.bf16.mxu0 0
        %3534 = vmatpush1.bf16.msra.mxu0 0
        %3535 = vmatprep.subr.bf16.mxu0 0
        %3536 = vmatpush1.bf16.msra.mxu0 0
        %3537 = vmatprep.subr.bf16.mxu0 0
        %3538 = vmatpush1.bf16.msra.mxu0 0
        %3539 = vmatprep.subr.bf16.mxu0 0
        %3540 = vmatpush1.bf16.msra.mxu0 0
        %3541 = vmatprep.subr.bf16.mxu0 0
        %3542 = vmatpush1.bf16.msra.mxu0 0
        %3543 = vmatprep.subr.bf16.mxu0 0
        %3544 = vmatpush1.bf16.msra.mxu0 0
        %3545 = vmatprep.subr.bf16.mxu0 0
        %3546 = vmatpush1.bf16.msra.mxu0 0
        %3547 = vmatprep.subr.bf16.mxu0 0
        %3548 = vmatpush1.bf16.msra.mxu0 0
        %3549 = vmatprep.mubr.bf16.mxu0 0
        %3550 = vmatmul.mubr.bf16.gmra.mrb[0].mxu0 %v3515
        %v3551 = vpop.f32.mrb[0].mxu0
        %v3552 = vadd.f32 0.0, %v3551
        %v3553 = vpop.f32.mrb[0].mxu0
        %v3554 = vpop.f32.mrb[0].mxu0
        %v3555 = vpop.f32.mrb[0].mxu0
        %3556 = vdwg.mxu0
        %v3557 = vadd.f32 %v3439, %v3552
        %3558 = vmatprep.subr.bf16.mxu0 0
        %3559 = vmatpush1.bf16.msra.mxu0 %v3320
        %3560 = vmatprep.subr.bf16.mxu0 0
        %3561 = vmatpush1.bf16.msra.mxu0 0
        %3562 = vmatprep.subr.bf16.mxu0 0
        %3563 = vmatpush1.bf16.msra.mxu0 0
        %3564 = vmatprep.subr.bf16.mxu0 0
        %3565 = vmatpush1.bf16.msra.mxu0 0
        %3566 = vmatprep.subr.bf16.mxu0 0
        %3567 = vmatpush1.bf16.msra.mxu0 0
        %3568 = vmatprep.subr.bf16.mxu0 0
        %3569 = vmatpush1.bf16.msra.mxu0 0
        %3570 = vmatprep.subr.bf16.mxu0 0
        %3571 = vmatpush1.bf16.msra.mxu0 0
        %3572 = vmatprep.subr.bf16.mxu0 0
        %3573 = vmatpush1.bf16.msra.mxu0 0
        %3574 = vmatprep.subr.bf16.mxu0 0
        %3575 = vmatpush1.bf16.msra.mxu0 0
        %3576 = vmatprep.subr.bf16.mxu0 0
        %3577 = vmatpush1.bf16.msra.mxu0 0
        %3578 = vmatprep.subr.bf16.mxu0 0
        %3579 = vmatpush1.bf16.msra.mxu0 0
        %3580 = vmatprep.subr.bf16.mxu0 0
        %3581 = vmatpush1.bf16.msra.mxu0 0
        %3582 = vmatprep.subr.bf16.mxu0 0
        %3583 = vmatpush1.bf16.msra.mxu0 0
        %3584 = vmatprep.subr.bf16.mxu0 0
        %3585 = vmatpush1.bf16.msra.mxu0 0
        %3586 = vmatprep.subr.bf16.mxu0 0
        %3587 = vmatpush1.bf16.msra.mxu0 0
        %3588 = vmatprep.subr.bf16.mxu0 0
        %3589 = vmatpush1.bf16.msra.mxu0 0
        %3590 = vmatprep.mubr.bf16.mxu0 0
        %3591 = vmatmul.mubr.bf16.gmra.mrb[0].mxu0 %v2581
        %v3592 = vpop.f32.mrb[0].mxu0
        %v3593 = vadd.f32 0.0, %v3592
        %v3594 = vpop.f32.mrb[0].mxu0
        %v3595 = vpop.f32.mrb[0].mxu0
        %v3596 = vpop.f32.mrb[0].mxu0
        %3597 = vdwg.mxu0
        %v3598 = vpack.c.bf16 %v3593, %v3593
        %s3599 = scalar_lea.vmem %s5, 320
        %v3600 = vld [vmem:[%s3599] sm:$0xf]
        %v3601 = vld [vmem:[%s3599 + $0x4] sm:$0xf]
        %v3602 = vld [vmem:[%s3599 + $0x8] sm:$0xf]
        %v3603 = vld [vmem:[%s3599 + $0xc] sm:$0xf]
        %v3604 = vld [vmem:[%s3599 + $0x10] sm:$0xf]
        %v3605 = vld [vmem:[%s3599 + $0x14] sm:$0xf]
        %v3606 = vld [vmem:[%s3599 + $0x18] sm:$0xf]
        %v3607 = vld [vmem:[%s3599 + $0x1c] sm:$0xf]
        %v3616 = vunpack.c.l.b16 %v3600
        %v3617 = vunpack.c.l.b16 %v3601
        %v3618 = vunpack.c.l.b16 %v3602
        %v3619 = vunpack.c.l.b16 %v3603
        %v3620 = vunpack.c.l.b16 %v3604
        %v3621 = vunpack.c.l.b16 %v3605
        %v3622 = vunpack.c.l.b16 %v3606
        %v3623 = vunpack.c.l.b16 %v3607
        %v3624 = vpack.c.b16 %v3617, %v3616
        %v3625 = vpack.c.b16 %v3619, %v3618
        %v3626 = vpack.c.b16 %v3621, %v3620
        %v3627 = vpack.c.b16 %v3623, %v3622
        %v3633 = vsel %vm2469, %v3598, 0
        %3635 = vmatprep.subr.bf16.mxu0 0
        %3636 = vmatpush1.bf16.msra.mxu0 %v3624
        %3637 = vmatprep.subr.bf16.mxu0 0
        %3638 = vmatpush1.bf16.msra.mxu0 %v3625
        %3639 = vmatprep.subr.bf16.mxu0 0
        %3640 = vmatpush1.bf16.msra.mxu0 %v3626
        %3641 = vmatprep.subr.bf16.mxu0 0
        %3642 = vmatpush1.bf16.msra.mxu0 %v3627
        %3643 = vmatprep.subr.bf16.mxu0 0
        %3644 = vmatpush1.bf16.msra.mxu0 0
        %3645 = vmatprep.subr.bf16.mxu0 0
        %3646 = vmatpush1.bf16.msra.mxu0 0
        %3647 = vmatprep.subr.bf16.mxu0 0
        %3648 = vmatpush1.bf16.msra.mxu0 0
        %3649 = vmatprep.subr.bf16.mxu0 0
        %3650 = vmatpush1.bf16.msra.mxu0 0
        %3651 = vmatprep.subr.bf16.mxu0 0
        %3652 = vmatpush1.bf16.msra.mxu0 0
        %3653 = vmatprep.subr.bf16.mxu0 0
        %3654 = vmatpush1.bf16.msra.mxu0 0
        %3655 = vmatprep.subr.bf16.mxu0 0
        %3656 = vmatpush1.bf16.msra.mxu0 0
        %3657 = vmatprep.subr.bf16.mxu0 0
        %3658 = vmatpush1.bf16.msra.mxu0 0
        %3659 = vmatprep.subr.bf16.mxu0 0
        %3660 = vmatpush1.bf16.msra.mxu0 0
        %3661 = vmatprep.subr.bf16.mxu0 0
        %3662 = vmatpush1.bf16.msra.mxu0 0
        %3663 = vmatprep.subr.bf16.mxu0 0
        %3664 = vmatpush1.bf16.msra.mxu0 0
        %3665 = vmatprep.subr.bf16.mxu0 0
        %3666 = vmatpush1.bf16.msra.mxu0 0
        %3667 = vmatprep.mubr.bf16.mxu0 0
        %3668 = vmatmul.mubr.bf16.gmra.mrb[0].mxu0 %v3633
        %v3669 = vpop.f32.mrb[0].mxu0
        %v3670 = vadd.f32 0.0, %v3669
        %v3671 = vpop.f32.mrb[0].mxu0
        %v3672 = vpop.f32.mrb[0].mxu0
        %v3673 = vpop.f32.mrb[0].mxu0
        %3674 = vdwg.mxu0
        %v3675 = vadd.f32 %v3557, %v3670
        %3676 = vmatprep.subr.bf16.mxu0 0
        %3677 = vmatpush1.bf16.msra.mxu0 %v3320
        %3678 = vmatprep.subr.bf16.mxu0 0
        %3679 = vmatpush1.bf16.msra.mxu0 0
        %3680 = vmatprep.subr.bf16.mxu0 0
        %3681 = vmatpush1.bf16.msra.mxu0 0
        %3682 = vmatprep.subr.bf16.mxu0 0
        %3683 = vmatpush1.bf16.msra.mxu0 0
        %3684 = vmatprep.subr.bf16.mxu0 0
        %3685 = vmatpush1.bf16.msra.mxu0 0
        %3686 = vmatprep.subr.bf16.mxu0 0
        %3687 = vmatpush1.bf16.msra.mxu0 0
        %3688 = vmatprep.subr.bf16.mxu0 0
        %3689 = vmatpush1.bf16.msra.mxu0 0
        %3690 = vmatprep.subr.bf16.mxu0 0
        %3691 = vmatpush1.bf16.msra.mxu0 0
        %3692 = vmatprep.subr.bf16.mxu0 0
        %3693 = vmatpush1.bf16.msra.mxu0 0
        %3694 = vmatprep.subr.bf16.mxu0 0
        %3695 = vmatpush1.bf16.msra.mxu0 0
        %3696 = vmatprep.subr.bf16.mxu0 0
        %3697 = vmatpush1.bf16.msra.mxu0 0
        %3698 = vmatprep.subr.bf16.mxu0 0
        %3699 = vmatpush1.bf16.msra.mxu0 0
        %3700 = vmatprep.subr.bf16.mxu0 0
        %3701 = vmatpush1.bf16.msra.mxu0 0
        %3702 = vmatprep.subr.bf16.mxu0 0
        %3703 = vmatpush1.bf16.msra.mxu0 0
        %3704 = vmatprep.subr.bf16.mxu0 0
        %3705 = vmatpush1.bf16.msra.mxu0 0
        %3706 = vmatprep.subr.bf16.mxu0 0
        %3707 = vmatpush1.bf16.msra.mxu0 0
        %3708 = vmatprep.mubr.bf16.mxu0 0
        %3709 = vmatmul.mubr.bf16.gmra.mrb[0].mxu0 %v2702
        %v3710 = vpop.f32.mrb[0].mxu0
        %v3711 = vadd.f32 0.0, %v3710
        %v3712 = vpop.f32.mrb[0].mxu0
        %v3713 = vpop.f32.mrb[0].mxu0
        %v3714 = vpop.f32.mrb[0].mxu0
        %3715 = vdwg.mxu0
        %v3716 = vpack.c.bf16 %v3711, %v3711
        %s3717 = scalar_lea.vmem %s5, 352
        %v3718 = vld [vmem:[%s3717] sm:$0xf]
        %v3719 = vld [vmem:[%s3717 + $0x4] sm:$0xf]
        %v3720 = vld [vmem:[%s3717 + $0x8] sm:$0xf]
        %v3721 = vld [vmem:[%s3717 + $0xc] sm:$0xf]
        %v3722 = vld [vmem:[%s3717 + $0x10] sm:$0xf]
        %v3723 = vld [vmem:[%s3717 + $0x14] sm:$0xf]
        %v3724 = vld [vmem:[%s3717 + $0x18] sm:$0xf]
        %v3725 = vld [vmem:[%s3717 + $0x1c] sm:$0xf]
        %v3734 = vunpack.c.l.b16 %v3718
        %v3735 = vunpack.c.l.b16 %v3719
        %v3736 = vunpack.c.l.b16 %v3720
        %v3737 = vunpack.c.l.b16 %v3721
        %v3738 = vunpack.c.l.b16 %v3722
        %v3739 = vunpack.c.l.b16 %v3723
        %v3740 = vunpack.c.l.b16 %v3724
        %v3741 = vunpack.c.l.b16 %v3725
        %v3742 = vpack.c.b16 %v3735, %v3734
        %v3743 = vpack.c.b16 %v3737, %v3736
        %v3744 = vpack.c.b16 %v3739, %v3738
        %v3745 = vpack.c.b16 %v3741, %v3740
        %v3751 = vsel %vm2469, %v3716, 0
        %3753 = vmatprep.subr.bf16.mxu0 0
        %3754 = vmatpush1.bf16.msra.mxu0 %v3742
        %3755 = vmatprep.subr.bf16.mxu0 0
        %3756 = vmatpush1.bf16.msra.mxu0 %v3743
        %3757 = vmatprep.subr.bf16.mxu0 0
        %3758 = vmatpush1.bf16.msra.mxu0 %v3744
        %3759 = vmatprep.subr.bf16.mxu0 0
        %3760 = vmatpush1.bf16.msra.mxu0 %v3745
        %3761 = vmatprep.subr.bf16.mxu0 0
        %3762 = vmatpush1.bf16.msra.mxu0 0
        %3763 = vmatprep.subr.bf16.mxu0 0
        %3764 = vmatpush1.bf16.msra.mxu0 0
        %3765 = vmatprep.subr.bf16.mxu0 0
        %3766 = vmatpush1.bf16.msra.mxu0 0
        %3767 = vmatprep.subr.bf16.mxu0 0
        %3768 = vmatpush1.bf16.msra.mxu0 0
        %3769 = vmatprep.subr.bf16.mxu0 0
        %3770 = vmatpush1.bf16.msra.mxu0 0
        %3771 = vmatprep.subr.bf16.mxu0 0
        %3772 = vmatpush1.bf16.msra.mxu0 0
        %3773 = vmatprep.subr.bf16.mxu0 0
        %3774 = vmatpush1.bf16.msra.mxu0 0
        %3775 = vmatprep.subr.bf16.mxu0 0
        %3776 = vmatpush1.bf16.msra.mxu0 0
        %3777 = vmatprep.subr.bf16.mxu0 0
        %3778 = vmatpush1.bf16.msra.mxu0 0
        %3779 = vmatprep.subr.bf16.mxu0 0
        %3780 = vmatpush1.bf16.msra.mxu0 0
        %3781 = vmatprep.subr.bf16.mxu0 0
        %3782 = vmatpush1.bf16.msra.mxu0 0
        %3783 = vmatprep.subr.bf16.mxu0 0
        %3784 = vmatpush1.bf16.msra.mxu0 0
        %3785 = vmatprep.mubr.bf16.mxu0 0
        %3786 = vmatmul.mubr.bf16.gmra.mrb[0].mxu0 %v3751
        %v3787 = vpop.f32.mrb[0].mxu0
        %v3788 = vadd.f32 0.0, %v3787
        %v3789 = vpop.f32.mrb[0].mxu0
        %v3790 = vpop.f32.mrb[0].mxu0
        %v3791 = vpop.f32.mrb[0].mxu0
        %3792 = vdwg.mxu0
        %v3793 = vadd.f32 %v3675, %v3788
        %s3794 = sadd.s32 %s2324, 3
        %s3795 = smul.u32 %s3794, 2
        %s3796 = smul.addr %s3795, 4
        %s3797 = scalar_lea.vmem [#allocation3], %s3796
        %v3798 = vld [vmem:[%s3797] sm:$0xf]
        %v3799 = vld [vmem:[%s3797 + $0x4] sm:$0x7]
        %v3802 = vunpack.c.l.b16 %v3798
        %v3803 = vunpack.c.l.b16 %v3799
        %v3804 = vpack.c.b16 %v3803, %v3802
        %v3806 = vsel %vm2339, %v3804, 0
        %3808 = vmatprep.subr.bf16.mxu0 0
        %3809 = vmatpush1.bf16.msra.mxu0 %v3806
        %3810 = vmatprep.subr.bf16.mxu0 0
        %3811 = vmatpush1.bf16.msra.mxu0 0
        %3812 = vmatprep.subr.bf16.mxu0 0
        %3813 = vmatpush1.bf16.msra.mxu0 0
        %3814 = vmatprep.subr.bf16.mxu0 0
        %3815 = vmatpush1.bf16.msra.mxu0 0
        %3816 = vmatprep.subr.bf16.mxu0 0
        %3817 = vmatpush1.bf16.msra.mxu0 0
        %3818 = vmatprep.subr.bf16.mxu0 0
        %3819 = vmatpush1.bf16.msra.mxu0 0
        %3820 = vmatprep.subr.bf16.mxu0 0
        %3821 = vmatpush1.bf16.msra.mxu0 0
        %3822 = vmatprep.subr.bf16.mxu0 0
        %3823 = vmatpush1.bf16.msra.mxu0 0
        %3824 = vmatprep.subr.bf16.mxu0 0
        %3825 = vmatpush1.bf16.msra.mxu0 0
        %3826 = vmatprep.subr.bf16.mxu0 0
        %3827 = vmatpush1.bf16.msra.mxu0 0
        %3828 = vmatprep.subr.bf16.mxu0 0
        %3829 = vmatpush1.bf16.msra.mxu0 0
        %3830 = vmatprep.subr.bf16.mxu0 0
        %3831 = vmatpush1.bf16.msra.mxu0 0
        %3832 = vmatprep.subr.bf16.mxu0 0
        %3833 = vmatpush1.bf16.msra.mxu0 0
        %3834 = vmatprep.subr.bf16.mxu0 0
        %3835 = vmatpush1.bf16.msra.mxu0 0
        %3836 = vmatprep.subr.bf16.mxu0 0
        %3837 = vmatpush1.bf16.msra.mxu0 0
        %3838 = vmatprep.subr.bf16.mxu0 0
        %3839 = vmatpush1.bf16.msra.mxu0 0
        %3840 = vmatprep.mubr.bf16.mxu0 0
        %3841 = vmatmul.mubr.bf16.gmra.mrb[0].mxu0 %v2337
        %v3842 = vpop.f32.mrb[0].mxu0
        %v3843 = vadd.f32 0.0, %v3842
        %v3844 = vpop.f32.mrb[0].mxu0
        %v3845 = vpop.f32.mrb[0].mxu0
        %v3846 = vpop.f32.mrb[0].mxu0
        %3847 = vdwg.mxu0
        %v3848 = vpack.c.bf16 %v3843, %v3843
        %s3849 = scalar_lea.vmem %s5, 384
        %v3850 = vld [vmem:[%s3849] sm:$0xf]
        %v3851 = vld [vmem:[%s3849 + $0x4] sm:$0xf]
        %v3852 = vld [vmem:[%s3849 + $0x8] sm:$0xf]
        %v3853 = vld [vmem:[%s3849 + $0xc] sm:$0xf]
        %v3854 = vld [vmem:[%s3849 + $0x10] sm:$0xf]
        %v3855 = vld [vmem:[%s3849 + $0x14] sm:$0xf]
        %v3856 = vld [vmem:[%s3849 + $0x18] sm:$0xf]
        %v3857 = vld [vmem:[%s3849 + $0x1c] sm:$0xf]
        %v3866 = vunpack.c.l.b16 %v3850
        %v3867 = vunpack.c.l.b16 %v3851
        %v3868 = vunpack.c.l.b16 %v3852
        %v3869 = vunpack.c.l.b16 %v3853
        %v3870 = vunpack.c.l.b16 %v3854
        %v3871 = vunpack.c.l.b16 %v3855
        %v3872 = vunpack.c.l.b16 %v3856
        %v3873 = vunpack.c.l.b16 %v3857
        %v3874 = vpack.c.b16 %v3867, %v3866
        %v3875 = vpack.c.b16 %v3869, %v3868
        %v3876 = vpack.c.b16 %v3871, %v3870
        %v3877 = vpack.c.b16 %v3873, %v3872
        %v3883 = vsel %vm2469, %v3848, 0
        %3885 = vmatprep.subr.bf16.mxu0 0
        %3886 = vmatpush1.bf16.msra.mxu0 %v3874
        %3887 = vmatprep.subr.bf16.mxu0 0
        %3888 = vmatpush1.bf16.msra.mxu0 %v3875
        %3889 = vmatprep.subr.bf16.mxu0 0
        %3890 = vmatpush1.bf16.msra.mxu0 %v3876
        %3891 = vmatprep.subr.bf16.mxu0 0
        %3892 = vmatpush1.bf16.msra.mxu0 %v3877
        %3893 = vmatprep.subr.bf16.mxu0 0
        %3894 = vmatpush1.bf16.msra.mxu0 0
        %3895 = vmatprep.subr.bf16.mxu0 0
        %3896 = vmatpush1.bf16.msra.mxu0 0
        %3897 = vmatprep.subr.bf16.mxu0 0
        %3898 = vmatpush1.bf16.msra.mxu0 0
        %3899 = vmatprep.subr.bf16.mxu0 0
        %3900 = vmatpush1.bf16.msra.mxu0 0
        %3901 = vmatprep.subr.bf16.mxu0 0
        %3902 = vmatpush1.bf16.msra.mxu0 0
        %3903 = vmatprep.subr.bf16.mxu0 0
        %3904 = vmatpush1.bf16.msra.mxu0 0
        %3905 = vmatprep.subr.bf16.mxu0 0
        %3906 = vmatpush1.bf16.msra.mxu0 0
        %3907 = vmatprep.subr.bf16.mxu0 0
        %3908 = vmatpush1.bf16.msra.mxu0 0
        %3909 = vmatprep.subr.bf16.mxu0 0
        %3910 = vmatpush1.bf16.msra.mxu0 0
        %3911 = vmatprep.subr.bf16.mxu0 0
        %3912 = vmatpush1.bf16.msra.mxu0 0
        %3913 = vmatprep.subr.bf16.mxu0 0
        %3914 = vmatpush1.bf16.msra.mxu0 0
        %3915 = vmatprep.subr.bf16.mxu0 0
        %3916 = vmatpush1.bf16.msra.mxu0 0
        %3917 = vmatprep.mubr.bf16.mxu0 0
        %3918 = vmatmul.mubr.bf16.gmra.mrb[0].mxu0 %v3883
        %v3919 = vpop.f32.mrb[0].mxu0
        %v3920 = vadd.f32 0.0, %v3919
        %v3921 = vpop.f32.mrb[0].mxu0
        %v3922 = vpop.f32.mrb[0].mxu0
        %v3923 = vpop.f32.mrb[0].mxu0
        %3924 = vdwg.mxu0
        %v3925 = vadd.f32 %v3793, %v3920
        %3926 = vmatprep.subr.bf16.mxu0 0
        %3927 = vmatpush1.bf16.msra.mxu0 %v3806
        %3928 = vmatprep.subr.bf16.mxu0 0
        %3929 = vmatpush1.bf16.msra.mxu0 0
        %3930 = vmatprep.subr.bf16.mxu0 0
        %3931 = vmatpush1.bf16.msra.mxu0 0
        %3932 = vmatprep.subr.bf16.mxu0 0
        %3933 = vmatpush1.bf16.msra.mxu0 0
        %3934 = vmatprep.subr.bf16.mxu0 0
        %3935 = vmatpush1.bf16.msra.mxu0 0
        %3936 = vmatprep.subr.bf16.mxu0 0
        %3937 = vmatpush1.bf16.msra.mxu0 0
        %3938 = vmatprep.subr.bf16.mxu0 0
        %3939 = vmatpush1.bf16.msra.mxu0 0
        %3940 = vmatprep.subr.bf16.mxu0 0
        %3941 = vmatpush1.bf16.msra.mxu0 0
        %3942 = vmatprep.subr.bf16.mxu0 0
        %3943 = vmatpush1.bf16.msra.mxu0 0
        %3944 = vmatprep.subr.bf16.mxu0 0
        %3945 = vmatpush1.bf16.msra.mxu0 0
        %3946 = vmatprep.subr.bf16.mxu0 0
        %3947 = vmatpush1.bf16.msra.mxu0 0
        %3948 = vmatprep.subr.bf16.mxu0 0
        %3949 = vmatpush1.bf16.msra.mxu0 0
        %3950 = vmatprep.subr.bf16.mxu0 0
        %3951 = vmatpush1.bf16.msra.mxu0 0
        %3952 = vmatprep.subr.bf16.mxu0 0
        %3953 = vmatpush1.bf16.msra.mxu0 0
        %3954 = vmatprep.subr.bf16.mxu0 0
        %3955 = vmatpush1.bf16.msra.mxu0 0
        %3956 = vmatprep.subr.bf16.mxu0 0
        %3957 = vmatpush1.bf16.msra.mxu0 0
        %3958 = vmatprep.mubr.bf16.mxu0 0
        %3959 = vmatmul.mubr.bf16.gmra.mrb[0].mxu0 %v2393
        %v3960 = vpop.f32.mrb[0].mxu0
        %v3961 = vadd.f32 0.0, %v3960
        %v3962 = vpop.f32.mrb[0].mxu0
        %v3963 = vpop.f32.mrb[0].mxu0
        %v3964 = vpop.f32.mrb[0].mxu0
        %3965 = vdwg.mxu0
        %v3966 = vpack.c.bf16 %v3961, %v3961
        %s3967 = scalar_lea.vmem %s5, 416
        %v3968 = vld [vmem:[%s3967] sm:$0xf]
        %v3969 = vld [vmem:[%s3967 + $0x4] sm:$0xf]
        %v3970 = vld [vmem:[%s3967 + $0x8] sm:$0xf]
        %v3971 = vld [vmem:[%s3967 + $0xc] sm:$0xf]
        %v3972 = vld [vmem:[%s3967 + $0x10] sm:$0xf]
        %v3973 = vld [vmem:[%s3967 + $0x14] sm:$0xf]
        %v3974 = vld [vmem:[%s3967 + $0x18] sm:$0xf]
        %v3975 = vld [vmem:[%s3967 + $0x1c] sm:$0xf]
        %v3984 = vunpack.c.l.b16 %v3968
        %v3985 = vunpack.c.l.b16 %v3969
        %v3986 = vunpack.c.l.b16 %v3970
        %v3987 = vunpack.c.l.b16 %v3971
        %v3988 = vunpack.c.l.b16 %v3972
        %v3989 = vunpack.c.l.b16 %v3973
        %v3990 = vunpack.c.l.b16 %v3974
        %v3991 = vunpack.c.l.b16 %v3975
        %v3992 = vpack.c.b16 %v3985, %v3984
        %v3993 = vpack.c.b16 %v3987, %v3986
        %v3994 = vpack.c.b16 %v3989, %v3988
        %v3995 = vpack.c.b16 %v3991, %v3990
        %v4001 = vsel %vm2469, %v3966, 0
        %4003 = vmatprep.subr.bf16.mxu0 0
        %4004 = vmatpush1.bf16.msra.mxu0 %v3992
        %4005 = vmatprep.subr.bf16.mxu0 0
        %4006 = vmatpush1.bf16.msra.mxu0 %v3993
        %4007 = vmatprep.subr.bf16.mxu0 0
        %4008 = vmatpush1.bf16.msra.mxu0 %v3994
        %4009 = vmatprep.subr.bf16.mxu0 0
        %4010 = vmatpush1.bf16.msra.mxu0 %v3995
        %4011 = vmatprep.subr.bf16.mxu0 0
        %4012 = vmatpush1.bf16.msra.mxu0 0
        %4013 = vmatprep.subr.bf16.mxu0 0
        %4014 = vmatpush1.bf16.msra.mxu0 0
        %4015 = vmatprep.subr.bf16.mxu0 0
        %4016 = vmatpush1.bf16.msra.mxu0 0
        %4017 = vmatprep.subr.bf16.mxu0 0
        %4018 = vmatpush1.bf16.msra.mxu0 0
        %4019 = vmatprep.subr.bf16.mxu0 0
        %4020 = vmatpush1.bf16.msra.mxu0 0
        %4021 = vmatprep.subr.bf16.mxu0 0
        %4022 = vmatpush1.bf16.msra.mxu0 0
        %4023 = vmatprep.subr.bf16.mxu0 0
        %4024 = vmatpush1.bf16.msra.mxu0 0
        %4025 = vmatprep.subr.bf16.mxu0 0
        %4026 = vmatpush1.bf16.msra.mxu0 0
        %4027 = vmatprep.subr.bf16.mxu0 0
        %4028 = vmatpush1.bf16.msra.mxu0 0
        %4029 = vmatprep.subr.bf16.mxu0 0
        %4030 = vmatpush1.bf16.msra.mxu0 0
        %4031 = vmatprep.subr.bf16.mxu0 0
        %4032 = vmatpush1.bf16.msra.mxu0 0
        %4033 = vmatprep.subr.bf16.mxu0 0
        %4034 = vmatpush1.bf16.msra.mxu0 0
        %4035 = vmatprep.mubr.bf16.mxu0 0
        %4036 = vmatmul.mubr.bf16.gmra.mrb[0].mxu0 %v4001
        %v4037 = vpop.f32.mrb[0].mxu0
        %v4038 = vadd.f32 0.0, %v4037
        %v4039 = vpop.f32.mrb[0].mxu0
        %v4040 = vpop.f32.mrb[0].mxu0
        %v4041 = vpop.f32.mrb[0].mxu0
        %4042 = vdwg.mxu0
        %v4043 = vadd.f32 %v3925, %v4038
        %4044 = vmatprep.subr.bf16.mxu0 0
        %4045 = vmatpush1.bf16.msra.mxu0 %v3806
        %4046 = vmatprep.subr.bf16.mxu0 0
        %4047 = vmatpush1.bf16.msra.mxu0 0
        %4048 = vmatprep.subr.bf16.mxu0 0
        %4049 = vmatpush1.bf16.msra.mxu0 0
        %4050 = vmatprep.subr.bf16.mxu0 0
        %4051 = vmatpush1.bf16.msra.mxu0 0
        %4052 = vmatprep.subr.bf16.mxu0 0
        %4053 = vmatpush1.bf16.msra.mxu0 0
        %4054 = vmatprep.subr.bf16.mxu0 0
        %4055 = vmatpush1.bf16.msra.mxu0 0
        %4056 = vmatprep.subr.bf16.mxu0 0
        %4057 = vmatpush1.bf16.msra.mxu0 0
        %4058 = vmatprep.subr.bf16.mxu0 0
        %4059 = vmatpush1.bf16.msra.mxu0 0
        %4060 = vmatprep.subr.bf16.mxu0 0
        %4061 = vmatpush1.bf16.msra.mxu0 0
        %4062 = vmatprep.subr.bf16.mxu0 0
        %4063 = vmatpush1.bf16.msra.mxu0 0
        %4064 = vmatprep.subr.bf16.mxu0 0
        %4065 = vmatpush1.bf16.msra.mxu0 0
        %4066 = vmatprep.subr.bf16.mxu0 0
        %4067 = vmatpush1.bf16.msra.mxu0 0
        %4068 = vmatprep.subr.bf16.mxu0 0
        %4069 = vmatpush1.bf16.msra.mxu0 0
        %4070 = vmatprep.subr.bf16.mxu0 0
        %4071 = vmatpush1.bf16.msra.mxu0 0
        %4072 = vmatprep.subr.bf16.mxu0 0
        %4073 = vmatpush1.bf16.msra.mxu0 0
        %4074 = vmatprep.subr.bf16.mxu0 0
        %4075 = vmatpush1.bf16.msra.mxu0 0
        %4076 = vmatprep.mubr.bf16.mxu0 0
        %4077 = vmatmul.mubr.bf16.gmra.mrb[0].mxu0 %v2581
        %v4078 = vpop.f32.mrb[0].mxu0
        %v4079 = vadd.f32 0.0, %v4078
        %v4080 = vpop.f32.mrb[0].mxu0
        %v4081 = vpop.f32.mrb[0].mxu0
        %v4082 = vpop.f32.mrb[0].mxu0
        %4083 = vdwg.mxu0
        %v4084 = vpack.c.bf16 %v4079, %v4079
        %s4085 = scalar_lea.vmem %s5, 448
        %v4086 = vld [vmem:[%s4085] sm:$0xf]
        %v4087 = vld [vmem:[%s4085 + $0x4] sm:$0xf]
        %v4088 = vld [vmem:[%s4085 + $0x8] sm:$0xf]
        %v4089 = vld [vmem:[%s4085 + $0xc] sm:$0xf]
        %v4090 = vld [vmem:[%s4085 + $0x10] sm:$0xf]
        %v4091 = vld [vmem:[%s4085 + $0x14] sm:$0xf]
        %v4092 = vld [vmem:[%s4085 + $0x18] sm:$0xf]
        %v4093 = vld [vmem:[%s4085 + $0x1c] sm:$0xf]
        %v4102 = vunpack.c.l.b16 %v4086
        %v4103 = vunpack.c.l.b16 %v4087
        %v4104 = vunpack.c.l.b16 %v4088
        %v4105 = vunpack.c.l.b16 %v4089
        %v4106 = vunpack.c.l.b16 %v4090
        %v4107 = vunpack.c.l.b16 %v4091
        %v4108 = vunpack.c.l.b16 %v4092
        %v4109 = vunpack.c.l.b16 %v4093
        %v4110 = vpack.c.b16 %v4103, %v4102
        %v4111 = vpack.c.b16 %v4105, %v4104
        %v4112 = vpack.c.b16 %v4107, %v4106
        %v4113 = vpack.c.b16 %v4109, %v4108
        %v4119 = vsel %vm2469, %v4084, 0
        %4121 = vmatprep.subr.bf16.mxu0 0
        %4122 = vmatpush1.bf16.msra.mxu0 %v4110
        %4123 = vmatprep.subr.bf16.mxu0 0
        %4124 = vmatpush1.bf16.msra.mxu0 %v4111
        %4125 = vmatprep.subr.bf16.mxu0 0
        %4126 = vmatpush1.bf16.msra.mxu0 %v4112
        %4127 = vmatprep.subr.bf16.mxu0 0
        %4128 = vmatpush1.bf16.msra.mxu0 %v4113
        %4129 = vmatprep.subr.bf16.mxu0 0
        %4130 = vmatpush1.bf16.msra.mxu0 0
        %4131 = vmatprep.subr.bf16.mxu0 0
        %4132 = vmatpush1.bf16.msra.mxu0 0
        %4133 = vmatprep.subr.bf16.mxu0 0
        %4134 = vmatpush1.bf16.msra.mxu0 0
        %4135 = vmatprep.subr.bf16.mxu0 0
        %4136 = vmatpush1.bf16.msra.mxu0 0
        %4137 = vmatprep.subr.bf16.mxu0 0
        %4138 = vmatpush1.bf16.msra.mxu0 0
        %4139 = vmatprep.subr.bf16.mxu0 0
        %4140 = vmatpush1.bf16.msra.mxu0 0
        %4141 = vmatprep.subr.bf16.mxu0 0
        %4142 = vmatpush1.bf16.msra.mxu0 0
        %4143 = vmatprep.subr.bf16.mxu0 0
        %4144 = vmatpush1.bf16.msra.mxu0 0
        %4145 = vmatprep.subr.bf16.mxu0 0
        %4146 = vmatpush1.bf16.msra.mxu0 0
        %4147 = vmatprep.subr.bf16.mxu0 0
        %4148 = vmatpush1.bf16.msra.mxu0 0
        %4149 = vmatprep.subr.bf16.mxu0 0
        %4150 = vmatpush1.bf16.msra.mxu0 0
        %4151 = vmatprep.subr.bf16.mxu0 0
        %4152 = vmatpush1.bf16.msra.mxu0 0
        %4153 = vmatprep.mubr.bf16.mxu0 0
        %4154 = vmatmul.mubr.bf16.gmra.mrb[0].mxu0 %v4119
        %v4155 = vpop.f32.mrb[0].mxu0
        %v4156 = vadd.f32 0.0, %v4155
        %v4157 = vpop.f32.mrb[0].mxu0
        %v4158 = vpop.f32.mrb[0].mxu0
        %v4159 = vpop.f32.mrb[0].mxu0
        %4160 = vdwg.mxu0
        %v4161 = vadd.f32 %v4043, %v4156
        %4162 = vmatprep.subr.bf16.mxu0 0
        %4163 = vmatpush1.bf16.msra.mxu0 %v3806
        %4164 = vmatprep.subr.bf16.mxu0 0
        %4165 = vmatpush1.bf16.msra.mxu0 0
        %4166 = vmatprep.subr.bf16.mxu0 0
        %4167 = vmatpush1.bf16.msra.mxu0 0
        %4168 = vmatprep.subr.bf16.mxu0 0
        %4169 = vmatpush1.bf16.msra.mxu0 0
        %4170 = vmatprep.subr.bf16.mxu0 0
        %4171 = vmatpush1.bf16.msra.mxu0 0
        %4172 = vmatprep.subr.bf16.mxu0 0
        %4173 = vmatpush1.bf16.msra.mxu0 0
        %4174 = vmatprep.subr.bf16.mxu0 0
        %4175 = vmatpush1.bf16.msra.mxu0 0
        %4176 = vmatprep.subr.bf16.mxu0 0
        %4177 = vmatpush1.bf16.msra.mxu0 0
        %4178 = vmatprep.subr.bf16.mxu0 0
        %4179 = vmatpush1.bf16.msra.mxu0 0
        %4180 = vmatprep.subr.bf16.mxu0 0
        %4181 = vmatpush1.bf16.msra.mxu0 0
        %4182 = vmatprep.subr.bf16.mxu0 0
        %4183 = vmatpush1.bf16.msra.mxu0 0
        %4184 = vmatprep.subr.bf16.mxu0 0
        %4185 = vmatpush1.bf16.msra.mxu0 0
        %4186 = vmatprep.subr.bf16.mxu0 0
        %4187 = vmatpush1.bf16.msra.mxu0 0
        %4188 = vmatprep.subr.bf16.mxu0 0
        %4189 = vmatpush1.bf16.msra.mxu0 0
        %4190 = vmatprep.subr.bf16.mxu0 0
        %4191 = vmatpush1.bf16.msra.mxu0 0
        %4192 = vmatprep.subr.bf16.mxu0 0
        %4193 = vmatpush1.bf16.msra.mxu0 0
        %4194 = vmatprep.mubr.bf16.mxu0 0
        %4195 = vmatmul.mubr.bf16.gmra.mrb[0].mxu0 %v2702
        %v4196 = vpop.f32.mrb[0].mxu0
        %v4197 = vadd.f32 0.0, %v4196
        %v4198 = vpop.f32.mrb[0].mxu0
        %v4199 = vpop.f32.mrb[0].mxu0
        %v4200 = vpop.f32.mrb[0].mxu0
        %4201 = vdwg.mxu0
        %v4202 = vpack.c.bf16 %v4197, %v4197
        %s4203 = scalar_lea.vmem %s5, 480
        %v4204 = vld [vmem:[%s4203] sm:$0xf]
        %v4205 = vld [vmem:[%s4203 + $0x4] sm:$0xf]
        %v4206 = vld [vmem:[%s4203 + $0x8] sm:$0xf]
        %v4207 = vld [vmem:[%s4203 + $0xc] sm:$0xf]
        %v4208 = vld [vmem:[%s4203 + $0x10] sm:$0xf]
        %v4209 = vld [vmem:[%s4203 + $0x14] sm:$0xf]
        %v4210 = vld [vmem:[%s4203 + $0x18] sm:$0xf]
        %v4211 = vld [vmem:[%s4203 + $0x1c] sm:$0xf]
        %v4220 = vunpack.c.l.b16 %v4204
        %v4221 = vunpack.c.l.b16 %v4205
        %v4222 = vunpack.c.l.b16 %v4206
        %v4223 = vunpack.c.l.b16 %v4207
        %v4224 = vunpack.c.l.b16 %v4208
        %v4225 = vunpack.c.l.b16 %v4209
        %v4226 = vunpack.c.l.b16 %v4210
        %v4227 = vunpack.c.l.b16 %v4211
        %v4228 = vpack.c.b16 %v4221, %v4220
        %v4229 = vpack.c.b16 %v4223, %v4222
        %v4230 = vpack.c.b16 %v4225, %v4224
        %v4231 = vpack.c.b16 %v4227, %v4226
        %v4237 = vsel %vm2469, %v4202, 0
        %4239 = vmatprep.subr.bf16.mxu0 0
        %4240 = vmatpush1.bf16.msra.mxu0 %v4228
        %4241 = vmatprep.subr.bf16.mxu0 0
        %4242 = vmatpush1.bf16.msra.mxu0 %v4229
        %4243 = vmatprep.subr.bf16.mxu0 0
        %4244 = vmatpush1.bf16.msra.mxu0 %v4230
        %4245 = vmatprep.subr.bf16.mxu0 0
        %4246 = vmatpush1.bf16.msra.mxu0 %v4231
        %4247 = vmatprep.subr.bf16.mxu0 0
        %4248 = vmatpush1.bf16.msra.mxu0 0
        %4249 = vmatprep.subr.bf16.mxu0 0
        %4250 = vmatpush1.bf16.msra.mxu0 0
        %4251 = vmatprep.subr.bf16.mxu0 0
        %4252 = vmatpush1.bf16.msra.mxu0 0
        %4253 = vmatprep.subr.bf16.mxu0 0
        %4254 = vmatpush1.bf16.msra.mxu0 0
        %4255 = vmatprep.subr.bf16.mxu0 0
        %4256 = vmatpush1.bf16.msra.mxu0 0
        %4257 = vmatprep.subr.bf16.mxu0 0
        %4258 = vmatpush1.bf16.msra.mxu0 0
        %4259 = vmatprep.subr.bf16.mxu0 0
        %4260 = vmatpush1.bf16.msra.mxu0 0
        %4261 = vmatprep.subr.bf16.mxu0 0
        %4262 = vmatpush1.bf16.msra.mxu0 0
        %4263 = vmatprep.subr.bf16.mxu0 0
        %4264 = vmatpush1.bf16.msra.mxu0 0
        %4265 = vmatprep.subr.bf16.mxu0 0
        %4266 = vmatpush1.bf16.msra.mxu0 0
        %4267 = vmatprep.subr.bf16.mxu0 0
        %4268 = vmatpush1.bf16.msra.mxu0 0
        %4269 = vmatprep.subr.bf16.mxu0 0
        %4270 = vmatpush1.bf16.msra.mxu0 0
        %4271 = vmatprep.mubr.bf16.mxu0 0
        %4272 = vmatmul.mubr.bf16.gmra.mrb[0].mxu0 %v4237
        %v4273 = vpop.f32.mrb[0].mxu0
        %v4274 = vadd.f32 0.0, %v4273
        %v4275 = vpop.f32.mrb[0].mxu0
        %v4276 = vpop.f32.mrb[0].mxu0
        %v4277 = vpop.f32.mrb[0].mxu0
        %4278 = vdwg.mxu0
        %v4279 = vadd.f32 %v4161, %v4274
        %v4281 = vlaneseq
        %v4282 = vshrl.u32 %v4281, 7
        %v4283 = vsub.s32 0, %v4282
        %v4284 = vrot.slane %v2317, %v4283
        %v4286 = vadd.f32 %v4279, %v4284
        %v4287 = vmax.f32 %v4286, 0.0
        %v4288 = vpack.c.bf16 %v4287, %v4287
        %s4289 = smul.addr %s2319, 4
        %s4290 = scalar_lea.vmem [#allocation4], %s4289
        %4291 = vst [vmem:[%s4290] sm:$0x7] %v4288
      $region75: #{conv_encoder_forward.1} parent=55 // loop_footer
        %s2323 = sadd.s32 1, %s2319
      $region76: #{conv_encoder_forward.1} parent=55 // loop_footer_branch
        %2318 = sbr.rel target = $region72
      $region77: #{conv_encoder_forward.1} parent=55 // loop_exit
        _
      %v4292 = vld [vmem:[%s8] sm:$0x3]
      %v4293 = vld [vmem:[#allocation4] sm:$0x7]
      %vm4294 = vcmask 48128
      %v4296 = vsel %vm4294, %v2313, 0
      %vm4298 = vcmask 1042432
      %v4300 = vsel %vm4298, %v4293, 0
      %4302 = vmatprep.subr.bf16.mxu0 0
      %4303 = vmatpush1.bf16.msra.mxu0 %v4300
      %4304 = vmatprep.subr.bf16.mxu0 0
      %4305 = vmatpush1.bf16.msra.mxu0 0
      %4306 = vmatprep.subr.bf16.mxu0 0
      %4307 = vmatpush1.bf16.msra.mxu0 0
      %4308 = vmatprep.subr.bf16.mxu0 0
      %4309 = vmatpush1.bf16.msra.mxu0 0
      %4310 = vmatprep.subr.bf16.mxu0 0
      %4311 = vmatpush1.bf16.msra.mxu0 0
      %4312 = vmatprep.subr.bf16.mxu0 0
      %4313 = vmatpush1.bf16.msra.mxu0 0
      %4314 = vmatprep.subr.bf16.mxu0 0
      %4315 = vmatpush1.bf16.msra.mxu0 0
      %4316 = vmatprep.subr.bf16.mxu0 0
      %4317 = vmatpush1.bf16.msra.mxu0 0
      %4318 = vmatprep.subr.bf16.mxu0 0
      %4319 = vmatpush1.bf16.msra.mxu0 0
      %4320 = vmatprep.subr.bf16.mxu0 0
      %4321 = vmatpush1.bf16.msra.mxu0 0
      %4322 = vmatprep.subr.bf16.mxu0 0
      %4323 = vmatpush1.bf16.msra.mxu0 0
      %4324 = vmatprep.subr.bf16.mxu0 0
      %4325 = vmatpush1.bf16.msra.mxu0 0
      %4326 = vmatprep.subr.bf16.mxu0 0
      %4327 = vmatpush1.bf16.msra.mxu0 0
      %4328 = vmatprep.subr.bf16.mxu0 0
      %4329 = vmatpush1.bf16.msra.mxu0 0
      %4330 = vmatprep.subr.bf16.mxu0 0
      %4331 = vmatpush1.bf16.msra.mxu0 0
      %4332 = vmatprep.subr.bf16.mxu0 0
      %4333 = vmatpush1.bf16.msra.mxu0 0
      %4334 = vmatprep.mubr.bf16.mxu0 0
      %4335 = vmatmul.mubr.bf16.gmra.mrb[0].mxu0 %v4296
      %v4336 = vpop.f32.mrb[0].mxu0
      %v4337 = vadd.f32 0.0, %v4336
      %v4338 = vpop.f32.mrb[0].mxu0
      %v4339 = vpop.f32.mrb[0].mxu0
      %v4340 = vpop.f32.mrb[0].mxu0
      %4341 = vdwg.mxu0
      %v4342 = vpack.c.bf16 %v4337, %v4337
      %v4343 = vld [vmem:[%s7] sm:$0xff]
      %v4344 = vld [vmem:[%s7 + $0x8] sm:$0xff]
      %v4345 = vld [vmem:[%s7 + $0x10] sm:$0xff]
      %v4346 = vld [vmem:[%s7 + $0x18] sm:$0xff]
      %v4347 = vld [vmem:[%s7 + $0x20] sm:$0xff]
      %v4348 = vld [vmem:[%s7 + $0x28] sm:$0xff]
      %v4349 = vld [vmem:[%s7 + $0x30] sm:$0xff]
      %v4350 = vld [vmem:[%s7 + $0x38] sm:$0xff]
      %v4351 = vld [vmem:[%s7 + $0x40] sm:$0xff]
      %v4352 = vld [vmem:[%s7 + $0x48] sm:$0xff]
      %v4353 = vld [vmem:[%s7 + $0x50] sm:$0xff]
      %v4354 = vld [vmem:[%s7 + $0x58] sm:$0xff]
      %v4355 = vld [vmem:[%s7 + $0x60] sm:$0xff]
      %v4356 = vld [vmem:[%s7 + $0x68] sm:$0xff]
      %v4357 = vld [vmem:[%s7 + $0x70] sm:$0xff]
      %v4358 = vld [vmem:[%s7 + $0x78] sm:$0xff]
      %v4360 = vsel %vm4294, %v2314, 0
      %4362 = vmatprep.subr.bf16.mxu0 0
      %4363 = vmatpush1.bf16.msra.mxu0 %v4300
      %4364 = vmatprep.subr.bf16.mxu0 0
      %4365 = vmatpush1.bf16.msra.mxu0 0
      %4366 = vmatprep.subr.bf16.mxu0 0
      %4367 = vmatpush1.bf16.msra.mxu0 0
      %4368 = vmatprep.subr.bf16.mxu0 0
      %4369 = vmatpush1.bf16.msra.mxu0 0
      %4370 = vmatprep.subr.bf16.mxu0 0
      %4371 = vmatpush1.bf16.msra.mxu0 0
      %4372 = vmatprep.subr.bf16.mxu0 0
      %4373 = vmatpush1.bf16.msra.mxu0 0
      %4374 = vmatprep.subr.bf16.mxu0 0
      %4375 = vmatpush1.bf16.msra.mxu0 0
      %4376 = vmatprep.subr.bf16.mxu0 0
      %4377 = vmatpush1.bf16.msra.mxu0 0
      %4378 = vmatprep.subr.bf16.mxu0 0
      %4379 = vmatpush1.bf16.msra.mxu0 0
      %4380 = vmatprep.subr.bf16.mxu0 0
      %4381 = vmatpush1.bf16.msra.mxu0 0
      %4382 = vmatprep.subr.bf16.mxu0 0
      %4383 = vmatpush1.bf16.msra.mxu0 0
      %4384 = vmatprep.subr.bf16.mxu0 0
      %4385 = vmatpush1.bf16.msra.mxu0 0
      %4386 = vmatprep.subr.bf16.mxu0 0
      %4387 = vmatpush1.bf16.msra.mxu0 0
      %4388 = vmatprep.subr.bf16.mxu0 0
      %4389 = vmatpush1.bf16.msra.mxu0 0
      %4390 = vmatprep.subr.bf16.mxu0 0
      %4391 = vmatpush1.bf16.msra.mxu0 0
      %4392 = vmatprep.subr.bf16.mxu0 0
      %4393 = vmatpush1.bf16.msra.mxu0 0
      %4394 = vmatprep.mubr.bf16.mxu0 0
      %4395 = vmatmul.mubr.bf16.gmra.mrb[0].mxu0 %v4360
      %v4396 = vpop.f32.mrb[0].mxu0
      %v4397 = vadd.f32 0.0, %v4396
      %v4398 = vpop.f32.mrb[0].mxu0
      %v4399 = vpop.f32.mrb[0].mxu0
      %v4400 = vpop.f32.mrb[0].mxu0
      %4401 = vdwg.mxu0
      %v4402 = vpack.c.bf16 %v4397, %v4397
      %s4403 = scalar_lea.vmem %s7, 128
      %v4404 = vld [vmem:[%s4403] sm:$0xff]
      %v4405 = vld [vmem:[%s4403 + $0x8] sm:$0xff]
      %v4406 = vld [vmem:[%s4403 + $0x10] sm:$0xff]
      %v4407 = vld [vmem:[%s4403 + $0x18] sm:$0xff]
      %v4408 = vld [vmem:[%s4403 + $0x20] sm:$0xff]
      %v4409 = vld [vmem:[%s4403 + $0x28] sm:$0xff]
      %v4410 = vld [vmem:[%s4403 + $0x30] sm:$0xff]
      %v4411 = vld [vmem:[%s4403 + $0x38] sm:$0xff]
      %v4412 = vld [vmem:[%s4403 + $0x40] sm:$0xff]
      %v4413 = vld [vmem:[%s4403 + $0x48] sm:$0xff]
      %v4414 = vld [vmem:[%s4403 + $0x50] sm:$0xff]
      %v4415 = vld [vmem:[%s4403 + $0x58] sm:$0xff]
      %v4416 = vld [vmem:[%s4403 + $0x60] sm:$0xff]
      %v4417 = vld [vmem:[%s4403 + $0x68] sm:$0xff]
      %v4418 = vld [vmem:[%s4403 + $0x70] sm:$0xff]
      %v4419 = vld [vmem:[%s4403 + $0x78] sm:$0xff]
      %v4436 = vunpack.c.l.b16 %v4404
      %v4437 = vunpack.c.h.b16 %v4404
      %v4438 = vunpack.c.l.b16 %v4405
      %v4439 = vunpack.c.h.b16 %v4405
      %v4440 = vunpack.c.l.b16 %v4406
      %v4441 = vunpack.c.h.b16 %v4406
      %v4442 = vunpack.c.l.b16 %v4407
      %v4443 = vunpack.c.h.b16 %v4407
      %v4444 = vunpack.c.l.b16 %v4408
      %v4445 = vunpack.c.h.b16 %v4408
      %v4446 = vunpack.c.l.b16 %v4409
      %v4447 = vunpack.c.h.b16 %v4409
      %v4448 = vunpack.c.l.b16 %v4410
      %v4449 = vunpack.c.h.b16 %v4410
      %v4450 = vunpack.c.l.b16 %v4411
      %v4451 = vunpack.c.h.b16 %v4411
      %v4452 = vunpack.c.l.b16 %v4412
      %v4453 = vunpack.c.h.b16 %v4412
      %v4454 = vunpack.c.l.b16 %v4413
      %v4455 = vunpack.c.h.b16 %v4413
      %v4456 = vunpack.c.l.b16 %v4414
      %v4457 = vunpack.c.h.b16 %v4414
      %v4458 = vunpack.c.l.b16 %v4415
      %v4459 = vunpack.c.h.b16 %v4415
      %v4460 = vunpack.c.l.b16 %v4416
      %v4461 = vunpack.c.h.b16 %v4416
      %v4462 = vunpack.c.l.b16 %v4417
      %v4463 = vunpack.c.h.b16 %v4417
      %v4464 = vunpack.c.l.b16 %v4418
      %v4465 = vunpack.c.h.b16 %v4418
      %v4466 = vunpack.c.l.b16 %v4419
      %v4467 = vunpack.c.h.b16 %v4419
      %v4468 = vpack.c.b16 %v4438, %v4436
      %v4469 = vpack.c.b16 %v4439, %v4437
      %v4470 = vpack.c.b16 %v4442, %v4440
      %v4471 = vpack.c.b16 %v4443, %v4441
      %v4472 = vpack.c.b16 %v4446, %v4444
      %v4473 = vpack.c.b16 %v4447, %v4445
      %v4474 = vpack.c.b16 %v4450, %v4448
      %v4475 = vpack.c.b16 %v4451, %v4449
      %v4476 = vpack.c.b16 %v4454, %v4452
      %v4477 = vpack.c.b16 %v4455, %v4453
      %v4478 = vpack.c.b16 %v4458, %v4456
      %v4479 = vpack.c.b16 %v4459, %v4457
      %v4480 = vpack.c.b16 %v4462, %v4460
      %v4481 = vpack.c.b16 %v4463, %v4461
      %v4482 = vpack.c.b16 %v4466, %v4464
      %v4483 = vpack.c.b16 %v4467, %v4465
      %4500 = vmatprep.subr.bf16.mxu0 %v4469
      %4501 = vmatpush1.bf16.msra.mxu0 %v4468
      %4502 = vmatprep.subr.bf16.mxu0 %v4471
      %4503 = vmatpush1.bf16.msra.mxu0 %v4470
      %4504 = vmatprep.subr.bf16.mxu0 %v4473
      %4505 = vmatpush1.bf16.msra.mxu0 %v4472
      %4506 = vmatprep.subr.bf16.mxu0 %v4475
      %4507 = vmatpush1.bf16.msra.mxu0 %v4474
      %4508 = vmatprep.subr.bf16.mxu0 %v4477
      %4509 = vmatpush1.bf16.msra.mxu0 %v4476
      %4510 = vmatprep.subr.bf16.mxu0 %v4479
      %4511 = vmatpush1.bf16.msra.mxu0 %v4478
      %4512 = vmatprep.subr.bf16.mxu0 %v4481
      %4513 = vmatpush1.bf16.msra.mxu0 %v4480
      %4514 = vmatprep.subr.bf16.mxu0 %v4483
      %4515 = vmatpush1.bf16.msra.mxu0 %v4482
      %4516 = vmatprep.subr.bf16.mxu0 0
      %4517 = vmatpush1.bf16.msra.mxu0 0
      %4518 = vmatprep.subr.bf16.mxu0 0
      %4519 = vmatpush1.bf16.msra.mxu0 0
      %4520 = vmatprep.subr.bf16.mxu0 0
      %4521 = vmatpush1.bf16.msra.mxu0 0
      %4522 = vmatprep.subr.bf16.mxu0 0
      %4523 = vmatpush1.bf16.msra.mxu0 0
      %4524 = vmatprep.subr.bf16.mxu0 0
      %4525 = vmatpush1.bf16.msra.mxu0 0
      %4526 = vmatprep.subr.bf16.mxu0 0
      %4527 = vmatpush1.bf16.msra.mxu0 0
      %4528 = vmatprep.subr.bf16.mxu0 0
      %4529 = vmatpush1.bf16.msra.mxu0 0
      %4530 = vmatprep.subr.bf16.mxu0 0
      %4531 = vmatpush1.bf16.msra.mxu0 0
      %4532 = vmatprep.mubr.bf16.mxu0 0
      %4533 = vmatmul.mubr.bf16.gmra.mrb[0].mxu0 %v4402
      %v4534 = vpop.f32.mrb[0].mxu0
      %v4535 = vadd.f32 0.0, %v4534
      %v4536 = vpop.f32.mrb[0].mxu0
      %v4537 = vadd.f32 0.0, %v4536
      %v4538 = vpop.f32.mrb[0].mxu0
      %v4539 = vpop.f32.mrb[0].mxu0
      %4540 = vdwg.mxu0
      %v4557 = vunpack.c.l.b16 %v4343
      %v4558 = vunpack.c.h.b16 %v4343
      %v4559 = vunpack.c.l.b16 %v4344
      %v4560 = vunpack.c.h.b16 %v4344
      %v4561 = vunpack.c.l.b16 %v4345
      %v4562 = vunpack.c.h.b16 %v4345
      %v4563 = vunpack.c.l.b16 %v4346
      %v4564 = vunpack.c.h.b16 %v4346
      %v4565 = vunpack.c.l.b16 %v4347
      %v4566 = vunpack.c.h.b16 %v4347
      %v4567 = vunpack.c.l.b16 %v4348
      %v4568 = vunpack.c.h.b16 %v4348
      %v4569 = vunpack.c.l.b16 %v4349
      %v4570 = vunpack.c.h.b16 %v4349
      %v4571 = vunpack.c.l.b16 %v4350
      %v4572 = vunpack.c.h.b16 %v4350
      %v4573 = vunpack.c.l.b16 %v4351
      %v4574 = vunpack.c.h.b16 %v4351
      %v4575 = vunpack.c.l.b16 %v4352
      %v4576 = vunpack.c.h.b16 %v4352
      %v4577 = vunpack.c.l.b16 %v4353
      %v4578 = vunpack.c.h.b16 %v4353
      %v4579 = vunpack.c.l.b16 %v4354
      %v4580 = vunpack.c.h.b16 %v4354
      %v4581 = vunpack.c.l.b16 %v4355
      %v4582 = vunpack.c.h.b16 %v4355
      %v4583 = vunpack.c.l.b16 %v4356
      %v4584 = vunpack.c.h.b16 %v4356
      %v4585 = vunpack.c.l.b16 %v4357
      %v4586 = vunpack.c.h.b16 %v4357
      %v4587 = vunpack.c.l.b16 %v4358
      %v4588 = vunpack.c.h.b16 %v4358
      %v4589 = vpack.c.b16 %v4559, %v4557
      %v4590 = vpack.c.b16 %v4560, %v4558
      %v4591 = vpack.c.b16 %v4563, %v4561
      %v4592 = vpack.c.b16 %v4564, %v4562
      %v4593 = vpack.c.b16 %v4567, %v4565
      %v4594 = vpack.c.b16 %v4568, %v4566
      %v4595 = vpack.c.b16 %v4571, %v4569
      %v4596 = vpack.c.b16 %v4572, %v4570
      %v4597 = vpack.c.b16 %v4575, %v4573
      %v4598 = vpack.c.b16 %v4576, %v4574
      %v4599 = vpack.c.b16 %v4579, %v4577
      %v4600 = vpack.c.b16 %v4580, %v4578
      %v4601 = vpack.c.b16 %v4583, %v4581
      %v4602 = vpack.c.b16 %v4584, %v4582
      %v4603 = vpack.c.b16 %v4587, %v4585
      %v4604 = vpack.c.b16 %v4588, %v4586
      %4621 = vmatprep.subr.bf16.mxu0 %v4590
      %4622 = vmatpush1.bf16.msra.mxu0 %v4589
      %4623 = vmatprep.subr.bf16.mxu0 %v4592
      %4624 = vmatpush1.bf16.msra.mxu0 %v4591
      %4625 = vmatprep.subr.bf16.mxu0 %v4594
      %4626 = vmatpush1.bf16.msra.mxu0 %v4593
      %4627 = vmatprep.subr.bf16.mxu0 %v4596
      %4628 = vmatpush1.bf16.msra.mxu0 %v4595
      %4629 = vmatprep.subr.bf16.mxu0 %v4598
      %4630 = vmatpush1.bf16.msra.mxu0 %v4597
      %4631 = vmatprep.subr.bf16.mxu0 %v4600
      %4632 = vmatpush1.bf16.msra.mxu0 %v4599
      %4633 = vmatprep.subr.bf16.mxu0 %v4602
      %4634 = vmatpush1.bf16.msra.mxu0 %v4601
      %4635 = vmatprep.subr.bf16.mxu0 %v4604
      %4636 = vmatpush1.bf16.msra.mxu0 %v4603
      %4637 = vmatprep.subr.bf16.mxu0 0
      %4638 = vmatpush1.bf16.msra.mxu0 0
      %4639 = vmatprep.subr.bf16.mxu0 0
      %4640 = vmatpush1.bf16.msra.mxu0 0
      %4641 = vmatprep.subr.bf16.mxu0 0
      %4642 = vmatpush1.bf16.msra.mxu0 0
      %4643 = vmatprep.subr.bf16.mxu0 0
      %4644 = vmatpush1.bf16.msra.mxu0 0
      %4645 = vmatprep.subr.bf16.mxu0 0
      %4646 = vmatpush1.bf16.msra.mxu0 0
      %4647 = vmatprep.subr.bf16.mxu0 0
      %4648 = vmatpush1.bf16.msra.mxu0 0
      %4649 = vmatprep.subr.bf16.mxu0 0
      %4650 = vmatpush1.bf16.msra.mxu0 0
      %4651 = vmatprep.subr.bf16.mxu0 0
      %4652 = vmatpush1.bf16.msra.mxu0 0
      %4653 = vmatprep.mubr.bf16.mxu0 0
      %4654 = vmatmul.mubr.bf16.gmra.mrb[0].mxu0 %v4342
      %v4655 = vpop.f32.mrb[0].mxu0
      %v4656 = vadd.f32 %v4535, %v4655
      %v4657 = vpop.f32.mrb[0].mxu0
      %v4658 = vadd.f32 %v4537, %v4657
      %v4659 = vpop.f32.mrb[0].mxu0
      %v4660 = vpop.f32.mrb[0].mxu0
      %4661 = vdwg.mxu0
      %v4663 = vsel %vm4294, %v2315, 0
      %4665 = vmatprep.subr.bf16.mxu0 0
      %4666 = vmatpush1.bf16.msra.mxu0 %v4300
      %4667 = vmatprep.subr.bf16.mxu0 0
      %4668 = vmatpush1.bf16.msra.mxu0 0
      %4669 = vmatprep.subr.bf16.mxu0 0
      %4670 = vmatpush1.bf16.msra.mxu0 0
      %4671 = vmatprep.subr.bf16.mxu0 0
      %4672 = vmatpush1.bf16.msra.mxu0 0
      %4673 = vmatprep.subr.bf16.mxu0 0
      %4674 = vmatpush1.bf16.msra.mxu0 0
      %4675 = vmatprep.subr.bf16.mxu0 0
      %4676 = vmatpush1.bf16.msra.mxu0 0
      %4677 = vmatprep.subr.bf16.mxu0 0
      %4678 = vmatpush1.bf16.msra.mxu0 0
      %4679 = vmatprep.subr.bf16.mxu0 0
      %4680 = vmatpush1.bf16.msra.mxu0 0
      %4681 = vmatprep.subr.bf16.mxu0 0
      %4682 = vmatpush1.bf16.msra.mxu0 0
      %4683 = vmatprep.subr.bf16.mxu0 0
      %4684 = vmatpush1.bf16.msra.mxu0 0
      %4685 = vmatprep.subr.bf16.mxu0 0
      %4686 = vmatpush1.bf16.msra.mxu0 0
      %4687 = vmatprep.subr.bf16.mxu0 0
      %4688 = vmatpush1.bf16.msra.mxu0 0
      %4689 = vmatprep.subr.bf16.mxu0 0
      %4690 = vmatpush1.bf16.msra.mxu0 0
      %4691 = vmatprep.subr.bf16.mxu0 0
      %4692 = vmatpush1.bf16.msra.mxu0 0
      %4693 = vmatprep.subr.bf16.mxu0 0
      %4694 = vmatpush1.bf16.msra.mxu0 0
      %4695 = vmatprep.subr.bf16.mxu0 0
      %4696 = vmatpush1.bf16.msra.mxu0 0
      %4697 = vmatprep.mubr.bf16.mxu0 0
      %4698 = vmatmul.mubr.bf16.gmra.mrb[0].mxu0 %v4663
      %v4699 = vpop.f32.mrb[0].mxu0
      %v4700 = vadd.f32 0.0, %v4699
      %v4701 = vpop.f32.mrb[0].mxu0
      %v4702 = vpop.f32.mrb[0].mxu0
      %v4703 = vpop.f32.mrb[0].mxu0
      %4704 = vdwg.mxu0
      %v4705 = vpack.c.bf16 %v4700, %v4700
      %s4706 = scalar_lea.vmem %s7, 256
      %v4707 = vld [vmem:[%s4706] sm:$0xff]
      %v4708 = vld [vmem:[%s4706 + $0x8] sm:$0xff]
      %v4709 = vld [vmem:[%s4706 + $0x10] sm:$0xff]
      %v4710 = vld [vmem:[%s4706 + $0x18] sm:$0xff]
      %v4711 = vld [vmem:[%s4706 + $0x20] sm:$0xff]
      %v4712 = vld [vmem:[%s4706 + $0x28] sm:$0xff]
      %v4713 = vld [vmem:[%s4706 + $0x30] sm:$0xff]
      %v4714 = vld [vmem:[%s4706 + $0x38] sm:$0xff]
      %v4715 = vld [vmem:[%s4706 + $0x40] sm:$0xff]
      %v4716 = vld [vmem:[%s4706 + $0x48] sm:$0xff]
      %v4717 = vld [vmem:[%s4706 + $0x50] sm:$0xff]
      %v4718 = vld [vmem:[%s4706 + $0x58] sm:$0xff]
      %v4719 = vld [vmem:[%s4706 + $0x60] sm:$0xff]
      %v4720 = vld [vmem:[%s4706 + $0x68] sm:$0xff]
      %v4721 = vld [vmem:[%s4706 + $0x70] sm:$0xff]
      %v4722 = vld [vmem:[%s4706 + $0x78] sm:$0xff]
      %v4739 = vunpack.c.l.b16 %v4707
      %v4740 = vunpack.c.h.b16 %v4707
      %v4741 = vunpack.c.l.b16 %v4708
      %v4742 = vunpack.c.h.b16 %v4708
      %v4743 = vunpack.c.l.b16 %v4709
      %v4744 = vunpack.c.h.b16 %v4709
      %v4745 = vunpack.c.l.b16 %v4710
      %v4746 = vunpack.c.h.b16 %v4710
      %v4747 = vunpack.c.l.b16 %v4711
      %v4748 = vunpack.c.h.b16 %v4711
      %v4749 = vunpack.c.l.b16 %v4712
      %v4750 = vunpack.c.h.b16 %v4712
      %v4751 = vunpack.c.l.b16 %v4713
      %v4752 = vunpack.c.h.b16 %v4713
      %v4753 = vunpack.c.l.b16 %v4714
      %v4754 = vunpack.c.h.b16 %v4714
      %v4755 = vunpack.c.l.b16 %v4715
      %v4756 = vunpack.c.h.b16 %v4715
      %v4757 = vunpack.c.l.b16 %v4716
      %v4758 = vunpack.c.h.b16 %v4716
      %v4759 = vunpack.c.l.b16 %v4717
      %v4760 = vunpack.c.h.b16 %v4717
      %v4761 = vunpack.c.l.b16 %v4718
      %v4762 = vunpack.c.h.b16 %v4718
      %v4763 = vunpack.c.l.b16 %v4719
      %v4764 = vunpack.c.h.b16 %v4719
      %v4765 = vunpack.c.l.b16 %v4720
      %v4766 = vunpack.c.h.b16 %v4720
      %v4767 = vunpack.c.l.b16 %v4721
      %v4768 = vunpack.c.h.b16 %v4721
      %v4769 = vunpack.c.l.b16 %v4722
      %v4770 = vunpack.c.h.b16 %v4722
      %v4771 = vpack.c.b16 %v4741, %v4739
      %v4772 = vpack.c.b16 %v4742, %v4740
      %v4773 = vpack.c.b16 %v4745, %v4743
      %v4774 = vpack.c.b16 %v4746, %v4744
      %v4775 = vpack.c.b16 %v4749, %v4747
      %v4776 = vpack.c.b16 %v4750, %v4748
      %v4777 = vpack.c.b16 %v4753, %v4751
      %v4778 = vpack.c.b16 %v4754, %v4752
      %v4779 = vpack.c.b16 %v4757, %v4755
      %v4780 = vpack.c.b16 %v4758, %v4756
      %v4781 = vpack.c.b16 %v4761, %v4759
      %v4782 = vpack.c.b16 %v4762, %v4760
      %v4783 = vpack.c.b16 %v4765, %v4763
      %v4784 = vpack.c.b16 %v4766, %v4764
      %v4785 = vpack.c.b16 %v4769, %v4767
      %v4786 = vpack.c.b16 %v4770, %v4768
      %4803 = vmatprep.subr.bf16.mxu0 %v4772
      %4804 = vmatpush1.bf16.msra.mxu0 %v4771
      %4805 = vmatprep.subr.bf16.mxu0 %v4774
      %4806 = vmatpush1.bf16.msra.mxu0 %v4773
      %4807 = vmatprep.subr.bf16.mxu0 %v4776
      %4808 = vmatpush1.bf16.msra.mxu0 %v4775
      %4809 = vmatprep.subr.bf16.mxu0 %v4778
      %4810 = vmatpush1.bf16.msra.mxu0 %v4777
      %4811 = vmatprep.subr.bf16.mxu0 %v4780
      %4812 = vmatpush1.bf16.msra.mxu0 %v4779
      %4813 = vmatprep.subr.bf16.mxu0 %v4782
      %4814 = vmatpush1.bf16.msra.mxu0 %v4781
      %4815 = vmatprep.subr.bf16.mxu0 %v4784
      %4816 = vmatpush1.bf16.msra.mxu0 %v4783
      %4817 = vmatprep.subr.bf16.mxu0 %v4786
      %4818 = vmatpush1.bf16.msra.mxu0 %v4785
      %4819 = vmatprep.subr.bf16.mxu0 0
      %4820 = vmatpush1.bf16.msra.mxu0 0
      %4821 = vmatprep.subr.bf16.mxu0 0
      %4822 = vmatpush1.bf16.msra.mxu0 0
      %4823 = vmatprep.subr.bf16.mxu0 0
      %4824 = vmatpush1.bf16.msra.mxu0 0
      %4825 = vmatprep.subr.bf16.mxu0 0
      %4826 = vmatpush1.bf16.msra.mxu0 0
      %4827 = vmatprep.subr.bf16.mxu0 0
      %4828 = vmatpush1.bf16.msra.mxu0 0
      %4829 = vmatprep.subr.bf16.mxu0 0
      %4830 = vmatpush1.bf16.msra.mxu0 0
      %4831 = vmatprep.subr.bf16.mxu0 0
      %4832 = vmatpush1.bf16.msra.mxu0 0
      %4833 = vmatprep.subr.bf16.mxu0 0
      %4834 = vmatpush1.bf16.msra.mxu0 0
      %4835 = vmatprep.mubr.bf16.mxu0 0
      %4836 = vmatmul.mubr.bf16.gmra.mrb[0].mxu0 %v4705
      %v4837 = vpop.f32.mrb[0].mxu0
      %v4838 = vadd.f32 0.0, %v4837
      %v4839 = vpop.f32.mrb[0].mxu0
      %v4840 = vadd.f32 0.0, %v4839
      %v4841 = vpop.f32.mrb[0].mxu0
      %v4842 = vpop.f32.mrb[0].mxu0
      %4843 = vdwg.mxu0
      %v4844 = vadd.f32 %v4656, %v4838
      %v4845 = vadd.f32 %v4658, %v4840
      %v4847 = vsel %vm4294, %v2316, 0
      %4849 = vmatprep.subr.bf16.mxu0 0
      %4850 = vmatpush1.bf16.msra.mxu0 %v4300
      %4851 = vmatprep.subr.bf16.mxu0 0
      %4852 = vmatpush1.bf16.msra.mxu0 0
      %4853 = vmatprep.subr.bf16.mxu0 0
      %4854 = vmatpush1.bf16.msra.mxu0 0
      %4855 = vmatprep.subr.bf16.mxu0 0
      %4856 = vmatpush1.bf16.msra.mxu0 0
      %4857 = vmatprep.subr.bf16.mxu0 0
      %4858 = vmatpush1.bf16.msra.mxu0 0
      %4859 = vmatprep.subr.bf16.mxu0 0
      %4860 = vmatpush1.bf16.msra.mxu0 0
      %4861 = vmatprep.subr.bf16.mxu0 0
      %4862 = vmatpush1.bf16.msra.mxu0 0
      %4863 = vmatprep.subr.bf16.mxu0 0
      %4864 = vmatpush1.bf16.msra.mxu0 0
      %4865 = vmatprep.subr.bf16.mxu0 0
      %4866 = vmatpush1.bf16.msra.mxu0 0
      %4867 = vmatprep.subr.bf16.mxu0 0
      %4868 = vmatpush1.bf16.msra.mxu0 0
      %4869 = vmatprep.subr.bf16.mxu0 0
      %4870 = vmatpush1.bf16.msra.mxu0 0
      %4871 = vmatprep.subr.bf16.mxu0 0
      %4872 = vmatpush1.bf16.msra.mxu0 0
      %4873 = vmatprep.subr.bf16.mxu0 0
      %4874 = vmatpush1.bf16.msra.mxu0 0
      %4875 = vmatprep.subr.bf16.mxu0 0
      %4876 = vmatpush1.bf16.msra.mxu0 0
      %4877 = vmatprep.subr.bf16.mxu0 0
      %4878 = vmatpush1.bf16.msra.mxu0 0
      %4879 = vmatprep.subr.bf16.mxu0 0
      %4880 = vmatpush1.bf16.msra.mxu0 0
      %4881 = vmatprep.mubr.bf16.mxu0 0
      %4882 = vmatmul.mubr.bf16.gmra.mrb[0].mxu0 %v4847
      %v4883 = vpop.f32.mrb[0].mxu0
      %v4884 = vadd.f32 0.0, %v4883
      %v4885 = vpop.f32.mrb[0].mxu0
      %v4886 = vpop.f32.mrb[0].mxu0
      %v4887 = vpop.f32.mrb[0].mxu0
      %4888 = vdwg.mxu0
      %v4889 = vpack.c.bf16 %v4884, %v4884
      %s4890 = scalar_lea.vmem %s7, 384
      %v4891 = vld [vmem:[%s4890] sm:$0xff]
      %v4892 = vld [vmem:[%s4890 + $0x8] sm:$0xff]
      %v4893 = vld [vmem:[%s4890 + $0x10] sm:$0xff]
      %v4894 = vld [vmem:[%s4890 + $0x18] sm:$0xff]
      %v4895 = vld [vmem:[%s4890 + $0x20] sm:$0xff]
      %v4896 = vld [vmem:[%s4890 + $0x28] sm:$0xff]
      %v4897 = vld [vmem:[%s4890 + $0x30] sm:$0xff]
      %v4898 = vld [vmem:[%s4890 + $0x38] sm:$0xff]
      %v4899 = vld [vmem:[%s4890 + $0x40] sm:$0xff]
      %v4900 = vld [vmem:[%s4890 + $0x48] sm:$0xff]
      %v4901 = vld [vmem:[%s4890 + $0x50] sm:$0xff]
      %v4902 = vld [vmem:[%s4890 + $0x58] sm:$0xff]
      %v4903 = vld [vmem:[%s4890 + $0x60] sm:$0xff]
      %v4904 = vld [vmem:[%s4890 + $0x68] sm:$0xff]
      %v4905 = vld [vmem:[%s4890 + $0x70] sm:$0xff]
      %v4906 = vld [vmem:[%s4890 + $0x78] sm:$0xff]
      %v4923 = vunpack.c.l.b16 %v4891
      %v4924 = vunpack.c.h.b16 %v4891
      %v4925 = vunpack.c.l.b16 %v4892
      %v4926 = vunpack.c.h.b16 %v4892
      %v4927 = vunpack.c.l.b16 %v4893
      %v4928 = vunpack.c.h.b16 %v4893
      %v4929 = vunpack.c.l.b16 %v4894
      %v4930 = vunpack.c.h.b16 %v4894
      %v4931 = vunpack.c.l.b16 %v4895
      %v4932 = vunpack.c.h.b16 %v4895
      %v4933 = vunpack.c.l.b16 %v4896
      %v4934 = vunpack.c.h.b16 %v4896
      %v4935 = vunpack.c.l.b16 %v4897
      %v4936 = vunpack.c.h.b16 %v4897
      %v4937 = vunpack.c.l.b16 %v4898
      %v4938 = vunpack.c.h.b16 %v4898
      %v4939 = vunpack.c.l.b16 %v4899
      %v4940 = vunpack.c.h.b16 %v4899
      %v4941 = vunpack.c.l.b16 %v4900
      %v4942 = vunpack.c.h.b16 %v4900
      %v4943 = vunpack.c.l.b16 %v4901
      %v4944 = vunpack.c.h.b16 %v4901
      %v4945 = vunpack.c.l.b16 %v4902
      %v4946 = vunpack.c.h.b16 %v4902
      %v4947 = vunpack.c.l.b16 %v4903
      %v4948 = vunpack.c.h.b16 %v4903
      %v4949 = vunpack.c.l.b16 %v4904
      %v4950 = vunpack.c.h.b16 %v4904
      %v4951 = vunpack.c.l.b16 %v4905
      %v4952 = vunpack.c.h.b16 %v4905
      %v4953 = vunpack.c.l.b16 %v4906
      %v4954 = vunpack.c.h.b16 %v4906
      %v4955 = vpack.c.b16 %v4925, %v4923
      %v4956 = vpack.c.b16 %v4926, %v4924
      %v4957 = vpack.c.b16 %v4929, %v4927
      %v4958 = vpack.c.b16 %v4930, %v4928
      %v4959 = vpack.c.b16 %v4933, %v4931
      %v4960 = vpack.c.b16 %v4934, %v4932
      %v4961 = vpack.c.b16 %v4937, %v4935
      %v4962 = vpack.c.b16 %v4938, %v4936
      %v4963 = vpack.c.b16 %v4941, %v4939
      %v4964 = vpack.c.b16 %v4942, %v4940
      %v4965 = vpack.c.b16 %v4945, %v4943
      %v4966 = vpack.c.b16 %v4946, %v4944
      %v4967 = vpack.c.b16 %v4949, %v4947
      %v4968 = vpack.c.b16 %v4950, %v4948
      %v4969 = vpack.c.b16 %v4953, %v4951
      %v4970 = vpack.c.b16 %v4954, %v4952
      %4987 = vmatprep.subr.bf16.mxu0 %v4956
      %4988 = vmatpush1.bf16.msra.mxu0 %v4955
      %4989 = vmatprep.subr.bf16.mxu0 %v4958
      %4990 = vmatpush1.bf16.msra.mxu0 %v4957
      %4991 = vmatprep.subr.bf16.mxu0 %v4960
      %4992 = vmatpush1.bf16.msra.mxu0 %v4959
      %4993 = vmatprep.subr.bf16.mxu0 %v4962
      %4994 = vmatpush1.bf16.msra.mxu0 %v4961
      %4995 = vmatprep.subr.bf16.mxu0 %v4964
      %4996 = vmatpush1.bf16.msra.mxu0 %v4963
      %4997 = vmatprep.subr.bf16.mxu0 %v4966
      %4998 = vmatpush1.bf16.msra.mxu0 %v4965
      %4999 = vmatprep.subr.bf16.mxu0 %v4968
      %5000 = vmatpush1.bf16.msra.mxu0 %v4967
      %5001 = vmatprep.subr.bf16.mxu0 %v4970
      %5002 = vmatpush1.bf16.msra.mxu0 %v4969
      %5003 = vmatprep.subr.bf16.mxu0 0
      %5004 = vmatpush1.bf16.msra.mxu0 0
      %5005 = vmatprep.subr.bf16.mxu0 0
      %5006 = vmatpush1.bf16.msra.mxu0 0
      %5007 = vmatprep.subr.bf16.mxu0 0
      %5008 = vmatpush1.bf16.msra.mxu0 0
      %5009 = vmatprep.subr.bf16.mxu0 0
      %5010 = vmatpush1.bf16.msra.mxu0 0
      %5011 = vmatprep.subr.bf16.mxu0 0
      %5012 = vmatpush1.bf16.msra.mxu0 0
      %5013 = vmatprep.subr.bf16.mxu0 0
      %5014 = vmatpush1.bf16.msra.mxu0 0
      %5015 = vmatprep.subr.bf16.mxu0 0
      %5016 = vmatpush1.bf16.msra.mxu0 0
      %5017 = vmatprep.subr.bf16.mxu0 0
      %5018 = vmatpush1.bf16.msra.mxu0 0
      %5019 = vmatprep.mubr.bf16.mxu0 0
      %5020 = vmatmul.mubr.bf16.gmra.mrb[0].mxu0 %v4889
      %v5021 = vpop.f32.mrb[0].mxu0
      %v5022 = vadd.f32 0.0, %v5021
      %v5023 = vpop.f32.mrb[0].mxu0
      %v5024 = vadd.f32 0.0, %v5023
      %v5025 = vpop.f32.mrb[0].mxu0
      %v5026 = vpop.f32.mrb[0].mxu0
      %5027 = vdwg.mxu0
      %v5028 = vadd.f32 %v4844, %v5022
      %v5029 = vadd.f32 %v4845, %v5024
      %s5030 = scalar_lea.vmem [#allocation4], 4
      %v5031 = vld [vmem:[%s5030] sm:$0x7]
      %v5033 = vsel %vm4298, %v5031, 0
      %5035 = vmatprep.subr.bf16.mxu0 0
      %5036 = vmatpush1.bf16.msra.mxu0 %v5033
      %5037 = vmatprep.subr.bf16.mxu0 0
      %5038 = vmatpush1.bf16.msra.mxu0 0
      %5039 = vmatprep.subr.bf16.mxu0 0
      %5040 = vmatpush1.bf16.msra.mxu0 0
      %5041 = vmatprep.subr.bf16.mxu0 0
      %5042 = vmatpush1.bf16.msra.mxu0 0
      %5043 = vmatprep.subr.bf16.mxu0 0
      %5044 = vmatpush1.bf16.msra.mxu0 0
      %5045 = vmatprep.subr.bf16.mxu0 0
      %5046 = vmatpush1.bf16.msra.mxu0 0
      %5047 = vmatprep.subr.bf16.mxu0 0
      %5048 = vmatpush1.bf16.msra.mxu0 0
      %5049 = vmatprep.subr.bf16.mxu0 0
      %5050 = vmatpush1.bf16.msra.mxu0 0
      %5051 = vmatprep.subr.bf16.mxu0 0
      %5052 = vmatpush1.bf16.msra.mxu0 0
      %5053 = vmatprep.subr.bf16.mxu0 0
      %5054 = vmatpush1.bf16.msra.mxu0 0
      %5055 = vmatprep.subr.bf16.mxu0 0
      %5056 = vmatpush1.bf16.msra.mxu0 0
      %5057 = vmatprep.subr.bf16.mxu0 0
      %5058 = vmatpush1.bf16.msra.mxu0 0
      %5059 = vmatprep.subr.bf16.mxu0 0
      %5060 = vmatpush1.bf16.msra.mxu0 0
      %5061 = vmatprep.subr.bf16.mxu0 0
      %5062 = vmatpush1.bf16.msra.mxu0 0
      %5063 = vmatprep.subr.bf16.mxu0 0
      %5064 = vmatpush1.bf16.msra.mxu0 0
      %5065 = vmatprep.subr.bf16.mxu0 0
      %5066 = vmatpush1.bf16.msra.mxu0 0
      %5067 = vmatprep.mubr.bf16.mxu0 0
      %5068 = vmatmul.mubr.bf16.gmra.mrb[0].mxu0 %v4296
      %v5069 = vpop.f32.mrb[0].mxu0
      %v5070 = vadd.f32 0.0, %v5069
      %v5071 = vpop.f32.mrb[0].mxu0
      %v5072 = vpop.f32.mrb[0].mxu0
      %v5073 = vpop.f32.mrb[0].mxu0
      %5074 = vdwg.mxu0
      %v5075 = vpack.c.bf16 %v5070, %v5070
      %s5076 = scalar_lea.vmem %s7, 512
      %v5077 = vld [vmem:[%s5076] sm:$0xff]
      %v5078 = vld [vmem:[%s5076 + $0x8] sm:$0xff]
      %v5079 = vld [vmem:[%s5076 + $0x10] sm:$0xff]
      %v5080 = vld [vmem:[%s5076 + $0x18] sm:$0xff]
      %v5081 = vld [vmem:[%s5076 + $0x20] sm:$0xff]
      %v5082 = vld [vmem:[%s5076 + $0x28] sm:$0xff]
      %v5083 = vld [vmem:[%s5076 + $0x30] sm:$0xff]
      %v5084 = vld [vmem:[%s5076 + $0x38] sm:$0xff]
      %v5085 = vld [vmem:[%s5076 + $0x40] sm:$0xff]
      %v5086 = vld [vmem:[%s5076 + $0x48] sm:$0xff]
      %v5087 = vld [vmem:[%s5076 + $0x50] sm:$0xff]
      %v5088 = vld [vmem:[%s5076 + $0x58] sm:$0xff]
      %v5089 = vld [vmem:[%s5076 + $0x60] sm:$0xff]
      %v5090 = vld [vmem:[%s5076 + $0x68] sm:$0xff]
      %v5091 = vld [vmem:[%s5076 + $0x70] sm:$0xff]
      %v5092 = vld [vmem:[%s5076 + $0x78] sm:$0xff]
      %v5109 = vunpack.c.l.b16 %v5077
      %v5110 = vunpack.c.h.b16 %v5077
      %v5111 = vunpack.c.l.b16 %v5078
      %v5112 = vunpack.c.h.b16 %v5078
      %v5113 = vunpack.c.l.b16 %v5079
      %v5114 = vunpack.c.h.b16 %v5079
      %v5115 = vunpack.c.l.b16 %v5080
      %v5116 = vunpack.c.h.b16 %v5080
      %v5117 = vunpack.c.l.b16 %v5081
      %v5118 = vunpack.c.h.b16 %v5081
      %v5119 = vunpack.c.l.b16 %v5082
      %v5120 = vunpack.c.h.b16 %v5082
      %v5121 = vunpack.c.l.b16 %v5083
      %v5122 = vunpack.c.h.b16 %v5083
      %v5123 = vunpack.c.l.b16 %v5084
      %v5124 = vunpack.c.h.b16 %v5084
      %v5125 = vunpack.c.l.b16 %v5085
      %v5126 = vunpack.c.h.b16 %v5085
      %v5127 = vunpack.c.l.b16 %v5086
      %v5128 = vunpack.c.h.b16 %v5086
      %v5129 = vunpack.c.l.b16 %v5087
      %v5130 = vunpack.c.h.b16 %v5087
      %v5131 = vunpack.c.l.b16 %v5088
      %v5132 = vunpack.c.h.b16 %v5088
      %v5133 = vunpack.c.l.b16 %v5089
      %v5134 = vunpack.c.h.b16 %v5089
      %v5135 = vunpack.c.l.b16 %v5090
      %v5136 = vunpack.c.h.b16 %v5090
      %v5137 = vunpack.c.l.b16 %v5091
      %v5138 = vunpack.c.h.b16 %v5091
      %v5139 = vunpack.c.l.b16 %v5092
      %v5140 = vunpack.c.h.b16 %v5092
      %v5141 = vpack.c.b16 %v5111, %v5109
      %v5142 = vpack.c.b16 %v5112, %v5110
      %v5143 = vpack.c.b16 %v5115, %v5113
      %v5144 = vpack.c.b16 %v5116, %v5114
      %v5145 = vpack.c.b16 %v5119, %v5117
      %v5146 = vpack.c.b16 %v5120, %v5118
      %v5147 = vpack.c.b16 %v5123, %v5121
      %v5148 = vpack.c.b16 %v5124, %v5122
      %v5149 = vpack.c.b16 %v5127, %v5125
      %v5150 = vpack.c.b16 %v5128, %v5126
      %v5151 = vpack.c.b16 %v5131, %v5129
      %v5152 = vpack.c.b16 %v5132, %v5130
      %v5153 = vpack.c.b16 %v5135, %v5133
      %v5154 = vpack.c.b16 %v5136, %v5134
      %v5155 = vpack.c.b16 %v5139, %v5137
      %v5156 = vpack.c.b16 %v5140, %v5138
      %5173 = vmatprep.subr.bf16.mxu0 %v5142
      %5174 = vmatpush1.bf16.msra.mxu0 %v5141
      %5175 = vmatprep.subr.bf16.mxu0 %v5144
      %5176 = vmatpush1.bf16.msra.mxu0 %v5143
      %5177 = vmatprep.subr.bf16.mxu0 %v5146
      %5178 = vmatpush1.bf16.msra.mxu0 %v5145
      %5179 = vmatprep.subr.bf16.mxu0 %v5148
      %5180 = vmatpush1.bf16.msra.mxu0 %v5147
      %5181 = vmatprep.subr.bf16.mxu0 %v5150
      %5182 = vmatpush1.bf16.msra.mxu0 %v5149
      %5183 = vmatprep.subr.bf16.mxu0 %v5152
      %5184 = vmatpush1.bf16.msra.mxu0 %v5151
      %5185 = vmatprep.subr.bf16.mxu0 %v5154
      %5186 = vmatpush1.bf16.msra.mxu0 %v5153
      %5187 = vmatprep.subr.bf16.mxu0 %v5156
      %5188 = vmatpush1.bf16.msra.mxu0 %v5155
      %5189 = vmatprep.subr.bf16.mxu0 0
      %5190 = vmatpush1.bf16.msra.mxu0 0
      %5191 = vmatprep.subr.bf16.mxu0 0
      %5192 = vmatpush1.bf16.msra.mxu0 0
      %5193 = vmatprep.subr.bf16.mxu0 0
      %5194 = vmatpush1.bf16.msra.mxu0 0
      %5195 = vmatprep.subr.bf16.mxu0 0
      %5196 = vmatpush1.bf16.msra.mxu0 0
      %5197 = vmatprep.subr.bf16.mxu0 0
      %5198 = vmatpush1.bf16.msra.mxu0 0
      %5199 = vmatprep.subr.bf16.mxu0 0
      %5200 = vmatpush1.bf16.msra.mxu0 0
      %5201 = vmatprep.subr.bf16.mxu0 0
      %5202 = vmatpush1.bf16.msra.mxu0 0
      %5203 = vmatprep.subr.bf16.mxu0 0
      %5204 = vmatpush1.bf16.msra.mxu0 0
      %5205 = vmatprep.mubr.bf16.mxu0 0
      %5206 = vmatmul.mubr.bf16.gmra.mrb[0].mxu0 %v5075
      %v5207 = vpop.f32.mrb[0].mxu0
      %v5208 = vadd.f32 0.0, %v5207
      %v5209 = vpop.f32.mrb[0].mxu0
      %v5210 = vadd.f32 0.0, %v5209
      %v5211 = vpop.f32.mrb[0].mxu0
      %v5212 = vpop.f32.mrb[0].mxu0
      %5213 = vdwg.mxu0
      %v5214 = vadd.f32 %v5028, %v5208
      %v5215 = vadd.f32 %v5029, %v5210
      %5216 = vmatprep.subr.bf16.mxu0 0
      %5217 = vmatpush1.bf16.msra.mxu0 %v5033
      %5218 = vmatprep.subr.bf16.mxu0 0
      %5219 = vmatpush1.bf16.msra.mxu0 0
      %5220 = vmatprep.subr.bf16.mxu0 0
      %5221 = vmatpush1.bf16.msra.mxu0 0
      %5222 = vmatprep.subr.bf16.mxu0 0
      %5223 = vmatpush1.bf16.msra.mxu0 0
      %5224 = vmatprep.subr.bf16.mxu0 0
      %5225 = vmatpush1.bf16.msra.mxu0 0
      %5226 = vmatprep.subr.bf16.mxu0 0
      %5227 = vmatpush1.bf16.msra.mxu0 0
      %5228 = vmatprep.subr.bf16.mxu0 0
      %5229 = vmatpush1.bf16.msra.mxu0 0
      %5230 = vmatprep.subr.bf16.mxu0 0
      %5231 = vmatpush1.bf16.msra.mxu0 0
      %5232 = vmatprep.subr.bf16.mxu0 0
      %5233 = vmatpush1.bf16.msra.mxu0 0
      %5234 = vmatprep.subr.bf16.mxu0 0
      %5235 = vmatpush1.bf16.msra.mxu0 0
      %5236 = vmatprep.subr.bf16.mxu0 0
      %5237 = vmatpush1.bf16.msra.mxu0 0
      %5238 = vmatprep.subr.bf16.mxu0 0
      %5239 = vmatpush1.bf16.msra.mxu0 0
      %5240 = vmatprep.subr.bf16.mxu0 0
      %5241 = vmatpush1.bf16.msra.mxu0 0
      %5242 = vmatprep.subr.bf16.mxu0 0
      %5243 = vmatpush1.bf16.msra.mxu0 0
      %5244 = vmatprep.subr.bf16.mxu0 0
      %5245 = vmatpush1.bf16.msra.mxu0 0
      %5246 = vmatprep.subr.bf16.mxu0 0
      %5247 = vmatpush1.bf16.msra.mxu0 0
      %5248 = vmatprep.mubr.bf16.mxu0 0
      %5249 = vmatmul.mubr.bf16.gmra.mrb[0].mxu0 %v4360
      %v5250 = vpop.f32.mrb[0].mxu0
      %v5251 = vadd.f32 0.0, %v5250
      %v5252 = vpop.f32.mrb[0].mxu0
      %v5253 = vpop.f32.mrb[0].mxu0
      %v5254 = vpop.f32.mrb[0].mxu0
      %5255 = vdwg.mxu0
      %v5256 = vpack.c.bf16 %v5251, %v5251
      %s5257 = scalar_lea.vmem %s7, 640
      %v5258 = vld [vmem:[%s5257] sm:$0xff]
      %v5259 = vld [vmem:[%s5257 + $0x8] sm:$0xff]
      %v5260 = vld [vmem:[%s5257 + $0x10] sm:$0xff]
      %v5261 = vld [vmem:[%s5257 + $0x18] sm:$0xff]
      %v5262 = vld [vmem:[%s5257 + $0x20] sm:$0xff]
      %v5263 = vld [vmem:[%s5257 + $0x28] sm:$0xff]
      %v5264 = vld [vmem:[%s5257 + $0x30] sm:$0xff]
      %v5265 = vld [vmem:[%s5257 + $0x38] sm:$0xff]
      %v5266 = vld [vmem:[%s5257 + $0x40] sm:$0xff]
      %v5267 = vld [vmem:[%s5257 + $0x48] sm:$0xff]
      %v5268 = vld [vmem:[%s5257 + $0x50] sm:$0xff]
      %v5269 = vld [vmem:[%s5257 + $0x58] sm:$0xff]
      %v5270 = vld [vmem:[%s5257 + $0x60] sm:$0xff]
      %v5271 = vld [vmem:[%s5257 + $0x68] sm:$0xff]
      %v5272 = vld [vmem:[%s5257 + $0x70] sm:$0xff]
      %v5273 = vld [vmem:[%s5257 + $0x78] sm:$0xff]
      %v5290 = vunpack.c.l.b16 %v5258
      %v5291 = vunpack.c.h.b16 %v5258
      %v5292 = vunpack.c.l.b16 %v5259
      %v5293 = vunpack.c.h.b16 %v5259
      %v5294 = vunpack.c.l.b16 %v5260
      %v5295 = vunpack.c.h.b16 %v5260
      %v5296 = vunpack.c.l.b16 %v5261
      %v5297 = vunpack.c.h.b16 %v5261
      %v5298 = vunpack.c.l.b16 %v5262
      %v5299 = vunpack.c.h.b16 %v5262
      %v5300 = vunpack.c.l.b16 %v5263
      %v5301 = vunpack.c.h.b16 %v5263
      %v5302 = vunpack.c.l.b16 %v5264
      %v5303 = vunpack.c.h.b16 %v5264
      %v5304 = vunpack.c.l.b16 %v5265
      %v5305 = vunpack.c.h.b16 %v5265
      %v5306 = vunpack.c.l.b16 %v5266
      %v5307 = vunpack.c.h.b16 %v5266
      %v5308 = vunpack.c.l.b16 %v5267
      %v5309 = vunpack.c.h.b16 %v5267
      %v5310 = vunpack.c.l.b16 %v5268
      %v5311 = vunpack.c.h.b16 %v5268
      %v5312 = vunpack.c.l.b16 %v5269
      %v5313 = vunpack.c.h.b16 %v5269
      %v5314 = vunpack.c.l.b16 %v5270
      %v5315 = vunpack.c.h.b16 %v5270
      %v5316 = vunpack.c.l.b16 %v5271
      %v5317 = vunpack.c.h.b16 %v5271
      %v5318 = vunpack.c.l.b16 %v5272
      %v5319 = vunpack.c.h.b16 %v5272
      %v5320 = vunpack.c.l.b16 %v5273
      %v5321 = vunpack.c.h.b16 %v5273
      %v5322 = vpack.c.b16 %v5292, %v5290
      %v5323 = vpack.c.b16 %v5293, %v5291
      %v5324 = vpack.c.b16 %v5296, %v5294
      %v5325 = vpack.c.b16 %v5297, %v5295
      %v5326 = vpack.c.b16 %v5300, %v5298
      %v5327 = vpack.c.b16 %v5301, %v5299
      %v5328 = vpack.c.b16 %v5304, %v5302
      %v5329 = vpack.c.b16 %v5305, %v5303
      %v5330 = vpack.c.b16 %v5308, %v5306
      %v5331 = vpack.c.b16 %v5309, %v5307
      %v5332 = vpack.c.b16 %v5312, %v5310
      %v5333 = vpack.c.b16 %v5313, %v5311
      %v5334 = vpack.c.b16 %v5316, %v5314
      %v5335 = vpack.c.b16 %v5317, %v5315
      %v5336 = vpack.c.b16 %v5320, %v5318
      %v5337 = vpack.c.b16 %v5321, %v5319
      %5354 = vmatprep.subr.bf16.mxu0 %v5323
      %5355 = vmatpush1.bf16.msra.mxu0 %v5322
      %5356 = vmatprep.subr.bf16.mxu0 %v5325
      %5357 = vmatpush1.bf16.msra.mxu0 %v5324
      %5358 = vmatprep.subr.bf16.mxu0 %v5327
      %5359 = vmatpush1.bf16.msra.mxu0 %v5326
      %5360 = vmatprep.subr.bf16.mxu0 %v5329
      %5361 = vmatpush1.bf16.msra.mxu0 %v5328
      %5362 = vmatprep.subr.bf16.mxu0 %v5331
      %5363 = vmatpush1.bf16.msra.mxu0 %v5330
      %5364 = vmatprep.subr.bf16.mxu0 %v5333
      %5365 = vmatpush1.bf16.msra.mxu0 %v5332
      %5366 = vmatprep.subr.bf16.mxu0 %v5335
      %5367 = vmatpush1.bf16.msra.mxu0 %v5334
      %5368 = vmatprep.subr.bf16.mxu0 %v5337
      %5369 = vmatpush1.bf16.msra.mxu0 %v5336
      %5370 = vmatprep.subr.bf16.mxu0 0
      %5371 = vmatpush1.bf16.msra.mxu0 0
      %5372 = vmatprep.subr.bf16.mxu0 0
      %5373 = vmatpush1.bf16.msra.mxu0 0
      %5374 = vmatprep.subr.bf16.mxu0 0
      %5375 = vmatpush1.bf16.msra.mxu0 0
      %5376 = vmatprep.subr.bf16.mxu0 0
      %5377 = vmatpush1.bf16.msra.mxu0 0
      %5378 = vmatprep.subr.bf16.mxu0 0
      %5379 = vmatpush1.bf16.msra.mxu0 0
      %5380 = vmatprep.subr.bf16.mxu0 0
      %5381 = vmatpush1.bf16.msra.mxu0 0
      %5382 = vmatprep.subr.bf16.mxu0 0
      %5383 = vmatpush1.bf16.msra.mxu0 0
      %5384 = vmatprep.subr.bf16.mxu0 0
      %5385 = vmatpush1.bf16.msra.mxu0 0
      %5386 = vmatprep.mubr.bf16.mxu0 0
      %5387 = vmatmul.mubr.bf16.gmra.mrb[0].mxu0 %v5256
      %v5388 = vpop.f32.mrb[0].mxu0
      %v5389 = vadd.f32 0.0, %v5388
      %v5390 = vpop.f32.mrb[0].mxu0
      %v5391 = vadd.f32 0.0, %v5390
      %v5392 = vpop.f32.mrb[0].mxu0
      %v5393 = vpop.f32.mrb[0].mxu0
      %5394 = vdwg.mxu0
      %v5395 = vadd.f32 %v5214, %v5389
      %v5396 = vadd.f32 %v5215, %v5391
      %5397 = vmatprep.subr.bf16.mxu0 0
      %5398 = vmatpush1.bf16.msra.mxu0 %v5033
      %5399 = vmatprep.subr.bf16.mxu0 0
      %5400 = vmatpush1.bf16.msra.mxu0 0
      %5401 = vmatprep.subr.bf16.mxu0 0
      %5402 = vmatpush1.bf16.msra.mxu0 0
      %5403 = vmatprep.subr.bf16.mxu0 0
      %5404 = vmatpush1.bf16.msra.mxu0 0
      %5405 = vmatprep.subr.bf16.mxu0 0
      %5406 = vmatpush1.bf16.msra.mxu0 0
      %5407 = vmatprep.subr.bf16.mxu0 0
      %5408 = vmatpush1.bf16.msra.mxu0 0
      %5409 = vmatprep.subr.bf16.mxu0 0
      %5410 = vmatpush1.bf16.msra.mxu0 0
      %5411 = vmatprep.subr.bf16.mxu0 0
      %5412 = vmatpush1.bf16.msra.mxu0 0
      %5413 = vmatprep.subr.bf16.mxu0 0
      %5414 = vmatpush1.bf16.msra.mxu0 0
      %5415 = vmatprep.subr.bf16.mxu0 0
      %5416 = vmatpush1.bf16.msra.mxu0 0
      %5417 = vmatprep.subr.bf16.mxu0 0
      %5418 = vmatpush1.bf16.msra.mxu0 0
      %5419 = vmatprep.subr.bf16.mxu0 0
      %5420 = vmatpush1.bf16.msra.mxu0 0
      %5421 = vmatprep.subr.bf16.mxu0 0
      %5422 = vmatpush1.bf16.msra.mxu0 0
      %5423 = vmatprep.subr.bf16.mxu0 0
      %5424 = vmatpush1.bf16.msra.mxu0 0
      %5425 = vmatprep.subr.bf16.mxu0 0
      %5426 = vmatpush1.bf16.msra.mxu0 0
      %5427 = vmatprep.subr.bf16.mxu0 0
      %5428 = vmatpush1.bf16.msra.mxu0 0
      %5429 = vmatprep.mubr.bf16.mxu0 0
      %5430 = vmatmul.mubr.bf16.gmra.mrb[0].mxu0 %v4663
      %v5431 = vpop.f32.mrb[0].mxu0
      %v5432 = vadd.f32 0.0, %v5431
      %v5433 = vpop.f32.mrb[0].mxu0
      %v5434 = vpop.f32.mrb[0].mxu0
      %v5435 = vpop.f32.mrb[0].mxu0
      %5436 = vdwg.mxu0
      %v5437 = vpack.c.bf16 %v5432, %v5432
      %s5438 = scalar_lea.vmem %s7, 768
      %v5439 = vld [vmem:[%s5438] sm:$0xff]
      %v5440 = vld [vmem:[%s5438 + $0x8] sm:$0xff]
      %v5441 = vld [vmem:[%s5438 + $0x10] sm:$0xff]
      %v5442 = vld [vmem:[%s5438 + $0x18] sm:$0xff]
      %v5443 = vld [vmem:[%s5438 + $0x20] sm:$0xff]
      %v5444 = vld [vmem:[%s5438 + $0x28] sm:$0xff]
      %v5445 = vld [vmem:[%s5438 + $0x30] sm:$0xff]
      %v5446 = vld [vmem:[%s5438 + $0x38] sm:$0xff]
      %v5447 = vld [vmem:[%s5438 + $0x40] sm:$0xff]
      %v5448 = vld [vmem:[%s5438 + $0x48] sm:$0xff]
      %v5449 = vld [vmem:[%s5438 + $0x50] sm:$0xff]
      %v5450 = vld [vmem:[%s5438 + $0x58] sm:$0xff]
      %v5451 = vld [vmem:[%s5438 + $0x60] sm:$0xff]
      %v5452 = vld [vmem:[%s5438 + $0x68] sm:$0xff]
      %v5453 = vld [vmem:[%s5438 + $0x70] sm:$0xff]
      %v5454 = vld [vmem:[%s5438 + $0x78] sm:$0xff]
      %v5471 = vunpack.c.l.b16 %v5439
      %v5472 = vunpack.c.h.b16 %v5439
      %v5473 = vunpack.c.l.b16 %v5440
      %v5474 = vunpack.c.h.b16 %v5440
      %v5475 = vunpack.c.l.b16 %v5441
      %v5476 = vunpack.c.h.b16 %v5441
      %v5477 = vunpack.c.l.b16 %v5442
      %v5478 = vunpack.c.h.b16 %v5442
      %v5479 = vunpack.c.l.b16 %v5443
      %v5480 = vunpack.c.h.b16 %v5443
      %v5481 = vunpack.c.l.b16 %v5444
      %v5482 = vunpack.c.h.b16 %v5444
      %v5483 = vunpack.c.l.b16 %v5445
      %v5484 = vunpack.c.h.b16 %v5445
      %v5485 = vunpack.c.l.b16 %v5446
      %v5486 = vunpack.c.h.b16 %v5446
      %v5487 = vunpack.c.l.b16 %v5447
      %v5488 = vunpack.c.h.b16 %v5447
      %v5489 = vunpack.c.l.b16 %v5448
      %v5490 = vunpack.c.h.b16 %v5448
      %v5491 = vunpack.c.l.b16 %v5449
      %v5492 = vunpack.c.h.b16 %v5449
      %v5493 = vunpack.c.l.b16 %v5450
      %v5494 = vunpack.c.h.b16 %v5450
      %v5495 = vunpack.c.l.b16 %v5451
      %v5496 = vunpack.c.h.b16 %v5451
      %v5497 = vunpack.c.l.b16 %v5452
      %v5498 = vunpack.c.h.b16 %v5452
      %v5499 = vunpack.c.l.b16 %v5453
      %v5500 = vunpack.c.h.b16 %v5453
      %v5501 = vunpack.c.l.b16 %v5454
      %v5502 = vunpack.c.h.b16 %v5454
      %v5503 = vpack.c.b16 %v5473, %v5471
      %v5504 = vpack.c.b16 %v5474, %v5472
      %v5505 = vpack.c.b16 %v5477, %v5475
      %v5506 = vpack.c.b16 %v5478, %v5476
      %v5507 = vpack.c.b16 %v5481, %v5479
      %v5508 = vpack.c.b16 %v5482, %v5480
      %v5509 = vpack.c.b16 %v5485, %v5483
      %v5510 = vpack.c.b16 %v5486, %v5484
      %v5511 = vpack.c.b16 %v5489, %v5487
      %v5512 = vpack.c.b16 %v5490, %v5488
      %v5513 = vpack.c.b16 %v5493, %v5491
      %v5514 = vpack.c.b16 %v5494, %v5492
      %v5515 = vpack.c.b16 %v5497, %v5495
      %v5516 = vpack.c.b16 %v5498, %v5496
      %v5517 = vpack.c.b16 %v5501, %v5499
      %v5518 = vpack.c.b16 %v5502, %v5500
      %5535 = vmatprep.subr.bf16.mxu0 %v5504
      %5536 = vmatpush1.bf16.msra.mxu0 %v5503
      %5537 = vmatprep.subr.bf16.mxu0 %v5506
      %5538 = vmatpush1.bf16.msra.mxu0 %v5505
      %5539 = vmatprep.subr.bf16.mxu0 %v5508
      %5540 = vmatpush1.bf16.msra.mxu0 %v5507
      %5541 = vmatprep.subr.bf16.mxu0 %v5510
      %5542 = vmatpush1.bf16.msra.mxu0 %v5509
      %5543 = vmatprep.subr.bf16.mxu0 %v5512
      %5544 = vmatpush1.bf16.msra.mxu0 %v5511
      %5545 = vmatprep.subr.bf16.mxu0 %v5514
      %5546 = vmatpush1.bf16.msra.mxu0 %v5513
      %5547 = vmatprep.subr.bf16.mxu0 %v5516
      %5548 = vmatpush1.bf16.msra.mxu0 %v5515
      %5549 = vmatprep.subr.bf16.mxu0 %v5518
      %5550 = vmatpush1.bf16.msra.mxu0 %v5517
      %5551 = vmatprep.subr.bf16.mxu0 0
      %5552 = vmatpush1.bf16.msra.mxu0 0
      %5553 = vmatprep.subr.bf16.mxu0 0
      %5554 = vmatpush1.bf16.msra.mxu0 0
      %5555 = vmatprep.subr.bf16.mxu0 0
      %5556 = vmatpush1.bf16.msra.mxu0 0
      %5557 = vmatprep.subr.bf16.mxu0 0
      %5558 = vmatpush1.bf16.msra.mxu0 0
      %5559 = vmatprep.subr.bf16.mxu0 0
      %5560 = vmatpush1.bf16.msra.mxu0 0
      %5561 = vmatprep.subr.bf16.mxu0 0
      %5562 = vmatpush1.bf16.msra.mxu0 0
      %5563 = vmatprep.subr.bf16.mxu0 0
      %5564 = vmatpush1.bf16.msra.mxu0 0
      %5565 = vmatprep.subr.bf16.mxu0 0
      %5566 = vmatpush1.bf16.msra.mxu0 0
      %5567 = vmatprep.mubr.bf16.mxu0 0
      %5568 = vmatmul.mubr.bf16.gmra.mrb[0].mxu0 %v5437
      %v5569 = vpop.f32.mrb[0].mxu0
      %v5570 = vadd.f32 0.0, %v5569
      %v5571 = vpop.f32.mrb[0].mxu0
      %v5572 = vadd.f32 0.0, %v5571
      %v5573 = vpop.f32.mrb[0].mxu0
      %v5574 = vpop.f32.mrb[0].mxu0
      %5575 = vdwg.mxu0
      %v5576 = vadd.f32 %v5395, %v5570
      %v5577 = vadd.f32 %v5396, %v5572
      %5578 = vmatprep.subr.bf16.mxu0 0
      %5579 = vmatpush1.bf16.msra.mxu0 %v5033
      %5580 = vmatprep.subr.bf16.mxu0 0
      %5581 = vmatpush1.bf16.msra.mxu0 0
      %5582 = vmatprep.subr.bf16.mxu0 0
      %5583 = vmatpush1.bf16.msra.mxu0 0
      %5584 = vmatprep.subr.bf16.mxu0 0
      %5585 = vmatpush1.bf16.msra.mxu0 0
      %5586 = vmatprep.subr.bf16.mxu0 0
      %5587 = vmatpush1.bf16.msra.mxu0 0
      %5588 = vmatprep.subr.bf16.mxu0 0
      %5589 = vmatpush1.bf16.msra.mxu0 0
      %5590 = vmatprep.subr.bf16.mxu0 0
      %5591 = vmatpush1.bf16.msra.mxu0 0
      %5592 = vmatprep.subr.bf16.mxu0 0
      %5593 = vmatpush1.bf16.msra.mxu0 0
      %5594 = vmatprep.subr.bf16.mxu0 0
      %5595 = vmatpush1.bf16.msra.mxu0 0
      %5596 = vmatprep.subr.bf16.mxu0 0
      %5597 = vmatpush1.bf16.msra.mxu0 0
      %5598 = vmatprep.subr.bf16.mxu0 0
      %5599 = vmatpush1.bf16.msra.mxu0 0
      %5600 = vmatprep.subr.bf16.mxu0 0
      %5601 = vmatpush1.bf16.msra.mxu0 0
      %5602 = vmatprep.subr.bf16.mxu0 0
      %5603 = vmatpush1.bf16.msra.mxu0 0
      %5604 = vmatprep.subr.bf16.mxu0 0
      %5605 = vmatpush1.bf16.msra.mxu0 0
      %5606 = vmatprep.subr.bf16.mxu0 0
      %5607 = vmatpush1.bf16.msra.mxu0 0
      %5608 = vmatprep.subr.bf16.mxu0 0
      %5609 = vmatpush1.bf16.msra.mxu0 0
      %5610 = vmatprep.mubr.bf16.mxu0 0
      %5611 = vmatmul.mubr.bf16.gmra.mrb[0].mxu0 %v4847
      %v5612 = vpop.f32.mrb[0].mxu0
      %v5613 = vadd.f32 0.0, %v5612
      %v5614 = vpop.f32.mrb[0].mxu0
      %v5615 = vpop.f32.mrb[0].mxu0
      %v5616 = vpop.f32.mrb[0].mxu0
      %5617 = vdwg.mxu0
      %v5618 = vpack.c.bf16 %v5613, %v5613
      %s5619 = scalar_lea.vmem %s7, 896
      %v5620 = vld [vmem:[%s5619] sm:$0xff]
      %v5621 = vld [vmem:[%s5619 + $0x8] sm:$0xff]
      %v5622 = vld [vmem:[%s5619 + $0x10] sm:$0xff]
      %v5623 = vld [vmem:[%s5619 + $0x18] sm:$0xff]
      %v5624 = vld [vmem:[%s5619 + $0x20] sm:$0xff]
      %v5625 = vld [vmem:[%s5619 + $0x28] sm:$0xff]
      %v5626 = vld [vmem:[%s5619 + $0x30] sm:$0xff]
      %v5627 = vld [vmem:[%s5619 + $0x38] sm:$0xff]
      %v5628 = vld [vmem:[%s5619 + $0x40] sm:$0xff]
      %v5629 = vld [vmem:[%s5619 + $0x48] sm:$0xff]
      %v5630 = vld [vmem:[%s5619 + $0x50] sm:$0xff]
      %v5631 = vld [vmem:[%s5619 + $0x58] sm:$0xff]
      %v5632 = vld [vmem:[%s5619 + $0x60] sm:$0xff]
      %v5633 = vld [vmem:[%s5619 + $0x68] sm:$0xff]
      %v5634 = vld [vmem:[%s5619 + $0x70] sm:$0xff]
      %v5635 = vld [vmem:[%s5619 + $0x78] sm:$0xff]
      %v5652 = vunpack.c.l.b16 %v5620
      %v5653 = vunpack.c.h.b16 %v5620
      %v5654 = vunpack.c.l.b16 %v5621
      %v5655 = vunpack.c.h.b16 %v5621
      %v5656 = vunpack.c.l.b16 %v5622
      %v5657 = vunpack.c.h.b16 %v5622
      %v5658 = vunpack.c.l.b16 %v5623
      %v5659 = vunpack.c.h.b16 %v5623
      %v5660 = vunpack.c.l.b16 %v5624
      %v5661 = vunpack.c.h.b16 %v5624
      %v5662 = vunpack.c.l.b16 %v5625
      %v5663 = vunpack.c.h.b16 %v5625
      %v5664 = vunpack.c.l.b16 %v5626
      %v5665 = vunpack.c.h.b16 %v5626
      %v5666 = vunpack.c.l.b16 %v5627
      %v5667 = vunpack.c.h.b16 %v5627
      %v5668 = vunpack.c.l.b16 %v5628
      %v5669 = vunpack.c.h.b16 %v5628
      %v5670 = vunpack.c.l.b16 %v5629
      %v5671 = vunpack.c.h.b16 %v5629
      %v5672 = vunpack.c.l.b16 %v5630
      %v5673 = vunpack.c.h.b16 %v5630
      %v5674 = vunpack.c.l.b16 %v5631
      %v5675 = vunpack.c.h.b16 %v5631
      %v5676 = vunpack.c.l.b16 %v5632
      %v5677 = vunpack.c.h.b16 %v5632
      %v5678 = vunpack.c.l.b16 %v5633
      %v5679 = vunpack.c.h.b16 %v5633
      %v5680 = vunpack.c.l.b16 %v5634
      %v5681 = vunpack.c.h.b16 %v5634
      %v5682 = vunpack.c.l.b16 %v5635
      %v5683 = vunpack.c.h.b16 %v5635
      %v5684 = vpack.c.b16 %v5654, %v5652
      %v5685 = vpack.c.b16 %v5655, %v5653
      %v5686 = vpack.c.b16 %v5658, %v5656
      %v5687 = vpack.c.b16 %v5659, %v5657
      %v5688 = vpack.c.b16 %v5662, %v5660
      %v5689 = vpack.c.b16 %v5663, %v5661
      %v5690 = vpack.c.b16 %v5666, %v5664
      %v5691 = vpack.c.b16 %v5667, %v5665
      %v5692 = vpack.c.b16 %v5670, %v5668
      %v5693 = vpack.c.b16 %v5671, %v5669
      %v5694 = vpack.c.b16 %v5674, %v5672
      %v5695 = vpack.c.b16 %v5675, %v5673
      %v5696 = vpack.c.b16 %v5678, %v5676
      %v5697 = vpack.c.b16 %v5679, %v5677
      %v5698 = vpack.c.b16 %v5682, %v5680
      %v5699 = vpack.c.b16 %v5683, %v5681
      %5716 = vmatprep.subr.bf16.mxu0 %v5685
      %5717 = vmatpush1.bf16.msra.mxu0 %v5684
      %5718 = vmatprep.subr.bf16.mxu0 %v5687
      %5719 = vmatpush1.bf16.msra.mxu0 %v5686
      %5720 = vmatprep.subr.bf16.mxu0 %v5689
      %5721 = vmatpush1.bf16.msra.mxu0 %v5688
      %5722 = vmatprep.subr.bf16.mxu0 %v5691
      %5723 = vmatpush1.bf16.msra.mxu0 %v5690
      %5724 = vmatprep.subr.bf16.mxu0 %v5693
      %5725 = vmatpush1.bf16.msra.mxu0 %v5692
      %5726 = vmatprep.subr.bf16.mxu0 %v5695
      %5727 = vmatpush1.bf16.msra.mxu0 %v5694
      %5728 = vmatprep.subr.bf16.mxu0 %v5697
      %5729 = vmatpush1.bf16.msra.mxu0 %v5696
      %5730 = vmatprep.subr.bf16.mxu0 %v5699
      %5731 = vmatpush1.bf16.msra.mxu0 %v5698
      %5732 = vmatprep.subr.bf16.mxu0 0
      %5733 = vmatpush1.bf16.msra.mxu0 0
      %5734 = vmatprep.subr.bf16.mxu0 0
      %5735 = vmatpush1.bf16.msra.mxu0 0
      %5736 = vmatprep.subr.bf16.mxu0 0
      %5737 = vmatpush1.bf16.msra.mxu0 0
      %5738 = vmatprep.subr.bf16.mxu0 0
      %5739 = vmatpush1.bf16.msra.mxu0 0
      %5740 = vmatprep.subr.bf16.mxu0 0
      %5741 = vmatpush1.bf16.msra.mxu0 0
      %5742 = vmatprep.subr.bf16.mxu0 0
      %5743 = vmatpush1.bf16.msra.mxu0 0
      %5744 = vmatprep.subr.bf16.mxu0 0
      %5745 = vmatpush1.bf16.msra.mxu0 0
      %5746 = vmatprep.subr.bf16.mxu0 0
      %5747 = vmatpush1.bf16.msra.mxu0 0
      %5748 = vmatprep.mubr.bf16.mxu0 0
      %5749 = vmatmul.mubr.bf16.gmra.mrb[0].mxu0 %v5618
      %v5750 = vpop.f32.mrb[0].mxu0
      %v5751 = vadd.f32 0.0, %v5750
      %v5752 = vpop.f32.mrb[0].mxu0
      %v5753 = vadd.f32 0.0, %v5752
      %v5754 = vpop.f32.mrb[0].mxu0
      %v5755 = vpop.f32.mrb[0].mxu0
      %5756 = vdwg.mxu0
      %v5757 = vadd.f32 %v5576, %v5751
      %v5758 = vadd.f32 %v5577, %v5753
      %s5759 = scalar_lea.vmem [#allocation4], 8
      %v5760 = vld [vmem:[%s5759] sm:$0x7]
      %v5762 = vsel %vm4298, %v5760, 0
      %5764 = vmatprep.subr.bf16.mxu0 0
      %5765 = vmatpush1.bf16.msra.mxu0 %v5762
      %5766 = vmatprep.subr.bf16.mxu0 0
      %5767 = vmatpush1.bf16.msra.mxu0 0
      %5768 = vmatprep.subr.bf16.mxu0 0
      %5769 = vmatpush1.bf16.msra.mxu0 0
      %5770 = vmatprep.subr.bf16.mxu0 0
      %5771 = vmatpush1.bf16.msra.mxu0 0
      %5772 = vmatprep.subr.bf16.mxu0 0
      %5773 = vmatpush1.bf16.msra.mxu0 0
      %5774 = vmatprep.subr.bf16.mxu0 0
      %5775 = vmatpush1.bf16.msra.mxu0 0
      %5776 = vmatprep.subr.bf16.mxu0 0
      %5777 = vmatpush1.bf16.msra.mxu0 0
      %5778 = vmatprep.subr.bf16.mxu0 0
      %5779 = vmatpush1.bf16.msra.mxu0 0
      %5780 = vmatprep.subr.bf16.mxu0 0
      %5781 = vmatpush1.bf16.msra.mxu0 0
      %5782 = vmatprep.subr.bf16.mxu0 0
      %5783 = vmatpush1.bf16.msra.mxu0 0
      %5784 = vmatprep.subr.bf16.mxu0 0
      %5785 = vmatpush1.bf16.msra.mxu0 0
      %5786 = vmatprep.subr.bf16.mxu0 0
      %5787 = vmatpush1.bf16.msra.mxu0 0
      %5788 = vmatprep.subr.bf16.mxu0 0
      %5789 = vmatpush1.bf16.msra.mxu0 0
      %5790 = vmatprep.subr.bf16.mxu0 0
      %5791 = vmatpush1.bf16.msra.mxu0 0
      %5792 = vmatprep.subr.bf16.mxu0 0
      %5793 = vmatpush1.bf16.msra.mxu0 0
      %5794 = vmatprep.subr.bf16.mxu0 0
      %5795 = vmatpush1.bf16.msra.mxu0 0
      %5796 = vmatprep.mubr.bf16.mxu0 0
      %5797 = vmatmul.mubr.bf16.gmra.mrb[0].mxu0 %v4296
      %v5798 = vpop.f32.mrb[0].mxu0
      %v5799 = vadd.f32 0.0, %v5798
      %v5800 = vpop.f32.mrb[0].mxu0
      %v5801 = vpop.f32.mrb[0].mxu0
      %v5802 = vpop.f32.mrb[0].mxu0
      %5803 = vdwg.mxu0
      %v5804 = vpack.c.bf16 %v5799, %v5799
      %s5805 = scalar_lea.vmem %s7, 1024
      %v5806 = vld [vmem:[%s5805] sm:$0xff]
      %v5807 = vld [vmem:[%s5805 + $0x8] sm:$0xff]
      %v5808 = vld [vmem:[%s5805 + $0x10] sm:$0xff]
      %v5809 = vld [vmem:[%s5805 + $0x18] sm:$0xff]
      %v5810 = vld [vmem:[%s5805 + $0x20] sm:$0xff]
      %v5811 = vld [vmem:[%s5805 + $0x28] sm:$0xff]
      %v5812 = vld [vmem:[%s5805 + $0x30] sm:$0xff]
      %v5813 = vld [vmem:[%s5805 + $0x38] sm:$0xff]
      %v5814 = vld [vmem:[%s5805 + $0x40] sm:$0xff]
      %v5815 = vld [vmem:[%s5805 + $0x48] sm:$0xff]
      %v5816 = vld [vmem:[%s5805 + $0x50] sm:$0xff]
      %v5817 = vld [vmem:[%s5805 + $0x58] sm:$0xff]
      %v5818 = vld [vmem:[%s5805 + $0x60] sm:$0xff]
      %v5819 = vld [vmem:[%s5805 + $0x68] sm:$0xff]
      %v5820 = vld [vmem:[%s5805 + $0x70] sm:$0xff]
      %v5821 = vld [vmem:[%s5805 + $0x78] sm:$0xff]
      %v5838 = vunpack.c.l.b16 %v5806
      %v5839 = vunpack.c.h.b16 %v5806
      %v5840 = vunpack.c.l.b16 %v5807
      %v5841 = vunpack.c.h.b16 %v5807
      %v5842 = vunpack.c.l.b16 %v5808
      %v5843 = vunpack.c.h.b16 %v5808
      %v5844 = vunpack.c.l.b16 %v5809
      %v5845 = vunpack.c.h.b16 %v5809
      %v5846 = vunpack.c.l.b16 %v5810
      %v5847 = vunpack.c.h.b16 %v5810
      %v5848 = vunpack.c.l.b16 %v5811
      %v5849 = vunpack.c.h.b16 %v5811
      %v5850 = vunpack.c.l.b16 %v5812
      %v5851 = vunpack.c.h.b16 %v5812
      %v5852 = vunpack.c.l.b16 %v5813
      %v5853 = vunpack.c.h.b16 %v5813
      %v5854 = vunpack.c.l.b16 %v5814
      %v5855 = vunpack.c.h.b16 %v5814
      %v5856 = vunpack.c.l.b16 %v5815
      %v5857 = vunpack.c.h.b16 %v5815
      %v5858 = vunpack.c.l.b16 %v5816
      %v5859 = vunpack.c.h.b16 %v5816
      %v5860 = vunpack.c.l.b16 %v5817
      %v5861 = vunpack.c.h.b16 %v5817
      %v5862 = vunpack.c.l.b16 %v5818
      %v5863 = vunpack.c.h.b16 %v5818
      %v5864 = vunpack.c.l.b16 %v5819
      %v5865 = vunpack.c.h.b16 %v5819
      %v5866 = vunpack.c.l.b16 %v5820
      %v5867 = vunpack.c.h.b16 %v5820
      %v5868 = vunpack.c.l.b16 %v5821
      %v5869 = vunpack.c.h.b16 %v5821
      %v5870 = vpack.c.b16 %v5840, %v5838
      %v5871 = vpack.c.b16 %v5841, %v5839
      %v5872 = vpack.c.b16 %v5844, %v5842
      %v5873 = vpack.c.b16 %v5845, %v5843
      %v5874 = vpack.c.b16 %v5848, %v5846
      %v5875 = vpack.c.b16 %v5849, %v5847
      %v5876 = vpack.c.b16 %v5852, %v5850
      %v5877 = vpack.c.b16 %v5853, %v5851
      %v5878 = vpack.c.b16 %v5856, %v5854
      %v5879 = vpack.c.b16 %v5857, %v5855
      %v5880 = vpack.c.b16 %v5860, %v5858
      %v5881 = vpack.c.b16 %v5861, %v5859
      %v5882 = vpack.c.b16 %v5864, %v5862
      %v5883 = vpack.c.b16 %v5865, %v5863
      %v5884 = vpack.c.b16 %v5868, %v5866
      %v5885 = vpack.c.b16 %v5869, %v5867
      %5902 = vmatprep.subr.bf16.mxu0 %v5871
      %5903 = vmatpush1.bf16.msra.mxu0 %v5870
      %5904 = vmatprep.subr.bf16.mxu0 %v5873
      %5905 = vmatpush1.bf16.msra.mxu0 %v5872
      %5906 = vmatprep.subr.bf16.mxu0 %v5875
      %5907 = vmatpush1.bf16.msra.mxu0 %v5874
      %5908 = vmatprep.subr.bf16.mxu0 %v5877
      %5909 = vmatpush1.bf16.msra.mxu0 %v5876
      %5910 = vmatprep.subr.bf16.mxu0 %v5879
      %5911 = vmatpush1.bf16.msra.mxu0 %v5878
      %5912 = vmatprep.subr.bf16.mxu0 %v5881
      %5913 = vmatpush1.bf16.msra.mxu0 %v5880
      %5914 = vmatprep.subr.bf16.mxu0 %v5883
      %5915 = vmatpush1.bf16.msra.mxu0 %v5882
      %5916 = vmatprep.subr.bf16.mxu0 %v5885
      %5917 = vmatpush1.bf16.msra.mxu0 %v5884
      %5918 = vmatprep.subr.bf16.mxu0 0
      %5919 = vmatpush1.bf16.msra.mxu0 0
      %5920 = vmatprep.subr.bf16.mxu0 0
      %5921 = vmatpush1.bf16.msra.mxu0 0
      %5922 = vmatprep.subr.bf16.mxu0 0
      %5923 = vmatpush1.bf16.msra.mxu0 0
      %5924 = vmatprep.subr.bf16.mxu0 0
      %5925 = vmatpush1.bf16.msra.mxu0 0
      %5926 = vmatprep.subr.bf16.mxu0 0
      %5927 = vmatpush1.bf16.msra.mxu0 0
      %5928 = vmatprep.subr.bf16.mxu0 0
      %5929 = vmatpush1.bf16.msra.mxu0 0
      %5930 = vmatprep.subr.bf16.mxu0 0
      %5931 = vmatpush1.bf16.msra.mxu0 0
      %5932 = vmatprep.subr.bf16.mxu0 0
      %5933 = vmatpush1.bf16.msra.mxu0 0
      %5934 = vmatprep.mubr.bf16.mxu0 0
      %5935 = vmatmul.mubr.bf16.gmra.mrb[0].mxu0 %v5804
      %v5936 = vpop.f32.mrb[0].mxu0
      %v5937 = vadd.f32 0.0, %v5936
      %v5938 = vpop.f32.mrb[0].mxu0
      %v5939 = vadd.f32 0.0, %v5938
      %v5940 = vpop.f32.mrb[0].mxu0
      %v5941 = vpop.f32.mrb[0].mxu0
      %5942 = vdwg.mxu0
      %v5943 = vadd.f32 %v5757, %v5937
      %v5944 = vadd.f32 %v5758, %v5939
      %5945 = vmatprep.subr.bf16.mxu0 0
      %5946 = vmatpush1.bf16.msra.mxu0 %v5762
      %5947 = vmatprep.subr.bf16.mxu0 0
      %5948 = vmatpush1.bf16.msra.mxu0 0
      %5949 = vmatprep.subr.bf16.mxu0 0
      %5950 = vmatpush1.bf16.msra.mxu0 0
      %5951 = vmatprep.subr.bf16.mxu0 0
      %5952 = vmatpush1.bf16.msra.mxu0 0
      %5953 = vmatprep.subr.bf16.mxu0 0
      %5954 = vmatpush1.bf16.msra.mxu0 0
      %5955 = vmatprep.subr.bf16.mxu0 0
      %5956 = vmatpush1.bf16.msra.mxu0 0
      %5957 = vmatprep.subr.bf16.mxu0 0
      %5958 = vmatpush1.bf16.msra.mxu0 0
      %5959 = vmatprep.subr.bf16.mxu0 0
      %5960 = vmatpush1.bf16.msra.mxu0 0
      %5961 = vmatprep.subr.bf16.mxu0 0
      %5962 = vmatpush1.bf16.msra.mxu0 0
      %5963 = vmatprep.subr.bf16.mxu0 0
      %5964 = vmatpush1.bf16.msra.mxu0 0
      %5965 = vmatprep.subr.bf16.mxu0 0
      %5966 = vmatpush1.bf16.msra.mxu0 0
      %5967 = vmatprep.subr.bf16.mxu0 0
      %5968 = vmatpush1.bf16.msra.mxu0 0
      %5969 = vmatprep.subr.bf16.mxu0 0
      %5970 = vmatpush1.bf16.msra.mxu0 0
      %5971 = vmatprep.subr.bf16.mxu0 0
      %5972 = vmatpush1.bf16.msra.mxu0 0
      %5973 = vmatprep.subr.bf16.mxu0 0
      %5974 = vmatpush1.bf16.msra.mxu0 0
      %5975 = vmatprep.subr.bf16.mxu0 0
      %5976 = vmatpush1.bf16.msra.mxu0 0
      %5977 = vmatprep.mubr.bf16.mxu0 0
      %5978 = vmatmul.mubr.bf16.gmra.mrb[0].mxu0 %v4360
      %v5979 = vpop.f32.mrb[0].mxu0
      %v5980 = vadd.f32 0.0, %v5979
      %v5981 = vpop.f32.mrb[0].mxu0
      %v5982 = vpop.f32.mrb[0].mxu0
      %v5983 = vpop.f32.mrb[0].mxu0
      %5984 = vdwg.mxu0
      %v5985 = vpack.c.bf16 %v5980, %v5980
      %s5986 = scalar_lea.vmem %s7, 1152
      %v5987 = vld [vmem:[%s5986] sm:$0xff]
      %v5988 = vld [vmem:[%s5986 + $0x8] sm:$0xff]
      %v5989 = vld [vmem:[%s5986 + $0x10] sm:$0xff]
      %v5990 = vld [vmem:[%s5986 + $0x18] sm:$0xff]
      %v5991 = vld [vmem:[%s5986 + $0x20] sm:$0xff]
      %v5992 = vld [vmem:[%s5986 + $0x28] sm:$0xff]
      %v5993 = vld [vmem:[%s5986 + $0x30] sm:$0xff]
      %v5994 = vld [vmem:[%s5986 + $0x38] sm:$0xff]
      %v5995 = vld [vmem:[%s5986 + $0x40] sm:$0xff]
      %v5996 = vld [vmem:[%s5986 + $0x48] sm:$0xff]
      %v5997 = vld [vmem:[%s5986 + $0x50] sm:$0xff]
      %v5998 = vld [vmem:[%s5986 + $0x58] sm:$0xff]
      %v5999 = vld [vmem:[%s5986 + $0x60] sm:$0xff]
      %v6000 = vld [vmem:[%s5986 + $0x68] sm:$0xff]
      %v6001 = vld [vmem:[%s5986 + $0x70] sm:$0xff]
      %v6002 = vld [vmem:[%s5986 + $0x78] sm:$0xff]
      %v6019 = vunpack.c.l.b16 %v5987
      %v6020 = vunpack.c.h.b16 %v5987
      %v6021 = vunpack.c.l.b16 %v5988
      %v6022 = vunpack.c.h.b16 %v5988
      %v6023 = vunpack.c.l.b16 %v5989
      %v6024 = vunpack.c.h.b16 %v5989
      %v6025 = vunpack.c.l.b16 %v5990
      %v6026 = vunpack.c.h.b16 %v5990
      %v6027 = vunpack.c.l.b16 %v5991
      %v6028 = vunpack.c.h.b16 %v5991
      %v6029 = vunpack.c.l.b16 %v5992
      %v6030 = vunpack.c.h.b16 %v5992
      %v6031 = vunpack.c.l.b16 %v5993
      %v6032 = vunpack.c.h.b16 %v5993
      %v6033 = vunpack.c.l.b16 %v5994
      %v6034 = vunpack.c.h.b16 %v5994
      %v6035 = vunpack.c.l.b16 %v5995
      %v6036 = vunpack.c.h.b16 %v5995
      %v6037 = vunpack.c.l.b16 %v5996
      %v6038 = vunpack.c.h.b16 %v5996
      %v6039 = vunpack.c.l.b16 %v5997
      %v6040 = vunpack.c.h.b16 %v5997
      %v6041 = vunpack.c.l.b16 %v5998
      %v6042 = vunpack.c.h.b16 %v5998
      %v6043 = vunpack.c.l.b16 %v5999
      %v6044 = vunpack.c.h.b16 %v5999
      %v6045 = vunpack.c.l.b16 %v6000
      %v6046 = vunpack.c.h.b16 %v6000
      %v6047 = vunpack.c.l.b16 %v6001
      %v6048 = vunpack.c.h.b16 %v6001
      %v6049 = vunpack.c.l.b16 %v6002
      %v6050 = vunpack.c.h.b16 %v6002
      %v6051 = vpack.c.b16 %v6021, %v6019
      %v6052 = vpack.c.b16 %v6022, %v6020
      %v6053 = vpack.c.b16 %v6025, %v6023
      %v6054 = vpack.c.b16 %v6026, %v6024
      %v6055 = vpack.c.b16 %v6029, %v6027
      %v6056 = vpack.c.b16 %v6030, %v6028
      %v6057 = vpack.c.b16 %v6033, %v6031
      %v6058 = vpack.c.b16 %v6034, %v6032
      %v6059 = vpack.c.b16 %v6037, %v6035
      %v6060 = vpack.c.b16 %v6038, %v6036
      %v6061 = vpack.c.b16 %v6041, %v6039
      %v6062 = vpack.c.b16 %v6042, %v6040
      %v6063 = vpack.c.b16 %v6045, %v6043
      %v6064 = vpack.c.b16 %v6046, %v6044
      %v6065 = vpack.c.b16 %v6049, %v6047
      %v6066 = vpack.c.b16 %v6050, %v6048
      %6083 = vmatprep.subr.bf16.mxu0 %v6052
      %6084 = vmatpush1.bf16.msra.mxu0 %v6051
      %6085 = vmatprep.subr.bf16.mxu0 %v6054
      %6086 = vmatpush1.bf16.msra.mxu0 %v6053
      %6087 = vmatprep.subr.bf16.mxu0 %v6056
      %6088 = vmatpush1.bf16.msra.mxu0 %v6055
      %6089 = vmatprep.subr.bf16.mxu0 %v6058
      %6090 = vmatpush1.bf16.msra.mxu0 %v6057
      %6091 = vmatprep.subr.bf16.mxu0 %v6060
      %6092 = vmatpush1.bf16.msra.mxu0 %v6059
      %6093 = vmatprep.subr.bf16.mxu0 %v6062
      %6094 = vmatpush1.bf16.msra.mxu0 %v6061
      %6095 = vmatprep.subr.bf16.mxu0 %v6064
      %6096 = vmatpush1.bf16.msra.mxu0 %v6063
      %6097 = vmatprep.subr.bf16.mxu0 %v6066
      %6098 = vmatpush1.bf16.msra.mxu0 %v6065
      %6099 = vmatprep.subr.bf16.mxu0 0
      %6100 = vmatpush1.bf16.msra.mxu0 0
      %6101 = vmatprep.subr.bf16.mxu0 0
      %6102 = vmatpush1.bf16.msra.mxu0 0
      %6103 = vmatprep.subr.bf16.mxu0 0
      %6104 = vmatpush1.bf16.msra.mxu0 0
      %6105 = vmatprep.subr.bf16.mxu0 0
      %6106 = vmatpush1.bf16.msra.mxu0 0
      %6107 = vmatprep.subr.bf16.mxu0 0
      %6108 = vmatpush1.bf16.msra.mxu0 0
      %6109 = vmatprep.subr.bf16.mxu0 0
      %6110 = vmatpush1.bf16.msra.mxu0 0
      %6111 = vmatprep.subr.bf16.mxu0 0
      %6112 = vmatpush1.bf16.msra.mxu0 0
      %6113 = vmatprep.subr.bf16.mxu0 0
      %6114 = vmatpush1.bf16.msra.mxu0 0
      %6115 = vmatprep.mubr.bf16.mxu0 0
      %6116 = vmatmul.mubr.bf16.gmra.mrb[0].mxu0 %v5985
      %v6117 = vpop.f32.mrb[0].mxu0
      %v6118 = vadd.f32 0.0, %v6117
      %v6119 = vpop.f32.mrb[0].mxu0
      %v6120 = vadd.f32 0.0, %v6119
      %v6121 = vpop.f32.mrb[0].mxu0
      %v6122 = vpop.f32.mrb[0].mxu0
      %6123 = vdwg.mxu0
      %v6124 = vadd.f32 %v5943, %v6118
      %v6125 = vadd.f32 %v5944, %v6120
      %6126 = vmatprep.subr.bf16.mxu0 0
      %6127 = vmatpush1.bf16.msra.mxu0 %v5762
      %6128 = vmatprep.subr.bf16.mxu0 0
      %6129 = vmatpush1.bf16.msra.mxu0 0
      %6130 = vmatprep.subr.bf16.mxu0 0
      %6131 = vmatpush1.bf16.msra.mxu0 0
      %6132 = vmatprep.subr.bf16.mxu0 0
      %6133 = vmatpush1.bf16.msra.mxu0 0
      %6134 = vmatprep.subr.bf16.mxu0 0
      %6135 = vmatpush1.bf16.msra.mxu0 0
      %6136 = vmatprep.subr.bf16.mxu0 0
      %6137 = vmatpush1.bf16.msra.mxu0 0
      %6138 = vmatprep.subr.bf16.mxu0 0
      %6139 = vmatpush1.bf16.msra.mxu0 0
      %6140 = vmatprep.subr.bf16.mxu0 0
      %6141 = vmatpush1.bf16.msra.mxu0 0
      %6142 = vmatprep.subr.bf16.mxu0 0
      %6143 = vmatpush1.bf16.msra.mxu0 0
      %6144 = vmatprep.subr.bf16.mxu0 0
      %6145 = vmatpush1.bf16.msra.mxu0 0
      %6146 = vmatprep.subr.bf16.mxu0 0
      %6147 = vmatpush1.bf16.msra.mxu0 0
      %6148 = vmatprep.subr.bf16.mxu0 0
      %6149 = vmatpush1.bf16.msra.mxu0 0
      %6150 = vmatprep.subr.bf16.mxu0 0
      %6151 = vmatpush1.bf16.msra.mxu0 0
      %6152 = vmatprep.subr.bf16.mxu0 0
      %6153 = vmatpush1.bf16.msra.mxu0 0
      %6154 = vmatprep.subr.bf16.mxu0 0
      %6155 = vmatpush1.bf16.msra.mxu0 0
      %6156 = vmatprep.subr.bf16.mxu0 0
      %6157 = vmatpush1.bf16.msra.mxu0 0
      %6158 = vmatprep.mubr.bf16.mxu0 0
      %6159 = vmatmul.mubr.bf16.gmra.mrb[0].mxu0 %v4663
      %v6160 = vpop.f32.mrb[0].mxu0
      %v6161 = vadd.f32 0.0, %v6160
      %v6162 = vpop.f32.mrb[0].mxu0
      %v6163 = vpop.f32.mrb[0].mxu0
      %v6164 = vpop.f32.mrb[0].mxu0
      %6165 = vdwg.mxu0
      %v6166 = vpack.c.bf16 %v6161, %v6161
      %s6167 = scalar_lea.vmem %s7, 1280
      %v6168 = vld [vmem:[%s6167] sm:$0xff]
      %v6169 = vld [vmem:[%s6167 + $0x8] sm:$0xff]
      %v6170 = vld [vmem:[%s6167 + $0x10] sm:$0xff]
      %v6171 = vld [vmem:[%s6167 + $0x18] sm:$0xff]
      %v6172 = vld [vmem:[%s6167 + $0x20] sm:$0xff]
      %v6173 = vld [vmem:[%s6167 + $0x28] sm:$0xff]
      %v6174 = vld [vmem:[%s6167 + $0x30] sm:$0xff]
      %v6175 = vld [vmem:[%s6167 + $0x38] sm:$0xff]
      %v6176 = vld [vmem:[%s6167 + $0x40] sm:$0xff]
      %v6177 = vld [vmem:[%s6167 + $0x48] sm:$0xff]
      %v6178 = vld [vmem:[%s6167 + $0x50] sm:$0xff]
      %v6179 = vld [vmem:[%s6167 + $0x58] sm:$0xff]
      %v6180 = vld [vmem:[%s6167 + $0x60] sm:$0xff]
      %v6181 = vld [vmem:[%s6167 + $0x68] sm:$0xff]
      %v6182 = vld [vmem:[%s6167 + $0x70] sm:$0xff]
      %v6183 = vld [vmem:[%s6167 + $0x78] sm:$0xff]
      %v6200 = vunpack.c.l.b16 %v6168
      %v6201 = vunpack.c.h.b16 %v6168
      %v6202 = vunpack.c.l.b16 %v6169
      %v6203 = vunpack.c.h.b16 %v6169
      %v6204 = vunpack.c.l.b16 %v6170
      %v6205 = vunpack.c.h.b16 %v6170
      %v6206 = vunpack.c.l.b16 %v6171
      %v6207 = vunpack.c.h.b16 %v6171
      %v6208 = vunpack.c.l.b16 %v6172
      %v6209 = vunpack.c.h.b16 %v6172
      %v6210 = vunpack.c.l.b16 %v6173
      %v6211 = vunpack.c.h.b16 %v6173
      %v6212 = vunpack.c.l.b16 %v6174
      %v6213 = vunpack.c.h.b16 %v6174
      %v6214 = vunpack.c.l.b16 %v6175
      %v6215 = vunpack.c.h.b16 %v6175
      %v6216 = vunpack.c.l.b16 %v6176
      %v6217 = vunpack.c.h.b16 %v6176
      %v6218 = vunpack.c.l.b16 %v6177
      %v6219 = vunpack.c.h.b16 %v6177
      %v6220 = vunpack.c.l.b16 %v6178
      %v6221 = vunpack.c.h.b16 %v6178
      %v6222 = vunpack.c.l.b16 %v6179
      %v6223 = vunpack.c.h.b16 %v6179
      %v6224 = vunpack.c.l.b16 %v6180
      %v6225 = vunpack.c.h.b16 %v6180
      %v6226 = vunpack.c.l.b16 %v6181
      %v6227 = vunpack.c.h.b16 %v6181
      %v6228 = vunpack.c.l.b16 %v6182
      %v6229 = vunpack.c.h.b16 %v6182
      %v6230 = vunpack.c.l.b16 %v6183
      %v6231 = vunpack.c.h.b16 %v6183
      %v6232 = vpack.c.b16 %v6202, %v6200
      %v6233 = vpack.c.b16 %v6203, %v6201
      %v6234 = vpack.c.b16 %v6206, %v6204
      %v6235 = vpack.c.b16 %v6207, %v6205
      %v6236 = vpack.c.b16 %v6210, %v6208
      %v6237 = vpack.c.b16 %v6211, %v6209
      %v6238 = vpack.c.b16 %v6214, %v6212
      %v6239 = vpack.c.b16 %v6215, %v6213
      %v6240 = vpack.c.b16 %v6218, %v6216
      %v6241 = vpack.c.b16 %v6219, %v6217
      %v6242 = vpack.c.b16 %v6222, %v6220
      %v6243 = vpack.c.b16 %v6223, %v6221
      %v6244 = vpack.c.b16 %v6226, %v6224
      %v6245 = vpack.c.b16 %v6227, %v6225
      %v6246 = vpack.c.b16 %v6230, %v6228
      %v6247 = vpack.c.b16 %v6231, %v6229
      %6264 = vmatprep.subr.bf16.mxu0 %v6233
      %6265 = vmatpush1.bf16.msra.mxu0 %v6232
      %6266 = vmatprep.subr.bf16.mxu0 %v6235
      %6267 = vmatpush1.bf16.msra.mxu0 %v6234
      %6268 = vmatprep.subr.bf16.mxu0 %v6237
      %6269 = vmatpush1.bf16.msra.mxu0 %v6236
      %6270 = vmatprep.subr.bf16.mxu0 %v6239
      %6271 = vmatpush1.bf16.msra.mxu0 %v6238
      %6272 = vmatprep.subr.bf16.mxu0 %v6241
      %6273 = vmatpush1.bf16.msra.mxu0 %v6240
      %6274 = vmatprep.subr.bf16.mxu0 %v6243
      %6275 = vmatpush1.bf16.msra.mxu0 %v6242
      %6276 = vmatprep.subr.bf16.mxu0 %v6245
      %6277 = vmatpush1.bf16.msra.mxu0 %v6244
      %6278 = vmatprep.subr.bf16.mxu0 %v6247
      %6279 = vmatpush1.bf16.msra.mxu0 %v6246
      %6280 = vmatprep.subr.bf16.mxu0 0
      %6281 = vmatpush1.bf16.msra.mxu0 0
      %6282 = vmatprep.subr.bf16.mxu0 0
      %6283 = vmatpush1.bf16.msra.mxu0 0
      %6284 = vmatprep.subr.bf16.mxu0 0
      %6285 = vmatpush1.bf16.msra.mxu0 0
      %6286 = vmatprep.subr.bf16.mxu0 0
      %6287 = vmatpush1.bf16.msra.mxu0 0
      %6288 = vmatprep.subr.bf16.mxu0 0
      %6289 = vmatpush1.bf16.msra.mxu0 0
      %6290 = vmatprep.subr.bf16.mxu0 0
      %6291 = vmatpush1.bf16.msra.mxu0 0
      %6292 = vmatprep.subr.bf16.mxu0 0
      %6293 = vmatpush1.bf16.msra.mxu0 0
      %6294 = vmatprep.subr.bf16.mxu0 0
      %6295 = vmatpush1.bf16.msra.mxu0 0
      %6296 = vmatprep.mubr.bf16.mxu0 0
      %6297 = vmatmul.mubr.bf16.gmra.mrb[0].mxu0 %v6166
      %v6298 = vpop.f32.mrb[0].mxu0
      %v6299 = vadd.f32 0.0, %v6298
      %v6300 = vpop.f32.mrb[0].mxu0
      %v6301 = vadd.f32 0.0, %v6300
      %v6302 = vpop.f32.mrb[0].mxu0
      %v6303 = vpop.f32.mrb[0].mxu0
      %6304 = vdwg.mxu0
      %v6305 = vadd.f32 %v6124, %v6299
      %v6306 = vadd.f32 %v6125, %v6301
      %6307 = vmatprep.subr.bf16.mxu0 0
      %6308 = vmatpush1.bf16.msra.mxu0 %v5762
      %6309 = vmatprep.subr.bf16.mxu0 0
      %6310 = vmatpush1.bf16.msra.mxu0 0
      %6311 = vmatprep.subr.bf16.mxu0 0
      %6312 = vmatpush1.bf16.msra.mxu0 0
      %6313 = vmatprep.subr.bf16.mxu0 0
      %6314 = vmatpush1.bf16.msra.mxu0 0
      %6315 = vmatprep.subr.bf16.mxu0 0
      %6316 = vmatpush1.bf16.msra.mxu0 0
      %6317 = vmatprep.subr.bf16.mxu0 0
      %6318 = vmatpush1.bf16.msra.mxu0 0
      %6319 = vmatprep.subr.bf16.mxu0 0
      %6320 = vmatpush1.bf16.msra.mxu0 0
      %6321 = vmatprep.subr.bf16.mxu0 0
      %6322 = vmatpush1.bf16.msra.mxu0 0
      %6323 = vmatprep.subr.bf16.mxu0 0
      %6324 = vmatpush1.bf16.msra.mxu0 0
      %6325 = vmatprep.subr.bf16.mxu0 0
      %6326 = vmatpush1.bf16.msra.mxu0 0
      %6327 = vmatprep.subr.bf16.mxu0 0
      %6328 = vmatpush1.bf16.msra.mxu0 0
      %6329 = vmatprep.subr.bf16.mxu0 0
      %6330 = vmatpush1.bf16.msra.mxu0 0
      %6331 = vmatprep.subr.bf16.mxu0 0
      %6332 = vmatpush1.bf16.msra.mxu0 0
      %6333 = vmatprep.subr.bf16.mxu0 0
      %6334 = vmatpush1.bf16.msra.mxu0 0
      %6335 = vmatprep.subr.bf16.mxu0 0
      %6336 = vmatpush1.bf16.msra.mxu0 0
      %6337 = vmatprep.subr.bf16.mxu0 0
      %6338 = vmatpush1.bf16.msra.mxu0 0
      %6339 = vmatprep.mubr.bf16.mxu0 0
      %6340 = vmatmul.mubr.bf16.gmra.mrb[0].mxu0 %v4847
      %v6341 = vpop.f32.mrb[0].mxu0
      %v6342 = vadd.f32 0.0, %v6341
      %v6343 = vpop.f32.mrb[0].mxu0
      %v6344 = vpop.f32.mrb[0].mxu0
      %v6345 = vpop.f32.mrb[0].mxu0
      %6346 = vdwg.mxu0
      %v6347 = vpack.c.bf16 %v6342, %v6342
      %s6348 = scalar_lea.vmem %s7, 1408
      %v6349 = vld [vmem:[%s6348] sm:$0xff]
      %v6350 = vld [vmem:[%s6348 + $0x8] sm:$0xff]
      %v6351 = vld [vmem:[%s6348 + $0x10] sm:$0xff]
      %v6352 = vld [vmem:[%s6348 + $0x18] sm:$0xff]
      %v6353 = vld [vmem:[%s6348 + $0x20] sm:$0xff]
      %v6354 = vld [vmem:[%s6348 + $0x28] sm:$0xff]
      %v6355 = vld [vmem:[%s6348 + $0x30] sm:$0xff]
      %v6356 = vld [vmem:[%s6348 + $0x38] sm:$0xff]
      %v6357 = vld [vmem:[%s6348 + $0x40] sm:$0xff]
      %v6358 = vld [vmem:[%s6348 + $0x48] sm:$0xff]
      %v6359 = vld [vmem:[%s6348 + $0x50] sm:$0xff]
      %v6360 = vld [vmem:[%s6348 + $0x58] sm:$0xff]
      %v6361 = vld [vmem:[%s6348 + $0x60] sm:$0xff]
      %v6362 = vld [vmem:[%s6348 + $0x68] sm:$0xff]
      %v6363 = vld [vmem:[%s6348 + $0x70] sm:$0xff]
      %v6364 = vld [vmem:[%s6348 + $0x78] sm:$0xff]
      %v6381 = vunpack.c.l.b16 %v6349
      %v6382 = vunpack.c.h.b16 %v6349
      %v6383 = vunpack.c.l.b16 %v6350
      %v6384 = vunpack.c.h.b16 %v6350
      %v6385 = vunpack.c.l.b16 %v6351
      %v6386 = vunpack.c.h.b16 %v6351
      %v6387 = vunpack.c.l.b16 %v6352
      %v6388 = vunpack.c.h.b16 %v6352
      %v6389 = vunpack.c.l.b16 %v6353
      %v6390 = vunpack.c.h.b16 %v6353
      %v6391 = vunpack.c.l.b16 %v6354
      %v6392 = vunpack.c.h.b16 %v6354
      %v6393 = vunpack.c.l.b16 %v6355
      %v6394 = vunpack.c.h.b16 %v6355
      %v6395 = vunpack.c.l.b16 %v6356
      %v6396 = vunpack.c.h.b16 %v6356
      %v6397 = vunpack.c.l.b16 %v6357
      %v6398 = vunpack.c.h.b16 %v6357
      %v6399 = vunpack.c.l.b16 %v6358
      %v6400 = vunpack.c.h.b16 %v6358
      %v6401 = vunpack.c.l.b16 %v6359
      %v6402 = vunpack.c.h.b16 %v6359
      %v6403 = vunpack.c.l.b16 %v6360
      %v6404 = vunpack.c.h.b16 %v6360
      %v6405 = vunpack.c.l.b16 %v6361
      %v6406 = vunpack.c.h.b16 %v6361
      %v6407 = vunpack.c.l.b16 %v6362
      %v6408 = vunpack.c.h.b16 %v6362
      %v6409 = vunpack.c.l.b16 %v6363
      %v6410 = vunpack.c.h.b16 %v6363
      %v6411 = vunpack.c.l.b16 %v6364
      %v6412 = vunpack.c.h.b16 %v6364
      %v6413 = vpack.c.b16 %v6383, %v6381
      %v6414 = vpack.c.b16 %v6384, %v6382
      %v6415 = vpack.c.b16 %v6387, %v6385
      %v6416 = vpack.c.b16 %v6388, %v6386
      %v6417 = vpack.c.b16 %v6391, %v6389
      %v6418 = vpack.c.b16 %v6392, %v6390
      %v6419 = vpack.c.b16 %v6395, %v6393
      %v6420 = vpack.c.b16 %v6396, %v6394
      %v6421 = vpack.c.b16 %v6399, %v6397
      %v6422 = vpack.c.b16 %v6400, %v6398
      %v6423 = vpack.c.b16 %v6403, %v6401
      %v6424 = vpack.c.b16 %v6404, %v6402
      %v6425 = vpack.c.b16 %v6407, %v6405
      %v6426 = vpack.c.b16 %v6408, %v6406
      %v6427 = vpack.c.b16 %v6411, %v6409
      %v6428 = vpack.c.b16 %v6412, %v6410
      %6445 = vmatprep.subr.bf16.mxu0 %v6414
      %6446 = vmatpush1.bf16.msra.mxu0 %v6413
      %6447 = vmatprep.subr.bf16.mxu0 %v6416
      %6448 = vmatpush1.bf16.msra.mxu0 %v6415
      %6449 = vmatprep.subr.bf16.mxu0 %v6418
      %6450 = vmatpush1.bf16.msra.mxu0 %v6417
      %6451 = vmatprep.subr.bf16.mxu0 %v6420
      %6452 = vmatpush1.bf16.msra.mxu0 %v6419
      %6453 = vmatprep.subr.bf16.mxu0 %v6422
      %6454 = vmatpush1.bf16.msra.mxu0 %v6421
      %6455 = vmatprep.subr.bf16.mxu0 %v6424
      %6456 = vmatpush1.bf16.msra.mxu0 %v6423
      %6457 = vmatprep.subr.bf16.mxu0 %v6426
      %6458 = vmatpush1.bf16.msra.mxu0 %v6425
      %6459 = vmatprep.subr.bf16.mxu0 %v6428
      %6460 = vmatpush1.bf16.msra.mxu0 %v6427
      %6461 = vmatprep.subr.bf16.mxu0 0
      %6462 = vmatpush1.bf16.msra.mxu0 0
      %6463 = vmatprep.subr.bf16.mxu0 0
      %6464 = vmatpush1.bf16.msra.mxu0 0
      %6465 = vmatprep.subr.bf16.mxu0 0
      %6466 = vmatpush1.bf16.msra.mxu0 0
      %6467 = vmatprep.subr.bf16.mxu0 0
      %6468 = vmatpush1.bf16.msra.mxu0 0
      %6469 = vmatprep.subr.bf16.mxu0 0
      %6470 = vmatpush1.bf16.msra.mxu0 0
      %6471 = vmatprep.subr.bf16.mxu0 0
      %6472 = vmatpush1.bf16.msra.mxu0 0
      %6473 = vmatprep.subr.bf16.mxu0 0
      %6474 = vmatpush1.bf16.msra.mxu0 0
      %6475 = vmatprep.subr.bf16.mxu0 0
      %6476 = vmatpush1.bf16.msra.mxu0 0
      %6477 = vmatprep.mubr.bf16.mxu0 0
      %6478 = vmatmul.mubr.bf16.gmra.mrb[0].mxu0 %v6347
      %v6479 = vpop.f32.mrb[0].mxu0
      %v6480 = vadd.f32 0.0, %v6479
      %v6481 = vpop.f32.mrb[0].mxu0
      %v6482 = vadd.f32 0.0, %v6481
      %v6483 = vpop.f32.mrb[0].mxu0
      %v6484 = vpop.f32.mrb[0].mxu0
      %6485 = vdwg.mxu0
      %v6486 = vadd.f32 %v6305, %v6480
      %v6487 = vadd.f32 %v6306, %v6482
      %s6488 = scalar_lea.vmem [#allocation4], 12
      %v6489 = vld [vmem:[%s6488] sm:$0x7]
      %v6491 = vsel %vm4298, %v6489, 0
      %6493 = vmatprep.subr.bf16.mxu0 0
      %6494 = vmatpush1.bf16.msra.mxu0 %v6491
      %6495 = vmatprep.subr.bf16.mxu0 0
      %6496 = vmatpush1.bf16.msra.mxu0 0
      %6497 = vmatprep.subr.bf16.mxu0 0
      %6498 = vmatpush1.bf16.msra.mxu0 0
      %6499 = vmatprep.subr.bf16.mxu0 0
      %6500 = vmatpush1.bf16.msra.mxu0 0
      %6501 = vmatprep.subr.bf16.mxu0 0
      %6502 = vmatpush1.bf16.msra.mxu0 0
      %6503 = vmatprep.subr.bf16.mxu0 0
      %6504 = vmatpush1.bf16.msra.mxu0 0
      %6505 = vmatprep.subr.bf16.mxu0 0
      %6506 = vmatpush1.bf16.msra.mxu0 0
      %6507 = vmatprep.subr.bf16.mxu0 0
      %6508 = vmatpush1.bf16.msra.mxu0 0
      %6509 = vmatprep.subr.bf16.mxu0 0
      %6510 = vmatpush1.bf16.msra.mxu0 0
      %6511 = vmatprep.subr.bf16.mxu0 0
      %6512 = vmatpush1.bf16.msra.mxu0 0
      %6513 = vmatprep.subr.bf16.mxu0 0
      %6514 = vmatpush1.bf16.msra.mxu0 0
      %6515 = vmatprep.subr.bf16.mxu0 0
      %6516 = vmatpush1.bf16.msra.mxu0 0
      %6517 = vmatprep.subr.bf16.mxu0 0
      %6518 = vmatpush1.bf16.msra.mxu0 0
      %6519 = vmatprep.subr.bf16.mxu0 0
      %6520 = vmatpush1.bf16.msra.mxu0 0
      %6521 = vmatprep.subr.bf16.mxu0 0
      %6522 = vmatpush1.bf16.msra.mxu0 0
      %6523 = vmatprep.subr.bf16.mxu0 0
      %6524 = vmatpush1.bf16.msra.mxu0 0
      %6525 = vmatprep.mubr.bf16.mxu0 0
      %6526 = vmatmul.mubr.bf16.gmra.mrb[0].mxu0 %v4296
      %v6527 = vpop.f32.mrb[0].mxu0
      %v6528 = vadd.f32 0.0, %v6527
      %v6529 = vpop.f32.mrb[0].mxu0
      %v6530 = vpop.f32.mrb[0].mxu0
      %v6531 = vpop.f32.mrb[0].mxu0
      %6532 = vdwg.mxu0
      %v6533 = vpack.c.bf16 %v6528, %v6528
      %s6534 = scalar_lea.vmem %s7, 1536
      %v6535 = vld [vmem:[%s6534] sm:$0xff]
      %v6536 = vld [vmem:[%s6534 + $0x8] sm:$0xff]
      %v6537 = vld [vmem:[%s6534 + $0x10] sm:$0xff]
      %v6538 = vld [vmem:[%s6534 + $0x18] sm:$0xff]
      %v6539 = vld [vmem:[%s6534 + $0x20] sm:$0xff]
      %v6540 = vld [vmem:[%s6534 + $0x28] sm:$0xff]
      %v6541 = vld [vmem:[%s6534 + $0x30] sm:$0xff]
      %v6542 = vld [vmem:[%s6534 + $0x38] sm:$0xff]
      %v6543 = vld [vmem:[%s6534 + $0x40] sm:$0xff]
      %v6544 = vld [vmem:[%s6534 + $0x48] sm:$0xff]
      %v6545 = vld [vmem:[%s6534 + $0x50] sm:$0xff]
      %v6546 = vld [vmem:[%s6534 + $0x58] sm:$0xff]
      %v6547 = vld [vmem:[%s6534 + $0x60] sm:$0xff]
      %v6548 = vld [vmem:[%s6534 + $0x68] sm:$0xff]
      %v6549 = vld [vmem:[%s6534 + $0x70] sm:$0xff]
      %v6550 = vld [vmem:[%s6534 + $0x78] sm:$0xff]
      %v6567 = vunpack.c.l.b16 %v6535
      %v6568 = vunpack.c.h.b16 %v6535
      %v6569 = vunpack.c.l.b16 %v6536
      %v6570 = vunpack.c.h.b16 %v6536
      %v6571 = vunpack.c.l.b16 %v6537
      %v6572 = vunpack.c.h.b16 %v6537
      %v6573 = vunpack.c.l.b16 %v6538
      %v6574 = vunpack.c.h.b16 %v6538
      %v6575 = vunpack.c.l.b16 %v6539
      %v6576 = vunpack.c.h.b16 %v6539
      %v6577 = vunpack.c.l.b16 %v6540
      %v6578 = vunpack.c.h.b16 %v6540
      %v6579 = vunpack.c.l.b16 %v6541
      %v6580 = vunpack.c.h.b16 %v6541
      %v6581 = vunpack.c.l.b16 %v6542
      %v6582 = vunpack.c.h.b16 %v6542
      %v6583 = vunpack.c.l.b16 %v6543
      %v6584 = vunpack.c.h.b16 %v6543
      %v6585 = vunpack.c.l.b16 %v6544
      %v6586 = vunpack.c.h.b16 %v6544
      %v6587 = vunpack.c.l.b16 %v6545
      %v6588 = vunpack.c.h.b16 %v6545
      %v6589 = vunpack.c.l.b16 %v6546
      %v6590 = vunpack.c.h.b16 %v6546
      %v6591 = vunpack.c.l.b16 %v6547
      %v6592 = vunpack.c.h.b16 %v6547
      %v6593 = vunpack.c.l.b16 %v6548
      %v6594 = vunpack.c.h.b16 %v6548
      %v6595 = vunpack.c.l.b16 %v6549
      %v6596 = vunpack.c.h.b16 %v6549
      %v6597 = vunpack.c.l.b16 %v6550
      %v6598 = vunpack.c.h.b16 %v6550
      %v6599 = vpack.c.b16 %v6569, %v6567
      %v6600 = vpack.c.b16 %v6570, %v6568
      %v6601 = vpack.c.b16 %v6573, %v6571
      %v6602 = vpack.c.b16 %v6574, %v6572
      %v6603 = vpack.c.b16 %v6577, %v6575
      %v6604 = vpack.c.b16 %v6578, %v6576
      %v6605 = vpack.c.b16 %v6581, %v6579
      %v6606 = vpack.c.b16 %v6582, %v6580
      %v6607 = vpack.c.b16 %v6585, %v6583
      %v6608 = vpack.c.b16 %v6586, %v6584
      %v6609 = vpack.c.b16 %v6589, %v6587
      %v6610 = vpack.c.b16 %v6590, %v6588
      %v6611 = vpack.c.b16 %v6593, %v6591
      %v6612 = vpack.c.b16 %v6594, %v6592
      %v6613 = vpack.c.b16 %v6597, %v6595
      %v6614 = vpack.c.b16 %v6598, %v6596
      %6631 = vmatprep.subr.bf16.mxu0 %v6600
      %6632 = vmatpush1.bf16.msra.mxu0 %v6599
      %6633 = vmatprep.subr.bf16.mxu0 %v6602
      %6634 = vmatpush1.bf16.msra.mxu0 %v6601
      %6635 = vmatprep.subr.bf16.mxu0 %v6604
      %6636 = vmatpush1.bf16.msra.mxu0 %v6603
      %6637 = vmatprep.subr.bf16.mxu0 %v6606
      %6638 = vmatpush1.bf16.msra.mxu0 %v6605
      %6639 = vmatprep.subr.bf16.mxu0 %v6608
      %6640 = vmatpush1.bf16.msra.mxu0 %v6607
      %6641 = vmatprep.subr.bf16.mxu0 %v6610
      %6642 = vmatpush1.bf16.msra.mxu0 %v6609
      %6643 = vmatprep.subr.bf16.mxu0 %v6612
      %6644 = vmatpush1.bf16.msra.mxu0 %v6611
      %6645 = vmatprep.subr.bf16.mxu0 %v6614
      %6646 = vmatpush1.bf16.msra.mxu0 %v6613
      %6647 = vmatprep.subr.bf16.mxu0 0
      %6648 = vmatpush1.bf16.msra.mxu0 0
      %6649 = vmatprep.subr.bf16.mxu0 0
      %6650 = vmatpush1.bf16.msra.mxu0 0
      %6651 = vmatprep.subr.bf16.mxu0 0
      %6652 = vmatpush1.bf16.msra.mxu0 0
      %6653 = vmatprep.subr.bf16.mxu0 0
      %6654 = vmatpush1.bf16.msra.mxu0 0
      %6655 = vmatprep.subr.bf16.mxu0 0
      %6656 = vmatpush1.bf16.msra.mxu0 0
      %6657 = vmatprep.subr.bf16.mxu0 0
      %6658 = vmatpush1.bf16.msra.mxu0 0
      %6659 = vmatprep.subr.bf16.mxu0 0
      %6660 = vmatpush1.bf16.msra.mxu0 0
      %6661 = vmatprep.subr.bf16.mxu0 0
      %6662 = vmatpush1.bf16.msra.mxu0 0
      %6663 = vmatprep.mubr.bf16.mxu0 0
      %6664 = vmatmul.mubr.bf16.gmra.mrb[0].mxu0 %v6533
      %v6665 = vpop.f32.mrb[0].mxu0
      %v6666 = vadd.f32 0.0, %v6665
      %v6667 = vpop.f32.mrb[0].mxu0
      %v6668 = vadd.f32 0.0, %v6667
      %v6669 = vpop.f32.mrb[0].mxu0
      %v6670 = vpop.f32.mrb[0].mxu0
      %6671 = vdwg.mxu0
      %v6672 = vadd.f32 %v6486, %v6666
      %v6673 = vadd.f32 %v6487, %v6668
      %6674 = vmatprep.subr.bf16.mxu0 0
      %6675 = vmatpush1.bf16.msra.mxu0 %v6491
      %6676 = vmatprep.subr.bf16.mxu0 0
      %6677 = vmatpush1.bf16.msra.mxu0 0
      %6678 = vmatprep.subr.bf16.mxu0 0
      %6679 = vmatpush1.bf16.msra.mxu0 0
      %6680 = vmatprep.subr.bf16.mxu0 0
      %6681 = vmatpush1.bf16.msra.mxu0 0
      %6682 = vmatprep.subr.bf16.mxu0 0
      %6683 = vmatpush1.bf16.msra.mxu0 0
      %6684 = vmatprep.subr.bf16.mxu0 0
      %6685 = vmatpush1.bf16.msra.mxu0 0
      %6686 = vmatprep.subr.bf16.mxu0 0
      %6687 = vmatpush1.bf16.msra.mxu0 0
      %6688 = vmatprep.subr.bf16.mxu0 0
      %6689 = vmatpush1.bf16.msra.mxu0 0
      %6690 = vmatprep.subr.bf16.mxu0 0
      %6691 = vmatpush1.bf16.msra.mxu0 0
      %6692 = vmatprep.subr.bf16.mxu0 0
      %6693 = vmatpush1.bf16.msra.mxu0 0
      %6694 = vmatprep.subr.bf16.mxu0 0
      %6695 = vmatpush1.bf16.msra.mxu0 0
      %6696 = vmatprep.subr.bf16.mxu0 0
      %6697 = vmatpush1.bf16.msra.mxu0 0
      %6698 = vmatprep.subr.bf16.mxu0 0
      %6699 = vmatpush1.bf16.msra.mxu0 0
      %6700 = vmatprep.subr.bf16.mxu0 0
      %6701 = vmatpush1.bf16.msra.mxu0 0
      %6702 = vmatprep.subr.bf16.mxu0 0
      %6703 = vmatpush1.bf16.msra.mxu0 0
      %6704 = vmatprep.subr.bf16.mxu0 0
      %6705 = vmatpush1.bf16.msra.mxu0 0
      %6706 = vmatprep.mubr.bf16.mxu0 0
      %6707 = vmatmul.mubr.bf16.gmra.mrb[0].mxu0 %v4360
      %v6708 = vpop.f32.mrb[0].mxu0
      %v6709 = vadd.f32 0.0, %v6708
      %v6710 = vpop.f32.mrb[0].mxu0
      %v6711 = vpop.f32.mrb[0].mxu0
      %v6712 = vpop.f32.mrb[0].mxu0
      %6713 = vdwg.mxu0
      %v6714 = vpack.c.bf16 %v6709, %v6709
      %s6715 = scalar_lea.vmem %s7, 1664
      %v6716 = vld [vmem:[%s6715] sm:$0xff]
      %v6717 = vld [vmem:[%s6715 + $0x8] sm:$0xff]
      %v6718 = vld [vmem:[%s6715 + $0x10] sm:$0xff]
      %v6719 = vld [vmem:[%s6715 + $0x18] sm:$0xff]
      %v6720 = vld [vmem:[%s6715 + $0x20] sm:$0xff]
      %v6721 = vld [vmem:[%s6715 + $0x28] sm:$0xff]
      %v6722 = vld [vmem:[%s6715 + $0x30] sm:$0xff]
      %v6723 = vld [vmem:[%s6715 + $0x38] sm:$0xff]
      %v6724 = vld [vmem:[%s6715 + $0x40] sm:$0xff]
      %v6725 = vld [vmem:[%s6715 + $0x48] sm:$0xff]
      %v6726 = vld [vmem:[%s6715 + $0x50] sm:$0xff]
      %v6727 = vld [vmem:[%s6715 + $0x58] sm:$0xff]
      %v6728 = vld [vmem:[%s6715 + $0x60] sm:$0xff]
      %v6729 = vld [vmem:[%s6715 + $0x68] sm:$0xff]
      %v6730 = vld [vmem:[%s6715 + $0x70] sm:$0xff]
      %v6731 = vld [vmem:[%s6715 + $0x78] sm:$0xff]
      %v6748 = vunpack.c.l.b16 %v6716
      %v6749 = vunpack.c.h.b16 %v6716
      %v6750 = vunpack.c.l.b16 %v6717
      %v6751 = vunpack.c.h.b16 %v6717
      %v6752 = vunpack.c.l.b16 %v6718
      %v6753 = vunpack.c.h.b16 %v6718
      %v6754 = vunpack.c.l.b16 %v6719
      %v6755 = vunpack.c.h.b16 %v6719
      %v6756 = vunpack.c.l.b16 %v6720
      %v6757 = vunpack.c.h.b16 %v6720
      %v6758 = vunpack.c.l.b16 %v6721
      %v6759 = vunpack.c.h.b16 %v6721
      %v6760 = vunpack.c.l.b16 %v6722
      %v6761 = vunpack.c.h.b16 %v6722
      %v6762 = vunpack.c.l.b16 %v6723
      %v6763 = vunpack.c.h.b16 %v6723
      %v6764 = vunpack.c.l.b16 %v6724
      %v6765 = vunpack.c.h.b16 %v6724
      %v6766 = vunpack.c.l.b16 %v6725
      %v6767 = vunpack.c.h.b16 %v6725
      %v6768 = vunpack.c.l.b16 %v6726
      %v6769 = vunpack.c.h.b16 %v6726
      %v6770 = vunpack.c.l.b16 %v6727
      %v6771 = vunpack.c.h.b16 %v6727
      %v6772 = vunpack.c.l.b16 %v6728
      %v6773 = vunpack.c.h.b16 %v6728
      %v6774 = vunpack.c.l.b16 %v6729
      %v6775 = vunpack.c.h.b16 %v6729
      %v6776 = vunpack.c.l.b16 %v6730
      %v6777 = vunpack.c.h.b16 %v6730
      %v6778 = vunpack.c.l.b16 %v6731
      %v6779 = vunpack.c.h.b16 %v6731
      %v6780 = vpack.c.b16 %v6750, %v6748
      %v6781 = vpack.c.b16 %v6751, %v6749
      %v6782 = vpack.c.b16 %v6754, %v6752
      %v6783 = vpack.c.b16 %v6755, %v6753
      %v6784 = vpack.c.b16 %v6758, %v6756
      %v6785 = vpack.c.b16 %v6759, %v6757
      %v6786 = vpack.c.b16 %v6762, %v6760
      %v6787 = vpack.c.b16 %v6763, %v6761
      %v6788 = vpack.c.b16 %v6766, %v6764
      %v6789 = vpack.c.b16 %v6767, %v6765
      %v6790 = vpack.c.b16 %v6770, %v6768
      %v6791 = vpack.c.b16 %v6771, %v6769
      %v6792 = vpack.c.b16 %v6774, %v6772
      %v6793 = vpack.c.b16 %v6775, %v6773
      %v6794 = vpack.c.b16 %v6778, %v6776
      %v6795 = vpack.c.b16 %v6779, %v6777
      %6812 = vmatprep.subr.bf16.mxu0 %v6781
      %6813 = vmatpush1.bf16.msra.mxu0 %v6780
      %6814 = vmatprep.subr.bf16.mxu0 %v6783
      %6815 = vmatpush1.bf16.msra.mxu0 %v6782
      %6816 = vmatprep.subr.bf16.mxu0 %v6785
      %6817 = vmatpush1.bf16.msra.mxu0 %v6784
      %6818 = vmatprep.subr.bf16.mxu0 %v6787
      %6819 = vmatpush1.bf16.msra.mxu0 %v6786
      %6820 = vmatprep.subr.bf16.mxu0 %v6789
      %6821 = vmatpush1.bf16.msra.mxu0 %v6788
      %6822 = vmatprep.subr.bf16.mxu0 %v6791
      %6823 = vmatpush1.bf16.msra.mxu0 %v6790
      %6824 = vmatprep.subr.bf16.mxu0 %v6793
      %6825 = vmatpush1.bf16.msra.mxu0 %v6792
      %6826 = vmatprep.subr.bf16.mxu0 %v6795
      %6827 = vmatpush1.bf16.msra.mxu0 %v6794
      %6828 = vmatprep.subr.bf16.mxu0 0
      %6829 = vmatpush1.bf16.msra.mxu0 0
      %6830 = vmatprep.subr.bf16.mxu0 0
      %6831 = vmatpush1.bf16.msra.mxu0 0
      %6832 = vmatprep.subr.bf16.mxu0 0
      %6833 = vmatpush1.bf16.msra.mxu0 0
      %6834 = vmatprep.subr.bf16.mxu0 0
      %6835 = vmatpush1.bf16.msra.mxu0 0
      %6836 = vmatprep.subr.bf16.mxu0 0
      %6837 = vmatpush1.bf16.msra.mxu0 0
      %6838 = vmatprep.subr.bf16.mxu0 0
      %6839 = vmatpush1.bf16.msra.mxu0 0
      %6840 = vmatprep.subr.bf16.mxu0 0
      %6841 = vmatpush1.bf16.msra.mxu0 0
      %6842 = vmatprep.subr.bf16.mxu0 0
      %6843 = vmatpush1.bf16.msra.mxu0 0
      %6844 = vmatprep.mubr.bf16.mxu0 0
      %6845 = vmatmul.mubr.bf16.gmra.mrb[0].mxu0 %v6714
      %v6846 = vpop.f32.mrb[0].mxu0
      %v6847 = vadd.f32 0.0, %v6846
      %v6848 = vpop.f32.mrb[0].mxu0
      %v6849 = vadd.f32 0.0, %v6848
      %v6850 = vpop.f32.mrb[0].mxu0
      %v6851 = vpop.f32.mrb[0].mxu0
      %6852 = vdwg.mxu0
      %v6853 = vadd.f32 %v6672, %v6847
      %v6854 = vadd.f32 %v6673, %v6849
      %6855 = vmatprep.subr.bf16.mxu0 0
      %6856 = vmatpush1.bf16.msra.mxu0 %v6491
      %6857 = vmatprep.subr.bf16.mxu0 0
      %6858 = vmatpush1.bf16.msra.mxu0 0
      %6859 = vmatprep.subr.bf16.mxu0 0
      %6860 = vmatpush1.bf16.msra.mxu0 0
      %6861 = vmatprep.subr.bf16.mxu0 0
      %6862 = vmatpush1.bf16.msra.mxu0 0
      %6863 = vmatprep.subr.bf16.mxu0 0
      %6864 = vmatpush1.bf16.msra.mxu0 0
      %6865 = vmatprep.subr.bf16.mxu0 0
      %6866 = vmatpush1.bf16.msra.mxu0 0
      %6867 = vmatprep.subr.bf16.mxu0 0
      %6868 = vmatpush1.bf16.msra.mxu0 0
      %6869 = vmatprep.subr.bf16.mxu0 0
      %6870 = vmatpush1.bf16.msra.mxu0 0
      %6871 = vmatprep.subr.bf16.mxu0 0
      %6872 = vmatpush1.bf16.msra.mxu0 0
      %6873 = vmatprep.subr.bf16.mxu0 0
      %6874 = vmatpush1.bf16.msra.mxu0 0
      %6875 = vmatprep.subr.bf16.mxu0 0
      %6876 = vmatpush1.bf16.msra.mxu0 0
      %6877 = vmatprep.subr.bf16.mxu0 0
      %6878 = vmatpush1.bf16.msra.mxu0 0
      %6879 = vmatprep.subr.bf16.mxu0 0
      %6880 = vmatpush1.bf16.msra.mxu0 0
      %6881 = vmatprep.subr.bf16.mxu0 0
      %6882 = vmatpush1.bf16.msra.mxu0 0
      %6883 = vmatprep.subr.bf16.mxu0 0
      %6884 = vmatpush1.bf16.msra.mxu0 0
      %6885 = vmatprep.subr.bf16.mxu0 0
      %6886 = vmatpush1.bf16.msra.mxu0 0
      %6887 = vmatprep.mubr.bf16.mxu0 0
      %6888 = vmatmul.mubr.bf16.gmra.mrb[0].mxu0 %v4663
      %v6889 = vpop.f32.mrb[0].mxu0
      %v6890 = vadd.f32 0.0, %v6889
      %v6891 = vpop.f32.mrb[0].mxu0
      %v6892 = vpop.f32.mrb[0].mxu0
      %v6893 = vpop.f32.mrb[0].mxu0
      %6894 = vdwg.mxu0
      %v6895 = vpack.c.bf16 %v6890, %v6890
      %s6896 = scalar_lea.vmem %s7, 1792
      %v6897 = vld [vmem:[%s6896] sm:$0xff]
      %v6898 = vld [vmem:[%s6896 + $0x8] sm:$0xff]
      %v6899 = vld [vmem:[%s6896 + $0x10] sm:$0xff]
      %v6900 = vld [vmem:[%s6896 + $0x18] sm:$0xff]
      %v6901 = vld [vmem:[%s6896 + $0x20] sm:$0xff]
      %v6902 = vld [vmem:[%s6896 + $0x28] sm:$0xff]
      %v6903 = vld [vmem:[%s6896 + $0x30] sm:$0xff]
      %v6904 = vld [vmem:[%s6896 + $0x38] sm:$0xff]
      %v6905 = vld [vmem:[%s6896 + $0x40] sm:$0xff]
      %v6906 = vld [vmem:[%s6896 + $0x48] sm:$0xff]
      %v6907 = vld [vmem:[%s6896 + $0x50] sm:$0xff]
      %v6908 = vld [vmem:[%s6896 + $0x58] sm:$0xff]
      %v6909 = vld [vmem:[%s6896 + $0x60] sm:$0xff]
      %v6910 = vld [vmem:[%s6896 + $0x68] sm:$0xff]
      %v6911 = vld [vmem:[%s6896 + $0x70] sm:$0xff]
      %v6912 = vld [vmem:[%s6896 + $0x78] sm:$0xff]
      %v6929 = vunpack.c.l.b16 %v6897
      %v6930 = vunpack.c.h.b16 %v6897
      %v6931 = vunpack.c.l.b16 %v6898
      %v6932 = vunpack.c.h.b16 %v6898
      %v6933 = vunpack.c.l.b16 %v6899
      %v6934 = vunpack.c.h.b16 %v6899
      %v6935 = vunpack.c.l.b16 %v6900
      %v6936 = vunpack.c.h.b16 %v6900
      %v6937 = vunpack.c.l.b16 %v6901
      %v6938 = vunpack.c.h.b16 %v6901
      %v6939 = vunpack.c.l.b16 %v6902
      %v6940 = vunpack.c.h.b16 %v6902
      %v6941 = vunpack.c.l.b16 %v6903
      %v6942 = vunpack.c.h.b16 %v6903
      %v6943 = vunpack.c.l.b16 %v6904
      %v6944 = vunpack.c.h.b16 %v6904
      %v6945 = vunpack.c.l.b16 %v6905
      %v6946 = vunpack.c.h.b16 %v6905
      %v6947 = vunpack.c.l.b16 %v6906
      %v6948 = vunpack.c.h.b16 %v6906
      %v6949 = vunpack.c.l.b16 %v6907
      %v6950 = vunpack.c.h.b16 %v6907
      %v6951 = vunpack.c.l.b16 %v6908
      %v6952 = vunpack.c.h.b16 %v6908
      %v6953 = vunpack.c.l.b16 %v6909
      %v6954 = vunpack.c.h.b16 %v6909
      %v6955 = vunpack.c.l.b16 %v6910
      %v6956 = vunpack.c.h.b16 %v6910
      %v6957 = vunpack.c.l.b16 %v6911
      %v6958 = vunpack.c.h.b16 %v6911
      %v6959 = vunpack.c.l.b16 %v6912
      %v6960 = vunpack.c.h.b16 %v6912
      %v6961 = vpack.c.b16 %v6931, %v6929
      %v6962 = vpack.c.b16 %v6932, %v6930
      %v6963 = vpack.c.b16 %v6935, %v6933
      %v6964 = vpack.c.b16 %v6936, %v6934
      %v6965 = vpack.c.b16 %v6939, %v6937
      %v6966 = vpack.c.b16 %v6940, %v6938
      %v6967 = vpack.c.b16 %v6943, %v6941
      %v6968 = vpack.c.b16 %v6944, %v6942
      %v6969 = vpack.c.b16 %v6947, %v6945
      %v6970 = vpack.c.b16 %v6948, %v6946
      %v6971 = vpack.c.b16 %v6951, %v6949
      %v6972 = vpack.c.b16 %v6952, %v6950
      %v6973 = vpack.c.b16 %v6955, %v6953
      %v6974 = vpack.c.b16 %v6956, %v6954
      %v6975 = vpack.c.b16 %v6959, %v6957
      %v6976 = vpack.c.b16 %v6960, %v6958
      %6993 = vmatprep.subr.bf16.mxu0 %v6962
      %6994 = vmatpush1.bf16.msra.mxu0 %v6961
      %6995 = vmatprep.subr.bf16.mxu0 %v6964
      %6996 = vmatpush1.bf16.msra.mxu0 %v6963
      %6997 = vmatprep.subr.bf16.mxu0 %v6966
      %6998 = vmatpush1.bf16.msra.mxu0 %v6965
      %6999 = vmatprep.subr.bf16.mxu0 %v6968
      %7000 = vmatpush1.bf16.msra.mxu0 %v6967
      %7001 = vmatprep.subr.bf16.mxu0 %v6970
      %7002 = vmatpush1.bf16.msra.mxu0 %v6969
      %7003 = vmatprep.subr.bf16.mxu0 %v6972
      %7004 = vmatpush1.bf16.msra.mxu0 %v6971
      %7005 = vmatprep.subr.bf16.mxu0 %v6974
      %7006 = vmatpush1.bf16.msra.mxu0 %v6973
      %7007 = vmatprep.subr.bf16.mxu0 %v6976
      %7008 = vmatpush1.bf16.msra.mxu0 %v6975
      %7009 = vmatprep.subr.bf16.mxu0 0
      %7010 = vmatpush1.bf16.msra.mxu0 0
      %7011 = vmatprep.subr.bf16.mxu0 0
      %7012 = vmatpush1.bf16.msra.mxu0 0
      %7013 = vmatprep.subr.bf16.mxu0 0
      %7014 = vmatpush1.bf16.msra.mxu0 0
      %7015 = vmatprep.subr.bf16.mxu0 0
      %7016 = vmatpush1.bf16.msra.mxu0 0
      %7017 = vmatprep.subr.bf16.mxu0 0
      %7018 = vmatpush1.bf16.msra.mxu0 0
      %7019 = vmatprep.subr.bf16.mxu0 0
      %7020 = vmatpush1.bf16.msra.mxu0 0
      %7021 = vmatprep.subr.bf16.mxu0 0
      %7022 = vmatpush1.bf16.msra.mxu0 0
      %7023 = vmatprep.subr.bf16.mxu0 0
      %7024 = vmatpush1.bf16.msra.mxu0 0
      %7025 = vmatprep.mubr.bf16.mxu0 0
      %7026 = vmatmul.mubr.bf16.gmra.mrb[0].mxu0 %v6895
      %v7027 = vpop.f32.mrb[0].mxu0
      %v7028 = vadd.f32 0.0, %v7027
      %v7029 = vpop.f32.mrb[0].mxu0
      %v7030 = vadd.f32 0.0, %v7029
      %v7031 = vpop.f32.mrb[0].mxu0
      %v7032 = vpop.f32.mrb[0].mxu0
      %7033 = vdwg.mxu0
      %v7034 = vadd.f32 %v6853, %v7028
      %v7035 = vadd.f32 %v6854, %v7030
      %7036 = vmatprep.subr.bf16.mxu0 0
      %7037 = vmatpush1.bf16.msra.mxu0 %v6491
      %7038 = vmatprep.subr.bf16.mxu0 0
      %7039 = vmatpush1.bf16.msra.mxu0 0
      %7040 = vmatprep.subr.bf16.mxu0 0
      %7041 = vmatpush1.bf16.msra.mxu0 0
      %7042 = vmatprep.subr.bf16.mxu0 0
      %7043 = vmatpush1.bf16.msra.mxu0 0
      %7044 = vmatprep.subr.bf16.mxu0 0
      %7045 = vmatpush1.bf16.msra.mxu0 0
      %7046 = vmatprep.subr.bf16.mxu0 0
      %7047 = vmatpush1.bf16.msra.mxu0 0
      %7048 = vmatprep.subr.bf16.mxu0 0
      %7049 = vmatpush1.bf16.msra.mxu0 0
      %7050 = vmatprep.subr.bf16.mxu0 0
      %7051 = vmatpush1.bf16.msra.mxu0 0
      %7052 = vmatprep.subr.bf16.mxu0 0
      %7053 = vmatpush1.bf16.msra.mxu0 0
      %7054 = vmatprep.subr.bf16.mxu0 0
      %7055 = vmatpush1.bf16.msra.mxu0 0
      %7056 = vmatprep.subr.bf16.mxu0 0
      %7057 = vmatpush1.bf16.msra.mxu0 0
      %7058 = vmatprep.subr.bf16.mxu0 0
      %7059 = vmatpush1.bf16.msra.mxu0 0
      %7060 = vmatprep.subr.bf16.mxu0 0
      %7061 = vmatpush1.bf16.msra.mxu0 0
      %7062 = vmatprep.subr.bf16.mxu0 0
      %7063 = vmatpush1.bf16.msra.mxu0 0
      %7064 = vmatprep.subr.bf16.mxu0 0
      %7065 = vmatpush1.bf16.msra.mxu0 0
      %7066 = vmatprep.subr.bf16.mxu0 0
      %7067 = vmatpush1.bf16.msra.mxu0 0
      %7068 = vmatprep.mubr.bf16.mxu0 0
      %7069 = vmatmul.mubr.bf16.gmra.mrb[0].mxu0 %v4847
      %v7070 = vpop.f32.mrb[0].mxu0
      %v7071 = vadd.f32 0.0, %v7070
      %v7072 = vpop.f32.mrb[0].mxu0
      %v7073 = vpop.f32.mrb[0].mxu0
      %v7074 = vpop.f32.mrb[0].mxu0
      %7075 = vdwg.mxu0
      %v7076 = vpack.c.bf16 %v7071, %v7071
      %s7077 = scalar_lea.vmem %s7, 1920
      %v7078 = vld [vmem:[%s7077] sm:$0xff]
      %v7079 = vld [vmem:[%s7077 + $0x8] sm:$0xff]
      %v7080 = vld [vmem:[%s7077 + $0x10] sm:$0xff]
      %v7081 = vld [vmem:[%s7077 + $0x18] sm:$0xff]
      %v7082 = vld [vmem:[%s7077 + $0x20] sm:$0xff]
      %v7083 = vld [vmem:[%s7077 + $0x28] sm:$0xff]
      %v7084 = vld [vmem:[%s7077 + $0x30] sm:$0xff]
      %v7085 = vld [vmem:[%s7077 + $0x38] sm:$0xff]
      %v7086 = vld [vmem:[%s7077 + $0x40] sm:$0xff]
      %v7087 = vld [vmem:[%s7077 + $0x48] sm:$0xff]
      %v7088 = vld [vmem:[%s7077 + $0x50] sm:$0xff]
      %v7089 = vld [vmem:[%s7077 + $0x58] sm:$0xff]
      %v7090 = vld [vmem:[%s7077 + $0x60] sm:$0xff]
      %v7091 = vld [vmem:[%s7077 + $0x68] sm:$0xff]
      %v7092 = vld [vmem:[%s7077 + $0x70] sm:$0xff]
      %v7093 = vld [vmem:[%s7077 + $0x78] sm:$0xff]
      %v7110 = vunpack.c.l.b16 %v7078
      %v7111 = vunpack.c.h.b16 %v7078
      %v7112 = vunpack.c.l.b16 %v7079
      %v7113 = vunpack.c.h.b16 %v7079
      %v7114 = vunpack.c.l.b16 %v7080
      %v7115 = vunpack.c.h.b16 %v7080
      %v7116 = vunpack.c.l.b16 %v7081
      %v7117 = vunpack.c.h.b16 %v7081
      %v7118 = vunpack.c.l.b16 %v7082
      %v7119 = vunpack.c.h.b16 %v7082
      %v7120 = vunpack.c.l.b16 %v7083
      %v7121 = vunpack.c.h.b16 %v7083
      %v7122 = vunpack.c.l.b16 %v7084
      %v7123 = vunpack.c.h.b16 %v7084
      %v7124 = vunpack.c.l.b16 %v7085
      %v7125 = vunpack.c.h.b16 %v7085
      %v7126 = vunpack.c.l.b16 %v7086
      %v7127 = vunpack.c.h.b16 %v7086
      %v7128 = vunpack.c.l.b16 %v7087
      %v7129 = vunpack.c.h.b16 %v7087
      %v7130 = vunpack.c.l.b16 %v7088
      %v7131 = vunpack.c.h.b16 %v7088
      %v7132 = vunpack.c.l.b16 %v7089
      %v7133 = vunpack.c.h.b16 %v7089
      %v7134 = vunpack.c.l.b16 %v7090
      %v7135 = vunpack.c.h.b16 %v7090
      %v7136 = vunpack.c.l.b16 %v7091
      %v7137 = vunpack.c.h.b16 %v7091
      %v7138 = vunpack.c.l.b16 %v7092
      %v7139 = vunpack.c.h.b16 %v7092
      %v7140 = vunpack.c.l.b16 %v7093
      %v7141 = vunpack.c.h.b16 %v7093
      %v7142 = vpack.c.b16 %v7112, %v7110
      %v7143 = vpack.c.b16 %v7113, %v7111
      %v7144 = vpack.c.b16 %v7116, %v7114
      %v7145 = vpack.c.b16 %v7117, %v7115
      %v7146 = vpack.c.b16 %v7120, %v7118
      %v7147 = vpack.c.b16 %v7121, %v7119
      %v7148 = vpack.c.b16 %v7124, %v7122
      %v7149 = vpack.c.b16 %v7125, %v7123
      %v7150 = vpack.c.b16 %v7128, %v7126
      %v7151 = vpack.c.b16 %v7129, %v7127
      %v7152 = vpack.c.b16 %v7132, %v7130
      %v7153 = vpack.c.b16 %v7133, %v7131
      %v7154 = vpack.c.b16 %v7136, %v7134
      %v7155 = vpack.c.b16 %v7137, %v7135
      %v7156 = vpack.c.b16 %v7140, %v7138
      %v7157 = vpack.c.b16 %v7141, %v7139
      %7174 = vmatprep.subr.bf16.mxu0 %v7143
      %7175 = vmatpush1.bf16.msra.mxu0 %v7142
      %7176 = vmatprep.subr.bf16.mxu0 %v7145
      %7177 = vmatpush1.bf16.msra.mxu0 %v7144
      %7178 = vmatprep.subr.bf16.mxu0 %v7147
      %7179 = vmatpush1.bf16.msra.mxu0 %v7146
      %7180 = vmatprep.subr.bf16.mxu0 %v7149
      %7181 = vmatpush1.bf16.msra.mxu0 %v7148
      %7182 = vmatprep.subr.bf16.mxu0 %v7151
      %7183 = vmatpush1.bf16.msra.mxu0 %v7150
      %7184 = vmatprep.subr.bf16.mxu0 %v7153
      %7185 = vmatpush1.bf16.msra.mxu0 %v7152
      %7186 = vmatprep.subr.bf16.mxu0 %v7155
      %7187 = vmatpush1.bf16.msra.mxu0 %v7154
      %7188 = vmatprep.subr.bf16.mxu0 %v7157
      %7189 = vmatpush1.bf16.msra.mxu0 %v7156
      %7190 = vmatprep.subr.bf16.mxu0 0
      %7191 = vmatpush1.bf16.msra.mxu0 0
      %7192 = vmatprep.subr.bf16.mxu0 0
      %7193 = vmatpush1.bf16.msra.mxu0 0
      %7194 = vmatprep.subr.bf16.mxu0 0
      %7195 = vmatpush1.bf16.msra.mxu0 0
      %7196 = vmatprep.subr.bf16.mxu0 0
      %7197 = vmatpush1.bf16.msra.mxu0 0
      %7198 = vmatprep.subr.bf16.mxu0 0
      %7199 = vmatpush1.bf16.msra.mxu0 0
      %7200 = vmatprep.subr.bf16.mxu0 0
      %7201 = vmatpush1.bf16.msra.mxu0 0
      %7202 = vmatprep.subr.bf16.mxu0 0
      %7203 = vmatpush1.bf16.msra.mxu0 0
      %7204 = vmatprep.subr.bf16.mxu0 0
      %7205 = vmatpush1.bf16.msra.mxu0 0
      %7206 = vmatprep.mubr.bf16.mxu0 0
      %7207 = vmatmul.mubr.bf16.gmra.mrb[0].mxu0 %v7076
      %v7208 = vpop.f32.mrb[0].mxu0
      %v7209 = vadd.f32 0.0, %v7208
      %v7210 = vpop.f32.mrb[0].mxu0
      %v7211 = vadd.f32 0.0, %v7210
      %v7212 = vpop.f32.mrb[0].mxu0
      %v7213 = vpop.f32.mrb[0].mxu0
      %7214 = vdwg.mxu0
      %v7215 = vadd.f32 %v7034, %v7209
      %v7216 = vadd.f32 %v7035, %v7211
      %v7218 = vlaneseq
      %v7219 = vshrl.u32 %v7218, 7
      %v7220 = vsub.s32 0, %v7219
      %v7221 = vrot.slane %v4292, %v7220
      %v7222 = vlaneseq
      %v7223 = vshrl.u32 %v7222, 7
      %v7224 = vsub.s32 1, %v7223
      %v7225 = vrot.slane %v4292, %v7224
      %v7228 = vadd.f32 %v7215, %v7221
      %v7229 = vadd.f32 %v7216, %v7225
      %v7230 = vmax.f32 %v7228, 0.0
      %v7231 = vmax.f32 %v7229, 0.0
      %v7234 = vcombine.low %v7230, %v7231
      %v7236 = vunpack.c.l.s4 1983009808
      %v7237 = vunpack.c.0.s8 %v7236
      %v7238 = vlaneseq
      %v7239 = vshrl.u32 %v7238, 7
      %v7240 = vsub.s32 %v7237, %v7239
      %v7241 = vrot.slane %v7234, %v7240
      %7243 = vst [vmem:[%s332] sm:$0xf] %v7241
      %v7244 = vld [vmem:[%s5759] sm:$0x7]
      %v7246 = vsel %vm4298, %v7244, 0
      %7248 = vmatprep.subr.bf16.mxu0 0
      %7249 = vmatpush1.bf16.msra.mxu0 %v7246
      %7250 = vmatprep.subr.bf16.mxu0 0
      %7251 = vmatpush1.bf16.msra.mxu0 0
      %7252 = vmatprep.subr.bf16.mxu0 0
      %7253 = vmatpush1.bf16.msra.mxu0 0
      %7254 = vmatprep.subr.bf16.mxu0 0
      %7255 = vmatpush1.bf16.msra.mxu0 0
      %7256 = vmatprep.subr.bf16.mxu0 0
      %7257 = vmatpush1.bf16.msra.mxu0 0
      %7258 = vmatprep.subr.bf16.mxu0 0
      %7259 = vmatpush1.bf16.msra.mxu0 0
      %7260 = vmatprep.subr.bf16.mxu0 0
      %7261 = vmatpush1.bf16.msra.mxu0 0
      %7262 = vmatprep.subr.bf16.mxu0 0
      %7263 = vmatpush1.bf16.msra.mxu0 0
      %7264 = vmatprep.subr.bf16.mxu0 0
      %7265 = vmatpush1.bf16.msra.mxu0 0
      %7266 = vmatprep.subr.bf16.mxu0 0
      %7267 = vmatpush1.bf16.msra.mxu0 0
      %7268 = vmatprep.subr.bf16.mxu0 0
      %7269 = vmatpush1.bf16.msra.mxu0 0
      %7270 = vmatprep.subr.bf16.mxu0 0
      %7271 = vmatpush1.bf16.msra.mxu0 0
      %7272 = vmatprep.subr.bf16.mxu0 0
      %7273 = vmatpush1.bf16.msra.mxu0 0
      %7274 = vmatprep.subr.bf16.mxu0 0
      %7275 = vmatpush1.bf16.msra.mxu0 0
      %7276 = vmatprep.subr.bf16.mxu0 0
      %7277 = vmatpush1.bf16.msra.mxu0 0
      %7278 = vmatprep.subr.bf16.mxu0 0
      %7279 = vmatpush1.bf16.msra.mxu0 0
      %7280 = vmatprep.mubr.bf16.mxu0 0
      %7281 = vmatmul.mubr.bf16.gmra.mrb[0].mxu0 %v4296
      %v7282 = vpop.f32.mrb[0].mxu0
      %v7283 = vadd.f32 0.0, %v7282
      %v7284 = vpop.f32.mrb[0].mxu0
      %v7285 = vpop.f32.mrb[0].mxu0
      %v7286 = vpop.f32.mrb[0].mxu0
      %7287 = vdwg.mxu0
      %v7288 = vpack.c.bf16 %v7283, %v7283
      %v7289 = vld [vmem:[%s7] sm:$0xff]
      %v7290 = vld [vmem:[%s7 + $0x8] sm:$0xff]
      %v7291 = vld [vmem:[%s7 + $0x10] sm:$0xff]
      %v7292 = vld [vmem:[%s7 + $0x18] sm:$0xff]
      %v7293 = vld [vmem:[%s7 + $0x20] sm:$0xff]
      %v7294 = vld [vmem:[%s7 + $0x28] sm:$0xff]
      %v7295 = vld [vmem:[%s7 + $0x30] sm:$0xff]
      %v7296 = vld [vmem:[%s7 + $0x38] sm:$0xff]
      %v7297 = vld [vmem:[%s7 + $0x40] sm:$0xff]
      %v7298 = vld [vmem:[%s7 + $0x48] sm:$0xff]
      %v7299 = vld [vmem:[%s7 + $0x50] sm:$0xff]
      %v7300 = vld [vmem:[%s7 + $0x58] sm:$0xff]
      %v7301 = vld [vmem:[%s7 + $0x60] sm:$0xff]
      %v7302 = vld [vmem:[%s7 + $0x68] sm:$0xff]
      %v7303 = vld [vmem:[%s7 + $0x70] sm:$0xff]
      %v7304 = vld [vmem:[%s7 + $0x78] sm:$0xff]
      %7305 = vmatprep.subr.bf16.mxu0 0
      %7306 = vmatpush1.bf16.msra.mxu0 %v7246
      %7307 = vmatprep.subr.bf16.mxu0 0
      %7308 = vmatpush1.bf16.msra.mxu0 0
      %7309 = vmatprep.subr.bf16.mxu0 0
      %7310 = vmatpush1.bf16.msra.mxu0 0
      %7311 = vmatprep.subr.bf16.mxu0 0
      %7312 = vmatpush1.bf16.msra.mxu0 0
      %7313 = vmatprep.subr.bf16.mxu0 0
      %7314 = vmatpush1.bf16.msra.mxu0 0
      %7315 = vmatprep.subr.bf16.mxu0 0
      %7316 = vmatpush1.bf16.msra.mxu0 0
      %7317 = vmatprep.subr.bf16.mxu0 0
      %7318 = vmatpush1.bf16.msra.mxu0 0
      %7319 = vmatprep.subr.bf16.mxu0 0
      %7320 = vmatpush1.bf16.msra.mxu0 0
      %7321 = vmatprep.subr.bf16.mxu0 0
      %7322 = vmatpush1.bf16.msra.mxu0 0
      %7323 = vmatprep.subr.bf16.mxu0 0
      %7324 = vmatpush1.bf16.msra.mxu0 0
      %7325 = vmatprep.subr.bf16.mxu0 0
      %7326 = vmatpush1.bf16.msra.mxu0 0
      %7327 = vmatprep.subr.bf16.mxu0 0
      %7328 = vmatpush1.bf16.msra.mxu0 0
      %7329 = vmatprep.subr.bf16.mxu0 0
      %7330 = vmatpush1.bf16.msra.mxu0 0
      %7331 = vmatprep.subr.bf16.mxu0 0
      %7332 = vmatpush1.bf16.msra.mxu0 0
      %7333 = vmatprep.subr.bf16.mxu0 0
      %7334 = vmatpush1.bf16.msra.mxu0 0
      %7335 = vmatprep.subr.bf16.mxu0 0
      %7336 = vmatpush1.bf16.msra.mxu0 0
      %7337 = vmatprep.mubr.bf16.mxu0 0
      %7338 = vmatmul.mubr.bf16.gmra.mrb[0].mxu0 %v4360
      %v7339 = vpop.f32.mrb[0].mxu0
      %v7340 = vadd.f32 0.0, %v7339
      %v7341 = vpop.f32.mrb[0].mxu0
      %v7342 = vpop.f32.mrb[0].mxu0
      %v7343 = vpop.f32.mrb[0].mxu0
      %7344 = vdwg.mxu0
      %v7345 = vpack.c.bf16 %v7340, %v7340
      %v7346 = vld [vmem:[%s4403] sm:$0xff]
      %v7347 = vld [vmem:[%s4403 + $0x8] sm:$0xff]
      %v7348 = vld [vmem:[%s4403 + $0x10] sm:$0xff]
      %v7349 = vld [vmem:[%s4403 + $0x18] sm:$0xff]
      %v7350 = vld [vmem:[%s4403 + $0x20] sm:$0xff]
      %v7351 = vld [vmem:[%s4403 + $0x28] sm:$0xff]
      %v7352 = vld [vmem:[%s4403 + $0x30] sm:$0xff]
      %v7353 = vld [vmem:[%s4403 + $0x38] sm:$0xff]
      %v7354 = vld [vmem:[%s4403 + $0x40] sm:$0xff]
      %v7355 = vld [vmem:[%s4403 + $0x48] sm:$0xff]
      %v7356 = vld [vmem:[%s4403 + $0x50] sm:$0xff]
      %v7357 = vld [vmem:[%s4403 + $0x58] sm:$0xff]
      %v7358 = vld [vmem:[%s4403 + $0x60] sm:$0xff]
      %v7359 = vld [vmem:[%s4403 + $0x68] sm:$0xff]
      %v7360 = vld [vmem:[%s4403 + $0x70] sm:$0xff]
      %v7361 = vld [vmem:[%s4403 + $0x78] sm:$0xff]
      %v7378 = vunpack.c.l.b16 %v7346
      %v7379 = vunpack.c.h.b16 %v7346
      %v7380 = vunpack.c.l.b16 %v7347
      %v7381 = vunpack.c.h.b16 %v7347
      %v7382 = vunpack.c.l.b16 %v7348
      %v7383 = vunpack.c.h.b16 %v7348
      %v7384 = vunpack.c.l.b16 %v7349
      %v7385 = vunpack.c.h.b16 %v7349
      %v7386 = vunpack.c.l.b16 %v7350
      %v7387 = vunpack.c.h.b16 %v7350
      %v7388 = vunpack.c.l.b16 %v7351
      %v7389 = vunpack.c.h.b16 %v7351
      %v7390 = vunpack.c.l.b16 %v7352
      %v7391 = vunpack.c.h.b16 %v7352
      %v7392 = vunpack.c.l.b16 %v7353
      %v7393 = vunpack.c.h.b16 %v7353
      %v7394 = vunpack.c.l.b16 %v7354
      %v7395 = vunpack.c.h.b16 %v7354
      %v7396 = vunpack.c.l.b16 %v7355
      %v7397 = vunpack.c.h.b16 %v7355
      %v7398 = vunpack.c.l.b16 %v7356
      %v7399 = vunpack.c.h.b16 %v7356
      %v7400 = vunpack.c.l.b16 %v7357
      %v7401 = vunpack.c.h.b16 %v7357
      %v7402 = vunpack.c.l.b16 %v7358
      %v7403 = vunpack.c.h.b16 %v7358
      %v7404 = vunpack.c.l.b16 %v7359
      %v7405 = vunpack.c.h.b16 %v7359
      %v7406 = vunpack.c.l.b16 %v7360
      %v7407 = vunpack.c.h.b16 %v7360
      %v7408 = vunpack.c.l.b16 %v7361
      %v7409 = vunpack.c.h.b16 %v7361
      %v7410 = vpack.c.b16 %v7380, %v7378
      %v7411 = vpack.c.b16 %v7381, %v7379
      %v7412 = vpack.c.b16 %v7384, %v7382
      %v7413 = vpack.c.b16 %v7385, %v7383
      %v7414 = vpack.c.b16 %v7388, %v7386
      %v7415 = vpack.c.b16 %v7389, %v7387
      %v7416 = vpack.c.b16 %v7392, %v7390
      %v7417 = vpack.c.b16 %v7393, %v7391
      %v7418 = vpack.c.b16 %v7396, %v7394
      %v7419 = vpack.c.b16 %v7397, %v7395
      %v7420 = vpack.c.b16 %v7400, %v7398
      %v7421 = vpack.c.b16 %v7401, %v7399
      %v7422 = vpack.c.b16 %v7404, %v7402
      %v7423 = vpack.c.b16 %v7405, %v7403
      %v7424 = vpack.c.b16 %v7408, %v7406
      %v7425 = vpack.c.b16 %v7409, %v7407
      %7442 = vmatprep.subr.bf16.mxu0 %v7411
      %7443 = vmatpush1.bf16.msra.mxu0 %v7410
      %7444 = vmatprep.subr.bf16.mxu0 %v7413
      %7445 = vmatpush1.bf16.msra.mxu0 %v7412
      %7446 = vmatprep.subr.bf16.mxu0 %v7415
      %7447 = vmatpush1.bf16.msra.mxu0 %v7414
      %7448 = vmatprep.subr.bf16.mxu0 %v7417
      %7449 = vmatpush1.bf16.msra.mxu0 %v7416
      %7450 = vmatprep.subr.bf16.mxu0 %v7419
      %7451 = vmatpush1.bf16.msra.mxu0 %v7418
      %7452 = vmatprep.subr.bf16.mxu0 %v7421
      %7453 = vmatpush1.bf16.msra.mxu0 %v7420
      %7454 = vmatprep.subr.bf16.mxu0 %v7423
      %7455 = vmatpush1.bf16.msra.mxu0 %v7422
      %7456 = vmatprep.subr.bf16.mxu0 %v7425
      %7457 = vmatpush1.bf16.msra.mxu0 %v7424
      %7458 = vmatprep.subr.bf16.mxu0 0
      %7459 = vmatpush1.bf16.msra.mxu0 0
      %7460 = vmatprep.subr.bf16.mxu0 0
      %7461 = vmatpush1.bf16.msra.mxu0 0
      %7462 = vmatprep.subr.bf16.mxu0 0
      %7463 = vmatpush1.bf16.msra.mxu0 0
      %7464 = vmatprep.subr.bf16.mxu0 0
      %7465 = vmatpush1.bf16.msra.mxu0 0
      %7466 = vmatprep.subr.bf16.mxu0 0
      %7467 = vmatpush1.bf16.msra.mxu0 0
      %7468 = vmatprep.subr.bf16.mxu0 0
      %7469 = vmatpush1.bf16.msra.mxu0 0
      %7470 = vmatprep.subr.bf16.mxu0 0
      %7471 = vmatpush1.bf16.msra.mxu0 0
      %7472 = vmatprep.subr.bf16.mxu0 0
      %7473 = vmatpush1.bf16.msra.mxu0 0
      %7474 = vmatprep.mubr.bf16.mxu0 0
      %7475 = vmatmul.mubr.bf16.gmra.mrb[0].mxu0 %v7345
      %v7476 = vpop.f32.mrb[0].mxu0
      %v7477 = vadd.f32 0.0, %v7476
      %v7478 = vpop.f32.mrb[0].mxu0
      %v7479 = vadd.f32 0.0, %v7478
      %v7480 = vpop.f32.mrb[0].mxu0
      %v7481 = vpop.f32.mrb[0].mxu0
      %7482 = vdwg.mxu0
      %v7499 = vunpack.c.l.b16 %v7289
      %v7500 = vunpack.c.h.b16 %v7289
      %v7501 = vunpack.c.l.b16 %v7290
      %v7502 = vunpack.c.h.b16 %v7290
      %v7503 = vunpack.c.l.b16 %v7291
      %v7504 = vunpack.c.h.b16 %v7291
      %v7505 = vunpack.c.l.b16 %v7292
      %v7506 = vunpack.c.h.b16 %v7292
      %v7507 = vunpack.c.l.b16 %v7293
      %v7508 = vunpack.c.h.b16 %v7293
      %v7509 = vunpack.c.l.b16 %v7294
      %v7510 = vunpack.c.h.b16 %v7294
      %v7511 = vunpack.c.l.b16 %v7295
      %v7512 = vunpack.c.h.b16 %v7295
      %v7513 = vunpack.c.l.b16 %v7296
      %v7514 = vunpack.c.h.b16 %v7296
      %v7515 = vunpack.c.l.b16 %v7297
      %v7516 = vunpack.c.h.b16 %v7297
      %v7517 = vunpack.c.l.b16 %v7298
      %v7518 = vunpack.c.h.b16 %v7298
      %v7519 = vunpack.c.l.b16 %v7299
      %v7520 = vunpack.c.h.b16 %v7299
      %v7521 = vunpack.c.l.b16 %v7300
      %v7522 = vunpack.c.h.b16 %v7300
      %v7523 = vunpack.c.l.b16 %v7301
      %v7524 = vunpack.c.h.b16 %v7301
      %v7525 = vunpack.c.l.b16 %v7302
      %v7526 = vunpack.c.h.b16 %v7302
      %v7527 = vunpack.c.l.b16 %v7303
      %v7528 = vunpack.c.h.b16 %v7303
      %v7529 = vunpack.c.l.b16 %v7304
      %v7530 = vunpack.c.h.b16 %v7304
      %v7531 = vpack.c.b16 %v7501, %v7499
      %v7532 = vpack.c.b16 %v7502, %v7500
      %v7533 = vpack.c.b16 %v7505, %v7503
      %v7534 = vpack.c.b16 %v7506, %v7504
      %v7535 = vpack.c.b16 %v7509, %v7507
      %v7536 = vpack.c.b16 %v7510, %v7508
      %v7537 = vpack.c.b16 %v7513, %v7511
      %v7538 = vpack.c.b16 %v7514, %v7512
      %v7539 = vpack.c.b16 %v7517, %v7515
      %v7540 = vpack.c.b16 %v7518, %v7516
      %v7541 = vpack.c.b16 %v7521, %v7519
      %v7542 = vpack.c.b16 %v7522, %v7520
      %v7543 = vpack.c.b16 %v7525, %v7523
      %v7544 = vpack.c.b16 %v7526, %v7524
      %v7545 = vpack.c.b16 %v7529, %v7527
      %v7546 = vpack.c.b16 %v7530, %v7528
      %7563 = vmatprep.subr.bf16.mxu0 %v7532
      %7564 = vmatpush1.bf16.msra.mxu0 %v7531
      %7565 = vmatprep.subr.bf16.mxu0 %v7534
      %7566 = vmatpush1.bf16.msra.mxu0 %v7533
      %7567 = vmatprep.subr.bf16.mxu0 %v7536
      %7568 = vmatpush1.bf16.msra.mxu0 %v7535
      %7569 = vmatprep.subr.bf16.mxu0 %v7538
      %7570 = vmatpush1.bf16.msra.mxu0 %v7537
      %7571 = vmatprep.subr.bf16.mxu0 %v7540
      %7572 = vmatpush1.bf16.msra.mxu0 %v7539
      %7573 = vmatprep.subr.bf16.mxu0 %v7542
      %7574 = vmatpush1.bf16.msra.mxu0 %v7541
      %7575 = vmatprep.subr.bf16.mxu0 %v7544
      %7576 = vmatpush1.bf16.msra.mxu0 %v7543
      %7577 = vmatprep.subr.bf16.mxu0 %v7546
      %7578 = vmatpush1.bf16.msra.mxu0 %v7545
      %7579 = vmatprep.subr.bf16.mxu0 0
      %7580 = vmatpush1.bf16.msra.mxu0 0
      %7581 = vmatprep.subr.bf16.mxu0 0
      %7582 = vmatpush1.bf16.msra.mxu0 0
      %7583 = vmatprep.subr.bf16.mxu0 0
      %7584 = vmatpush1.bf16.msra.mxu0 0
      %7585 = vmatprep.subr.bf16.mxu0 0
      %7586 = vmatpush1.bf16.msra.mxu0 0
      %7587 = vmatprep.subr.bf16.mxu0 0
      %7588 = vmatpush1.bf16.msra.mxu0 0
      %7589 = vmatprep.subr.bf16.mxu0 0
      %7590 = vmatpush1.bf16.msra.mxu0 0
      %7591 = vmatprep.subr.bf16.mxu0 0
      %7592 = vmatpush1.bf16.msra.mxu0 0
      %7593 = vmatprep.subr.bf16.mxu0 0
      %7594 = vmatpush1.bf16.msra.mxu0 0
      %7595 = vmatprep.mubr.bf16.mxu0 0
      %7596 = vmatmul.mubr.bf16.gmra.mrb[0].mxu0 %v7288
      %v7597 = vpop.f32.mrb[0].mxu0
      %v7598 = vadd.f32 %v7477, %v7597
      %v7599 = vpop.f32.mrb[0].mxu0
      %v7600 = vadd.f32 %v7479, %v7599
      %v7601 = vpop.f32.mrb[0].mxu0
      %v7602 = vpop.f32.mrb[0].mxu0
      %7603 = vdwg.mxu0
      %7604 = vmatprep.subr.bf16.mxu0 0
      %7605 = vmatpush1.bf16.msra.mxu0 %v7246
      %7606 = vmatprep.subr.bf16.mxu0 0
      %7607 = vmatpush1.bf16.msra.mxu0 0
      %7608 = vmatprep.subr.bf16.mxu0 0
      %7609 = vmatpush1.bf16.msra.mxu0 0
      %7610 = vmatprep.subr.bf16.mxu0 0
      %7611 = vmatpush1.bf16.msra.mxu0 0
      %7612 = vmatprep.subr.bf16.mxu0 0
      %7613 = vmatpush1.bf16.msra.mxu0 0
      %7614 = vmatprep.subr.bf16.mxu0 0
      %7615 = vmatpush1.bf16.msra.mxu0 0
      %7616 = vmatprep.subr.bf16.mxu0 0
      %7617 = vmatpush1.bf16.msra.mxu0 0
      %7618 = vmatprep.subr.bf16.mxu0 0
      %7619 = vmatpush1.bf16.msra.mxu0 0
      %7620 = vmatprep.subr.bf16.mxu0 0
      %7621 = vmatpush1.bf16.msra.mxu0 0
      %7622 = vmatprep.subr.bf16.mxu0 0
      %7623 = vmatpush1.bf16.msra.mxu0 0
      %7624 = vmatprep.subr.bf16.mxu0 0
      %7625 = vmatpush1.bf16.msra.mxu0 0
      %7626 = vmatprep.subr.bf16.mxu0 0
      %7627 = vmatpush1.bf16.msra.mxu0 0
      %7628 = vmatprep.subr.bf16.mxu0 0
      %7629 = vmatpush1.bf16.msra.mxu0 0
      %7630 = vmatprep.subr.bf16.mxu0 0
      %7631 = vmatpush1.bf16.msra.mxu0 0
      %7632 = vmatprep.subr.bf16.mxu0 0
      %7633 = vmatpush1.bf16.msra.mxu0 0
      %7634 = vmatprep.subr.bf16.mxu0 0
      %7635 = vmatpush1.bf16.msra.mxu0 0
      %7636 = vmatprep.mubr.bf16.mxu0 0
      %7637 = vmatmul.mubr.bf16.gmra.mrb[0].mxu0 %v4663
      %v7638 = vpop.f32.mrb[0].mxu0
      %v7639 = vadd.f32 0.0, %v7638
      %v7640 = vpop.f32.mrb[0].mxu0
      %v7641 = vpop.f32.mrb[0].mxu0
      %v7642 = vpop.f32.mrb[0].mxu0
      %7643 = vdwg.mxu0
      %v7644 = vpack.c.bf16 %v7639, %v7639
      %v7645 = vld [vmem:[%s4706] sm:$0xff]
      %v7646 = vld [vmem:[%s4706 + $0x8] sm:$0xff]
      %v7647 = vld [vmem:[%s4706 + $0x10] sm:$0xff]
      %v7648 = vld [vmem:[%s4706 + $0x18] sm:$0xff]
      %v7649 = vld [vmem:[%s4706 + $0x20] sm:$0xff]
      %v7650 = vld [vmem:[%s4706 + $0x28] sm:$0xff]
      %v7651 = vld [vmem:[%s4706 + $0x30] sm:$0xff]
      %v7652 = vld [vmem:[%s4706 + $0x38] sm:$0xff]
      %v7653 = vld [vmem:[%s4706 + $0x40] sm:$0xff]
      %v7654 = vld [vmem:[%s4706 + $0x48] sm:$0xff]
      %v7655 = vld [vmem:[%s4706 + $0x50] sm:$0xff]
      %v7656 = vld [vmem:[%s4706 + $0x58] sm:$0xff]
      %v7657 = vld [vmem:[%s4706 + $0x60] sm:$0xff]
      %v7658 = vld [vmem:[%s4706 + $0x68] sm:$0xff]
      %v7659 = vld [vmem:[%s4706 + $0x70] sm:$0xff]
      %v7660 = vld [vmem:[%s4706 + $0x78] sm:$0xff]
      %v7677 = vunpack.c.l.b16 %v7645
      %v7678 = vunpack.c.h.b16 %v7645
      %v7679 = vunpack.c.l.b16 %v7646
      %v7680 = vunpack.c.h.b16 %v7646
      %v7681 = vunpack.c.l.b16 %v7647
      %v7682 = vunpack.c.h.b16 %v7647
      %v7683 = vunpack.c.l.b16 %v7648
      %v7684 = vunpack.c.h.b16 %v7648
      %v7685 = vunpack.c.l.b16 %v7649
      %v7686 = vunpack.c.h.b16 %v7649
      %v7687 = vunpack.c.l.b16 %v7650
      %v7688 = vunpack.c.h.b16 %v7650
      %v7689 = vunpack.c.l.b16 %v7651
      %v7690 = vunpack.c.h.b16 %v7651
      %v7691 = vunpack.c.l.b16 %v7652
      %v7692 = vunpack.c.h.b16 %v7652
      %v7693 = vunpack.c.l.b16 %v7653
      %v7694 = vunpack.c.h.b16 %v7653
      %v7695 = vunpack.c.l.b16 %v7654
      %v7696 = vunpack.c.h.b16 %v7654
      %v7697 = vunpack.c.l.b16 %v7655
      %v7698 = vunpack.c.h.b16 %v7655
      %v7699 = vunpack.c.l.b16 %v7656
      %v7700 = vunpack.c.h.b16 %v7656
      %v7701 = vunpack.c.l.b16 %v7657
      %v7702 = vunpack.c.h.b16 %v7657
      %v7703 = vunpack.c.l.b16 %v7658
      %v7704 = vunpack.c.h.b16 %v7658
      %v7705 = vunpack.c.l.b16 %v7659
      %v7706 = vunpack.c.h.b16 %v7659
      %v7707 = vunpack.c.l.b16 %v7660
      %v7708 = vunpack.c.h.b16 %v7660
      %v7709 = vpack.c.b16 %v7679, %v7677
      %v7710 = vpack.c.b16 %v7680, %v7678
      %v7711 = vpack.c.b16 %v7683, %v7681
      %v7712 = vpack.c.b16 %v7684, %v7682
      %v7713 = vpack.c.b16 %v7687, %v7685
      %v7714 = vpack.c.b16 %v7688, %v7686
      %v7715 = vpack.c.b16 %v7691, %v7689
      %v7716 = vpack.c.b16 %v7692, %v7690
      %v7717 = vpack.c.b16 %v7695, %v7693
      %v7718 = vpack.c.b16 %v7696, %v7694
      %v7719 = vpack.c.b16 %v7699, %v7697
      %v7720 = vpack.c.b16 %v7700, %v7698
      %v7721 = vpack.c.b16 %v7703, %v7701
      %v7722 = vpack.c.b16 %v7704, %v7702
      %v7723 = vpack.c.b16 %v7707, %v7705
      %v7724 = vpack.c.b16 %v7708, %v7706
      %7741 = vmatprep.subr.bf16.mxu0 %v7710
      %7742 = vmatpush1.bf16.msra.mxu0 %v7709
      %7743 = vmatprep.subr.bf16.mxu0 %v7712
      %7744 = vmatpush1.bf16.msra.mxu0 %v7711
      %7745 = vmatprep.subr.bf16.mxu0 %v7714
      %7746 = vmatpush1.bf16.msra.mxu0 %v7713
      %7747 = vmatprep.subr.bf16.mxu0 %v7716
      %7748 = vmatpush1.bf16.msra.mxu0 %v7715
      %7749 = vmatprep.subr.bf16.mxu0 %v7718
      %7750 = vmatpush1.bf16.msra.mxu0 %v7717
      %7751 = vmatprep.subr.bf16.mxu0 %v7720
      %7752 = vmatpush1.bf16.msra.mxu0 %v7719
      %7753 = vmatprep.subr.bf16.mxu0 %v7722
      %7754 = vmatpush1.bf16.msra.mxu0 %v7721
      %7755 = vmatprep.subr.bf16.mxu0 %v7724
      %7756 = vmatpush1.bf16.msra.mxu0 %v7723
      %7757 = vmatprep.subr.bf16.mxu0 0
      %7758 = vmatpush1.bf16.msra.mxu0 0
      %7759 = vmatprep.subr.bf16.mxu0 0
      %7760 = vmatpush1.bf16.msra.mxu0 0
      %7761 = vmatprep.subr.bf16.mxu0 0
      %7762 = vmatpush1.bf16.msra.mxu0 0
      %7763 = vmatprep.subr.bf16.mxu0 0
      %7764 = vmatpush1.bf16.msra.mxu0 0
      %7765 = vmatprep.subr.bf16.mxu0 0
      %7766 = vmatpush1.bf16.msra.mxu0 0
      %7767 = vmatprep.subr.bf16.mxu0 0
      %7768 = vmatpush1.bf16.msra.mxu0 0
      %7769 = vmatprep.subr.bf16.mxu0 0
      %7770 = vmatpush1.bf16.msra.mxu0 0
      %7771 = vmatprep.subr.bf16.mxu0 0
      %7772 = vmatpush1.bf16.msra.mxu0 0
      %7773 = vmatprep.mubr.bf16.mxu0 0
      %7774 = vmatmul.mubr.bf16.gmra.mrb[0].mxu0 %v7644
      %v7775 = vpop.f32.mrb[0].mxu0
      %v7776 = vadd.f32 0.0, %v7775
      %v7777 = vpop.f32.mrb[0].mxu0
      %v7778 = vadd.f32 0.0, %v7777
      %v7779 = vpop.f32.mrb[0].mxu0
      %v7780 = vpop.f32.mrb[0].mxu0
      %7781 = vdwg.mxu0
      %v7782 = vadd.f32 %v7598, %v7776
      %v7783 = vadd.f32 %v7600, %v7778
      %7784 = vmatprep.subr.bf16.mxu0 0
      %7785 = vmatpush1.bf16.msra.mxu0 %v7246
      %7786 = vmatprep.subr.bf16.mxu0 0
      %7787 = vmatpush1.bf16.msra.mxu0 0
      %7788 = vmatprep.subr.bf16.mxu0 0
      %7789 = vmatpush1.bf16.msra.mxu0 0
      %7790 = vmatprep.subr.bf16.mxu0 0
      %7791 = vmatpush1.bf16.msra.mxu0 0
      %7792 = vmatprep.subr.bf16.mxu0 0
      %7793 = vmatpush1.bf16.msra.mxu0 0
      %7794 = vmatprep.subr.bf16.mxu0 0
      %7795 = vmatpush1.bf16.msra.mxu0 0
      %7796 = vmatprep.subr.bf16.mxu0 0
      %7797 = vmatpush1.bf16.msra.mxu0 0
      %7798 = vmatprep.subr.bf16.mxu0 0
      %7799 = vmatpush1.bf16.msra.mxu0 0
      %7800 = vmatprep.subr.bf16.mxu0 0
      %7801 = vmatpush1.bf16.msra.mxu0 0
      %7802 = vmatprep.subr.bf16.mxu0 0
      %7803 = vmatpush1.bf16.msra.mxu0 0
      %7804 = vmatprep.subr.bf16.mxu0 0
      %7805 = vmatpush1.bf16.msra.mxu0 0
      %7806 = vmatprep.subr.bf16.mxu0 0
      %7807 = vmatpush1.bf16.msra.mxu0 0
      %7808 = vmatprep.subr.bf16.mxu0 0
      %7809 = vmatpush1.bf16.msra.mxu0 0
      %7810 = vmatprep.subr.bf16.mxu0 0
      %7811 = vmatpush1.bf16.msra.mxu0 0
      %7812 = vmatprep.subr.bf16.mxu0 0
      %7813 = vmatpush1.bf16.msra.mxu0 0
      %7814 = vmatprep.subr.bf16.mxu0 0
      %7815 = vmatpush1.bf16.msra.mxu0 0
      %7816 = vmatprep.mubr.bf16.mxu0 0
      %7817 = vmatmul.mubr.bf16.gmra.mrb[0].mxu0 %v4847
      %v7818 = vpop.f32.mrb[0].mxu0
      %v7819 = vadd.f32 0.0, %v7818
      %v7820 = vpop.f32.mrb[0].mxu0
      %v7821 = vpop.f32.mrb[0].mxu0
      %v7822 = vpop.f32.mrb[0].mxu0
      %7823 = vdwg.mxu0
      %v7824 = vpack.c.bf16 %v7819, %v7819
      %v7825 = vld [vmem:[%s4890] sm:$0xff]
      %v7826 = vld [vmem:[%s4890 + $0x8] sm:$0xff]
      %v7827 = vld [vmem:[%s4890 + $0x10] sm:$0xff]
      %v7828 = vld [vmem:[%s4890 + $0x18] sm:$0xff]
      %v7829 = vld [vmem:[%s4890 + $0x20] sm:$0xff]
      %v7830 = vld [vmem:[%s4890 + $0x28] sm:$0xff]
      %v7831 = vld [vmem:[%s4890 + $0x30] sm:$0xff]
      %v7832 = vld [vmem:[%s4890 + $0x38] sm:$0xff]
      %v7833 = vld [vmem:[%s4890 + $0x40] sm:$0xff]
      %v7834 = vld [vmem:[%s4890 + $0x48] sm:$0xff]
      %v7835 = vld [vmem:[%s4890 + $0x50] sm:$0xff]
      %v7836 = vld [vmem:[%s4890 + $0x58] sm:$0xff]
      %v7837 = vld [vmem:[%s4890 + $0x60] sm:$0xff]
      %v7838 = vld [vmem:[%s4890 + $0x68] sm:$0xff]
      %v7839 = vld [vmem:[%s4890 + $0x70] sm:$0xff]
      %v7840 = vld [vmem:[%s4890 + $0x78] sm:$0xff]
      %v7857 = vunpack.c.l.b16 %v7825
      %v7858 = vunpack.c.h.b16 %v7825
      %v7859 = vunpack.c.l.b16 %v7826
      %v7860 = vunpack.c.h.b16 %v7826
      %v7861 = vunpack.c.l.b16 %v7827
      %v7862 = vunpack.c.h.b16 %v7827
      %v7863 = vunpack.c.l.b16 %v7828
      %v7864 = vunpack.c.h.b16 %v7828
      %v7865 = vunpack.c.l.b16 %v7829
      %v7866 = vunpack.c.h.b16 %v7829
      %v7867 = vunpack.c.l.b16 %v7830
      %v7868 = vunpack.c.h.b16 %v7830
      %v7869 = vunpack.c.l.b16 %v7831
      %v7870 = vunpack.c.h.b16 %v7831
      %v7871 = vunpack.c.l.b16 %v7832
      %v7872 = vunpack.c.h.b16 %v7832
      %v7873 = vunpack.c.l.b16 %v7833
      %v7874 = vunpack.c.h.b16 %v7833
      %v7875 = vunpack.c.l.b16 %v7834
      %v7876 = vunpack.c.h.b16 %v7834
      %v7877 = vunpack.c.l.b16 %v7835
      %v7878 = vunpack.c.h.b16 %v7835
      %v7879 = vunpack.c.l.b16 %v7836
      %v7880 = vunpack.c.h.b16 %v7836
      %v7881 = vunpack.c.l.b16 %v7837
      %v7882 = vunpack.c.h.b16 %v7837
      %v7883 = vunpack.c.l.b16 %v7838
      %v7884 = vunpack.c.h.b16 %v7838
      %v7885 = vunpack.c.l.b16 %v7839
      %v7886 = vunpack.c.h.b16 %v7839
      %v7887 = vunpack.c.l.b16 %v7840
      %v7888 = vunpack.c.h.b16 %v7840
      %v7889 = vpack.c.b16 %v7859, %v7857
      %v7890 = vpack.c.b16 %v7860, %v7858
      %v7891 = vpack.c.b16 %v7863, %v7861
      %v7892 = vpack.c.b16 %v7864, %v7862
      %v7893 = vpack.c.b16 %v7867, %v7865
      %v7894 = vpack.c.b16 %v7868, %v7866
      %v7895 = vpack.c.b16 %v7871, %v7869
      %v7896 = vpack.c.b16 %v7872, %v7870
      %v7897 = vpack.c.b16 %v7875, %v7873
      %v7898 = vpack.c.b16 %v7876, %v7874
      %v7899 = vpack.c.b16 %v7879, %v7877
      %v7900 = vpack.c.b16 %v7880, %v7878
      %v7901 = vpack.c.b16 %v7883, %v7881
      %v7902 = vpack.c.b16 %v7884, %v7882
      %v7903 = vpack.c.b16 %v7887, %v7885
      %v7904 = vpack.c.b16 %v7888, %v7886
      %7921 = vmatprep.subr.bf16.mxu0 %v7890
      %7922 = vmatpush1.bf16.msra.mxu0 %v7889
      %7923 = vmatprep.subr.bf16.mxu0 %v7892
      %7924 = vmatpush1.bf16.msra.mxu0 %v7891
      %7925 = vmatprep.subr.bf16.mxu0 %v7894
      %7926 = vmatpush1.bf16.msra.mxu0 %v7893
      %7927 = vmatprep.subr.bf16.mxu0 %v7896
      %7928 = vmatpush1.bf16.msra.mxu0 %v7895
      %7929 = vmatprep.subr.bf16.mxu0 %v7898
      %7930 = vmatpush1.bf16.msra.mxu0 %v7897
      %7931 = vmatprep.subr.bf16.mxu0 %v7900
      %7932 = vmatpush1.bf16.msra.mxu0 %v7899
      %7933 = vmatprep.subr.bf16.mxu0 %v7902
      %7934 = vmatpush1.bf16.msra.mxu0 %v7901
      %7935 = vmatprep.subr.bf16.mxu0 %v7904
      %7936 = vmatpush1.bf16.msra.mxu0 %v7903
      %7937 = vmatprep.subr.bf16.mxu0 0
      %7938 = vmatpush1.bf16.msra.mxu0 0
      %7939 = vmatprep.subr.bf16.mxu0 0
      %7940 = vmatpush1.bf16.msra.mxu0 0
      %7941 = vmatprep.subr.bf16.mxu0 0
      %7942 = vmatpush1.bf16.msra.mxu0 0
      %7943 = vmatprep.subr.bf16.mxu0 0
      %7944 = vmatpush1.bf16.msra.mxu0 0
      %7945 = vmatprep.subr.bf16.mxu0 0
      %7946 = vmatpush1.bf16.msra.mxu0 0
      %7947 = vmatprep.subr.bf16.mxu0 0
      %7948 = vmatpush1.bf16.msra.mxu0 0
      %7949 = vmatprep.subr.bf16.mxu0 0
      %7950 = vmatpush1.bf16.msra.mxu0 0
      %7951 = vmatprep.subr.bf16.mxu0 0
      %7952 = vmatpush1.bf16.msra.mxu0 0
      %7953 = vmatprep.mubr.bf16.mxu0 0
      %7954 = vmatmul.mubr.bf16.gmra.mrb[0].mxu0 %v7824
      %v7955 = vpop.f32.mrb[0].mxu0
      %v7956 = vadd.f32 0.0, %v7955
      %v7957 = vpop.f32.mrb[0].mxu0
      %v7958 = vadd.f32 0.0, %v7957
      %v7959 = vpop.f32.mrb[0].mxu0
      %v7960 = vpop.f32.mrb[0].mxu0
      %7961 = vdwg.mxu0
      %v7962 = vadd.f32 %v7782, %v7956
      %v7963 = vadd.f32 %v7783, %v7958
      %v7964 = vld [vmem:[%s6488] sm:$0x7]
      %v7966 = vsel %vm4298, %v7964, 0
      %7968 = vmatprep.subr.bf16.mxu0 0
      %7969 = vmatpush1.bf16.msra.mxu0 %v7966
      %7970 = vmatprep.subr.bf16.mxu0 0
      %7971 = vmatpush1.bf16.msra.mxu0 0
      %7972 = vmatprep.subr.bf16.mxu0 0
      %7973 = vmatpush1.bf16.msra.mxu0 0
      %7974 = vmatprep.subr.bf16.mxu0 0
      %7975 = vmatpush1.bf16.msra.mxu0 0
      %7976 = vmatprep.subr.bf16.mxu0 0
      %7977 = vmatpush1.bf16.msra.mxu0 0
      %7978 = vmatprep.subr.bf16.mxu0 0
      %7979 = vmatpush1.bf16.msra.mxu0 0
      %7980 = vmatprep.subr.bf16.mxu0 0
      %7981 = vmatpush1.bf16.msra.mxu0 0
      %7982 = vmatprep.subr.bf16.mxu0 0
      %7983 = vmatpush1.bf16.msra.mxu0 0
      %7984 = vmatprep.subr.bf16.mxu0 0
      %7985 = vmatpush1.bf16.msra.mxu0 0
      %7986 = vmatprep.subr.bf16.mxu0 0
      %7987 = vmatpush1.bf16.msra.mxu0 0
      %7988 = vmatprep.subr.bf16.mxu0 0
      %7989 = vmatpush1.bf16.msra.mxu0 0
      %7990 = vmatprep.subr.bf16.mxu0 0
      %7991 = vmatpush1.bf16.msra.mxu0 0
      %7992 = vmatprep.subr.bf16.mxu0 0
      %7993 = vmatpush1.bf16.msra.mxu0 0
      %7994 = vmatprep.subr.bf16.mxu0 0
      %7995 = vmatpush1.bf16.msra.mxu0 0
      %7996 = vmatprep.subr.bf16.mxu0 0
      %7997 = vmatpush1.bf16.msra.mxu0 0
      %7998 = vmatprep.subr.bf16.mxu0 0
      %7999 = vmatpush1.bf16.msra.mxu0 0
      %8000 = vmatprep.mubr.bf16.mxu0 0
      %8001 = vmatmul.mubr.bf16.gmra.mrb[0].mxu0 %v4296
      %v8002 = vpop.f32.mrb[0].mxu0
      %v8003 = vadd.f32 0.0, %v8002
      %v8004 = vpop.f32.mrb[0].mxu0
      %v8005 = vpop.f32.mrb[0].mxu0
      %v8006 = vpop.f32.mrb[0].mxu0
      %8007 = vdwg.mxu0
      %v8008 = vpack.c.bf16 %v8003, %v8003
      %v8009 = vld [vmem:[%s5076] sm:$0xff]
      %v8010 = vld [vmem:[%s5076 + $0x8] sm:$0xff]
      %v8011 = vld [vmem:[%s5076 + $0x10] sm:$0xff]
      %v8012 = vld [vmem:[%s5076 + $0x18] sm:$0xff]
      %v8013 = vld [vmem:[%s5076 + $0x20] sm:$0xff]
      %v8014 = vld [vmem:[%s5076 + $0x28] sm:$0xff]
      %v8015 = vld [vmem:[%s5076 + $0x30] sm:$0xff]
      %v8016 = vld [vmem:[%s5076 + $0x38] sm:$0xff]
      %v8017 = vld [vmem:[%s5076 + $0x40] sm:$0xff]
      %v8018 = vld [vmem:[%s5076 + $0x48] sm:$0xff]
      %v8019 = vld [vmem:[%s5076 + $0x50] sm:$0xff]
      %v8020 = vld [vmem:[%s5076 + $0x58] sm:$0xff]
      %v8021 = vld [vmem:[%s5076 + $0x60] sm:$0xff]
      %v8022 = vld [vmem:[%s5076 + $0x68] sm:$0xff]
      %v8023 = vld [vmem:[%s5076 + $0x70] sm:$0xff]
      %v8024 = vld [vmem:[%s5076 + $0x78] sm:$0xff]
      %v8041 = vunpack.c.l.b16 %v8009
      %v8042 = vunpack.c.h.b16 %v8009
      %v8043 = vunpack.c.l.b16 %v8010
      %v8044 = vunpack.c.h.b16 %v8010
      %v8045 = vunpack.c.l.b16 %v8011
      %v8046 = vunpack.c.h.b16 %v8011
      %v8047 = vunpack.c.l.b16 %v8012
      %v8048 = vunpack.c.h.b16 %v8012
      %v8049 = vunpack.c.l.b16 %v8013
      %v8050 = vunpack.c.h.b16 %v8013
      %v8051 = vunpack.c.l.b16 %v8014
      %v8052 = vunpack.c.h.b16 %v8014
      %v8053 = vunpack.c.l.b16 %v8015
      %v8054 = vunpack.c.h.b16 %v8015
      %v8055 = vunpack.c.l.b16 %v8016
      %v8056 = vunpack.c.h.b16 %v8016
      %v8057 = vunpack.c.l.b16 %v8017
      %v8058 = vunpack.c.h.b16 %v8017
      %v8059 = vunpack.c.l.b16 %v8018
      %v8060 = vunpack.c.h.b16 %v8018
      %v8061 = vunpack.c.l.b16 %v8019
      %v8062 = vunpack.c.h.b16 %v8019
      %v8063 = vunpack.c.l.b16 %v8020
      %v8064 = vunpack.c.h.b16 %v8020
      %v8065 = vunpack.c.l.b16 %v8021
      %v8066 = vunpack.c.h.b16 %v8021
      %v8067 = vunpack.c.l.b16 %v8022
      %v8068 = vunpack.c.h.b16 %v8022
      %v8069 = vunpack.c.l.b16 %v8023
      %v8070 = vunpack.c.h.b16 %v8023
      %v8071 = vunpack.c.l.b16 %v8024
      %v8072 = vunpack.c.h.b16 %v8024
      %v8073 = vpack.c.b16 %v8043, %v8041
      %v8074 = vpack.c.b16 %v8044, %v8042
      %v8075 = vpack.c.b16 %v8047, %v8045
      %v8076 = vpack.c.b16 %v8048, %v8046
      %v8077 = vpack.c.b16 %v8051, %v8049
      %v8078 = vpack.c.b16 %v8052, %v8050
      %v8079 = vpack.c.b16 %v8055, %v8053
      %v8080 = vpack.c.b16 %v8056, %v8054
      %v8081 = vpack.c.b16 %v8059, %v8057
      %v8082 = vpack.c.b16 %v8060, %v8058
      %v8083 = vpack.c.b16 %v8063, %v8061
      %v8084 = vpack.c.b16 %v8064, %v8062
      %v8085 = vpack.c.b16 %v8067, %v8065
      %v8086 = vpack.c.b16 %v8068, %v8066
      %v8087 = vpack.c.b16 %v8071, %v8069
      %v8088 = vpack.c.b16 %v8072, %v8070
      %8105 = vmatprep.subr.bf16.mxu0 %v8074
      %8106 = vmatpush1.bf16.msra.mxu0 %v8073
      %8107 = vmatprep.subr.bf16.mxu0 %v8076
      %8108 = vmatpush1.bf16.msra.mxu0 %v8075
      %8109 = vmatprep.subr.bf16.mxu0 %v8078
      %8110 = vmatpush1.bf16.msra.mxu0 %v8077
      %8111 = vmatprep.subr.bf16.mxu0 %v8080
      %8112 = vmatpush1.bf16.msra.mxu0 %v8079
      %8113 = vmatprep.subr.bf16.mxu0 %v8082
      %8114 = vmatpush1.bf16.msra.mxu0 %v8081
      %8115 = vmatprep.subr.bf16.mxu0 %v8084
      %8116 = vmatpush1.bf16.msra.mxu0 %v8083
      %8117 = vmatprep.subr.bf16.mxu0 %v8086
      %8118 = vmatpush1.bf16.msra.mxu0 %v8085
      %8119 = vmatprep.subr.bf16.mxu0 %v8088
      %8120 = vmatpush1.bf16.msra.mxu0 %v8087
      %8121 = vmatprep.subr.bf16.mxu0 0
      %8122 = vmatpush1.bf16.msra.mxu0 0
      %8123 = vmatprep.subr.bf16.mxu0 0
      %8124 = vmatpush1.bf16.msra.mxu0 0
      %8125 = vmatprep.subr.bf16.mxu0 0
      %8126 = vmatpush1.bf16.msra.mxu0 0
      %8127 = vmatprep.subr.bf16.mxu0 0
      %8128 = vmatpush1.bf16.msra.mxu0 0
      %8129 = vmatprep.subr.bf16.mxu0 0
      %8130 = vmatpush1.bf16.msra.mxu0 0
      %8131 = vmatprep.subr.bf16.mxu0 0
      %8132 = vmatpush1.bf16.msra.mxu0 0
      %8133 = vmatprep.subr.bf16.mxu0 0
      %8134 = vmatpush1.bf16.msra.mxu0 0
      %8135 = vmatprep.subr.bf16.mxu0 0
      %8136 = vmatpush1.bf16.msra.mxu0 0
      %8137 = vmatprep.mubr.bf16.mxu0 0
      %8138 = vmatmul.mubr.bf16.gmra.mrb[0].mxu0 %v8008
      %v8139 = vpop.f32.mrb[0].mxu0
      %v8140 = vadd.f32 0.0, %v8139
      %v8141 = vpop.f32.mrb[0].mxu0
      %v8142 = vadd.f32 0.0, %v8141
      %v8143 = vpop.f32.mrb[0].mxu0
      %v8144 = vpop.f32.mrb[0].mxu0
      %8145 = vdwg.mxu0
      %v8146 = vadd.f32 %v7962, %v8140
      %v8147 = vadd.f32 %v7963, %v8142
      %8148 = vmatprep.subr.bf16.mxu0 0
      %8149 = vmatpush1.bf16.msra.mxu0 %v7966
      %8150 = vmatprep.subr.bf16.mxu0 0
      %8151 = vmatpush1.bf16.msra.mxu0 0
      %8152 = vmatprep.subr.bf16.mxu0 0
      %8153 = vmatpush1.bf16.msra.mxu0 0
      %8154 = vmatprep.subr.bf16.mxu0 0
      %8155 = vmatpush1.bf16.msra.mxu0 0
      %8156 = vmatprep.subr.bf16.mxu0 0
      %8157 = vmatpush1.bf16.msra.mxu0 0
      %8158 = vmatprep.subr.bf16.mxu0 0
      %8159 = vmatpush1.bf16.msra.mxu0 0
      %8160 = vmatprep.subr.bf16.mxu0 0
      %8161 = vmatpush1.bf16.msra.mxu0 0
      %8162 = vmatprep.subr.bf16.mxu0 0
      %8163 = vmatpush1.bf16.msra.mxu0 0
      %8164 = vmatprep.subr.bf16.mxu0 0
      %8165 = vmatpush1.bf16.msra.mxu0 0
      %8166 = vmatprep.subr.bf16.mxu0 0
      %8167 = vmatpush1.bf16.msra.mxu0 0
      %8168 = vmatprep.subr.bf16.mxu0 0
      %8169 = vmatpush1.bf16.msra.mxu0 0
      %8170 = vmatprep.subr.bf16.mxu0 0
      %8171 = vmatpush1.bf16.msra.mxu0 0
      %8172 = vmatprep.subr.bf16.mxu0 0
      %8173 = vmatpush1.bf16.msra.mxu0 0
      %8174 = vmatprep.subr.bf16.mxu0 0
      %8175 = vmatpush1.bf16.msra.mxu0 0
      %8176 = vmatprep.subr.bf16.mxu0 0
      %8177 = vmatpush1.bf16.msra.mxu0 0
      %8178 = vmatprep.subr.bf16.mxu0 0
      %8179 = vmatpush1.bf16.msra.mxu0 0
      %8180 = vmatprep.mubr.bf16.mxu0 0
      %8181 = vmatmul.mubr.bf16.gmra.mrb[0].mxu0 %v4360
      %v8182 = vpop.f32.mrb[0].mxu0
      %v8183 = vadd.f32 0.0, %v8182
      %v8184 = vpop.f32.mrb[0].mxu0
      %v8185 = vpop.f32.mrb[0].mxu0
      %v8186 = vpop.f32.mrb[0].mxu0
      %8187 = vdwg.mxu0
      %v8188 = vpack.c.bf16 %v8183, %v8183
      %v8189 = vld [vmem:[%s5257] sm:$0xff]
      %v8190 = vld [vmem:[%s5257 + $0x8] sm:$0xff]
      %v8191 = vld [vmem:[%s5257 + $0x10] sm:$0xff]
      %v8192 = vld [vmem:[%s5257 + $0x18] sm:$0xff]
      %v8193 = vld [vmem:[%s5257 + $0x20] sm:$0xff]
      %v8194 = vld [vmem:[%s5257 + $0x28] sm:$0xff]
      %v8195 = vld [vmem:[%s5257 + $0x30] sm:$0xff]
      %v8196 = vld [vmem:[%s5257 + $0x38] sm:$0xff]
      %v8197 = vld [vmem:[%s5257 + $0x40] sm:$0xff]
      %v8198 = vld [vmem:[%s5257 + $0x48] sm:$0xff]
      %v8199 = vld [vmem:[%s5257 + $0x50] sm:$0xff]
      %v8200 = vld [vmem:[%s5257 + $0x58] sm:$0xff]
      %v8201 = vld [vmem:[%s5257 + $0x60] sm:$0xff]
      %v8202 = vld [vmem:[%s5257 + $0x68] sm:$0xff]
      %v8203 = vld [vmem:[%s5257 + $0x70] sm:$0xff]
      %v8204 = vld [vmem:[%s5257 + $0x78] sm:$0xff]
      %v8221 = vunpack.c.l.b16 %v8189
      %v8222 = vunpack.c.h.b16 %v8189
      %v8223 = vunpack.c.l.b16 %v8190
      %v8224 = vunpack.c.h.b16 %v8190
      %v8225 = vunpack.c.l.b16 %v8191
      %v8226 = vunpack.c.h.b16 %v8191
      %v8227 = vunpack.c.l.b16 %v8192
      %v8228 = vunpack.c.h.b16 %v8192
      %v8229 = vunpack.c.l.b16 %v8193
      %v8230 = vunpack.c.h.b16 %v8193
      %v8231 = vunpack.c.l.b16 %v8194
      %v8232 = vunpack.c.h.b16 %v8194
      %v8233 = vunpack.c.l.b16 %v8195
      %v8234 = vunpack.c.h.b16 %v8195
      %v8235 = vunpack.c.l.b16 %v8196
      %v8236 = vunpack.c.h.b16 %v8196
      %v8237 = vunpack.c.l.b16 %v8197
      %v8238 = vunpack.c.h.b16 %v8197
      %v8239 = vunpack.c.l.b16 %v8198
      %v8240 = vunpack.c.h.b16 %v8198
      %v8241 = vunpack.c.l.b16 %v8199
      %v8242 = vunpack.c.h.b16 %v8199
      %v8243 = vunpack.c.l.b16 %v8200
      %v8244 = vunpack.c.h.b16 %v8200
      %v8245 = vunpack.c.l.b16 %v8201
      %v8246 = vunpack.c.h.b16 %v8201
      %v8247 = vunpack.c.l.b16 %v8202
      %v8248 = vunpack.c.h.b16 %v8202
      %v8249 = vunpack.c.l.b16 %v8203
      %v8250 = vunpack.c.h.b16 %v8203
      %v8251 = vunpack.c.l.b16 %v8204
      %v8252 = vunpack.c.h.b16 %v8204
      %v8253 = vpack.c.b16 %v8223, %v8221
      %v8254 = vpack.c.b16 %v8224, %v8222
      %v8255 = vpack.c.b16 %v8227, %v8225
      %v8256 = vpack.c.b16 %v8228, %v8226
      %v8257 = vpack.c.b16 %v8231, %v8229
      %v8258 = vpack.c.b16 %v8232, %v8230
      %v8259 = vpack.c.b16 %v8235, %v8233
      %v8260 = vpack.c.b16 %v8236, %v8234
      %v8261 = vpack.c.b16 %v8239, %v8237
      %v8262 = vpack.c.b16 %v8240, %v8238
      %v8263 = vpack.c.b16 %v8243, %v8241
      %v8264 = vpack.c.b16 %v8244, %v8242
      %v8265 = vpack.c.b16 %v8247, %v8245
      %v8266 = vpack.c.b16 %v8248, %v8246
      %v8267 = vpack.c.b16 %v8251, %v8249
      %v8268 = vpack.c.b16 %v8252, %v8250
      %8285 = vmatprep.subr.bf16.mxu0 %v8254
      %8286 = vmatpush1.bf16.msra.mxu0 %v8253
      %8287 = vmatprep.subr.bf16.mxu0 %v8256
      %8288 = vmatpush1.bf16.msra.mxu0 %v8255
      %8289 = vmatprep.subr.bf16.mxu0 %v8258
      %8290 = vmatpush1.bf16.msra.mxu0 %v8257
      %8291 = vmatprep.subr.bf16.mxu0 %v8260
      %8292 = vmatpush1.bf16.msra.mxu0 %v8259
      %8293 = vmatprep.subr.bf16.mxu0 %v8262
      %8294 = vmatpush1.bf16.msra.mxu0 %v8261
      %8295 = vmatprep.subr.bf16.mxu0 %v8264
      %8296 = vmatpush1.bf16.msra.mxu0 %v8263
      %8297 = vmatprep.subr.bf16.mxu0 %v8266
      %8298 = vmatpush1.bf16.msra.mxu0 %v8265
      %8299 = vmatprep.subr.bf16.mxu0 %v8268
      %8300 = vmatpush1.bf16.msra.mxu0 %v8267
      %8301 = vmatprep.subr.bf16.mxu0 0
      %8302 = vmatpush1.bf16.msra.mxu0 0
      %8303 = vmatprep.subr.bf16.mxu0 0
      %8304 = vmatpush1.bf16.msra.mxu0 0
      %8305 = vmatprep.subr.bf16.mxu0 0
      %8306 = vmatpush1.bf16.msra.mxu0 0
      %8307 = vmatprep.subr.bf16.mxu0 0
      %8308 = vmatpush1.bf16.msra.mxu0 0
      %8309 = vmatprep.subr.bf16.mxu0 0
      %8310 = vmatpush1.bf16.msra.mxu0 0
      %8311 = vmatprep.subr.bf16.mxu0 0
      %8312 = vmatpush1.bf16.msra.mxu0 0
      %8313 = vmatprep.subr.bf16.mxu0 0
      %8314 = vmatpush1.bf16.msra.mxu0 0
      %8315 = vmatprep.subr.bf16.mxu0 0
      %8316 = vmatpush1.bf16.msra.mxu0 0
      %8317 = vmatprep.mubr.bf16.mxu0 0
      %8318 = vmatmul.mubr.bf16.gmra.mrb[0].mxu0 %v8188
      %v8319 = vpop.f32.mrb[0].mxu0
      %v8320 = vadd.f32 0.0, %v8319
      %v8321 = vpop.f32.mrb[0].mxu0
      %v8322 = vadd.f32 0.0, %v8321
      %v8323 = vpop.f32.mrb[0].mxu0
      %v8324 = vpop.f32.mrb[0].mxu0
      %8325 = vdwg.mxu0
      %v8326 = vadd.f32 %v8146, %v8320
      %v8327 = vadd.f32 %v8147, %v8322
      %8328 = vmatprep.subr.bf16.mxu0 0
      %8329 = vmatpush1.bf16.msra.mxu0 %v7966
      %8330 = vmatprep.subr.bf16.mxu0 0
      %8331 = vmatpush1.bf16.msra.mxu0 0
      %8332 = vmatprep.subr.bf16.mxu0 0
      %8333 = vmatpush1.bf16.msra.mxu0 0
      %8334 = vmatprep.subr.bf16.mxu0 0
      %8335 = vmatpush1.bf16.msra.mxu0 0
      %8336 = vmatprep.subr.bf16.mxu0 0
      %8337 = vmatpush1.bf16.msra.mxu0 0
      %8338 = vmatprep.subr.bf16.mxu0 0
      %8339 = vmatpush1.bf16.msra.mxu0 0
      %8340 = vmatprep.subr.bf16.mxu0 0
      %8341 = vmatpush1.bf16.msra.mxu0 0
      %8342 = vmatprep.subr.bf16.mxu0 0
      %8343 = vmatpush1.bf16.msra.mxu0 0
      %8344 = vmatprep.subr.bf16.mxu0 0
      %8345 = vmatpush1.bf16.msra.mxu0 0
      %8346 = vmatprep.subr.bf16.mxu0 0
      %8347 = vmatpush1.bf16.msra.mxu0 0
      %8348 = vmatprep.subr.bf16.mxu0 0
      %8349 = vmatpush1.bf16.msra.mxu0 0
      %8350 = vmatprep.subr.bf16.mxu0 0
      %8351 = vmatpush1.bf16.msra.mxu0 0
      %8352 = vmatprep.subr.bf16.mxu0 0
      %8353 = vmatpush1.bf16.msra.mxu0 0
      %8354 = vmatprep.subr.bf16.mxu0 0
      %8355 = vmatpush1.bf16.msra.mxu0 0
      %8356 = vmatprep.subr.bf16.mxu0 0
      %8357 = vmatpush1.bf16.msra.mxu0 0
      %8358 = vmatprep.subr.bf16.mxu0 0
      %8359 = vmatpush1.bf16.msra.mxu0 0
      %8360 = vmatprep.mubr.bf16.mxu0 0
      %8361 = vmatmul.mubr.bf16.gmra.mrb[0].mxu0 %v4663
      %v8362 = vpop.f32.mrb[0].mxu0
      %v8363 = vadd.f32 0.0, %v8362
      %v8364 = vpop.f32.mrb[0].mxu0
      %v8365 = vpop.f32.mrb[0].mxu0
      %v8366 = vpop.f32.mrb[0].mxu0
      %8367 = vdwg.mxu0
      %v8368 = vpack.c.bf16 %v8363, %v8363
      %v8369 = vld [vmem:[%s5438] sm:$0xff]
      %v8370 = vld [vmem:[%s5438 + $0x8] sm:$0xff]
      %v8371 = vld [vmem:[%s5438 + $0x10] sm:$0xff]
      %v8372 = vld [vmem:[%s5438 + $0x18] sm:$0xff]
      %v8373 = vld [vmem:[%s5438 + $0x20] sm:$0xff]
      %v8374 = vld [vmem:[%s5438 + $0x28] sm:$0xff]
      %v8375 = vld [vmem:[%s5438 + $0x30] sm:$0xff]
      %v8376 = vld [vmem:[%s5438 + $0x38] sm:$0xff]
      %v8377 = vld [vmem:[%s5438 + $0x40] sm:$0xff]
      %v8378 = vld [vmem:[%s5438 + $0x48] sm:$0xff]
      %v8379 = vld [vmem:[%s5438 + $0x50] sm:$0xff]
      %v8380 = vld [vmem:[%s5438 + $0x58] sm:$0xff]
      %v8381 = vld [vmem:[%s5438 + $0x60] sm:$0xff]
      %v8382 = vld [vmem:[%s5438 + $0x68] sm:$0xff]
      %v8383 = vld [vmem:[%s5438 + $0x70] sm:$0xff]
      %v8384 = vld [vmem:[%s5438 + $0x78] sm:$0xff]
      %v8401 = vunpack.c.l.b16 %v8369
      %v8402 = vunpack.c.h.b16 %v8369
      %v8403 = vunpack.c.l.b16 %v8370
      %v8404 = vunpack.c.h.b16 %v8370
      %v8405 = vunpack.c.l.b16 %v8371
      %v8406 = vunpack.c.h.b16 %v8371
      %v8407 = vunpack.c.l.b16 %v8372
      %v8408 = vunpack.c.h.b16 %v8372
      %v8409 = vunpack.c.l.b16 %v8373
      %v8410 = vunpack.c.h.b16 %v8373
      %v8411 = vunpack.c.l.b16 %v8374
      %v8412 = vunpack.c.h.b16 %v8374
      %v8413 = vunpack.c.l.b16 %v8375
      %v8414 = vunpack.c.h.b16 %v8375
      %v8415 = vunpack.c.l.b16 %v8376
      %v8416 = vunpack.c.h.b16 %v8376
      %v8417 = vunpack.c.l.b16 %v8377
      %v8418 = vunpack.c.h.b16 %v8377
      %v8419 = vunpack.c.l.b16 %v8378
      %v8420 = vunpack.c.h.b16 %v8378
      %v8421 = vunpack.c.l.b16 %v8379
      %v8422 = vunpack.c.h.b16 %v8379
      %v8423 = vunpack.c.l.b16 %v8380
      %v8424 = vunpack.c.h.b16 %v8380
      %v8425 = vunpack.c.l.b16 %v8381
      %v8426 = vunpack.c.h.b16 %v8381
      %v8427 = vunpack.c.l.b16 %v8382
      %v8428 = vunpack.c.h.b16 %v8382
      %v8429 = vunpack.c.l.b16 %v8383
      %v8430 = vunpack.c.h.b16 %v8383
      %v8431 = vunpack.c.l.b16 %v8384
      %v8432 = vunpack.c.h.b16 %v8384
      %v8433 = vpack.c.b16 %v8403, %v8401
      %v8434 = vpack.c.b16 %v8404, %v8402
      %v8435 = vpack.c.b16 %v8407, %v8405
      %v8436 = vpack.c.b16 %v8408, %v8406
      %v8437 = vpack.c.b16 %v8411, %v8409
      %v8438 = vpack.c.b16 %v8412, %v8410
      %v8439 = vpack.c.b16 %v8415, %v8413
      %v8440 = vpack.c.b16 %v8416, %v8414
      %v8441 = vpack.c.b16 %v8419, %v8417
      %v8442 = vpack.c.b16 %v8420, %v8418
      %v8443 = vpack.c.b16 %v8423, %v8421
      %v8444 = vpack.c.b16 %v8424, %v8422
      %v8445 = vpack.c.b16 %v8427, %v8425
      %v8446 = vpack.c.b16 %v8428, %v8426
      %v8447 = vpack.c.b16 %v8431, %v8429
      %v8448 = vpack.c.b16 %v8432, %v8430
      %8465 = vmatprep.subr.bf16.mxu0 %v8434
      %8466 = vmatpush1.bf16.msra.mxu0 %v8433
      %8467 = vmatprep.subr.bf16.mxu0 %v8436
      %8468 = vmatpush1.bf16.msra.mxu0 %v8435
      %8469 = vmatprep.subr.bf16.mxu0 %v8438
      %8470 = vmatpush1.bf16.msra.mxu0 %v8437
      %8471 = vmatprep.subr.bf16.mxu0 %v8440
      %8472 = vmatpush1.bf16.msra.mxu0 %v8439
      %8473 = vmatprep.subr.bf16.mxu0 %v8442
      %8474 = vmatpush1.bf16.msra.mxu0 %v8441
      %8475 = vmatprep.subr.bf16.mxu0 %v8444
      %8476 = vmatpush1.bf16.msra.mxu0 %v8443
      %8477 = vmatprep.subr.bf16.mxu0 %v8446
      %8478 = vmatpush1.bf16.msra.mxu0 %v8445
      %8479 = vmatprep.subr.bf16.mxu0 %v8448
      %8480 = vmatpush1.bf16.msra.mxu0 %v8447
      %8481 = vmatprep.subr.bf16.mxu0 0
      %8482 = vmatpush1.bf16.msra.mxu0 0
      %8483 = vmatprep.subr.bf16.mxu0 0
      %8484 = vmatpush1.bf16.msra.mxu0 0
      %8485 = vmatprep.subr.bf16.mxu0 0
      %8486 = vmatpush1.bf16.msra.mxu0 0
      %8487 = vmatprep.subr.bf16.mxu0 0
      %8488 = vmatpush1.bf16.msra.mxu0 0
      %8489 = vmatprep.subr.bf16.mxu0 0
      %8490 = vmatpush1.bf16.msra.mxu0 0
      %8491 = vmatprep.subr.bf16.mxu0 0
      %8492 = vmatpush1.bf16.msra.mxu0 0
      %8493 = vmatprep.subr.bf16.mxu0 0
      %8494 = vmatpush1.bf16.msra.mxu0 0
      %8495 = vmatprep.subr.bf16.mxu0 0
      %8496 = vmatpush1.bf16.msra.mxu0 0
      %8497 = vmatprep.mubr.bf16.mxu0 0
      %8498 = vmatmul.mubr.bf16.gmra.mrb[0].mxu0 %v8368
      %v8499 = vpop.f32.mrb[0].mxu0
      %v8500 = vadd.f32 0.0, %v8499
      %v8501 = vpop.f32.mrb[0].mxu0
      %v8502 = vadd.f32 0.0, %v8501
      %v8503 = vpop.f32.mrb[0].mxu0
      %v8504 = vpop.f32.mrb[0].mxu0
      %8505 = vdwg.mxu0
      %v8506 = vadd.f32 %v8326, %v8500
      %v8507 = vadd.f32 %v8327, %v8502
      %8508 = vmatprep.subr.bf16.mxu0 0
      %8509 = vmatpush1.bf16.msra.mxu0 %v7966
      %8510 = vmatprep.subr.bf16.mxu0 0
      %8511 = vmatpush1.bf16.msra.mxu0 0
      %8512 = vmatprep.subr.bf16.mxu0 0
      %8513 = vmatpush1.bf16.msra.mxu0 0
      %8514 = vmatprep.subr.bf16.mxu0 0
      %8515 = vmatpush1.bf16.msra.mxu0 0
      %8516 = vmatprep.subr.bf16.mxu0 0
      %8517 = vmatpush1.bf16.msra.mxu0 0
      %8518 = vmatprep.subr.bf16.mxu0 0
      %8519 = vmatpush1.bf16.msra.mxu0 0
      %8520 = vmatprep.subr.bf16.mxu0 0
      %8521 = vmatpush1.bf16.msra.mxu0 0
      %8522 = vmatprep.subr.bf16.mxu0 0
      %8523 = vmatpush1.bf16.msra.mxu0 0
      %8524 = vmatprep.subr.bf16.mxu0 0
      %8525 = vmatpush1.bf16.msra.mxu0 0
      %8526 = vmatprep.subr.bf16.mxu0 0
      %8527 = vmatpush1.bf16.msra.mxu0 0
      %8528 = vmatprep.subr.bf16.mxu0 0
      %8529 = vmatpush1.bf16.msra.mxu0 0
      %8530 = vmatprep.subr.bf16.mxu0 0
      %8531 = vmatpush1.bf16.msra.mxu0 0
      %8532 = vmatprep.subr.bf16.mxu0 0
      %8533 = vmatpush1.bf16.msra.mxu0 0
      %8534 = vmatprep.subr.bf16.mxu0 0
      %8535 = vmatpush1.bf16.msra.mxu0 0
      %8536 = vmatprep.subr.bf16.mxu0 0
      %8537 = vmatpush1.bf16.msra.mxu0 0
      %8538 = vmatprep.subr.bf16.mxu0 0
      %8539 = vmatpush1.bf16.msra.mxu0 0
      %8540 = vmatprep.mubr.bf16.mxu0 0
      %8541 = vmatmul.mubr.bf16.gmra.mrb[0].mxu0 %v4847
      %v8542 = vpop.f32.mrb[0].mxu0
      %v8543 = vadd.f32 0.0, %v8542
      %v8544 = vpop.f32.mrb[0].mxu0
      %v8545 = vpop.f32.mrb[0].mxu0
      %v8546 = vpop.f32.mrb[0].mxu0
      %8547 = vdwg.mxu0
      %v8548 = vpack.c.bf16 %v8543, %v8543
      %v8549 = vld [vmem:[%s5619] sm:$0xff]
      %v8550 = vld [vmem:[%s5619 + $0x8] sm:$0xff]
      %v8551 = vld [vmem:[%s5619 + $0x10] sm:$0xff]
      %v8552 = vld [vmem:[%s5619 + $0x18] sm:$0xff]
      %v8553 = vld [vmem:[%s5619 + $0x20] sm:$0xff]
      %v8554 = vld [vmem:[%s5619 + $0x28] sm:$0xff]
      %v8555 = vld [vmem:[%s5619 + $0x30] sm:$0xff]
      %v8556 = vld [vmem:[%s5619 + $0x38] sm:$0xff]
      %v8557 = vld [vmem:[%s5619 + $0x40] sm:$0xff]
      %v8558 = vld [vmem:[%s5619 + $0x48] sm:$0xff]
      %v8559 = vld [vmem:[%s5619 + $0x50] sm:$0xff]
      %v8560 = vld [vmem:[%s5619 + $0x58] sm:$0xff]
      %v8561 = vld [vmem:[%s5619 + $0x60] sm:$0xff]
      %v8562 = vld [vmem:[%s5619 + $0x68] sm:$0xff]
      %v8563 = vld [vmem:[%s5619 + $0x70] sm:$0xff]
      %v8564 = vld [vmem:[%s5619 + $0x78] sm:$0xff]
      %v8581 = vunpack.c.l.b16 %v8549
      %v8582 = vunpack.c.h.b16 %v8549
      %v8583 = vunpack.c.l.b16 %v8550
      %v8584 = vunpack.c.h.b16 %v8550
      %v8585 = vunpack.c.l.b16 %v8551
      %v8586 = vunpack.c.h.b16 %v8551
      %v8587 = vunpack.c.l.b16 %v8552
      %v8588 = vunpack.c.h.b16 %v8552
      %v8589 = vunpack.c.l.b16 %v8553
      %v8590 = vunpack.c.h.b16 %v8553
      %v8591 = vunpack.c.l.b16 %v8554
      %v8592 = vunpack.c.h.b16 %v8554
      %v8593 = vunpack.c.l.b16 %v8555
      %v8594 = vunpack.c.h.b16 %v8555
      %v8595 = vunpack.c.l.b16 %v8556
      %v8596 = vunpack.c.h.b16 %v8556
      %v8597 = vunpack.c.l.b16 %v8557
      %v8598 = vunpack.c.h.b16 %v8557
      %v8599 = vunpack.c.l.b16 %v8558
      %v8600 = vunpack.c.h.b16 %v8558
      %v8601 = vunpack.c.l.b16 %v8559
      %v8602 = vunpack.c.h.b16 %v8559
      %v8603 = vunpack.c.l.b16 %v8560
      %v8604 = vunpack.c.h.b16 %v8560
      %v8605 = vunpack.c.l.b16 %v8561
      %v8606 = vunpack.c.h.b16 %v8561
      %v8607 = vunpack.c.l.b16 %v8562
      %v8608 = vunpack.c.h.b16 %v8562
      %v8609 = vunpack.c.l.b16 %v8563
      %v8610 = vunpack.c.h.b16 %v8563
      %v8611 = vunpack.c.l.b16 %v8564
      %v8612 = vunpack.c.h.b16 %v8564
      %v8613 = vpack.c.b16 %v8583, %v8581
      %v8614 = vpack.c.b16 %v8584, %v8582
      %v8615 = vpack.c.b16 %v8587, %v8585
      %v8616 = vpack.c.b16 %v8588, %v8586
      %v8617 = vpack.c.b16 %v8591, %v8589
      %v8618 = vpack.c.b16 %v8592, %v8590
      %v8619 = vpack.c.b16 %v8595, %v8593
      %v8620 = vpack.c.b16 %v8596, %v8594
      %v8621 = vpack.c.b16 %v8599, %v8597
      %v8622 = vpack.c.b16 %v8600, %v8598
      %v8623 = vpack.c.b16 %v8603, %v8601
      %v8624 = vpack.c.b16 %v8604, %v8602
      %v8625 = vpack.c.b16 %v8607, %v8605
      %v8626 = vpack.c.b16 %v8608, %v8606
      %v8627 = vpack.c.b16 %v8611, %v8609
      %v8628 = vpack.c.b16 %v8612, %v8610
      %8645 = vmatprep.subr.bf16.mxu0 %v8614
      %8646 = vmatpush1.bf16.msra.mxu0 %v8613
      %8647 = vmatprep.subr.bf16.mxu0 %v8616
      %8648 = vmatpush1.bf16.msra.mxu0 %v8615
      %8649 = vmatprep.subr.bf16.mxu0 %v8618
      %8650 = vmatpush1.bf16.msra.mxu0 %v8617
      %8651 = vmatprep.subr.bf16.mxu0 %v8620
      %8652 = vmatpush1.bf16.msra.mxu0 %v8619
      %8653 = vmatprep.subr.bf16.mxu0 %v8622
      %8654 = vmatpush1.bf16.msra.mxu0 %v8621
      %8655 = vmatprep.subr.bf16.mxu0 %v8624
      %8656 = vmatpush1.bf16.msra.mxu0 %v8623
      %8657 = vmatprep.subr.bf16.mxu0 %v8626
      %8658 = vmatpush1.bf16.msra.mxu0 %v8625
      %8659 = vmatprep.subr.bf16.mxu0 %v8628
      %8660 = vmatpush1.bf16.msra.mxu0 %v8627
      %8661 = vmatprep.subr.bf16.mxu0 0
      %8662 = vmatpush1.bf16.msra.mxu0 0
      %8663 = vmatprep.subr.bf16.mxu0 0
      %8664 = vmatpush1.bf16.msra.mxu0 0
      %8665 = vmatprep.subr.bf16.mxu0 0
      %8666 = vmatpush1.bf16.msra.mxu0 0
      %8667 = vmatprep.subr.bf16.mxu0 0
      %8668 = vmatpush1.bf16.msra.mxu0 0
      %8669 = vmatprep.subr.bf16.mxu0 0
      %8670 = vmatpush1.bf16.msra.mxu0 0
      %8671 = vmatprep.subr.bf16.mxu0 0
      %8672 = vmatpush1.bf16.msra.mxu0 0
      %8673 = vmatprep.subr.bf16.mxu0 0
      %8674 = vmatpush1.bf16.msra.mxu0 0
      %8675 = vmatprep.subr.bf16.mxu0 0
      %8676 = vmatpush1.bf16.msra.mxu0 0
      %8677 = vmatprep.mubr.bf16.mxu0 0
      %8678 = vmatmul.mubr.bf16.gmra.mrb[0].mxu0 %v8548
      %v8679 = vpop.f32.mrb[0].mxu0
      %v8680 = vadd.f32 0.0, %v8679
      %v8681 = vpop.f32.mrb[0].mxu0
      %v8682 = vadd.f32 0.0, %v8681
      %v8683 = vpop.f32.mrb[0].mxu0
      %v8684 = vpop.f32.mrb[0].mxu0
      %8685 = vdwg.mxu0
      %v8686 = vadd.f32 %v8506, %v8680
      %v8687 = vadd.f32 %v8507, %v8682
      %s8688 = scalar_lea.vmem [#allocation4], 16
      %v8689 = vld [vmem:[%s8688] sm:$0x7]
      %v8691 = vsel %vm4298, %v8689, 0
      %8693 = vmatprep.subr.bf16.mxu0 0
      %8694 = vmatpush1.bf16.msra.mxu0 %v8691
      %8695 = vmatprep.subr.bf16.mxu0 0
      %8696 = vmatpush1.bf16.msra.mxu0 0
      %8697 = vmatprep.subr.bf16.mxu0 0
      %8698 = vmatpush1.bf16.msra.mxu0 0
      %8699 = vmatprep.subr.bf16.mxu0 0
      %8700 = vmatpush1.bf16.msra.mxu0 0
      %8701 = vmatprep.subr.bf16.mxu0 0
      %8702 = vmatpush1.bf16.msra.mxu0 0
      %8703 = vmatprep.subr.bf16.mxu0 0
      %8704 = vmatpush1.bf16.msra.mxu0 0
      %8705 = vmatprep.subr.bf16.mxu0 0
      %8706 = vmatpush1.bf16.msra.mxu0 0
      %8707 = vmatprep.subr.bf16.mxu0 0
      %8708 = vmatpush1.bf16.msra.mxu0 0
      %8709 = vmatprep.subr.bf16.mxu0 0
      %8710 = vmatpush1.bf16.msra.mxu0 0
      %8711 = vmatprep.subr.bf16.mxu0 0
      %8712 = vmatpush1.bf16.msra.mxu0 0
      %8713 = vmatprep.subr.bf16.mxu0 0
      %8714 = vmatpush1.bf16.msra.mxu0 0
      %8715 = vmatprep.subr.bf16.mxu0 0
      %8716 = vmatpush1.bf16.msra.mxu0 0
      %8717 = vmatprep.subr.bf16.mxu0 0
      %8718 = vmatpush1.bf16.msra.mxu0 0
      %8719 = vmatprep.subr.bf16.mxu0 0
      %8720 = vmatpush1.bf16.msra.mxu0 0
      %8721 = vmatprep.subr.bf16.mxu0 0
      %8722 = vmatpush1.bf16.msra.mxu0 0
      %8723 = vmatprep.subr.bf16.mxu0 0
      %8724 = vmatpush1.bf16.msra.mxu0 0
      %8725 = vmatprep.mubr.bf16.mxu0 0
      %8726 = vmatmul.mubr.bf16.gmra.mrb[0].mxu0 %v4296
      %v8727 = vpop.f32.mrb[0].mxu0
      %v8728 = vadd.f32 0.0, %v8727
      %v8729 = vpop.f32.mrb[0].mxu0
      %v8730 = vpop.f32.mrb[0].mxu0
      %v8731 = vpop.f32.mrb[0].mxu0
      %8732 = vdwg.mxu0
      %v8733 = vpack.c.bf16 %v8728, %v8728
      %v8734 = vld [vmem:[%s5805] sm:$0xff]
      %v8735 = vld [vmem:[%s5805 + $0x8] sm:$0xff]
      %v8736 = vld [vmem:[%s5805 + $0x10] sm:$0xff]
      %v8737 = vld [vmem:[%s5805 + $0x18] sm:$0xff]
      %v8738 = vld [vmem:[%s5805 + $0x20] sm:$0xff]
      %v8739 = vld [vmem:[%s5805 + $0x28] sm:$0xff]
      %v8740 = vld [vmem:[%s5805 + $0x30] sm:$0xff]
      %v8741 = vld [vmem:[%s5805 + $0x38] sm:$0xff]
      %v8742 = vld [vmem:[%s5805 + $0x40] sm:$0xff]
      %v8743 = vld [vmem:[%s5805 + $0x48] sm:$0xff]
      %v8744 = vld [vmem:[%s5805 + $0x50] sm:$0xff]
      %v8745 = vld [vmem:[%s5805 + $0x58] sm:$0xff]
      %v8746 = vld [vmem:[%s5805 + $0x60] sm:$0xff]
      %v8747 = vld [vmem:[%s5805 + $0x68] sm:$0xff]
      %v8748 = vld [vmem:[%s5805 + $0x70] sm:$0xff]
      %v8749 = vld [vmem:[%s5805 + $0x78] sm:$0xff]
      %v8766 = vunpack.c.l.b16 %v8734
      %v8767 = vunpack.c.h.b16 %v8734
      %v8768 = vunpack.c.l.b16 %v8735
      %v8769 = vunpack.c.h.b16 %v8735
      %v8770 = vunpack.c.l.b16 %v8736
      %v8771 = vunpack.c.h.b16 %v8736
      %v8772 = vunpack.c.l.b16 %v8737
      %v8773 = vunpack.c.h.b16 %v8737
      %v8774 = vunpack.c.l.b16 %v8738
      %v8775 = vunpack.c.h.b16 %v8738
      %v8776 = vunpack.c.l.b16 %v8739
      %v8777 = vunpack.c.h.b16 %v8739
      %v8778 = vunpack.c.l.b16 %v8740
      %v8779 = vunpack.c.h.b16 %v8740
      %v8780 = vunpack.c.l.b16 %v8741
      %v8781 = vunpack.c.h.b16 %v8741
      %v8782 = vunpack.c.l.b16 %v8742
      %v8783 = vunpack.c.h.b16 %v8742
      %v8784 = vunpack.c.l.b16 %v8743
      %v8785 = vunpack.c.h.b16 %v8743
      %v8786 = vunpack.c.l.b16 %v8744
      %v8787 = vunpack.c.h.b16 %v8744
      %v8788 = vunpack.c.l.b16 %v8745
      %v8789 = vunpack.c.h.b16 %v8745
      %v8790 = vunpack.c.l.b16 %v8746
      %v8791 = vunpack.c.h.b16 %v8746
      %v8792 = vunpack.c.l.b16 %v8747
      %v8793 = vunpack.c.h.b16 %v8747
      %v8794 = vunpack.c.l.b16 %v8748
      %v8795 = vunpack.c.h.b16 %v8748
      %v8796 = vunpack.c.l.b16 %v8749
      %v8797 = vunpack.c.h.b16 %v8749
      %v8798 = vpack.c.b16 %v8768, %v8766
      %v8799 = vpack.c.b16 %v8769, %v8767
      %v8800 = vpack.c.b16 %v8772, %v8770
      %v8801 = vpack.c.b16 %v8773, %v8771
      %v8802 = vpack.c.b16 %v8776, %v8774
      %v8803 = vpack.c.b16 %v8777, %v8775
      %v8804 = vpack.c.b16 %v8780, %v8778
      %v8805 = vpack.c.b16 %v8781, %v8779
      %v8806 = vpack.c.b16 %v8784, %v8782
      %v8807 = vpack.c.b16 %v8785, %v8783
      %v8808 = vpack.c.b16 %v8788, %v8786
      %v8809 = vpack.c.b16 %v8789, %v8787
      %v8810 = vpack.c.b16 %v8792, %v8790
      %v8811 = vpack.c.b16 %v8793, %v8791
      %v8812 = vpack.c.b16 %v8796, %v8794
      %v8813 = vpack.c.b16 %v8797, %v8795
      %8830 = vmatprep.subr.bf16.mxu0 %v8799
      %8831 = vmatpush1.bf16.msra.mxu0 %v8798
      %8832 = vmatprep.subr.bf16.mxu0 %v8801
      %8833 = vmatpush1.bf16.msra.mxu0 %v8800
      %8834 = vmatprep.subr.bf16.mxu0 %v8803
      %8835 = vmatpush1.bf16.msra.mxu0 %v8802
      %8836 = vmatprep.subr.bf16.mxu0 %v8805
      %8837 = vmatpush1.bf16.msra.mxu0 %v8804
      %8838 = vmatprep.subr.bf16.mxu0 %v8807
      %8839 = vmatpush1.bf16.msra.mxu0 %v8806
      %8840 = vmatprep.subr.bf16.mxu0 %v8809
      %8841 = vmatpush1.bf16.msra.mxu0 %v8808
      %8842 = vmatprep.subr.bf16.mxu0 %v8811
      %8843 = vmatpush1.bf16.msra.mxu0 %v8810
      %8844 = vmatprep.subr.bf16.mxu0 %v8813
      %8845 = vmatpush1.bf16.msra.mxu0 %v8812
      %8846 = vmatprep.subr.bf16.mxu0 0
      %8847 = vmatpush1.bf16.msra.mxu0 0
      %8848 = vmatprep.subr.bf16.mxu0 0
      %8849 = vmatpush1.bf16.msra.mxu0 0
      %8850 = vmatprep.subr.bf16.mxu0 0
      %8851 = vmatpush1.bf16.msra.mxu0 0
      %8852 = vmatprep.subr.bf16.mxu0 0
      %8853 = vmatpush1.bf16.msra.mxu0 0
      %8854 = vmatprep.subr.bf16.mxu0 0
      %8855 = vmatpush1.bf16.msra.mxu0 0
      %8856 = vmatprep.subr.bf16.mxu0 0
      %8857 = vmatpush1.bf16.msra.mxu0 0
      %8858 = vmatprep.subr.bf16.mxu0 0
      %8859 = vmatpush1.bf16.msra.mxu0 0
      %8860 = vmatprep.subr.bf16.mxu0 0
      %8861 = vmatpush1.bf16.msra.mxu0 0
      %8862 = vmatprep.mubr.bf16.mxu0 0
      %8863 = vmatmul.mubr.bf16.gmra.mrb[0].mxu0 %v8733
      %v8864 = vpop.f32.mrb[0].mxu0
      %v8865 = vadd.f32 0.0, %v8864
      %v8866 = vpop.f32.mrb[0].mxu0
      %v8867 = vadd.f32 0.0, %v8866
      %v8868 = vpop.f32.mrb[0].mxu0
      %v8869 = vpop.f32.mrb[0].mxu0
      %8870 = vdwg.mxu0
      %v8871 = vadd.f32 %v8686, %v8865
      %v8872 = vadd.f32 %v8687, %v8867
      %8873 = vmatprep.subr.bf16.mxu0 0
      %8874 = vmatpush1.bf16.msra.mxu0 %v8691
      %8875 = vmatprep.subr.bf16.mxu0 0
      %8876 = vmatpush1.bf16.msra.mxu0 0
      %8877 = vmatprep.subr.bf16.mxu0 0
      %8878 = vmatpush1.bf16.msra.mxu0 0
      %8879 = vmatprep.subr.bf16.mxu0 0
      %8880 = vmatpush1.bf16.msra.mxu0 0
      %8881 = vmatprep.subr.bf16.mxu0 0
      %8882 = vmatpush1.bf16.msra.mxu0 0
      %8883 = vmatprep.subr.bf16.mxu0 0
      %8884 = vmatpush1.bf16.msra.mxu0 0
      %8885 = vmatprep.subr.bf16.mxu0 0
      %8886 = vmatpush1.bf16.msra.mxu0 0
      %8887 = vmatprep.subr.bf16.mxu0 0
      %8888 = vmatpush1.bf16.msra.mxu0 0
      %8889 = vmatprep.subr.bf16.mxu0 0
      %8890 = vmatpush1.bf16.msra.mxu0 0
      %8891 = vmatprep.subr.bf16.mxu0 0
      %8892 = vmatpush1.bf16.msra.mxu0 0
      %8893 = vmatprep.subr.bf16.mxu0 0
      %8894 = vmatpush1.bf16.msra.mxu0 0
      %8895 = vmatprep.subr.bf16.mxu0 0
      %8896 = vmatpush1.bf16.msra.mxu0 0
      %8897 = vmatprep.subr.bf16.mxu0 0
      %8898 = vmatpush1.bf16.msra.mxu0 0
      %8899 = vmatprep.subr.bf16.mxu0 0
      %8900 = vmatpush1.bf16.msra.mxu0 0
      %8901 = vmatprep.subr.bf16.mxu0 0
      %8902 = vmatpush1.bf16.msra.mxu0 0
      %8903 = vmatprep.subr.bf16.mxu0 0
      %8904 = vmatpush1.bf16.msra.mxu0 0
      %8905 = vmatprep.mubr.bf16.mxu0 0
      %8906 = vmatmul.mubr.bf16.gmra.mrb[0].mxu0 %v4360
      %v8907 = vpop.f32.mrb[0].mxu0
      %v8908 = vadd.f32 0.0, %v8907
      %v8909 = vpop.f32.mrb[0].mxu0
      %v8910 = vpop.f32.mrb[0].mxu0
      %v8911 = vpop.f32.mrb[0].mxu0
      %8912 = vdwg.mxu0
      %v8913 = vpack.c.bf16 %v8908, %v8908
      %v8914 = vld [vmem:[%s5986] sm:$0xff]
      %v8915 = vld [vmem:[%s5986 + $0x8] sm:$0xff]
      %v8916 = vld [vmem:[%s5986 + $0x10] sm:$0xff]
      %v8917 = vld [vmem:[%s5986 + $0x18] sm:$0xff]
      %v8918 = vld [vmem:[%s5986 + $0x20] sm:$0xff]
      %v8919 = vld [vmem:[%s5986 + $0x28] sm:$0xff]
      %v8920 = vld [vmem:[%s5986 + $0x30] sm:$0xff]
      %v8921 = vld [vmem:[%s5986 + $0x38] sm:$0xff]
      %v8922 = vld [vmem:[%s5986 + $0x40] sm:$0xff]
      %v8923 = vld [vmem:[%s5986 + $0x48] sm:$0xff]
      %v8924 = vld [vmem:[%s5986 + $0x50] sm:$0xff]
      %v8925 = vld [vmem:[%s5986 + $0x58] sm:$0xff]
      %v8926 = vld [vmem:[%s5986 + $0x60] sm:$0xff]
      %v8927 = vld [vmem:[%s5986 + $0x68] sm:$0xff]
      %v8928 = vld [vmem:[%s5986 + $0x70] sm:$0xff]
      %v8929 = vld [vmem:[%s5986 + $0x78] sm:$0xff]
      %v8946 = vunpack.c.l.b16 %v8914
      %v8947 = vunpack.c.h.b16 %v8914
      %v8948 = vunpack.c.l.b16 %v8915
      %v8949 = vunpack.c.h.b16 %v8915
      %v8950 = vunpack.c.l.b16 %v8916
      %v8951 = vunpack.c.h.b16 %v8916
      %v8952 = vunpack.c.l.b16 %v8917
      %v8953 = vunpack.c.h.b16 %v8917
      %v8954 = vunpack.c.l.b16 %v8918
      %v8955 = vunpack.c.h.b16 %v8918
      %v8956 = vunpack.c.l.b16 %v8919
      %v8957 = vunpack.c.h.b16 %v8919
      %v8958 = vunpack.c.l.b16 %v8920
      %v8959 = vunpack.c.h.b16 %v8920
      %v8960 = vunpack.c.l.b16 %v8921
      %v8961 = vunpack.c.h.b16 %v8921
      %v8962 = vunpack.c.l.b16 %v8922
      %v8963 = vunpack.c.h.b16 %v8922
      %v8964 = vunpack.c.l.b16 %v8923
      %v8965 = vunpack.c.h.b16 %v8923
      %v8966 = vunpack.c.l.b16 %v8924
      %v8967 = vunpack.c.h.b16 %v8924
      %v8968 = vunpack.c.l.b16 %v8925
      %v8969 = vunpack.c.h.b16 %v8925
      %v8970 = vunpack.c.l.b16 %v8926
      %v8971 = vunpack.c.h.b16 %v8926
      %v8972 = vunpack.c.l.b16 %v8927
      %v8973 = vunpack.c.h.b16 %v8927
      %v8974 = vunpack.c.l.b16 %v8928
      %v8975 = vunpack.c.h.b16 %v8928
      %v8976 = vunpack.c.l.b16 %v8929
      %v8977 = vunpack.c.h.b16 %v8929
      %v8978 = vpack.c.b16 %v8948, %v8946
      %v8979 = vpack.c.b16 %v8949, %v8947
      %v8980 = vpack.c.b16 %v8952, %v8950
      %v8981 = vpack.c.b16 %v8953, %v8951
      %v8982 = vpack.c.b16 %v8956, %v8954
      %v8983 = vpack.c.b16 %v8957, %v8955
      %v8984 = vpack.c.b16 %v8960, %v8958
      %v8985 = vpack.c.b16 %v8961, %v8959
      %v8986 = vpack.c.b16 %v8964, %v8962
      %v8987 = vpack.c.b16 %v8965, %v8963
      %v8988 = vpack.c.b16 %v8968, %v8966
      %v8989 = vpack.c.b16 %v8969, %v8967
      %v8990 = vpack.c.b16 %v8972, %v8970
      %v8991 = vpack.c.b16 %v8973, %v8971
      %v8992 = vpack.c.b16 %v8976, %v8974
      %v8993 = vpack.c.b16 %v8977, %v8975
      %9010 = vmatprep.subr.bf16.mxu0 %v8979
      %9011 = vmatpush1.bf16.msra.mxu0 %v8978
      %9012 = vmatprep.subr.bf16.mxu0 %v8981
      %9013 = vmatpush1.bf16.msra.mxu0 %v8980
      %9014 = vmatprep.subr.bf16.mxu0 %v8983
      %9015 = vmatpush1.bf16.msra.mxu0 %v8982
      %9016 = vmatprep.subr.bf16.mxu0 %v8985
      %9017 = vmatpush1.bf16.msra.mxu0 %v8984
      %9018 = vmatprep.subr.bf16.mxu0 %v8987
      %9019 = vmatpush1.bf16.msra.mxu0 %v8986
      %9020 = vmatprep.subr.bf16.mxu0 %v8989
      %9021 = vmatpush1.bf16.msra.mxu0 %v8988
      %9022 = vmatprep.subr.bf16.mxu0 %v8991
      %9023 = vmatpush1.bf16.msra.mxu0 %v8990
      %9024 = vmatprep.subr.bf16.mxu0 %v8993
      %9025 = vmatpush1.bf16.msra.mxu0 %v8992
      %9026 = vmatprep.subr.bf16.mxu0 0
      %9027 = vmatpush1.bf16.msra.mxu0 0
      %9028 = vmatprep.subr.bf16.mxu0 0
      %9029 = vmatpush1.bf16.msra.mxu0 0
      %9030 = vmatprep.subr.bf16.mxu0 0
      %9031 = vmatpush1.bf16.msra.mxu0 0
      %9032 = vmatprep.subr.bf16.mxu0 0
      %9033 = vmatpush1.bf16.msra.mxu0 0
      %9034 = vmatprep.subr.bf16.mxu0 0
      %9035 = vmatpush1.bf16.msra.mxu0 0
      %9036 = vmatprep.subr.bf16.mxu0 0
      %9037 = vmatpush1.bf16.msra.mxu0 0
      %9038 = vmatprep.subr.bf16.mxu0 0
      %9039 = vmatpush1.bf16.msra.mxu0 0
      %9040 = vmatprep.subr.bf16.mxu0 0
      %9041 = vmatpush1.bf16.msra.mxu0 0
      %9042 = vmatprep.mubr.bf16.mxu0 0
      %9043 = vmatmul.mubr.bf16.gmra.mrb[0].mxu0 %v8913
      %v9044 = vpop.f32.mrb[0].mxu0
      %v9045 = vadd.f32 0.0, %v9044
      %v9046 = vpop.f32.mrb[0].mxu0
      %v9047 = vadd.f32 0.0, %v9046
      %v9048 = vpop.f32.mrb[0].mxu0
      %v9049 = vpop.f32.mrb[0].mxu0
      %9050 = vdwg.mxu0
      %v9051 = vadd.f32 %v8871, %v9045
      %v9052 = vadd.f32 %v8872, %v9047
      %9053 = vmatprep.subr.bf16.mxu0 0
      %9054 = vmatpush1.bf16.msra.mxu0 %v8691
      %9055 = vmatprep.subr.bf16.mxu0 0
      %9056 = vmatpush1.bf16.msra.mxu0 0
      %9057 = vmatprep.subr.bf16.mxu0 0
      %9058 = vmatpush1.bf16.msra.mxu0 0
      %9059 = vmatprep.subr.bf16.mxu0 0
      %9060 = vmatpush1.bf16.msra.mxu0 0
      %9061 = vmatprep.subr.bf16.mxu0 0
      %9062 = vmatpush1.bf16.msra.mxu0 0
      %9063 = vmatprep.subr.bf16.mxu0 0
      %9064 = vmatpush1.bf16.msra.mxu0 0
      %9065 = vmatprep.subr.bf16.mxu0 0
      %9066 = vmatpush1.bf16.msra.mxu0 0
      %9067 = vmatprep.subr.bf16.mxu0 0
      %9068 = vmatpush1.bf16.msra.mxu0 0
      %9069 = vmatprep.subr.bf16.mxu0 0
      %9070 = vmatpush1.bf16.msra.mxu0 0
      %9071 = vmatprep.subr.bf16.mxu0 0
      %9072 = vmatpush1.bf16.msra.mxu0 0
      %9073 = vmatprep.subr.bf16.mxu0 0
      %9074 = vmatpush1.bf16.msra.mxu0 0
      %9075 = vmatprep.subr.bf16.mxu0 0
      %9076 = vmatpush1.bf16.msra.mxu0 0
      %9077 = vmatprep.subr.bf16.mxu0 0
      %9078 = vmatpush1.bf16.msra.mxu0 0
      %9079 = vmatprep.subr.bf16.mxu0 0
      %9080 = vmatpush1.bf16.msra.mxu0 0
      %9081 = vmatprep.subr.bf16.mxu0 0
      %9082 = vmatpush1.bf16.msra.mxu0 0
      %9083 = vmatprep.subr.bf16.mxu0 0
      %9084 = vmatpush1.bf16.msra.mxu0 0
      %9085 = vmatprep.mubr.bf16.mxu0 0
      %9086 = vmatmul.mubr.bf16.gmra.mrb[0].mxu0 %v4663
      %v9087 = vpop.f32.mrb[0].mxu0
      %v9088 = vadd.f32 0.0, %v9087
      %v9089 = vpop.f32.mrb[0].mxu0
      %v9090 = vpop.f32.mrb[0].mxu0
      %v9091 = vpop.f32.mrb[0].mxu0
      %9092 = vdwg.mxu0
      %v9093 = vpack.c.bf16 %v9088, %v9088
      %v9094 = vld [vmem:[%s6167] sm:$0xff]
      %v9095 = vld [vmem:[%s6167 + $0x8] sm:$0xff]
      %v9096 = vld [vmem:[%s6167 + $0x10] sm:$0xff]
      %v9097 = vld [vmem:[%s6167 + $0x18] sm:$0xff]
      %v9098 = vld [vmem:[%s6167 + $0x20] sm:$0xff]
      %v9099 = vld [vmem:[%s6167 + $0x28] sm:$0xff]
      %v9100 = vld [vmem:[%s6167 + $0x30] sm:$0xff]
      %v9101 = vld [vmem:[%s6167 + $0x38] sm:$0xff]
      %v9102 = vld [vmem:[%s6167 + $0x40] sm:$0xff]
      %v9103 = vld [vmem:[%s6167 + $0x48] sm:$0xff]
      %v9104 = vld [vmem:[%s6167 + $0x50] sm:$0xff]
      %v9105 = vld [vmem:[%s6167 + $0x58] sm:$0xff]
      %v9106 = vld [vmem:[%s6167 + $0x60] sm:$0xff]
      %v9107 = vld [vmem:[%s6167 + $0x68] sm:$0xff]
      %v9108 = vld [vmem:[%s6167 + $0x70] sm:$0xff]
      %v9109 = vld [vmem:[%s6167 + $0x78] sm:$0xff]
      %v9126 = vunpack.c.l.b16 %v9094
      %v9127 = vunpack.c.h.b16 %v9094
      %v9128 = vunpack.c.l.b16 %v9095
      %v9129 = vunpack.c.h.b16 %v9095
      %v9130 = vunpack.c.l.b16 %v9096
      %v9131 = vunpack.c.h.b16 %v9096
      %v9132 = vunpack.c.l.b16 %v9097
      %v9133 = vunpack.c.h.b16 %v9097
      %v9134 = vunpack.c.l.b16 %v9098
      %v9135 = vunpack.c.h.b16 %v9098
      %v9136 = vunpack.c.l.b16 %v9099
      %v9137 = vunpack.c.h.b16 %v9099
      %v9138 = vunpack.c.l.b16 %v9100
      %v9139 = vunpack.c.h.b16 %v9100
      %v9140 = vunpack.c.l.b16 %v9101
      %v9141 = vunpack.c.h.b16 %v9101
      %v9142 = vunpack.c.l.b16 %v9102
      %v9143 = vunpack.c.h.b16 %v9102
      %v9144 = vunpack.c.l.b16 %v9103
      %v9145 = vunpack.c.h.b16 %v9103
      %v9146 = vunpack.c.l.b16 %v9104
      %v9147 = vunpack.c.h.b16 %v9104
      %v9148 = vunpack.c.l.b16 %v9105
      %v9149 = vunpack.c.h.b16 %v9105
      %v9150 = vunpack.c.l.b16 %v9106
      %v9151 = vunpack.c.h.b16 %v9106
      %v9152 = vunpack.c.l.b16 %v9107
      %v9153 = vunpack.c.h.b16 %v9107
      %v9154 = vunpack.c.l.b16 %v9108
      %v9155 = vunpack.c.h.b16 %v9108
      %v9156 = vunpack.c.l.b16 %v9109
      %v9157 = vunpack.c.h.b16 %v9109
      %v9158 = vpack.c.b16 %v9128, %v9126
      %v9159 = vpack.c.b16 %v9129, %v9127
      %v9160 = vpack.c.b16 %v9132, %v9130
      %v9161 = vpack.c.b16 %v9133, %v9131
      %v9162 = vpack.c.b16 %v9136, %v9134
      %v9163 = vpack.c.b16 %v9137, %v9135
      %v9164 = vpack.c.b16 %v9140, %v9138
      %v9165 = vpack.c.b16 %v9141, %v9139
      %v9166 = vpack.c.b16 %v9144, %v9142
      %v9167 = vpack.c.b16 %v9145, %v9143
      %v9168 = vpack.c.b16 %v9148, %v9146
      %v9169 = vpack.c.b16 %v9149, %v9147
      %v9170 = vpack.c.b16 %v9152, %v9150
      %v9171 = vpack.c.b16 %v9153, %v9151
      %v9172 = vpack.c.b16 %v9156, %v9154
      %v9173 = vpack.c.b16 %v9157, %v9155
      %9190 = vmatprep.subr.bf16.mxu0 %v9159
      %9191 = vmatpush1.bf16.msra.mxu0 %v9158
      %9192 = vmatprep.subr.bf16.mxu0 %v9161
      %9193 = vmatpush1.bf16.msra.mxu0 %v9160
      %9194 = vmatprep.subr.bf16.mxu0 %v9163
      %9195 = vmatpush1.bf16.msra.mxu0 %v9162
      %9196 = vmatprep.subr.bf16.mxu0 %v9165
      %9197 = vmatpush1.bf16.msra.mxu0 %v9164
      %9198 = vmatprep.subr.bf16.mxu0 %v9167
      %9199 = vmatpush1.bf16.msra.mxu0 %v9166
      %9200 = vmatprep.subr.bf16.mxu0 %v9169
      %9201 = vmatpush1.bf16.msra.mxu0 %v9168
      %9202 = vmatprep.subr.bf16.mxu0 %v9171
      %9203 = vmatpush1.bf16.msra.mxu0 %v9170
      %9204 = vmatprep.subr.bf16.mxu0 %v9173
      %9205 = vmatpush1.bf16.msra.mxu0 %v9172
      %9206 = vmatprep.subr.bf16.mxu0 0
      %9207 = vmatpush1.bf16.msra.mxu0 0
      %9208 = vmatprep.subr.bf16.mxu0 0
      %9209 = vmatpush1.bf16.msra.mxu0 0
      %9210 = vmatprep.subr.bf16.mxu0 0
      %9211 = vmatpush1.bf16.msra.mxu0 0
      %9212 = vmatprep.subr.bf16.mxu0 0
      %9213 = vmatpush1.bf16.msra.mxu0 0
      %9214 = vmatprep.subr.bf16.mxu0 0
      %9215 = vmatpush1.bf16.msra.mxu0 0
      %9216 = vmatprep.subr.bf16.mxu0 0
      %9217 = vmatpush1.bf16.msra.mxu0 0
      %9218 = vmatprep.subr.bf16.mxu0 0
      %9219 = vmatpush1.bf16.msra.mxu0 0
      %9220 = vmatprep.subr.bf16.mxu0 0
      %9221 = vmatpush1.bf16.msra.mxu0 0
      %9222 = vmatprep.mubr.bf16.mxu0 0
      %9223 = vmatmul.mubr.bf16.gmra.mrb[0].mxu0 %v9093
      %v9224 = vpop.f32.mrb[0].mxu0
      %v9225 = vadd.f32 0.0, %v9224
      %v9226 = vpop.f32.mrb[0].mxu0
      %v9227 = vadd.f32 0.0, %v9226
      %v9228 = vpop.f32.mrb[0].mxu0
      %v9229 = vpop.f32.mrb[0].mxu0
      %9230 = vdwg.mxu0
      %v9231 = vadd.f32 %v9051, %v9225
      %v9232 = vadd.f32 %v9052, %v9227
      %9233 = vmatprep.subr.bf16.mxu0 0
      %9234 = vmatpush1.bf16.msra.mxu0 %v8691
      %9235 = vmatprep.subr.bf16.mxu0 0
      %9236 = vmatpush1.bf16.msra.mxu0 0
      %9237 = vmatprep.subr.bf16.mxu0 0
      %9238 = vmatpush1.bf16.msra.mxu0 0
      %9239 = vmatprep.subr.bf16.mxu0 0
      %9240 = vmatpush1.bf16.msra.mxu0 0
      %9241 = vmatprep.subr.bf16.mxu0 0
      %9242 = vmatpush1.bf16.msra.mxu0 0
      %9243 = vmatprep.subr.bf16.mxu0 0
      %9244 = vmatpush1.bf16.msra.mxu0 0
      %9245 = vmatprep.subr.bf16.mxu0 0
      %9246 = vmatpush1.bf16.msra.mxu0 0
      %9247 = vmatprep.subr.bf16.mxu0 0
      %9248 = vmatpush1.bf16.msra.mxu0 0
      %9249 = vmatprep.subr.bf16.mxu0 0
      %9250 = vmatpush1.bf16.msra.mxu0 0
      %9251 = vmatprep.subr.bf16.mxu0 0
      %9252 = vmatpush1.bf16.msra.mxu0 0
      %9253 = vmatprep.subr.bf16.mxu0 0
      %9254 = vmatpush1.bf16.msra.mxu0 0
      %9255 = vmatprep.subr.bf16.mxu0 0
      %9256 = vmatpush1.bf16.msra.mxu0 0
      %9257 = vmatprep.subr.bf16.mxu0 0
      %9258 = vmatpush1.bf16.msra.mxu0 0
      %9259 = vmatprep.subr.bf16.mxu0 0
      %9260 = vmatpush1.bf16.msra.mxu0 0
      %9261 = vmatprep.subr.bf16.mxu0 0
      %9262 = vmatpush1.bf16.msra.mxu0 0
      %9263 = vmatprep.subr.bf16.mxu0 0
      %9264 = vmatpush1.bf16.msra.mxu0 0
      %9265 = vmatprep.mubr.bf16.mxu0 0
      %9266 = vmatmul.mubr.bf16.gmra.mrb[0].mxu0 %v4847
      %v9267 = vpop.f32.mrb[0].mxu0
      %v9268 = vadd.f32 0.0, %v9267
      %v9269 = vpop.f32.mrb[0].mxu0
      %v9270 = vpop.f32.mrb[0].mxu0
      %v9271 = vpop.f32.mrb[0].mxu0
      %9272 = vdwg.mxu0
      %v9273 = vpack.c.bf16 %v9268, %v9268
      %v9274 = vld [vmem:[%s6348] sm:$0xff]
      %v9275 = vld [vmem:[%s6348 + $0x8] sm:$0xff]
      %v9276 = vld [vmem:[%s6348 + $0x10] sm:$0xff]
      %v9277 = vld [vmem:[%s6348 + $0x18] sm:$0xff]
      %v9278 = vld [vmem:[%s6348 + $0x20] sm:$0xff]
      %v9279 = vld [vmem:[%s6348 + $0x28] sm:$0xff]
      %v9280 = vld [vmem:[%s6348 + $0x30] sm:$0xff]
      %v9281 = vld [vmem:[%s6348 + $0x38] sm:$0xff]
      %v9282 = vld [vmem:[%s6348 + $0x40] sm:$0xff]
      %v9283 = vld [vmem:[%s6348 + $0x48] sm:$0xff]
      %v9284 = vld [vmem:[%s6348 + $0x50] sm:$0xff]
      %v9285 = vld [vmem:[%s6348 + $0x58] sm:$0xff]
      %v9286 = vld [vmem:[%s6348 + $0x60] sm:$0xff]
      %v9287 = vld [vmem:[%s6348 + $0x68] sm:$0xff]
      %v9288 = vld [vmem:[%s6348 + $0x70] sm:$0xff]
      %v9289 = vld [vmem:[%s6348 + $0x78] sm:$0xff]
      %v9306 = vunpack.c.l.b16 %v9274
      %v9307 = vunpack.c.h.b16 %v9274
      %v9308 = vunpack.c.l.b16 %v9275
      %v9309 = vunpack.c.h.b16 %v9275
      %v9310 = vunpack.c.l.b16 %v9276
      %v9311 = vunpack.c.h.b16 %v9276
      %v9312 = vunpack.c.l.b16 %v9277
      %v9313 = vunpack.c.h.b16 %v9277
      %v9314 = vunpack.c.l.b16 %v9278
      %v9315 = vunpack.c.h.b16 %v9278
      %v9316 = vunpack.c.l.b16 %v9279
      %v9317 = vunpack.c.h.b16 %v9279
      %v9318 = vunpack.c.l.b16 %v9280
      %v9319 = vunpack.c.h.b16 %v9280
      %v9320 = vunpack.c.l.b16 %v9281
      %v9321 = vunpack.c.h.b16 %v9281
      %v9322 = vunpack.c.l.b16 %v9282
      %v9323 = vunpack.c.h.b16 %v9282
      %v9324 = vunpack.c.l.b16 %v9283
      %v9325 = vunpack.c.h.b16 %v9283
      %v9326 = vunpack.c.l.b16 %v9284
      %v9327 = vunpack.c.h.b16 %v9284
      %v9328 = vunpack.c.l.b16 %v9285
      %v9329 = vunpack.c.h.b16 %v9285
      %v9330 = vunpack.c.l.b16 %v9286
      %v9331 = vunpack.c.h.b16 %v9286
      %v9332 = vunpack.c.l.b16 %v9287
      %v9333 = vunpack.c.h.b16 %v9287
      %v9334 = vunpack.c.l.b16 %v9288
      %v9335 = vunpack.c.h.b16 %v9288
      %v9336 = vunpack.c.l.b16 %v9289
      %v9337 = vunpack.c.h.b16 %v9289
      %v9338 = vpack.c.b16 %v9308, %v9306
      %v9339 = vpack.c.b16 %v9309, %v9307
      %v9340 = vpack.c.b16 %v9312, %v9310
      %v9341 = vpack.c.b16 %v9313, %v9311
      %v9342 = vpack.c.b16 %v9316, %v9314
      %v9343 = vpack.c.b16 %v9317, %v9315
      %v9344 = vpack.c.b16 %v9320, %v9318
      %v9345 = vpack.c.b16 %v9321, %v9319
      %v9346 = vpack.c.b16 %v9324, %v9322
      %v9347 = vpack.c.b16 %v9325, %v9323
      %v9348 = vpack.c.b16 %v9328, %v9326
      %v9349 = vpack.c.b16 %v9329, %v9327
      %v9350 = vpack.c.b16 %v9332, %v9330
      %v9351 = vpack.c.b16 %v9333, %v9331
      %v9352 = vpack.c.b16 %v9336, %v9334
      %v9353 = vpack.c.b16 %v9337, %v9335
      %9370 = vmatprep.subr.bf16.mxu0 %v9339
      %9371 = vmatpush1.bf16.msra.mxu0 %v9338
      %9372 = vmatprep.subr.bf16.mxu0 %v9341
      %9373 = vmatpush1.bf16.msra.mxu0 %v9340
      %9374 = vmatprep.subr.bf16.mxu0 %v9343
      %9375 = vmatpush1.bf16.msra.mxu0 %v9342
      %9376 = vmatprep.subr.bf16.mxu0 %v9345
      %9377 = vmatpush1.bf16.msra.mxu0 %v9344
      %9378 = vmatprep.subr.bf16.mxu0 %v9347
      %9379 = vmatpush1.bf16.msra.mxu0 %v9346
      %9380 = vmatprep.subr.bf16.mxu0 %v9349
      %9381 = vmatpush1.bf16.msra.mxu0 %v9348
      %9382 = vmatprep.subr.bf16.mxu0 %v9351
      %9383 = vmatpush1.bf16.msra.mxu0 %v9350
      %9384 = vmatprep.subr.bf16.mxu0 %v9353
      %9385 = vmatpush1.bf16.msra.mxu0 %v9352
      %9386 = vmatprep.subr.bf16.mxu0 0
      %9387 = vmatpush1.bf16.msra.mxu0 0
      %9388 = vmatprep.subr.bf16.mxu0 0
      %9389 = vmatpush1.bf16.msra.mxu0 0
      %9390 = vmatprep.subr.bf16.mxu0 0
      %9391 = vmatpush1.bf16.msra.mxu0 0
      %9392 = vmatprep.subr.bf16.mxu0 0
      %9393 = vmatpush1.bf16.msra.mxu0 0
      %9394 = vmatprep.subr.bf16.mxu0 0
      %9395 = vmatpush1.bf16.msra.mxu0 0
      %9396 = vmatprep.subr.bf16.mxu0 0
      %9397 = vmatpush1.bf16.msra.mxu0 0
      %9398 = vmatprep.subr.bf16.mxu0 0
      %9399 = vmatpush1.bf16.msra.mxu0 0
      %9400 = vmatprep.subr.bf16.mxu0 0
      %9401 = vmatpush1.bf16.msra.mxu0 0
      %9402 = vmatprep.mubr.bf16.mxu0 0
      %9403 = vmatmul.mubr.bf16.gmra.mrb[0].mxu0 %v9273
      %v9404 = vpop.f32.mrb[0].mxu0
      %v9405 = vadd.f32 0.0, %v9404
      %v9406 = vpop.f32.mrb[0].mxu0
      %v9407 = vadd.f32 0.0, %v9406
      %v9408 = vpop.f32.mrb[0].mxu0
      %v9409 = vpop.f32.mrb[0].mxu0
      %9410 = vdwg.mxu0
      %v9411 = vadd.f32 %v9231, %v9405
      %v9412 = vadd.f32 %v9232, %v9407
      %s9413 = scalar_lea.vmem [#allocation4], 20
      %v9414 = vld [vmem:[%s9413] sm:$0x7]
      %v9416 = vsel %vm4298, %v9414, 0
      %9418 = vmatprep.subr.bf16.mxu0 0
      %9419 = vmatpush1.bf16.msra.mxu0 %v9416
      %9420 = vmatprep.subr.bf16.mxu0 0
      %9421 = vmatpush1.bf16.msra.mxu0 0
      %9422 = vmatprep.subr.bf16.mxu0 0
      %9423 = vmatpush1.bf16.msra.mxu0 0
      %9424 = vmatprep.subr.bf16.mxu0 0
      %9425 = vmatpush1.bf16.msra.mxu0 0
      %9426 = vmatprep.subr.bf16.mxu0 0
      %9427 = vmatpush1.bf16.msra.mxu0 0
      %9428 = vmatprep.subr.bf16.mxu0 0
      %9429 = vmatpush1.bf16.msra.mxu0 0
      %9430 = vmatprep.subr.bf16.mxu0 0
      %9431 = vmatpush1.bf16.msra.mxu0 0
      %9432 = vmatprep.subr.bf16.mxu0 0
      %9433 = vmatpush1.bf16.msra.mxu0 0
      %9434 = vmatprep.subr.bf16.mxu0 0
      %9435 = vmatpush1.bf16.msra.mxu0 0
      %9436 = vmatprep.subr.bf16.mxu0 0
      %9437 = vmatpush1.bf16.msra.mxu0 0
      %9438 = vmatprep.subr.bf16.mxu0 0
      %9439 = vmatpush1.bf16.msra.mxu0 0
      %9440 = vmatprep.subr.bf16.mxu0 0
      %9441 = vmatpush1.bf16.msra.mxu0 0
      %9442 = vmatprep.subr.bf16.mxu0 0
      %9443 = vmatpush1.bf16.msra.mxu0 0
      %9444 = vmatprep.subr.bf16.mxu0 0
      %9445 = vmatpush1.bf16.msra.mxu0 0
      %9446 = vmatprep.subr.bf16.mxu0 0
      %9447 = vmatpush1.bf16.msra.mxu0 0
      %9448 = vmatprep.subr.bf16.mxu0 0
      %9449 = vmatpush1.bf16.msra.mxu0 0
      %9450 = vmatprep.mubr.bf16.mxu0 0
      %9451 = vmatmul.mubr.bf16.gmra.mrb[0].mxu0 %v4296
      %v9452 = vpop.f32.mrb[0].mxu0
      %v9453 = vadd.f32 0.0, %v9452
      %v9454 = vpop.f32.mrb[0].mxu0
      %v9455 = vpop.f32.mrb[0].mxu0
      %v9456 = vpop.f32.mrb[0].mxu0
      %9457 = vdwg.mxu0
      %v9458 = vpack.c.bf16 %v9453, %v9453
      %v9459 = vld [vmem:[%s6534] sm:$0xff]
      %v9460 = vld [vmem:[%s6534 + $0x8] sm:$0xff]
      %v9461 = vld [vmem:[%s6534 + $0x10] sm:$0xff]
      %v9462 = vld [vmem:[%s6534 + $0x18] sm:$0xff]
      %v9463 = vld [vmem:[%s6534 + $0x20] sm:$0xff]
      %v9464 = vld [vmem:[%s6534 + $0x28] sm:$0xff]
      %v9465 = vld [vmem:[%s6534 + $0x30] sm:$0xff]
      %v9466 = vld [vmem:[%s6534 + $0x38] sm:$0xff]
      %v9467 = vld [vmem:[%s6534 + $0x40] sm:$0xff]
      %v9468 = vld [vmem:[%s6534 + $0x48] sm:$0xff]
      %v9469 = vld [vmem:[%s6534 + $0x50] sm:$0xff]
      %v9470 = vld [vmem:[%s6534 + $0x58] sm:$0xff]
      %v9471 = vld [vmem:[%s6534 + $0x60] sm:$0xff]
      %v9472 = vld [vmem:[%s6534 + $0x68] sm:$0xff]
      %v9473 = vld [vmem:[%s6534 + $0x70] sm:$0xff]
      %v9474 = vld [vmem:[%s6534 + $0x78] sm:$0xff]
      %v9491 = vunpack.c.l.b16 %v9459
      %v9492 = vunpack.c.h.b16 %v9459
      %v9493 = vunpack.c.l.b16 %v9460
      %v9494 = vunpack.c.h.b16 %v9460
      %v9495 = vunpack.c.l.b16 %v9461
      %v9496 = vunpack.c.h.b16 %v9461
      %v9497 = vunpack.c.l.b16 %v9462
      %v9498 = vunpack.c.h.b16 %v9462
      %v9499 = vunpack.c.l.b16 %v9463
      %v9500 = vunpack.c.h.b16 %v9463
      %v9501 = vunpack.c.l.b16 %v9464
      %v9502 = vunpack.c.h.b16 %v9464
      %v9503 = vunpack.c.l.b16 %v9465
      %v9504 = vunpack.c.h.b16 %v9465
      %v9505 = vunpack.c.l.b16 %v9466
      %v9506 = vunpack.c.h.b16 %v9466
      %v9507 = vunpack.c.l.b16 %v9467
      %v9508 = vunpack.c.h.b16 %v9467
      %v9509 = vunpack.c.l.b16 %v9468
      %v9510 = vunpack.c.h.b16 %v9468
      %v9511 = vunpack.c.l.b16 %v9469
      %v9512 = vunpack.c.h.b16 %v9469
      %v9513 = vunpack.c.l.b16 %v9470
      %v9514 = vunpack.c.h.b16 %v9470
      %v9515 = vunpack.c.l.b16 %v9471
      %v9516 = vunpack.c.h.b16 %v9471
      %v9517 = vunpack.c.l.b16 %v9472
      %v9518 = vunpack.c.h.b16 %v9472
      %v9519 = vunpack.c.l.b16 %v9473
      %v9520 = vunpack.c.h.b16 %v9473
      %v9521 = vunpack.c.l.b16 %v9474
      %v9522 = vunpack.c.h.b16 %v9474
      %v9523 = vpack.c.b16 %v9493, %v9491
      %v9524 = vpack.c.b16 %v9494, %v9492
      %v9525 = vpack.c.b16 %v9497, %v9495
      %v9526 = vpack.c.b16 %v9498, %v9496
      %v9527 = vpack.c.b16 %v9501, %v9499
      %v9528 = vpack.c.b16 %v9502, %v9500
      %v9529 = vpack.c.b16 %v9505, %v9503
      %v9530 = vpack.c.b16 %v9506, %v9504
      %v9531 = vpack.c.b16 %v9509, %v9507
      %v9532 = vpack.c.b16 %v9510, %v9508
      %v9533 = vpack.c.b16 %v9513, %v9511
      %v9534 = vpack.c.b16 %v9514, %v9512
      %v9535 = vpack.c.b16 %v9517, %v9515
      %v9536 = vpack.c.b16 %v9518, %v9516
      %v9537 = vpack.c.b16 %v9521, %v9519
      %v9538 = vpack.c.b16 %v9522, %v9520
      %9555 = vmatprep.subr.bf16.mxu0 %v9524
      %9556 = vmatpush1.bf16.msra.mxu0 %v9523
      %9557 = vmatprep.subr.bf16.mxu0 %v9526
      %9558 = vmatpush1.bf16.msra.mxu0 %v9525
      %9559 = vmatprep.subr.bf16.mxu0 %v9528
      %9560 = vmatpush1.bf16.msra.mxu0 %v9527
      %9561 = vmatprep.subr.bf16.mxu0 %v9530
      %9562 = vmatpush1.bf16.msra.mxu0 %v9529
      %9563 = vmatprep.subr.bf16.mxu0 %v9532
      %9564 = vmatpush1.bf16.msra.mxu0 %v9531
      %9565 = vmatprep.subr.bf16.mxu0 %v9534
      %9566 = vmatpush1.bf16.msra.mxu0 %v9533
      %9567 = vmatprep.subr.bf16.mxu0 %v9536
      %9568 = vmatpush1.bf16.msra.mxu0 %v9535
      %9569 = vmatprep.subr.bf16.mxu0 %v9538
      %9570 = vmatpush1.bf16.msra.mxu0 %v9537
      %9571 = vmatprep.subr.bf16.mxu0 0
      %9572 = vmatpush1.bf16.msra.mxu0 0
      %9573 = vmatprep.subr.bf16.mxu0 0
      %9574 = vmatpush1.bf16.msra.mxu0 0
      %9575 = vmatprep.subr.bf16.mxu0 0
      %9576 = vmatpush1.bf16.msra.mxu0 0
      %9577 = vmatprep.subr.bf16.mxu0 0
      %9578 = vmatpush1.bf16.msra.mxu0 0
      %9579 = vmatprep.subr.bf16.mxu0 0
      %9580 = vmatpush1.bf16.msra.mxu0 0
      %9581 = vmatprep.subr.bf16.mxu0 0
      %9582 = vmatpush1.bf16.msra.mxu0 0
      %9583 = vmatprep.subr.bf16.mxu0 0
      %9584 = vmatpush1.bf16.msra.mxu0 0
      %9585 = vmatprep.subr.bf16.mxu0 0
      %9586 = vmatpush1.bf16.msra.mxu0 0
      %9587 = vmatprep.mubr.bf16.mxu0 0
      %9588 = vmatmul.mubr.bf16.gmra.mrb[0].mxu0 %v9458
      %v9589 = vpop.f32.mrb[0].mxu0
      %v9590 = vadd.f32 0.0, %v9589
      %v9591 = vpop.f32.mrb[0].mxu0
      %v9592 = vadd.f32 0.0, %v9591
      %v9593 = vpop.f32.mrb[0].mxu0
      %v9594 = vpop.f32.mrb[0].mxu0
      %9595 = vdwg.mxu0
      %v9596 = vadd.f32 %v9411, %v9590
      %v9597 = vadd.f32 %v9412, %v9592
      %9598 = vmatprep.subr.bf16.mxu0 0
      %9599 = vmatpush1.bf16.msra.mxu0 %v9416
      %9600 = vmatprep.subr.bf16.mxu0 0
      %9601 = vmatpush1.bf16.msra.mxu0 0
      %9602 = vmatprep.subr.bf16.mxu0 0
      %9603 = vmatpush1.bf16.msra.mxu0 0
      %9604 = vmatprep.subr.bf16.mxu0 0
      %9605 = vmatpush1.bf16.msra.mxu0 0
      %9606 = vmatprep.subr.bf16.mxu0 0
      %9607 = vmatpush1.bf16.msra.mxu0 0
      %9608 = vmatprep.subr.bf16.mxu0 0
      %9609 = vmatpush1.bf16.msra.mxu0 0
      %9610 = vmatprep.subr.bf16.mxu0 0
      %9611 = vmatpush1.bf16.msra.mxu0 0
      %9612 = vmatprep.subr.bf16.mxu0 0
      %9613 = vmatpush1.bf16.msra.mxu0 0
      %9614 = vmatprep.subr.bf16.mxu0 0
      %9615 = vmatpush1.bf16.msra.mxu0 0
      %9616 = vmatprep.subr.bf16.mxu0 0
      %9617 = vmatpush1.bf16.msra.mxu0 0
      %9618 = vmatprep.subr.bf16.mxu0 0
      %9619 = vmatpush1.bf16.msra.mxu0 0
      %9620 = vmatprep.subr.bf16.mxu0 0
      %9621 = vmatpush1.bf16.msra.mxu0 0
      %9622 = vmatprep.subr.bf16.mxu0 0
      %9623 = vmatpush1.bf16.msra.mxu0 0
      %9624 = vmatprep.subr.bf16.mxu0 0
      %9625 = vmatpush1.bf16.msra.mxu0 0
      %9626 = vmatprep.subr.bf16.mxu0 0
      %9627 = vmatpush1.bf16.msra.mxu0 0
      %9628 = vmatprep.subr.bf16.mxu0 0
      %9629 = vmatpush1.bf16.msra.mxu0 0
      %9630 = vmatprep.mubr.bf16.mxu0 0
      %9631 = vmatmul.mubr.bf16.gmra.mrb[0].mxu0 %v4360
      %v9632 = vpop.f32.mrb[0].mxu0
      %v9633 = vadd.f32 0.0, %v9632
      %v9634 = vpop.f32.mrb[0].mxu0
      %v9635 = vpop.f32.mrb[0].mxu0
      %v9636 = vpop.f32.mrb[0].mxu0
      %9637 = vdwg.mxu0
      %v9638 = vpack.c.bf16 %v9633, %v9633
      %v9639 = vld [vmem:[%s6715] sm:$0xff]
      %v9640 = vld [vmem:[%s6715 + $0x8] sm:$0xff]
      %v9641 = vld [vmem:[%s6715 + $0x10] sm:$0xff]
      %v9642 = vld [vmem:[%s6715 + $0x18] sm:$0xff]
      %v9643 = vld [vmem:[%s6715 + $0x20] sm:$0xff]
      %v9644 = vld [vmem:[%s6715 + $0x28] sm:$0xff]
      %v9645 = vld [vmem:[%s6715 + $0x30] sm:$0xff]
      %v9646 = vld [vmem:[%s6715 + $0x38] sm:$0xff]
      %v9647 = vld [vmem:[%s6715 + $0x40] sm:$0xff]
      %v9648 = vld [vmem:[%s6715 + $0x48] sm:$0xff]
      %v9649 = vld [vmem:[%s6715 + $0x50] sm:$0xff]
      %v9650 = vld [vmem:[%s6715 + $0x58] sm:$0xff]
      %v9651 = vld [vmem:[%s6715 + $0x60] sm:$0xff]
      %v9652 = vld [vmem:[%s6715 + $0x68] sm:$0xff]
      %v9653 = vld [vmem:[%s6715 + $0x70] sm:$0xff]
      %v9654 = vld [vmem:[%s6715 + $0x78] sm:$0xff]
      %v9671 = vunpack.c.l.b16 %v9639
      %v9672 = vunpack.c.h.b16 %v9639
      %v9673 = vunpack.c.l.b16 %v9640
      %v9674 = vunpack.c.h.b16 %v9640
      %v9675 = vunpack.c.l.b16 %v9641
      %v9676 = vunpack.c.h.b16 %v9641
      %v9677 = vunpack.c.l.b16 %v9642
      %v9678 = vunpack.c.h.b16 %v9642
      %v9679 = vunpack.c.l.b16 %v9643
      %v9680 = vunpack.c.h.b16 %v9643
      %v9681 = vunpack.c.l.b16 %v9644
      %v9682 = vunpack.c.h.b16 %v9644
      %v9683 = vunpack.c.l.b16 %v9645
      %v9684 = vunpack.c.h.b16 %v9645
      %v9685 = vunpack.c.l.b16 %v9646
      %v9686 = vunpack.c.h.b16 %v9646
      %v9687 = vunpack.c.l.b16 %v9647
      %v9688 = vunpack.c.h.b16 %v9647
      %v9689 = vunpack.c.l.b16 %v9648
      %v9690 = vunpack.c.h.b16 %v9648
      %v9691 = vunpack.c.l.b16 %v9649
      %v9692 = vunpack.c.h.b16 %v9649
      %v9693 = vunpack.c.l.b16 %v9650
      %v9694 = vunpack.c.h.b16 %v9650
      %v9695 = vunpack.c.l.b16 %v9651
      %v9696 = vunpack.c.h.b16 %v9651
      %v9697 = vunpack.c.l.b16 %v9652
      %v9698 = vunpack.c.h.b16 %v9652
      %v9699 = vunpack.c.l.b16 %v9653
      %v9700 = vunpack.c.h.b16 %v9653
      %v9701 = vunpack.c.l.b16 %v9654
      %v9702 = vunpack.c.h.b16 %v9654
      %v9703 = vpack.c.b16 %v9673, %v9671
      %v9704 = vpack.c.b16 %v9674, %v9672
      %v9705 = vpack.c.b16 %v9677, %v9675
      %v9706 = vpack.c.b16 %v9678, %v9676
      %v9707 = vpack.c.b16 %v9681, %v9679
      %v9708 = vpack.c.b16 %v9682, %v9680
      %v9709 = vpack.c.b16 %v9685, %v9683
      %v9710 = vpack.c.b16 %v9686, %v9684
      %v9711 = vpack.c.b16 %v9689, %v9687
      %v9712 = vpack.c.b16 %v9690, %v9688
      %v9713 = vpack.c.b16 %v9693, %v9691
      %v9714 = vpack.c.b16 %v9694, %v9692
      %v9715 = vpack.c.b16 %v9697, %v9695
      %v9716 = vpack.c.b16 %v9698, %v9696
      %v9717 = vpack.c.b16 %v9701, %v9699
      %v9718 = vpack.c.b16 %v9702, %v9700
      %9735 = vmatprep.subr.bf16.mxu0 %v9704
      %9736 = vmatpush1.bf16.msra.mxu0 %v9703
      %9737 = vmatprep.subr.bf16.mxu0 %v9706
      %9738 = vmatpush1.bf16.msra.mxu0 %v9705
      %9739 = vmatprep.subr.bf16.mxu0 %v9708
      %9740 = vmatpush1.bf16.msra.mxu0 %v9707
      %9741 = vmatprep.subr.bf16.mxu0 %v9710
      %9742 = vmatpush1.bf16.msra.mxu0 %v9709
      %9743 = vmatprep.subr.bf16.mxu0 %v9712
      %9744 = vmatpush1.bf16.msra.mxu0 %v9711
      %9745 = vmatprep.subr.bf16.mxu0 %v9714
      %9746 = vmatpush1.bf16.msra.mxu0 %v9713
      %9747 = vmatprep.subr.bf16.mxu0 %v9716
      %9748 = vmatpush1.bf16.msra.mxu0 %v9715
      %9749 = vmatprep.subr.bf16.mxu0 %v9718
      %9750 = vmatpush1.bf16.msra.mxu0 %v9717
      %9751 = vmatprep.subr.bf16.mxu0 0
      %9752 = vmatpush1.bf16.msra.mxu0 0
      %9753 = vmatprep.subr.bf16.mxu0 0
      %9754 = vmatpush1.bf16.msra.mxu0 0
      %9755 = vmatprep.subr.bf16.mxu0 0
      %9756 = vmatpush1.bf16.msra.mxu0 0
      %9757 = vmatprep.subr.bf16.mxu0 0
      %9758 = vmatpush1.bf16.msra.mxu0 0
      %9759 = vmatprep.subr.bf16.mxu0 0
      %9760 = vmatpush1.bf16.msra.mxu0 0
      %9761 = vmatprep.subr.bf16.mxu0 0
      %9762 = vmatpush1.bf16.msra.mxu0 0
      %9763 = vmatprep.subr.bf16.mxu0 0
      %9764 = vmatpush1.bf16.msra.mxu0 0
      %9765 = vmatprep.subr.bf16.mxu0 0
      %9766 = vmatpush1.bf16.msra.mxu0 0
      %9767 = vmatprep.mubr.bf16.mxu0 0
      %9768 = vmatmul.mubr.bf16.gmra.mrb[0].mxu0 %v9638
      %v9769 = vpop.f32.mrb[0].mxu0
      %v9770 = vadd.f32 0.0, %v9769
      %v9771 = vpop.f32.mrb[0].mxu0
      %v9772 = vadd.f32 0.0, %v9771
      %v9773 = vpop.f32.mrb[0].mxu0
      %v9774 = vpop.f32.mrb[0].mxu0
      %9775 = vdwg.mxu0
      %v9776 = vadd.f32 %v9596, %v9770
      %v9777 = vadd.f32 %v9597, %v9772
      %9778 = vmatprep.subr.bf16.mxu0 0
      %9779 = vmatpush1.bf16.msra.mxu0 %v9416
      %9780 = vmatprep.subr.bf16.mxu0 0
      %9781 = vmatpush1.bf16.msra.mxu0 0
      %9782 = vmatprep.subr.bf16.mxu0 0
      %9783 = vmatpush1.bf16.msra.mxu0 0
      %9784 = vmatprep.subr.bf16.mxu0 0
      %9785 = vmatpush1.bf16.msra.mxu0 0
      %9786 = vmatprep.subr.bf16.mxu0 0
      %9787 = vmatpush1.bf16.msra.mxu0 0
      %9788 = vmatprep.subr.bf16.mxu0 0
      %9789 = vmatpush1.bf16.msra.mxu0 0
      %9790 = vmatprep.subr.bf16.mxu0 0
      %9791 = vmatpush1.bf16.msra.mxu0 0
      %9792 = vmatprep.subr.bf16.mxu0 0
      %9793 = vmatpush1.bf16.msra.mxu0 0
      %9794 = vmatprep.subr.bf16.mxu0 0
      %9795 = vmatpush1.bf16.msra.mxu0 0
      %9796 = vmatprep.subr.bf16.mxu0 0
      %9797 = vmatpush1.bf16.msra.mxu0 0
      %9798 = vmatprep.subr.bf16.mxu0 0
      %9799 = vmatpush1.bf16.msra.mxu0 0
      %9800 = vmatprep.subr.bf16.mxu0 0
      %9801 = vmatpush1.bf16.msra.mxu0 0
      %9802 = vmatprep.subr.bf16.mxu0 0
      %9803 = vmatpush1.bf16.msra.mxu0 0
      %9804 = vmatprep.subr.bf16.mxu0 0
      %9805 = vmatpush1.bf16.msra.mxu0 0
      %9806 = vmatprep.subr.bf16.mxu0 0
      %9807 = vmatpush1.bf16.msra.mxu0 0
      %9808 = vmatprep.subr.bf16.mxu0 0
      %9809 = vmatpush1.bf16.msra.mxu0 0
      %9810 = vmatprep.mubr.bf16.mxu0 0
      %9811 = vmatmul.mubr.bf16.gmra.mrb[0].mxu0 %v4663
      %v9812 = vpop.f32.mrb[0].mxu0
      %v9813 = vadd.f32 0.0, %v9812
      %v9814 = vpop.f32.mrb[0].mxu0
      %v9815 = vpop.f32.mrb[0].mxu0
      %v9816 = vpop.f32.mrb[0].mxu0
      %9817 = vdwg.mxu0
      %v9818 = vpack.c.bf16 %v9813, %v9813
      %v9819 = vld [vmem:[%s6896] sm:$0xff]
      %v9820 = vld [vmem:[%s6896 + $0x8] sm:$0xff]
      %v9821 = vld [vmem:[%s6896 + $0x10] sm:$0xff]
      %v9822 = vld [vmem:[%s6896 + $0x18] sm:$0xff]
      %v9823 = vld [vmem:[%s6896 + $0x20] sm:$0xff]
      %v9824 = vld [vmem:[%s6896 + $0x28] sm:$0xff]
      %v9825 = vld [vmem:[%s6896 + $0x30] sm:$0xff]
      %v9826 = vld [vmem:[%s6896 + $0x38] sm:$0xff]
      %v9827 = vld [vmem:[%s6896 + $0x40] sm:$0xff]
      %v9828 = vld [vmem:[%s6896 + $0x48] sm:$0xff]
      %v9829 = vld [vmem:[%s6896 + $0x50] sm:$0xff]
      %v9830 = vld [vmem:[%s6896 + $0x58] sm:$0xff]
      %v9831 = vld [vmem:[%s6896 + $0x60] sm:$0xff]
      %v9832 = vld [vmem:[%s6896 + $0x68] sm:$0xff]
      %v9833 = vld [vmem:[%s6896 + $0x70] sm:$0xff]
      %v9834 = vld [vmem:[%s6896 + $0x78] sm:$0xff]
      %v9851 = vunpack.c.l.b16 %v9819
      %v9852 = vunpack.c.h.b16 %v9819
      %v9853 = vunpack.c.l.b16 %v9820
      %v9854 = vunpack.c.h.b16 %v9820
      %v9855 = vunpack.c.l.b16 %v9821
      %v9856 = vunpack.c.h.b16 %v9821
      %v9857 = vunpack.c.l.b16 %v9822
      %v9858 = vunpack.c.h.b16 %v9822
      %v9859 = vunpack.c.l.b16 %v9823
      %v9860 = vunpack.c.h.b16 %v9823
      %v9861 = vunpack.c.l.b16 %v9824
      %v9862 = vunpack.c.h.b16 %v9824
      %v9863 = vunpack.c.l.b16 %v9825
      %v9864 = vunpack.c.h.b16 %v9825
      %v9865 = vunpack.c.l.b16 %v9826
      %v9866 = vunpack.c.h.b16 %v9826
      %v9867 = vunpack.c.l.b16 %v9827
      %v9868 = vunpack.c.h.b16 %v9827
      %v9869 = vunpack.c.l.b16 %v9828
      %v9870 = vunpack.c.h.b16 %v9828
      %v9871 = vunpack.c.l.b16 %v9829
      %v9872 = vunpack.c.h.b16 %v9829
      %v9873 = vunpack.c.l.b16 %v9830
      %v9874 = vunpack.c.h.b16 %v9830
      %v9875 = vunpack.c.l.b16 %v9831
      %v9876 = vunpack.c.h.b16 %v9831
      %v9877 = vunpack.c.l.b16 %v9832
      %v9878 = vunpack.c.h.b16 %v9832
      %v9879 = vunpack.c.l.b16 %v9833
      %v9880 = vunpack.c.h.b16 %v9833
      %v9881 = vunpack.c.l.b16 %v9834
      %v9882 = vunpack.c.h.b16 %v9834
      %v9883 = vpack.c.b16 %v9853, %v9851
      %v9884 = vpack.c.b16 %v9854, %v9852
      %v9885 = vpack.c.b16 %v9857, %v9855
      %v9886 = vpack.c.b16 %v9858, %v9856
      %v9887 = vpack.c.b16 %v9861, %v9859
      %v9888 = vpack.c.b16 %v9862, %v9860
      %v9889 = vpack.c.b16 %v9865, %v9863
      %v9890 = vpack.c.b16 %v9866, %v9864
      %v9891 = vpack.c.b16 %v9869, %v9867
      %v9892 = vpack.c.b16 %v9870, %v9868
      %v9893 = vpack.c.b16 %v9873, %v9871
      %v9894 = vpack.c.b16 %v9874, %v9872
      %v9895 = vpack.c.b16 %v9877, %v9875
      %v9896 = vpack.c.b16 %v9878, %v9876
      %v9897 = vpack.c.b16 %v9881, %v9879
      %v9898 = vpack.c.b16 %v9882, %v9880
      %9915 = vmatprep.subr.bf16.mxu0 %v9884
      %9916 = vmatpush1.bf16.msra.mxu0 %v9883
      %9917 = vmatprep.subr.bf16.mxu0 %v9886
      %9918 = vmatpush1.bf16.msra.mxu0 %v9885
      %9919 = vmatprep.subr.bf16.mxu0 %v9888
      %9920 = vmatpush1.bf16.msra.mxu0 %v9887
      %9921 = vmatprep.subr.bf16.mxu0 %v9890
      %9922 = vmatpush1.bf16.msra.mxu0 %v9889
      %9923 = vmatprep.subr.bf16.mxu0 %v9892
      %9924 = vmatpush1.bf16.msra.mxu0 %v9891
      %9925 = vmatprep.subr.bf16.mxu0 %v9894
      %9926 = vmatpush1.bf16.msra.mxu0 %v9893
      %9927 = vmatprep.subr.bf16.mxu0 %v9896
      %9928 = vmatpush1.bf16.msra.mxu0 %v9895
      %9929 = vmatprep.subr.bf16.mxu0 %v9898
      %9930 = vmatpush1.bf16.msra.mxu0 %v9897
      %9931 = vmatprep.subr.bf16.mxu0 0
      %9932 = vmatpush1.bf16.msra.mxu0 0
      %9933 = vmatprep.subr.bf16.mxu0 0
      %9934 = vmatpush1.bf16.msra.mxu0 0
      %9935 = vmatprep.subr.bf16.mxu0 0
      %9936 = vmatpush1.bf16.msra.mxu0 0
      %9937 = vmatprep.subr.bf16.mxu0 0
      %9938 = vmatpush1.bf16.msra.mxu0 0
      %9939 = vmatprep.subr.bf16.mxu0 0
      %9940 = vmatpush1.bf16.msra.mxu0 0
      %9941 = vmatprep.subr.bf16.mxu0 0
      %9942 = vmatpush1.bf16.msra.mxu0 0
      %9943 = vmatprep.subr.bf16.mxu0 0
      %9944 = vmatpush1.bf16.msra.mxu0 0
      %9945 = vmatprep.subr.bf16.mxu0 0
      %9946 = vmatpush1.bf16.msra.mxu0 0
      %9947 = vmatprep.mubr.bf16.mxu0 0
      %9948 = vmatmul.mubr.bf16.gmra.mrb[0].mxu0 %v9818
      %v9949 = vpop.f32.mrb[0].mxu0
      %v9950 = vadd.f32 0.0, %v9949
      %v9951 = vpop.f32.mrb[0].mxu0
      %v9952 = vadd.f32 0.0, %v9951
      %v9953 = vpop.f32.mrb[0].mxu0
      %v9954 = vpop.f32.mrb[0].mxu0
      %9955 = vdwg.mxu0
      %v9956 = vadd.f32 %v9776, %v9950
      %v9957 = vadd.f32 %v9777, %v9952
      %9958 = vmatprep.subr.bf16.mxu0 0
      %9959 = vmatpush1.bf16.msra.mxu0 %v9416
      %9960 = vmatprep.subr.bf16.mxu0 0
      %9961 = vmatpush1.bf16.msra.mxu0 0
      %9962 = vmatprep.subr.bf16.mxu0 0
      %9963 = vmatpush1.bf16.msra.mxu0 0
      %9964 = vmatprep.subr.bf16.mxu0 0
      %9965 = vmatpush1.bf16.msra.mxu0 0
      %9966 = vmatprep.subr.bf16.mxu0 0
      %9967 = vmatpush1.bf16.msra.mxu0 0
      %9968 = vmatprep.subr.bf16.mxu0 0
      %9969 = vmatpush1.bf16.msra.mxu0 0
      %9970 = vmatprep.subr.bf16.mxu0 0
      %9971 = vmatpush1.bf16.msra.mxu0 0
      %9972 = vmatprep.subr.bf16.mxu0 0
      %9973 = vmatpush1.bf16.msra.mxu0 0
      %9974 = vmatprep.subr.bf16.mxu0 0
      %9975 = vmatpush1.bf16.msra.mxu0 0
      %9976 = vmatprep.subr.bf16.mxu0 0
      %9977 = vmatpush1.bf16.msra.mxu0 0
      %9978 = vmatprep.subr.bf16.mxu0 0
      %9979 = vmatpush1.bf16.msra.mxu0 0
      %9980 = vmatprep.subr.bf16.mxu0 0
      %9981 = vmatpush1.bf16.msra.mxu0 0
      %9982 = vmatprep.subr.bf16.mxu0 0
      %9983 = vmatpush1.bf16.msra.mxu0 0
      %9984 = vmatprep.subr.bf16.mxu0 0
      %9985 = vmatpush1.bf16.msra.mxu0 0
      %9986 = vmatprep.subr.bf16.mxu0 0
      %9987 = vmatpush1.bf16.msra.mxu0 0
      %9988 = vmatprep.subr.bf16.mxu0 0
      %9989 = vmatpush1.bf16.msra.mxu0 0
      %9990 = vmatprep.mubr.bf16.mxu0 0
      %9991 = vmatmul.mubr.bf16.gmra.mrb[0].mxu0 %v4847
      %v9992 = vpop.f32.mrb[0].mxu0
      %v9993 = vadd.f32 0.0, %v9992
      %v9994 = vpop.f32.mrb[0].mxu0
      %v9995 = vpop.f32.mrb[0].mxu0
      %v9996 = vpop.f32.mrb[0].mxu0
      %9997 = vdwg.mxu0
      %v9998 = vpack.c.bf16 %v9993, %v9993
      %v9999 = vld [vmem:[%s7077] sm:$0xff]
      %v10000 = vld [vmem:[%s7077 + $0x8] sm:$0xff]
      %v10001 = vld [vmem:[%s7077 + $0x10] sm:$0xff]
      %v10002 = vld [vmem:[%s7077 + $0x18] sm:$0xff]
      %v10003 = vld [vmem:[%s7077 + $0x20] sm:$0xff]
      %v10004 = vld [vmem:[%s7077 + $0x28] sm:$0xff]
      %v10005 = vld [vmem:[%s7077 + $0x30] sm:$0xff]
      %v10006 = vld [vmem:[%s7077 + $0x38] sm:$0xff]
      %v10007 = vld [vmem:[%s7077 + $0x40] sm:$0xff]
      %v10008 = vld [vmem:[%s7077 + $0x48] sm:$0xff]
      %v10009 = vld [vmem:[%s7077 + $0x50] sm:$0xff]
      %v10010 = vld [vmem:[%s7077 + $0x58] sm:$0xff]
      %v10011 = vld [vmem:[%s7077 + $0x60] sm:$0xff]
      %v10012 = vld [vmem:[%s7077 + $0x68] sm:$0xff]
      %v10013 = vld [vmem:[%s7077 + $0x70] sm:$0xff]
      %v10014 = vld [vmem:[%s7077 + $0x78] sm:$0xff]
      %v10031 = vunpack.c.l.b16 %v9999
      %v10032 = vunpack.c.h.b16 %v9999
      %v10033 = vunpack.c.l.b16 %v10000
      %v10034 = vunpack.c.h.b16 %v10000
      %v10035 = vunpack.c.l.b16 %v10001
      %v10036 = vunpack.c.h.b16 %v10001
      %v10037 = vunpack.c.l.b16 %v10002
      %v10038 = vunpack.c.h.b16 %v10002
      %v10039 = vunpack.c.l.b16 %v10003
      %v10040 = vunpack.c.h.b16 %v10003
      %v10041 = vunpack.c.l.b16 %v10004
      %v10042 = vunpack.c.h.b16 %v10004
      %v10043 = vunpack.c.l.b16 %v10005
      %v10044 = vunpack.c.h.b16 %v10005
      %v10045 = vunpack.c.l.b16 %v10006
      %v10046 = vunpack.c.h.b16 %v10006
      %v10047 = vunpack.c.l.b16 %v10007
      %v10048 = vunpack.c.h.b16 %v10007
      %v10049 = vunpack.c.l.b16 %v10008
      %v10050 = vunpack.c.h.b16 %v10008
      %v10051 = vunpack.c.l.b16 %v10009
      %v10052 = vunpack.c.h.b16 %v10009
      %v10053 = vunpack.c.l.b16 %v10010
      %v10054 = vunpack.c.h.b16 %v10010
      %v10055 = vunpack.c.l.b16 %v10011
      %v10056 = vunpack.c.h.b16 %v10011
      %v10057 = vunpack.c.l.b16 %v10012
      %v10058 = vunpack.c.h.b16 %v10012
      %v10059 = vunpack.c.l.b16 %v10013
      %v10060 = vunpack.c.h.b16 %v10013
      %v10061 = vunpack.c.l.b16 %v10014
      %v10062 = vunpack.c.h.b16 %v10014
      %v10063 = vpack.c.b16 %v10033, %v10031
      %v10064 = vpack.c.b16 %v10034, %v10032
      %v10065 = vpack.c.b16 %v10037, %v10035
      %v10066 = vpack.c.b16 %v10038, %v10036
      %v10067 = vpack.c.b16 %v10041, %v10039
      %v10068 = vpack.c.b16 %v10042, %v10040
      %v10069 = vpack.c.b16 %v10045, %v10043
      %v10070 = vpack.c.b16 %v10046, %v10044
      %v10071 = vpack.c.b16 %v10049, %v10047
      %v10072 = vpack.c.b16 %v10050, %v10048
      %v10073 = vpack.c.b16 %v10053, %v10051
      %v10074 = vpack.c.b16 %v10054, %v10052
      %v10075 = vpack.c.b16 %v10057, %v10055
      %v10076 = vpack.c.b16 %v10058, %v10056
      %v10077 = vpack.c.b16 %v10061, %v10059
      %v10078 = vpack.c.b16 %v10062, %v10060
      %10095 = vmatprep.subr.bf16.mxu0 %v10064
      %10096 = vmatpush1.bf16.msra.mxu0 %v10063
      %10097 = vmatprep.subr.bf16.mxu0 %v10066
      %10098 = vmatpush1.bf16.msra.mxu0 %v10065
      %10099 = vmatprep.subr.bf16.mxu0 %v10068
      %10100 = vmatpush1.bf16.msra.mxu0 %v10067
      %10101 = vmatprep.subr.bf16.mxu0 %v10070
      %10102 = vmatpush1.bf16.msra.mxu0 %v10069
      %10103 = vmatprep.subr.bf16.mxu0 %v10072
      %10104 = vmatpush1.bf16.msra.mxu0 %v10071
      %10105 = vmatprep.subr.bf16.mxu0 %v10074
      %10106 = vmatpush1.bf16.msra.mxu0 %v10073
      %10107 = vmatprep.subr.bf16.mxu0 %v10076
      %10108 = vmatpush1.bf16.msra.mxu0 %v10075
      %10109 = vmatprep.subr.bf16.mxu0 %v10078
      %10110 = vmatpush1.bf16.msra.mxu0 %v10077
      %10111 = vmatprep.subr.bf16.mxu0 0
      %10112 = vmatpush1.bf16.msra.mxu0 0
      %10113 = vmatprep.subr.bf16.mxu0 0
      %10114 = vmatpush1.bf16.msra.mxu0 0
      %10115 = vmatprep.subr.bf16.mxu0 0
      %10116 = vmatpush1.bf16.msra.mxu0 0
      %10117 = vmatprep.subr.bf16.mxu0 0
      %10118 = vmatpush1.bf16.msra.mxu0 0
      %10119 = vmatprep.subr.bf16.mxu0 0
      %10120 = vmatpush1.bf16.msra.mxu0 0
      %10121 = vmatprep.subr.bf16.mxu0 0
      %10122 = vmatpush1.bf16.msra.mxu0 0
      %10123 = vmatprep.subr.bf16.mxu0 0
      %10124 = vmatpush1.bf16.msra.mxu0 0
      %10125 = vmatprep.subr.bf16.mxu0 0
      %10126 = vmatpush1.bf16.msra.mxu0 0
      %10127 = vmatprep.mubr.bf16.mxu0 0
      %10128 = vmatmul.mubr.bf16.gmra.mrb[0].mxu0 %v9998
      %v10129 = vpop.f32.mrb[0].mxu0
      %v10130 = vadd.f32 0.0, %v10129
      %v10131 = vpop.f32.mrb[0].mxu0
      %v10132 = vadd.f32 0.0, %v10131
      %v10133 = vpop.f32.mrb[0].mxu0
      %v10134 = vpop.f32.mrb[0].mxu0
      %10135 = vdwg.mxu0
      %v10136 = vadd.f32 %v9956, %v10130
      %v10137 = vadd.f32 %v9957, %v10132
      %v10138 = vadd.f32 %v10136, %v7221
      %v10139 = vadd.f32 %v10137, %v7225
      %v10140 = vmax.f32 %v10138, 0.0
      %v10141 = vmax.f32 %v10139, 0.0
      %v10144 = vcombine.low %v10140, %v10141
      %v10146 = vunpack.c.l.s4 1983009808
      %v10147 = vunpack.c.0.s8 %v10146
      %v10148 = vlaneseq
      %v10149 = vshrl.u32 %v10148, 7
      %v10150 = vsub.s32 %v10147, %v10149
      %v10151 = vrot.slane %v10144, %v10150
      %s10153 = scalar_lea.vmem %s332, 4
      %10154 = vst [vmem:[%s10153] sm:$0xf] %v10151
      %p10155 = scmp.lt.s32.totalorder %s20, 1
      %s10156 = scalar_select %p10155, %s20, 1
      %s10157 = smul.addr %s10156, 4
      %s10158 = smul.addr %s10157, 2
      %s10159 = scalar_lea.vmem %s9, %s10158
      // Predicated region
      $region78: #{conv_encoder_forward.1} parent=55 // pred_check
        %p10160 = pneg %p232
      $region79: #{conv_encoder_forward.1} parent=55 // pred_check_branch
        %10162 = sbr.rel (%p10160) target = $region81
      $region80: #{conv_encoder_forward.1} parent=55 // pred_region
        _
      $region81: #{conv_encoder_forward.1} parent=55 // pred_fallthru
        _
    $region56: #{conv_encoder_forward.1} parent=5 // pred_fallthru
      _
    %p10163 = scmp.le.s32.totalorder 2, %s15
    // Predicated region
    $region82: #{conv_encoder_forward.1} parent=5 // pred_check
      %p10164 = pneg %p10163
    $region83: #{conv_encoder_forward.1} parent=5 // pred_check_branch
      %10166 = sbr.rel (%p10164) target = $region85
    $region84: #{conv_encoder_forward.1} parent=5 // pred_region
      %s10167 = ssub.s32 %s15, 2
      // Predicated region
      $region86: #{conv_encoder_forward.1} parent=84 // pred_check
        %p10168 = pneg %p238
      $region87: #{conv_encoder_forward.1} parent=84 // pred_check_branch
        %10170 = sbr.rel (%p10168) target = $region89
      $region88: #{conv_encoder_forward.1} parent=84 // pred_region
        %p10171 = scmp.lt.s32.totalorder %s21, 1
        %s10172 = scalar_select %p10171, %s21, 1
        %s10173 = smul.addr %s10172, 4
        %s10174 = smul.addr %s10173, 2
        %s10175 = scalar_lea.vmem %s9, %s10174
      $region89: #{conv_encoder_forward.1} parent=84 // pred_fallthru
        _
    $region85: #{conv_encoder_forward.1} parent=5 // pred_fallthru
      _
  $region6: #{conv_encoder_forward.1} parent=0 // loop_footer
    %s19 = sadd.s32 1, %s15
  $region7: #{conv_encoder_forward.1} parent=0 // loop_footer_branch
    %14 = sbr.rel target = $region3
  $region8: #{conv_encoder_forward.1} parent=0 // loop_exit
    _

</llo_original>
